<compile_context>
chip_gen: v7x
topology: tpu7x:2x2x1
jax: 0.10.0
libtpu: 0.0.40
codegen_flags: <defaults>
</compile_context>

<pallas_src>
import functools

import jax
import jax.numpy as jnp
from jax.experimental import pallas as pl
from jax.experimental.pallas import tpu as pltpu

F32 = jnp.float32
BF16 = jnp.bfloat16


def _round_up(x, m):
    return -(-x // m) * m


def _cparams():
    return pltpu.CompilerParams(
        dimension_semantics=("parallel",),
        vmem_limit_bytes=48 * 1024 * 1024,
    )


def _cost(flops, bytes_accessed, transcendentals=0):
    return pl.CostEstimate(flops=int(flops), transcendentals=int(transcendentals),
                           bytes_accessed=int(bytes_accessed))


def _shift(x, d, L):
    """shifted[..., j] = x[..., j + d]; wrapped lanes only reach masked rows."""
    if d == 0:
        return x
    return pltpu.roll(x, (-d) % L, axis=x.ndim - 1)


# --------------------------------------------------------------------------
# Kernels
# --------------------------------------------------------------------------
def _make_upsampler_kernel(H, W, C, Lq):
    """Fused UPSAMPLER ResBlock on one image, (C, Lq) channels-in-sublanes."""
    Wp = W + 1
    shifts = (0, 1, Wp, Wp + 1)                 # flat offsets of (dy, dx) in {0,1}^2
    # per output phase p = 2*pY + pX : (shift slot, ConvT tap index k = kh*3+kw)
    phase_taps = (
        ((0, 4),),
        ((0, 5), (1, 3)),
        ((0, 7), (2, 1)),
        ((0, 8), (1, 6), (2, 2), (3, 0)),
    )

    def kernel(x_ref, m_ref, pro_ref, w1_ref, wt_ref, w3_ref, wsc_ref, fb_ref, o_ref):
        x = x_ref[...]                          # (C, Lq) f32
        m = m_ref[...]                          # (1, Lq) f32, 1 on the image
        pro = pro_ref[...]                      # (C, 6)  f32
        s1, b1 = pro[:, 0:1], pro[:, 1:2]
        s2, b2 = pro[:, 2:3], pro[:, 3:4]       # conv1 bias folded into b2
        s3, b3 = pro[:, 4:5], pro[:, 5:6]       # ConvT bias folded into b3
        # conv1 = BN1 -> ReLU -> 1x1 (prologue fused into the matmul)
        a1 = jnp.maximum(x * s1 + b1, 0.0).astype(BF16)
        h1 = jnp.dot(w1_ref[...], a1, preferred_element_type=F32)
        # conv2 prologue = BN2 -> ReLU; pad / lane-pad positions forced back to 0
        a2 = jnp.maximum(h1 * s2 + b2, 0.0) * m
        # shortcut: Conv1x1+BN at low res == nearest-upsampled value at every phase
        sc = jnp.dot(wsc_ref[...], x.astype(BF16), preferred_element_type=F32) + fb_ref[...]
        # lane-rolled copies of a2 (XLU), shared across phases, each cast once
        rolled = tuple(_shift(a2, d, Lq).astype(BF16) for d in shifts)
        for p, taps in enumerate(phase_taps):
            s, k = taps[0]
            acc = jnp.dot(wt_ref[k], rolled[s], preferred_element_type=F32)
            for s, k in taps[1:]:
                acc = acc + jnp.dot(wt_ref[k], rolled[s], preferred_element_type=F32)
            # conv3 = BN3 -> ReLU -> 1x1, plus shortcut; masked so the host-side
            # phase interleave lands directly in the decoder's zero-padded layout
            a3 = jnp.maximum(acc * s3 + b3, 0.0).astype(BF16)
            o = jnp.dot(w3_ref[...], a3, preferred_element_type=F32) + sc
            o_ref[p] = (o * m).astype(o_ref.dtype)

    return kernel


def _make_decoder_kernel(W2, L2, Cs, Ci, first):
    """Fused DECODER ResBlock on one image in the flat (H2+2)x(W2+2) lane layout.

    first=True additionally fuses the attention gate and takes (skip, x1)
    separately (virtual concat via column-split conv1 / shortcut weights).
    """
    row = W2 + 2
    tap_d = tuple((ky - 1) * row + (kx - 1) for ky in range(3) for kx in range(3))

    def conv3x3(a2, w2_ref):
        # 9 shifted-tap matmuls; shifts are XLU lane rolls of the (zero-masked)
        # a2, so wrapped lanes never reach a live output position.
        acc = jnp.dot(w2_ref[4], a2.astype(BF16), preferred_element_type=F32)
        for k in range(9):
            if k == 4:
                continue
            a2s = _shift(a2, tap_d[k], L2).astype(BF16)
            acc = acc + jnp.dot(w2_ref[k], a2s, preferred_element_type=F32)
        return acc

    if first:
        def kernel(skip_ref, x1_ref, m_ref, wx_ref, wg_ref, ab_ref, wp_ref, pb_ref,
                   pro_ref, w1s_ref, w1x_ref, w2_ref, w3_ref, wss_ref, wsx_ref,
                   fb_ref, o_ref):
            m = m_ref[...]                      # (1, L2)
            pro = pro_ref[...]                  # (Cs+Ci, 6)
            s1, b1 = pro[:, 0:1], pro[:, 1:2]
            s2, b2 = pro[:, 2:3], pro[:, 3:4]   # conv1 bias folded into b2
            s3, b3 = pro[:, 4:5], pro[:, 5:6]   # conv2 bias folded into b3
            skip = skip_ref[...]                # (Cs, L2) f32
            x1 = x1_ref[...]                    # (Ci, L2) f32
            skb = skip.astype(BF16)
            x1b = x1.astype(BF16)
            # ---- fused attention gate (1x1 convs + BN folded into the weights)
            r = jnp.maximum(
                jnp.dot(wx_ref[...], skb, preferred_element_type=F32)
                + jnp.dot(wg_ref[...], x1b, preferred_element_type=F32)
                + ab_ref[...], 0.0)             # (inner, L2)
            psi = jax.nn.sigmoid(
                jnp.sum(r * wp_ref[...], axis=0, keepdims=True) + pb_ref[...])
            s1g = skip * psi                    # gated skip channels (Cs, L2)
            # ---- conv1 = BN -> ReLU -> 1x1 over the virtual concat(s1g, x1)
            a1s = jnp.maximum(s1g * s1[:Cs] + b1[:Cs], 0.0).astype(BF16)
            a1x = jnp.maximum(x1 * s1[Cs:] + b1[Cs:], 0.0).astype(BF16)
            h1 = (jnp.dot(w1s_ref[...], a1s, preferred_element_type=F32)
                  + jnp.dot(w1x_ref[...], a1x, preferred_element_type=F32))
            a2 = jnp.maximum(h1 * s2 + b2, 0.0) * m
            acc = conv3x3(a2, w2_ref)
            a3 = jnp.maximum(acc * s3 + b3, 0.0).astype(BF16)
            # residual shortcut Conv1x1+BN on the virtual concat
            res = (jnp.dot(wss_ref[...], s1g.astype(BF16), preferred_element_type=F32)
                   + jnp.dot(wsx_ref[...], x1b, preferred_element_type=F32))
            y = jnp.dot(w3_ref[...], a3, preferred_element_type=F32) + fb_ref[...] + res
            o_ref[...] = (y * m).astype(o_ref.dtype)
        return kernel

    def kernel(x_ref, m_ref, pro_ref, w1_ref, w2_ref, w3_ref, fb_ref, o_ref):
        m = m_ref[...]
        pro = pro_ref[...]
        s1, b1 = pro[:, 0:1], pro[:, 1:2]
        s2, b2 = pro[:, 2:3], pro[:, 3:4]
        s3, b3 = pro[:, 4:5], pro[:, 5:6]
        x = x_ref[...]                          # (ci, L2) f32, ci == co
        a1 = jnp.maximum(x * s1 + b1, 0.0).astype(BF16)
        h1 = jnp.dot(w1_ref[...], a1, preferred_element_type=F32)
        a2 = jnp.maximum(h1 * s2 + b2, 0.0) * m
        acc = conv3x3(a2, w2_ref)
        a3 = jnp.maximum(acc * s3 + b3, 0.0).astype(BF16)
        y = jnp.dot(w3_ref[...], a3, preferred_element_type=F32) + fb_ref[...] + x
        o_ref[...] = (y * m).astype(o_ref.dtype)

    return kernel


# --------------------------------------------------------------------------
# pallas_call wrappers
# --------------------------------------------------------------------------
def upsampler_resblock(x_nchw, p):
    """Fused UPSAMPLER ResBlock: (N,C,H,W) -> (N, C, (2H+2)*(2W+2)) flat layout
    (image at the top-left, zeros in the last two rows / cols)."""
    N, C, H, W = x_nchw.shape
    PQ = (H + 1) * (W + 1)
    Lq = _round_up(PQ, 128)
    # low-res lane-dense flat layout with a zero row/col on the bottom/right
    xq = jnp.pad(x_nchw, ((0, 0), (0, 0), (0, 1), (0, 1))).reshape(N, C, PQ)
    xq = jnp.pad(xq, ((0, 0), (0, 0), (0, Lq - PQ)))
    m = jnp.pad(jnp.ones((H, W), F32), ((0, 1), (0, 1))).reshape(1, PQ)
    m = jnp.pad(m, ((0, 0), (0, Lq - PQ)))
    full2 = lambda n: (0, 0)
    out = pl.pallas_call(
        _make_upsampler_kernel(H, W, C, Lq),
        out_shape=jax.ShapeDtypeStruct((N, 4, C, Lq), F32),
        grid=(N,),
        in_specs=[
            pl.BlockSpec((None, C, Lq), lambda n: (n, 0, 0)),
            pl.BlockSpec((1, Lq), full2),
            pl.BlockSpec((C, 6), full2),
            pl.BlockSpec((C, C), full2),
            pl.BlockSpec((9, C, C), lambda n: (0, 0, 0)),
            pl.BlockSpec((C, C), full2),
            pl.BlockSpec((C, C), full2),
            pl.BlockSpec((C, 1), full2),
        ],
        out_specs=pl.BlockSpec((None, 4, C, Lq), lambda n: (n, 0, 0, 0)),
        compiler_params=_cparams(),
        cost_estimate=_cost(flops=2 * N * 15 * C * C * Lq,
                            bytes_accessed=4 * N * 5 * C * Lq),
    )(xq, m, p["pro"], p["w1"], p["wt9"], p["w3"], p["wsc"], p["fb"])
    # interleave the 4 masked phase planes -> decoder's zero-padded flat layout
    o = out[:, :, :, :PQ].reshape(N, 2, 2, C, H + 1, W + 1)
    o = jnp.transpose(o, (0, 3, 4, 1, 5, 2)).reshape(N, C, (2 * H + 2) * (2 * W + 2))
    return o


def decoder_resblock_first(skipd, x1d, m, attn, pd, W2, L2):
    """First DECODER ResBlock with the attention gate and concat fused in."""
    N, Cs, _ = skipd.shape
    Ci = x1d.shape[1]
    C0 = Cs + Ci
    co = pd["w3"].shape[0]
    inner = attn["wx"].shape[0]
    full2 = lambda n: (0, 0)
    return pl.pallas_call(
        _make_decoder_kernel(W2, L2, Cs, Ci, first=True),
        out_shape=jax.ShapeDtypeStruct((N, co, L2), F32),
        grid=(N,),
        in_specs=[
            pl.BlockSpec((None, Cs, L2), lambda n: (n, 0, 0)),
            pl.BlockSpec((None, Ci, L2), lambda n: (n, 0, 0)),
            pl.BlockSpec((1, L2), full2),
            pl.BlockSpec((inner, Cs), full2),
            pl.BlockSpec((inner, Ci), full2),
            pl.BlockSpec((inner, 1), full2),
            pl.BlockSpec((inner, 1), full2),
            pl.BlockSpec((1, 1), full2),
            pl.BlockSpec((C0, 6), full2),
            pl.BlockSpec((C0, Cs), full2),
            pl.BlockSpec((C0, Ci), full2),
            pl.BlockSpec((9, C0, C0), lambda n: (0, 0, 0)),
            pl.BlockSpec((co, C0), full2),
            pl.BlockSpec((co, Cs), full2),
            pl.BlockSpec((co, Ci), full2),
            pl.BlockSpec((co, 1), full2),
        ],
        out_specs=pl.BlockSpec((None, co, L2), lambda n: (n, 0, 0)),
        compiler_params=_cparams(),
        cost_estimate=_cost(flops=2 * N * L2 * (inner * C0 + 11 * C0 * C0),
                            bytes_accessed=4 * N * L2 * (C0 + co + 1),
                            transcendentals=N * L2),
    )(skipd, x1d, m, attn["wx"], attn["wg"], attn["b"], attn["wp"], attn["bp"],
      pd["pro"], pd["w1s"], pd["w1x"], pd["w2"], pd["w3"], pd["wscs"], pd["wscx"],
      pd["fb"])


def decoder_resblock(h, m, pd, W2, L2):
    """DECODER ResBlock with identity shortcut (in_channels == out_channels)."""
    N, ci, _ = h.shape
    co = pd["w3"].shape[0]
    full2 = lambda n: (0, 0)
    return pl.pallas_call(
        _make_decoder_kernel(W2, L2, 0, ci, first=False),
        out_shape=jax.ShapeDtypeStruct((N, co, L2), F32),
        grid=(N,),
        in_specs=[
            pl.BlockSpec((None, ci, L2), lambda n: (n, 0, 0)),
            pl.BlockSpec((1, L2), full2),
            pl.BlockSpec((ci, 6), full2),
            pl.BlockSpec((ci, ci), full2),
            pl.BlockSpec((9, ci, ci), lambda n: (0, 0, 0)),
            pl.BlockSpec((co, ci), full2),
            pl.BlockSpec((co, 1), full2),
        ],
        out_specs=pl.BlockSpec((None, co, L2), lambda n: (n, 0, 0)),
        compiler_params=_cparams(),
        cost_estimate=_cost(flops=2 * N * L2 * 11 * ci * ci,
                            bytes_accessed=4 * N * L2 * (ci + co + 1)),
    )(h, m, pd["pro"], pd["w1"], pd["w2"], pd["w3"], pd["fb"])


# --------------------------------------------------------------------------
# BatchNorm folding & parameter packing (host side, done once)
# --------------------------------------------------------------------------
def bn_fold(bn, conv_bias=None, eps=1e-5):
    gamma, beta, mean, var = bn
    s = gamma / jnp.sqrt(var + eps)
    b = beta - mean * s
    if conv_bias is not None:
        b = b + conv_bias * s
    return s, b


def pack_upsampler(up):
    s1, b1 = bn_fold(up["bn1"])
    s2, b2 = bn_fold(up["bn2"])
    s3, b3 = bn_fold(up["bn3"])
    b2 = up["b1"] * s2 + b2                     # fold conv1 bias into BN2 bias
    b3 = up["bt"] * s3 + b3                     # fold ConvTranspose bias into BN3 bias
    pro = jnp.stack([s1, b1, s2, b2, s3, b3], axis=1)                     # (C, 6)
    w1 = up["w1"][:, :, 0, 0].astype(BF16)                                # (out, in)
    # ConvTranspose2d weight (in, out, kh, kw): tap (kh,kw) transposed to (out, in)
    wt9 = jnp.stack([up["wt"][:, :, kh, kw].T for kh in range(3) for kw in range(3)],
                    axis=0).astype(BF16)                                  # (9, out, in)
    w3 = up["w3"][:, :, 0, 0].astype(BF16)
    ssc, bsc = bn_fold(up["sc_bn"], conv_bias=up["sc_b"])
    wsc = (up["sc_w"][:, :, 0, 0] * ssc[:, None]).astype(BF16)
    fb = (up["b3"] + bsc)[:, None]                                        # (C, 1)
    return dict(pro=pro, w1=w1, wt9=wt9, w3=w3, wsc=wsc, fb=fb)


def pack_attention(at):
    sx, bx = bn_fold(at["x_bn"], conv_bias=at["x_b"])
    sg, bg = bn_fold(at["g_bn"], conv_bias=at["g_b"])
    wx = (at["x_w"][:, :, 0, 0] * sx[:, None]).astype(BF16)               # (inner, Cs)
    wg = (at["g_w"][:, :, 0, 0] * sg[:, None]).astype(BF16)               # (inner, Ci)
    sp, bp = bn_fold(at["psi_bn"], conv_bias=at["psi_b"])
    wp = (at["psi_w"][:, :, 0, 0] * sp[:, None]).T                        # (inner, 1) f32
    return dict(wx=wx, wg=wg, b=(bx + bg)[:, None], wp=wp, bp=bp.reshape(1, 1))


def pack_decoder(d, Cs=None):
    """Cs is set for the first decoder (fused attention, column-split weights)."""
    ci = d["b1"].shape[0]
    co = d["w3"].shape[0]
    s1, b1 = bn_fold(d["bn1"])
    s2, b2 = bn_fold(d["bn2"])
    s3, b3 = bn_fold(d["bn3"])
    b2 = d["b1"] * s2 + b2                      # fold conv1 bias into BN2 bias
    b3 = d["b2"] * s3 + b3                      # fold conv2 bias into BN3 bias
    pro = jnp.stack([s1, b1, s2, b2, s3, b3], axis=1)                     # (ci, 6)
    w1 = d["w1"][:, :, 0, 0].astype(BF16)                                 # (ci, ci)
    w2 = jnp.stack([d["w2"][:, :, ky, kx] for ky in range(3) for kx in range(3)],
                   axis=0).astype(BF16)                                   # (9, ci, ci)
    w3 = d["w3"][:, :, 0, 0].astype(BF16)                                 # (co, ci)
    if d["sc_w"] is not None:
        ssc, bsc = bn_fold(d["sc_bn"], conv_bias=d["sc_b"])
        wsc = d["sc_w"][:, :, 0, 0] * ssc[:, None]
        fb = (d["b3"] + bsc)[:, None]
    else:
        wsc = jnp.eye(co, ci, dtype=F32)        # identity shortcut as a 1x1 conv
        fb = d["b3"][:, None]
    out = dict(pro=pro, w3=w3, fb=fb, w2=w2)
    if Cs is None:
        out.update(w1=w1)                       # identity shortcut added in f32
    else:
        out.update(w1s=w1[:, :Cs], w1x=w1[:, Cs:],
                   wscs=wsc[:, :Cs].astype(BF16), wscx=wsc[:, Cs:].astype(BF16))
    return out


def pack_params(raw, C_skip):
    decs = [pack_decoder(raw["decoders"][0], Cs=C_skip)]
    decs += [pack_decoder(d) for d in raw["decoders"][1:]]
    return dict(up=pack_upsampler(raw["upsampler"]),
                attn=pack_attention(raw["attention"]),
                dec=decs)


# --------------------------------------------------------------------------
# Parameter initialization (deterministic, synthetic; PyTorch-shaped weights)
# --------------------------------------------------------------------------
def init_params(key, C_in, C_skip, C_out, blocks):
    kiter = iter(jax.random.split(key, 256))
    nk = lambda: next(kiter)

    def conv2d(ci, co, k):                      # Conv2d weight (co, ci, k, k)
        w = 0.2 * jax.random.normal(nk(), (co, ci, k, k), F32)
        b = 0.1 * jax.random.normal(nk(), (co,), F32)
        return w, b

    def convT2d(ci, co, k):                     # ConvTranspose2d weight (ci, co, k, k)
        w = 0.2 * jax.random.normal(nk(), (ci, co, k, k), F32)
        b = 0.1 * jax.random.normal(nk(), (co,), F32)
        return w, b

    def bn(c):
        g = 1.0 + 0.1 * jax.random.normal(nk(), (c,), F32)
        be = 0.1 * jax.random.normal(nk(), (c,), F32)
        m = 0.1 * jax.random.normal(nk(), (c,), F32)
        v = 0.9 + 0.2 * jax.random.uniform(nk(), (c,), F32)
        return g, be, m, v

    sc_w, sc_b = conv2d(C_in, C_in, 1)
    w1, b1 = conv2d(C_in, C_in, 1)
    wt, bt = convT2d(C_in, C_in, 3)
    w3, b3 = conv2d(C_in, C_in, 1)
    upsampler = dict(sc_w=sc_w, sc_b=sc_b, sc_bn=bn(C_in),
                     bn1=bn(C_in), w1=w1, b1=b1,
                     bn2=bn(C_in), wt=wt, bt=bt,
                     bn3=bn(C_in), w3=w3, b3=b3)

    xw, xb = conv2d(C_skip, C_skip, 1)
    gw, gb = conv2d(C_in, C_skip, 1)
    pw, pb = conv2d(C_skip, 1, 1)
    attention = dict(x_w=xw, x_b=xb, x_bn=bn(C_skip),
                     g_w=gw, g_b=gb, g_bn=bn(C_skip),
                     psi_w=pw, psi_b=pb, psi_bn=bn(1))

    decoders = []
    chans = [(C_in + C_skip, C_out)] + [(C_out, C_out)] * (blocks - 2)
    for ci, co in chans:
        d = {}
        if ci != co:
            sw, sb = conv2d(ci, co, 1)
            d.update(sc_w=sw, sc_b=sb, sc_bn=bn(co))
        else:
            d.update(sc_w=None)
        dw1, db1 = conv2d(ci, ci, 1)
        dw2, db2 = conv2d(ci, ci, 3)
        dw3, db3 = conv2d(ci, co, 1)
        d.update(bn1=bn(ci), w1=dw1, b1=db1,
                 bn2=bn(ci), w2=dw2, b2=db2,
                 bn3=bn(ci), w3=dw3, b3=db3)
        decoders.append(d)

    return dict(upsampler=upsampler, attention=attention, decoders=decoders)


# --------------------------------------------------------------------------
# Forward pass
# --------------------------------------------------------------------------
def upstack_forward(params, x_nchw, skip_nchw):
    N, C_in, H, W = x_nchw.shape
    _, C_skip, H2, W2 = skip_nchw.shape
    assert H2 == 2 * H and W2 == 2 * W
    PP = (H2 + 2) * (W2 + 2)
    L2 = _round_up(PP, 128)
    x = x_nchw.astype(F32)
    skip = skip_nchw.astype(F32)

    # fused upsampler ResBlock -> (N, C_in, PP) flat decoder layout
    x1 = upsampler_resblock(x, params["up"])
    x1 = jnp.pad(x1, ((0, 0), (0, 0), (0, L2 - PP)))

    # skip in the same flat layout (zeros in the last 2 rows / cols + lane pad)
    skipd = jnp.pad(skip, ((0, 0), (0, 0), (0, 2), (0, 2))).reshape(N, C_skip, PP)
    skipd = jnp.pad(skipd, ((0, 0), (0, 0), (0, L2 - PP)))

    m = jnp.pad(jnp.ones((H2, W2), F32), ((0, 2), (0, 2))).reshape(1, PP)
    m = jnp.pad(m, ((0, 0), (0, L2 - PP)))

    # first decoder (attention gate + concat fused in), then the rest
    h = decoder_resblock_first(skipd, x1, m, params["attn"], params["dec"][0], W2, L2)
    for pd in params["dec"][1:]:
        h = decoder_resblock(h, m, pd, W2, L2)

    co = h.shape[1]
    out = h[:, :, :PP].reshape(N, co, H2 + 2, W2 + 2)[:, :, :H2, :W2]
    return out                                  # NCHW


# --------------------------------------------------------------------------
# Pure-JAX reference (inference-mode BN), used for the correctness check
# --------------------------------------------------------------------------
def _bn_ref(x, bn, eps=1e-5):
    g, b, m, v = bn
    s = g / jnp.sqrt(v + eps)
    return x * s[None, :, None, None] + (b - m * s)[None, :, None, None]


def _conv1x1_ref(x, w, b):
    y = jnp.einsum("nihw,oi->nohw", x, w[:, :, 0, 0],
                   precision=jax.lax.Precision.HIGHEST)
    return y + b[None, :, None, None]


def _conv3x3_ref(x, w, b):
    y = jax.lax.conv_general_dilated(
        x, w, window_strides=(1, 1), padding=((1, 1), (1, 1)),
        dimension_numbers=("NCHW", "OIHW", "NCHW"),
        precision=jax.lax.Precision.HIGHEST)
    return y + b[None, :, None, None]


def _convt3x3s2_ref(x, w, b):
    wf = jnp.transpose(w[:, :, ::-1, ::-1], (1, 0, 2, 3))
    y = jax.lax.conv_general_dilated(
        x, wf, window_strides=(1, 1), padding=((1, 2), (1, 2)),
        lhs_dilation=(2, 2), dimension_numbers=("NCHW", "OIHW", "NCHW"),
        precision=jax.lax.Precision.HIGHEST)
    return y + b[None, :, None, None]


def _upsample2_ref(x):
    return jnp.repeat(jnp.repeat(x, 2, axis=2), 2, axis=3)


def _resblock_upsampler_ref(p, x):
    sc = _bn_ref(_conv1x1_ref(_upsample2_ref(x), p["sc_w"], p["sc_b"]), p["sc_bn"])
    x1 = _conv1x1_ref(jnp.maximum(_bn_ref(x, p["bn1"]), 0.0), p["w1"], p["b1"])
    x2 = _convt3x3s2_ref(jnp.maximum(_bn_ref(x1, p["bn2"]), 0.0), p["wt"], p["bt"])
    x3 = _conv1x1_ref(jnp.maximum(_bn_ref(x2, p["bn3"]), 0.0), p["w3"], p["b3"])
    return x3 + sc


def _attention_ref(p, x, g):
    x1 = _bn_ref(_conv1x1_ref(x, p["x_w"], p["x_b"]), p["x_bn"])
    g1 = _bn_ref(_conv1x1_ref(g, p["g_w"], p["g_b"]), p["g_bn"])
    r = jnp.maximum(x1 + g1, 0.0)
    psi = jax.nn.sigmoid(_bn_ref(_conv1x1_ref(r, p["psi_w"], p["psi_b"]), p["psi_bn"]))
    return x * psi


def _resblock_decoder_ref(p, x):
    if p["sc_w"] is not None:
        sc = _bn_ref(_conv1x1_ref(x, p["sc_w"], p["sc_b"]), p["sc_bn"])
    else:
        sc = x
    x1 = _conv1x1_ref(jnp.maximum(_bn_ref(x, p["bn1"]), 0.0), p["w1"], p["b1"])
    x2 = _conv3x3_ref(jnp.maximum(_bn_ref(x1, p["bn2"]), 0.0), p["w2"], p["b2"])
    x3 = _conv1x1_ref(jnp.maximum(_bn_ref(x2, p["bn3"]), 0.0), p["w3"], p["b3"])
    return x3 + sc


def upstack_reference(raw, x, skip):
    x1 = _resblock_upsampler_ref(raw["upsampler"], x)
    s1 = _attention_ref(raw["attention"], skip, x1)
    h = jnp.concatenate([s1, x1], axis=1)
    for d in raw["decoders"]:
        h = _resblock_decoder_ref(d, h)
    return h


# --------------------------------------------------------------------------
if __name__ == "__main__":
    # UpStack(in_channels=8, skip_channels=4, out_channels=8, blocks=3)
    N, C_in, C_skip, C_out, blocks = 2, 8, 4, 8, 3
    H = W = 8            # x spatial; skip spatial is 2x
    key = jax.random.PRNGKey(0)
    kx, ks, kp = jax.random.split(key, 3)
    x = jax.random.normal(kx, (N, C_in, H, W), F32)
    skip = jax.random.normal(ks, (N, C_skip, 2 * H, 2 * W), F32)

    raw = init_params(kp, C_in, C_skip, C_out, blocks)
    params = pack_params(raw, C_skip)

    fwd = jax.jit(functools.partial(upstack_forward, params))
    out = jax.block_until_ready(fwd(x, skip))
    assert out.shape == (N, C_out, 2 * H, 2 * W), out.shape
    assert bool(jnp.all(jnp.isfinite(out)))

    ref = upstack_reference(raw, x, skip)
    scale = float(jnp.max(jnp.abs(ref)))
    err = float(jnp.max(jnp.abs(out - ref)))
    assert err <= 5e-2 * scale + 5e-2, (err, scale)   # bf16-weight tolerance
    print("KERNEL_OK")
</pallas_src>

<mosaic_0001>
module attributes {stable_mosaic.version = 11 : i64} {
  func.func @kernel(%arg0: i32, %arg1: memref<1x8x128xf32, #tpu.memory_space<vmem>>, %arg2: memref<1x128xf32, #tpu.memory_space<vmem>>, %arg3: memref<8x6xf32, #tpu.memory_space<vmem>>, %arg4: memref<8x8xbf16, #tpu.memory_space<vmem>>, %arg5: memref<9x8x8xbf16, #tpu.memory_space<vmem>>, %arg6: memref<8x8xbf16, #tpu.memory_space<vmem>>, %arg7: memref<8x8xbf16, #tpu.memory_space<vmem>>, %arg8: memref<8x1xf32, #tpu.memory_space<vmem>>, %arg9: memref<1x4x8x128xf32, #tpu.memory_space<vmem>>) attributes {dimension_semantics = [#tpu.dimension_semantics<parallel>], iteration_bounds = array<i64: 2>, scalar_prefetch = 0 : i64, scratch_operands = 0 : i64, tpu.core_type = #tpu.core_type<tc>, window_params = [{transform_indices = @transform_0, window_bounds = array<i64: 1, 8, 128>}, {pipeline_mode = #tpu.pipeline_mode<synchronous>, transform_indices = @transform_1, window_bounds = array<i64: 1, 128>}, {pipeline_mode = #tpu.pipeline_mode<synchronous>, transform_indices = @transform_2, window_bounds = array<i64: 8, 6>}, {pipeline_mode = #tpu.pipeline_mode<synchronous>, transform_indices = @transform_3, window_bounds = array<i64: 8, 8>}, {pipeline_mode = #tpu.pipeline_mode<synchronous>, transform_indices = @transform_4, window_bounds = array<i64: 9, 8, 8>}, {pipeline_mode = #tpu.pipeline_mode<synchronous>, transform_indices = @transform_5, window_bounds = array<i64: 8, 8>}, {pipeline_mode = #tpu.pipeline_mode<synchronous>, transform_indices = @transform_6, window_bounds = array<i64: 8, 8>}, {pipeline_mode = #tpu.pipeline_mode<synchronous>, transform_indices = @transform_7, window_bounds = array<i64: 8, 1>}, {transform_indices = @transform_8, window_bounds = array<i64: 1, 4, 8, 128>}]} {
    %c0 = arith.constant 0 : index
    %c0_0 = arith.constant 0 : index
    %c0_1 = arith.constant 0 : index
    %0 = vector.load %arg1[%c0, %c0_0, %c0_1] : memref<1x8x128xf32, #tpu.memory_space<vmem>>, vector<1x8x128xf32>
    %1 = vector.shape_cast %0 : vector<1x8x128xf32> to vector<8x128xf32>
    %c0_2 = arith.constant 0 : index
    %c0_3 = arith.constant 0 : index
    %2 = vector.load %arg2[%c0_2, %c0_3] : memref<1x128xf32, #tpu.memory_space<vmem>>, vector<1x128xf32>
    %c0_4 = arith.constant 0 : index
    %c0_5 = arith.constant 0 : index
    %3 = vector.load %arg3[%c0_4, %c0_5] : memref<8x6xf32, #tpu.memory_space<vmem>>, vector<8x6xf32>
    %4 = vector.extract_strided_slice %3 {offsets = [0, 0], sizes = [8, 1], strides = [1, 1]} : vector<8x6xf32> to vector<8x1xf32>
    %5 = vector.extract_strided_slice %3 {offsets = [0, 1], sizes = [8, 1], strides = [1, 1]} : vector<8x6xf32> to vector<8x1xf32>
    %6 = vector.extract_strided_slice %3 {offsets = [0, 2], sizes = [8, 1], strides = [1, 1]} : vector<8x6xf32> to vector<8x1xf32>
    %7 = vector.extract_strided_slice %3 {offsets = [0, 3], sizes = [8, 1], strides = [1, 1]} : vector<8x6xf32> to vector<8x1xf32>
    %8 = vector.extract_strided_slice %3 {offsets = [0, 4], sizes = [8, 1], strides = [1, 1]} : vector<8x6xf32> to vector<8x1xf32>
    %9 = vector.extract_strided_slice %3 {offsets = [0, 5], sizes = [8, 1], strides = [1, 1]} : vector<8x6xf32> to vector<8x1xf32>
    %10 = vector.broadcast %4 : vector<8x1xf32> to vector<8x128xf32>
    %11 = arith.mulf %1, %10 : vector<8x128xf32>
    %12 = vector.broadcast %5 : vector<8x1xf32> to vector<8x128xf32>
    %13 = arith.addf %11, %12 : vector<8x128xf32>
    %cst = arith.constant 0.000000e+00 : f32
    %14 = vector.broadcast %cst : f32 to vector<8x128xf32>
    %15 = arith.maximumf %13, %14 : vector<8x128xf32>
    %16 = arith.truncf %15 : vector<8x128xf32> to vector<8x128xbf16>
    %c0_6 = arith.constant 0 : index
    %c0_7 = arith.constant 0 : index
    %17 = vector.load %arg4[%c0_6, %c0_7] : memref<8x8xbf16, #tpu.memory_space<vmem>>, vector<8x8xbf16>
    %cst_8 = arith.constant dense<0.000000e+00> : vector<8x128xf32>
    %18 = tpu.matmul %17, %16, %cst_8 {dimension_numbers = #tpu.dot_dimension_numbers<[1], [0], [0], [1], [0, 0, 1, 1], [], []>} : vector<8x8xbf16>, vector<8x128xbf16>, vector<8x128xf32> -> vector<8x128xf32>
    %19 = vector.broadcast %6 : vector<8x1xf32> to vector<8x128xf32>
    %20 = arith.mulf %18, %19 : vector<8x128xf32>
    %21 = vector.broadcast %7 : vector<8x1xf32> to vector<8x128xf32>
    %22 = arith.addf %20, %21 : vector<8x128xf32>
    %cst_9 = arith.constant 0.000000e+00 : f32
    %23 = vector.broadcast %cst_9 : f32 to vector<8x128xf32>
    %24 = arith.maximumf %22, %23 : vector<8x128xf32>
    %25 = vector.broadcast %2 : vector<1x128xf32> to vector<8x128xf32>
    %26 = arith.mulf %24, %25 : vector<8x128xf32>
    %c0_10 = arith.constant 0 : index
    %c0_11 = arith.constant 0 : index
    %27 = vector.load %arg7[%c0_10, %c0_11] : memref<8x8xbf16, #tpu.memory_space<vmem>>, vector<8x8xbf16>
    %28 = arith.truncf %1 : vector<8x128xf32> to vector<8x128xbf16>
    %cst_12 = arith.constant dense<0.000000e+00> : vector<8x128xf32>
    %29 = tpu.matmul %27, %28, %cst_12 {dimension_numbers = #tpu.dot_dimension_numbers<[1], [0], [0], [1], [0, 0, 1, 1], [], []>} : vector<8x8xbf16>, vector<8x128xbf16>, vector<8x128xf32> -> vector<8x128xf32>
    %c0_13 = arith.constant 0 : index
    %c0_14 = arith.constant 0 : index
    %30 = vector.load %arg8[%c0_13, %c0_14] : memref<8x1xf32, #tpu.memory_space<vmem>>, vector<8x1xf32>
    %31 = vector.broadcast %30 : vector<8x1xf32> to vector<8x128xf32>
    %32 = arith.addf %29, %31 : vector<8x128xf32>
    %33 = arith.truncf %26 : vector<8x128xf32> to vector<8x128xbf16>
    %c127_i32 = arith.constant 127 : i32
    %34 = tpu.dynamic_rotate %26 by %c127_i32 dim 1 : vector<8x128xf32>, i32 -> vector<8x128xf32>
    %35 = arith.truncf %34 : vector<8x128xf32> to vector<8x128xbf16>
    %c119_i32 = arith.constant 119 : i32
    %36 = tpu.dynamic_rotate %26 by %c119_i32 dim 1 : vector<8x128xf32>, i32 -> vector<8x128xf32>
    %37 = arith.truncf %36 : vector<8x128xf32> to vector<8x128xbf16>
    %c118_i32 = arith.constant 118 : i32
    %38 = tpu.dynamic_rotate %26 by %c118_i32 dim 1 : vector<8x128xf32>, i32 -> vector<8x128xf32>
    %39 = arith.truncf %38 : vector<8x128xf32> to vector<8x128xbf16>
    %c4 = arith.constant 4 : index
    %c0_15 = arith.constant 0 : index
    %c0_16 = arith.constant 0 : index
    %40 = vector.load %arg5[%c4, %c0_15, %c0_16] : memref<9x8x8xbf16, #tpu.memory_space<vmem>>, vector<1x8x8xbf16>
    %41 = vector.shape_cast %40 : vector<1x8x8xbf16> to vector<8x8xbf16>
    %cst_17 = arith.constant dense<0.000000e+00> : vector<8x128xf32>
    %42 = tpu.matmul %41, %33, %cst_17 {dimension_numbers = #tpu.dot_dimension_numbers<[1], [0], [0], [1], [0, 0, 1, 1], [], []>} : vector<8x8xbf16>, vector<8x128xbf16>, vector<8x128xf32> -> vector<8x128xf32>
    %43 = vector.broadcast %8 : vector<8x1xf32> to vector<8x128xf32>
    %44 = arith.mulf %42, %43 : vector<8x128xf32>
    %45 = vector.broadcast %9 : vector<8x1xf32> to vector<8x128xf32>
    %46 = arith.addf %44, %45 : vector<8x128xf32>
    %cst_18 = arith.constant 0.000000e+00 : f32
    %47 = vector.broadcast %cst_18 : f32 to vector<8x128xf32>
    %48 = arith.maximumf %46, %47 : vector<8x128xf32>
    %49 = arith.truncf %48 : vector<8x128xf32> to vector<8x128xbf16>
    %c0_19 = arith.constant 0 : index
    %c0_20 = arith.constant 0 : index
    %50 = vector.load %arg6[%c0_19, %c0_20] : memref<8x8xbf16, #tpu.memory_space<vmem>>, vector<8x8xbf16>
    %cst_21 = arith.constant dense<0.000000e+00> : vector<8x128xf32>
    %51 = tpu.matmul %50, %49, %cst_21 {dimension_numbers = #tpu.dot_dimension_numbers<[1], [0], [0], [1], [0, 0, 1, 1], [], []>} : vector<8x8xbf16>, vector<8x128xbf16>, vector<8x128xf32> -> vector<8x128xf32>
    %52 = arith.addf %51, %32 : vector<8x128xf32>
    %53 = vector.broadcast %2 : vector<1x128xf32> to vector<8x128xf32>
    %54 = arith.mulf %52, %53 : vector<8x128xf32>
    %c0_22 = arith.constant 0 : index
    %c0_23 = arith.constant 0 : index
    %c0_24 = arith.constant 0 : index
    %c0_25 = arith.constant 0 : index
    %55 = vector.load %arg9[%c0_22, %c0_23, %c0_24, %c0_25] : memref<1x4x8x128xf32, #tpu.memory_space<vmem>>, vector<1x1x8x128xf32>
    %56 = vector.shape_cast %55 : vector<1x1x8x128xf32> to vector<8x128xf32>
    %57 = vector.shape_cast %54 : vector<8x128xf32> to vector<1x1x8x128xf32>
    tpu.vector_store %arg9[%c0_22, %c0_23, %c0_24, %c0_25], %57 {strides = array<i32>} : memref<1x4x8x128xf32, #tpu.memory_space<vmem>>, vector<1x1x8x128xf32>,
    %c5 = arith.constant 5 : index
    %c0_26 = arith.constant 0 : index
    %c0_27 = arith.constant 0 : index
    %58 = vector.load %arg5[%c5, %c0_26, %c0_27] : memref<9x8x8xbf16, #tpu.memory_space<vmem>>, vector<1x8x8xbf16>
    %59 = vector.shape_cast %58 : vector<1x8x8xbf16> to vector<8x8xbf16>
    %cst_28 = arith.constant dense<0.000000e+00> : vector<8x128xf32>
    %60 = tpu.matmul %59, %33, %cst_28 {dimension_numbers = #tpu.dot_dimension_numbers<[1], [0], [0], [1], [0, 0, 1, 1], [], []>} : vector<8x8xbf16>, vector<8x128xbf16>, vector<8x128xf32> -> vector<8x128xf32>
    %c3 = arith.constant 3 : index
    %c0_29 = arith.constant 0 : index
    %c0_30 = arith.constant 0 : index
    %61 = vector.load %arg5[%c3, %c0_29, %c0_30] : memref<9x8x8xbf16, #tpu.memory_space<vmem>>, vector<1x8x8xbf16>
    %62 = vector.shape_cast %61 : vector<1x8x8xbf16> to vector<8x8xbf16>
    %cst_31 = arith.constant dense<0.000000e+00> : vector<8x128xf32>
    %63 = tpu.matmul %62, %35, %cst_31 {dimension_numbers = #tpu.dot_dimension_numbers<[1], [0], [0], [1], [0, 0, 1, 1], [], []>} : vector<8x8xbf16>, vector<8x128xbf16>, vector<8x128xf32> -> vector<8x128xf32>
    %64 = arith.addf %60, %63 : vector<8x128xf32>
    %65 = vector.broadcast %8 : vector<8x1xf32> to vector<8x128xf32>
    %66 = arith.mulf %64, %65 : vector<8x128xf32>
    %67 = vector.broadcast %9 : vector<8x1xf32> to vector<8x128xf32>
    %68 = arith.addf %66, %67 : vector<8x128xf32>
    %cst_32 = arith.constant 0.000000e+00 : f32
    %69 = vector.broadcast %cst_32 : f32 to vector<8x128xf32>
    %70 = arith.maximumf %68, %69 : vector<8x128xf32>
    %71 = arith.truncf %70 : vector<8x128xf32> to vector<8x128xbf16>
    %c0_33 = arith.constant 0 : index
    %c0_34 = arith.constant 0 : index
    %72 = vector.load %arg6[%c0_33, %c0_34] : memref<8x8xbf16, #tpu.memory_space<vmem>>, vector<8x8xbf16>
    %cst_35 = arith.constant dense<0.000000e+00> : vector<8x128xf32>
    %73 = tpu.matmul %72, %71, %cst_35 {dimension_numbers = #tpu.dot_dimension_numbers<[1], [0], [0], [1], [0, 0, 1, 1], [], []>} : vector<8x8xbf16>, vector<8x128xbf16>, vector<8x128xf32> -> vector<8x128xf32>
    %74 = arith.addf %73, %32 : vector<8x128xf32>
    %75 = vector.broadcast %2 : vector<1x128xf32> to vector<8x128xf32>
    %76 = arith.mulf %74, %75 : vector<8x128xf32>
    %c0_36 = arith.constant 0 : index
    %c1 = arith.constant 1 : index
    %c0_37 = arith.constant 0 : index
    %c0_38 = arith.constant 0 : index
    %77 = vector.load %arg9[%c0_36, %c1, %c0_37, %c0_38] : memref<1x4x8x128xf32, #tpu.memory_space<vmem>>, vector<1x1x8x128xf32>
    %78 = vector.shape_cast %77 : vector<1x1x8x128xf32> to vector<8x128xf32>
    %79 = vector.shape_cast %76 : vector<8x128xf32> to vector<1x1x8x128xf32>
    tpu.vector_store %arg9[%c0_36, %c1, %c0_37, %c0_38], %79 {strides = array<i32>} : memref<1x4x8x128xf32, #tpu.memory_space<vmem>>, vector<1x1x8x128xf32>,
    %c7 = arith.constant 7 : index
    %c0_39 = arith.constant 0 : index
    %c0_40 = arith.constant 0 : index
    %80 = vector.load %arg5[%c7, %c0_39, %c0_40] : memref<9x8x8xbf16, #tpu.memory_space<vmem>>, vector<1x8x8xbf16>
    %81 = vector.shape_cast %80 : vector<1x8x8xbf16> to vector<8x8xbf16>
    %cst_41 = arith.constant dense<0.000000e+00> : vector<8x128xf32>
    %82 = tpu.matmul %81, %33, %cst_41 {dimension_numbers = #tpu.dot_dimension_numbers<[1], [0], [0], [1], [0, 0, 1, 1], [], []>} : vector<8x8xbf16>, vector<8x128xbf16>, vector<8x128xf32> -> vector<8x128xf32>
    %c1_42 = arith.constant 1 : index
    %c0_43 = arith.constant 0 : index
    %c0_44 = arith.constant 0 : index
    %83 = vector.load %arg5[%c1_42, %c0_43, %c0_44] : memref<9x8x8xbf16, #tpu.memory_space<vmem>>, vector<1x8x8xbf16>
    %84 = vector.shape_cast %83 : vector<1x8x8xbf16> to vector<8x8xbf16>
    %cst_45 = arith.constant dense<0.000000e+00> : vector<8x128xf32>
    %85 = tpu.matmul %84, %37, %cst_45 {dimension_numbers = #tpu.dot_dimension_numbers<[1], [0], [0], [1], [0, 0, 1, 1], [], []>} : vector<8x8xbf16>, vector<8x128xbf16>, vector<8x128xf32> -> vector<8x128xf32>
    %86 = arith.addf %82, %85 : vector<8x128xf32>
    %87 = vector.broadcast %8 : vector<8x1xf32> to vector<8x128xf32>
    %88 = arith.mulf %86, %87 : vector<8x128xf32>
    %89 = vector.broadcast %9 : vector<8x1xf32> to vector<8x128xf32>
    %90 = arith.addf %88, %89 : vector<8x128xf32>
    %cst_46 = arith.constant 0.000000e+00 : f32
    %91 = vector.broadcast %cst_46 : f32 to vector<8x128xf32>
    %92 = arith.maximumf %90, %91 : vector<8x128xf32>
    %93 = arith.truncf %92 : vector<8x128xf32> to vector<8x128xbf16>
    %c0_47 = arith.constant 0 : index
    %c0_48 = arith.constant 0 : index
    %94 = vector.load %arg6[%c0_47, %c0_48] : memref<8x8xbf16, #tpu.memory_space<vmem>>, vector<8x8xbf16>
    %cst_49 = arith.constant dense<0.000000e+00> : vector<8x128xf32>
    %95 = tpu.matmul %94, %93, %cst_49 {dimension_numbers = #tpu.dot_dimension_numbers<[1], [0], [0], [1], [0, 0, 1, 1], [], []>} : vector<8x8xbf16>, vector<8x128xbf16>, vector<8x128xf32> -> vector<8x128xf32>
    %96 = arith.addf %95, %32 : vector<8x128xf32>
    %97 = vector.broadcast %2 : vector<1x128xf32> to vector<8x128xf32>
    %98 = arith.mulf %96, %97 : vector<8x128xf32>
    %c0_50 = arith.constant 0 : index
    %c2 = arith.constant 2 : index
    %c0_51 = arith.constant 0 : index
    %c0_52 = arith.constant 0 : index
    %99 = vector.load %arg9[%c0_50, %c2, %c0_51, %c0_52] : memref<1x4x8x128xf32, #tpu.memory_space<vmem>>, vector<1x1x8x128xf32>
    %100 = vector.shape_cast %99 : vector<1x1x8x128xf32> to vector<8x128xf32>
    %101 = vector.shape_cast %98 : vector<8x128xf32> to vector<1x1x8x128xf32>
    tpu.vector_store %arg9[%c0_50, %c2, %c0_51, %c0_52], %101 {strides = array<i32>} : memref<1x4x8x128xf32, #tpu.memory_space<vmem>>, vector<1x1x8x128xf32>,
    %c8 = arith.constant 8 : index
    %c0_53 = arith.constant 0 : index
    %c0_54 = arith.constant 0 : index
    %102 = vector.load %arg5[%c8, %c0_53, %c0_54] : memref<9x8x8xbf16, #tpu.memory_space<vmem>>, vector<1x8x8xbf16>
    %103 = vector.shape_cast %102 : vector<1x8x8xbf16> to vector<8x8xbf16>
    %cst_55 = arith.constant dense<0.000000e+00> : vector<8x128xf32>
    %104 = tpu.matmul %103, %33, %cst_55 {dimension_numbers = #tpu.dot_dimension_numbers<[1], [0], [0], [1], [0, 0, 1, 1], [], []>} : vector<8x8xbf16>, vector<8x128xbf16>, vector<8x128xf32> -> vector<8x128xf32>
    %c6 = arith.constant 6 : index
    %c0_56 = arith.constant 0 : index
    %c0_57 = arith.constant 0 : index
    %105 = vector.load %arg5[%c6, %c0_56, %c0_57] : memref<9x8x8xbf16, #tpu.memory_space<vmem>>, vector<1x8x8xbf16>
    %106 = vector.shape_cast %105 : vector<1x8x8xbf16> to vector<8x8xbf16>
    %cst_58 = arith.constant dense<0.000000e+00> : vector<8x128xf32>
    %107 = tpu.matmul %106, %35, %cst_58 {dimension_numbers = #tpu.dot_dimension_numbers<[1], [0], [0], [1], [0, 0, 1, 1], [], []>} : vector<8x8xbf16>, vector<8x128xbf16>, vector<8x128xf32> -> vector<8x128xf32>
    %108 = arith.addf %104, %107 : vector<8x128xf32>
    %c2_59 = arith.constant 2 : index
    %c0_60 = arith.constant 0 : index
    %c0_61 = arith.constant 0 : index
    %109 = vector.load %arg5[%c2_59, %c0_60, %c0_61] : memref<9x8x8xbf16, #tpu.memory_space<vmem>>, vector<1x8x8xbf16>
    %110 = vector.shape_cast %109 : vector<1x8x8xbf16> to vector<8x8xbf16>
    %cst_62 = arith.constant dense<0.000000e+00> : vector<8x128xf32>
    %111 = tpu.matmul %110, %37, %cst_62 {dimension_numbers = #tpu.dot_dimension_numbers<[1], [0], [0], [1], [0, 0, 1, 1], [], []>} : vector<8x8xbf16>, vector<8x128xbf16>, vector<8x128xf32> -> vector<8x128xf32>
    %112 = arith.addf %108, %111 : vector<8x128xf32>
    %c0_63 = arith.constant 0 : index
    %c0_64 = arith.constant 0 : index
    %c0_65 = arith.constant 0 : index
    %113 = vector.load %arg5[%c0_63, %c0_64, %c0_65] : memref<9x8x8xbf16, #tpu.memory_space<vmem>>, vector<1x8x8xbf16>
    %114 = vector.shape_cast %113 : vector<1x8x8xbf16> to vector<8x8xbf16>
    %cst_66 = arith.constant dense<0.000000e+00> : vector<8x128xf32>
    %115 = tpu.matmul %114, %39, %cst_66 {dimension_numbers = #tpu.dot_dimension_numbers<[1], [0], [0], [1], [0, 0, 1, 1], [], []>} : vector<8x8xbf16>, vector<8x128xbf16>, vector<8x128xf32> -> vector<8x128xf32>
    %116 = arith.addf %112, %115 : vector<8x128xf32>
    %117 = vector.broadcast %8 : vector<8x1xf32> to vector<8x128xf32>
    %118 = arith.mulf %116, %117 : vector<8x128xf32>
    %119 = vector.broadcast %9 : vector<8x1xf32> to vector<8x128xf32>
    %120 = arith.addf %118, %119 : vector<8x128xf32>
    %cst_67 = arith.constant 0.000000e+00 : f32
    %121 = vector.broadcast %cst_67 : f32 to vector<8x128xf32>
    %122 = arith.maximumf %120, %121 : vector<8x128xf32>
    %123 = arith.truncf %122 : vector<8x128xf32> to vector<8x128xbf16>
    %c0_68 = arith.constant 0 : index
    %c0_69 = arith.constant 0 : index
    %124 = vector.load %arg6[%c0_68, %c0_69] : memref<8x8xbf16, #tpu.memory_space<vmem>>, vector<8x8xbf16>
    %cst_70 = arith.constant dense<0.000000e+00> : vector<8x128xf32>
    %125 = tpu.matmul %124, %123, %cst_70 {dimension_numbers = #tpu.dot_dimension_numbers<[1], [0], [0], [1], [0, 0, 1, 1], [], []>} : vector<8x8xbf16>, vector<8x128xbf16>, vector<8x128xf32> -> vector<8x128xf32>
    %126 = arith.addf %125, %32 : vector<8x128xf32>
    %127 = vector.broadcast %2 : vector<1x128xf32> to vector<8x128xf32>
    %128 = arith.mulf %126, %127 : vector<8x128xf32>
    %c0_71 = arith.constant 0 : index
    %c3_72 = arith.constant 3 : index
    %c0_73 = arith.constant 0 : index
    %c0_74 = arith.constant 0 : index
    %129 = vector.load %arg9[%c0_71, %c3_72, %c0_73, %c0_74] : memref<1x4x8x128xf32, #tpu.memory_space<vmem>>, vector<1x1x8x128xf32>
    %130 = vector.shape_cast %129 : vector<1x1x8x128xf32> to vector<8x128xf32>
    %131 = vector.shape_cast %128 : vector<8x128xf32> to vector<1x1x8x128xf32>
    tpu.vector_store %arg9[%c0_71, %c3_72, %c0_73, %c0_74], %131 {strides = array<i32>} : memref<1x4x8x128xf32, #tpu.memory_space<vmem>>, vector<1x1x8x128xf32>,
    return
  }
  func.func @transform_0(%arg0: i32) -> (i32, i32, i32) {
    %c0_i32 = arith.constant 0 : i32
    %c0_i32_0 = arith.constant 0 : i32
    %c0_i32_1 = arith.constant 0 : i32
    return %arg0, %c0_i32, %c0_i32_0 : i32, i32, i32
  }
  func.func @transform_1(%arg0: i32) -> (i32, i32) {
    %c0_i32 = arith.constant 0 : i32
    %c0_i32_0 = arith.constant 0 : i32
    %c0_i32_1 = arith.constant 0 : i32
    return %c0_i32, %c0_i32_0 : i32, i32
  }
  func.func @transform_2(%arg0: i32) -> (i32, i32) {
    %c0_i32 = arith.constant 0 : i32
    %c0_i32_0 = arith.constant 0 : i32
    %c0_i32_1 = arith.constant 0 : i32
    return %c0_i32, %c0_i32_0 : i32, i32
  }
  func.func @transform_3(%arg0: i32) -> (i32, i32) {
    %c0_i32 = arith.constant 0 : i32
    %c0_i32_0 = arith.constant 0 : i32
    %c0_i32_1 = arith.constant 0 : i32
    return %c0_i32, %c0_i32_0 : i32, i32
  }
  func.func @transform_4(%arg0: i32) -> (i32, i32, i32) {
    %c0_i32 = arith.constant 0 : i32
    %c0_i32_0 = arith.constant 0 : i32
    %c0_i32_1 = arith.constant 0 : i32
    %c0_i32_2 = arith.constant 0 : i32
    return %c0_i32, %c0_i32_0, %c0_i32_1 : i32, i32, i32
  }
  func.func @transform_5(%arg0: i32) -> (i32, i32) {
    %c0_i32 = arith.constant 0 : i32
    %c0_i32_0 = arith.constant 0 : i32
    %c0_i32_1 = arith.constant 0 : i32
    return %c0_i32, %c0_i32_0 : i32, i32
  }
  func.func @transform_6(%arg0: i32) -> (i32, i32) {
    %c0_i32 = arith.constant 0 : i32
    %c0_i32_0 = arith.constant 0 : i32
    %c0_i32_1 = arith.constant 0 : i32
    return %c0_i32, %c0_i32_0 : i32, i32
  }
  func.func @transform_7(%arg0: i32) -> (i32, i32) {
    %c0_i32 = arith.constant 0 : i32
    %c0_i32_0 = arith.constant 0 : i32
    %c0_i32_1 = arith.constant 0 : i32
    return %c0_i32, %c0_i32_0 : i32, i32
  }
  func.func @transform_8(%arg0: i32) -> (i32, i32, i32, i32) {
    %c0_i32 = arith.constant 0 : i32
    %c0_i32_0 = arith.constant 0 : i32
    %c0_i32_1 = arith.constant 0 : i32
    %c0_i32_2 = arith.constant 0 : i32
    return %arg0, %c0_i32, %c0_i32_0, %c0_i32_1 : i32, i32, i32, i32
  }
}

module attributes {stable_mosaic.version = 11 : i64} {
  func.func @kernel(%arg0: i32, %arg1: memref<1x8x384xf32, #tpu.memory_space<vmem>>, %arg2: memref<1x384xf32, #tpu.memory_space<vmem>>, %arg3: memref<8x6xf32, #tpu.memory_space<vmem>>, %arg4: memref<8x8xbf16, #tpu.memory_space<vmem>>, %arg5: memref<9x8x8xbf16, #tpu.memory_space<vmem>>, %arg6: memref<8x8xbf16, #tpu.memory_space<vmem>>, %arg7: memref<8x1xf32, #tpu.memory_space<vmem>>, %arg8: memref<1x8x384xf32, #tpu.memory_space<vmem>>) attributes {dimension_semantics = [#tpu.dimension_semantics<parallel>], iteration_bounds = array<i64: 2>, scalar_prefetch = 0 : i64, scratch_operands = 0 : i64, tpu.core_type = #tpu.core_type<tc>, window_params = [{transform_indices = @transform_0, window_bounds = array<i64: 1, 8, 384>}, {pipeline_mode = #tpu.pipeline_mode<synchronous>, transform_indices = @transform_1, window_bounds = array<i64: 1, 384>}, {pipeline_mode = #tpu.pipeline_mode<synchronous>, transform_indices = @transform_2, window_bounds = array<i64: 8, 6>}, {pipeline_mode = #tpu.pipeline_mode<synchronous>, transform_indices = @transform_3, window_bounds = array<i64: 8, 8>}, {pipeline_mode = #tpu.pipeline_mode<synchronous>, transform_indices = @transform_4, window_bounds = array<i64: 9, 8, 8>}, {pipeline_mode = #tpu.pipeline_mode<synchronous>, transform_indices = @transform_5, window_bounds = array<i64: 8, 8>}, {pipeline_mode = #tpu.pipeline_mode<synchronous>, transform_indices = @transform_6, window_bounds = array<i64: 8, 1>}, {transform_indices = @transform_7, window_bounds = array<i64: 1, 8, 384>}]} {
    %c0 = arith.constant 0 : index
    %c0_0 = arith.constant 0 : index
    %0 = vector.load %arg2[%c0, %c0_0] : memref<1x384xf32, #tpu.memory_space<vmem>>, vector<1x384xf32>
    %c0_1 = arith.constant 0 : index
    %c0_2 = arith.constant 0 : index
    %1 = vector.load %arg3[%c0_1, %c0_2] : memref<8x6xf32, #tpu.memory_space<vmem>>, vector<8x6xf32>
    %2 = vector.extract_strided_slice %1 {offsets = [0, 0], sizes = [8, 1], strides = [1, 1]} : vector<8x6xf32> to vector<8x1xf32>
    %3 = vector.extract_strided_slice %1 {offsets = [0, 1], sizes = [8, 1], strides = [1, 1]} : vector<8x6xf32> to vector<8x1xf32>
    %4 = vector.extract_strided_slice %1 {offsets = [0, 2], sizes = [8, 1], strides = [1, 1]} : vector<8x6xf32> to vector<8x1xf32>
    %5 = vector.extract_strided_slice %1 {offsets = [0, 3], sizes = [8, 1], strides = [1, 1]} : vector<8x6xf32> to vector<8x1xf32>
    %6 = vector.extract_strided_slice %1 {offsets = [0, 4], sizes = [8, 1], strides = [1, 1]} : vector<8x6xf32> to vector<8x1xf32>
    %7 = vector.extract_strided_slice %1 {offsets = [0, 5], sizes = [8, 1], strides = [1, 1]} : vector<8x6xf32> to vector<8x1xf32>
    %c0_3 = arith.constant 0 : index
    %c0_4 = arith.constant 0 : index
    %c0_5 = arith.constant 0 : index
    %8 = vector.load %arg1[%c0_3, %c0_4, %c0_5] : memref<1x8x384xf32, #tpu.memory_space<vmem>>, vector<1x8x384xf32>
    %9 = vector.shape_cast %8 : vector<1x8x384xf32> to vector<8x384xf32>
    %10 = vector.broadcast %2 : vector<8x1xf32> to vector<8x384xf32>
    %11 = arith.mulf %9, %10 : vector<8x384xf32>
    %12 = vector.broadcast %3 : vector<8x1xf32> to vector<8x384xf32>
    %13 = arith.addf %11, %12 : vector<8x384xf32>
    %cst = arith.constant 0.000000e+00 : f32
    %14 = vector.broadcast %cst : f32 to vector<8x384xf32>
    %15 = arith.maximumf %13, %14 : vector<8x384xf32>
    %16 = arith.truncf %15 : vector<8x384xf32> to vector<8x384xbf16>
    %c0_6 = arith.constant 0 : index
    %c0_7 = arith.constant 0 : index
    %17 = vector.load %arg4[%c0_6, %c0_7] : memref<8x8xbf16, #tpu.memory_space<vmem>>, vector<8x8xbf16>
    %cst_8 = arith.constant dense<0.000000e+00> : vector<8x384xf32>
    %18 = tpu.matmul %17, %16, %cst_8 {dimension_numbers = #tpu.dot_dimension_numbers<[1], [0], [0], [1], [0, 0, 1, 1], [], []>} : vector<8x8xbf16>, vector<8x384xbf16>, vector<8x384xf32> -> vector<8x384xf32>
    %19 = vector.broadcast %4 : vector<8x1xf32> to vector<8x384xf32>
    %20 = arith.mulf %18, %19 : vector<8x384xf32>
    %21 = vector.broadcast %5 : vector<8x1xf32> to vector<8x384xf32>
    %22 = arith.addf %20, %21 : vector<8x384xf32>
    %cst_9 = arith.constant 0.000000e+00 : f32
    %23 = vector.broadcast %cst_9 : f32 to vector<8x384xf32>
    %24 = arith.maximumf %22, %23 : vector<8x384xf32>
    %25 = vector.broadcast %0 : vector<1x384xf32> to vector<8x384xf32>
    %26 = arith.mulf %24, %25 : vector<8x384xf32>
    %c4 = arith.constant 4 : index
    %c0_10 = arith.constant 0 : index
    %c0_11 = arith.constant 0 : index
    %27 = vector.load %arg5[%c4, %c0_10, %c0_11] : memref<9x8x8xbf16, #tpu.memory_space<vmem>>, vector<1x8x8xbf16>
    %28 = vector.shape_cast %27 : vector<1x8x8xbf16> to vector<8x8xbf16>
    %29 = arith.truncf %26 : vector<8x384xf32> to vector<8x384xbf16>
    %cst_12 = arith.constant dense<0.000000e+00> : vector<8x384xf32>
    %30 = tpu.matmul %28, %29, %cst_12 {dimension_numbers = #tpu.dot_dimension_numbers<[1], [0], [0], [1], [0, 0, 1, 1], [], []>} : vector<8x8xbf16>, vector<8x384xbf16>, vector<8x384xf32> -> vector<8x384xf32>
    %c19_i32 = arith.constant 19 : i32
    %31 = tpu.dynamic_rotate %26 by %c19_i32 dim 1 : vector<8x384xf32>, i32 -> vector<8x384xf32>
    %32 = arith.truncf %31 : vector<8x384xf32> to vector<8x384xbf16>
    %c0_13 = arith.constant 0 : index
    %c0_14 = arith.constant 0 : index
    %c0_15 = arith.constant 0 : index
    %33 = vector.load %arg5[%c0_13, %c0_14, %c0_15] : memref<9x8x8xbf16, #tpu.memory_space<vmem>>, vector<1x8x8xbf16>
    %34 = vector.shape_cast %33 : vector<1x8x8xbf16> to vector<8x8xbf16>
    %cst_16 = arith.constant dense<0.000000e+00> : vector<8x384xf32>
    %35 = tpu.matmul %34, %32, %cst_16 {dimension_numbers = #tpu.dot_dimension_numbers<[1], [0], [0], [1], [0, 0, 1, 1], [], []>} : vector<8x8xbf16>, vector<8x384xbf16>, vector<8x384xf32> -> vector<8x384xf32>
    %36 = arith.addf %30, %35 : vector<8x384xf32>
    %c18_i32 = arith.constant 18 : i32
    %37 = tpu.dynamic_rotate %26 by %c18_i32 dim 1 : vector<8x384xf32>, i32 -> vector<8x384xf32>
    %38 = arith.truncf %37 : vector<8x384xf32> to vector<8x384xbf16>
    %c1 = arith.constant 1 : index
    %c0_17 = arith.constant 0 : index
    %c0_18 = arith.constant 0 : index
    %39 = vector.load %arg5[%c1, %c0_17, %c0_18] : memref<9x8x8xbf16, #tpu.memory_space<vmem>>, vector<1x8x8xbf16>
    %40 = vector.shape_cast %39 : vector<1x8x8xbf16> to vector<8x8xbf16>
    %cst_19 = arith.constant dense<0.000000e+00> : vector<8x384xf32>
    %41 = tpu.matmul %40, %38, %cst_19 {dimension_numbers = #tpu.dot_dimension_numbers<[1], [0], [0], [1], [0, 0, 1, 1], [], []>} : vector<8x8xbf16>, vector<8x384xbf16>, vector<8x384xf32> -> vector<8x384xf32>
    %42 = arith.addf %36, %41 : vector<8x384xf32>
    %c17_i32 = arith.constant 17 : i32
    %43 = tpu.dynamic_rotate %26 by %c17_i32 dim 1 : vector<8x384xf32>, i32 -> vector<8x384xf32>
    %44 = arith.truncf %43 : vector<8x384xf32> to vector<8x384xbf16>
    %c2 = arith.constant 2 : index
    %c0_20 = arith.constant 0 : index
    %c0_21 = arith.constant 0 : index
    %45 = vector.load %arg5[%c2, %c0_20, %c0_21] : memref<9x8x8xbf16, #tpu.memory_space<vmem>>, vector<1x8x8xbf16>
    %46 = vector.shape_cast %45 : vector<1x8x8xbf16> to vector<8x8xbf16>
    %cst_22 = arith.constant dense<0.000000e+00> : vector<8x384xf32>
    %47 = tpu.matmul %46, %44, %cst_22 {dimension_numbers = #tpu.dot_dimension_numbers<[1], [0], [0], [1], [0, 0, 1, 1], [], []>} : vector<8x8xbf16>, vector<8x384xbf16>, vector<8x384xf32> -> vector<8x384xf32>
    %48 = arith.addf %42, %47 : vector<8x384xf32>
    %c1_i32 = arith.constant 1 : i32
    %49 = tpu.dynamic_rotate %26 by %c1_i32 dim 1 : vector<8x384xf32>, i32 -> vector<8x384xf32>
    %50 = arith.truncf %49 : vector<8x384xf32> to vector<8x384xbf16>
    %c3 = arith.constant 3 : index
    %c0_23 = arith.constant 0 : index
    %c0_24 = arith.constant 0 : index
    %51 = vector.load %arg5[%c3, %c0_23, %c0_24] : memref<9x8x8xbf16, #tpu.memory_space<vmem>>, vector<1x8x8xbf16>
    %52 = vector.shape_cast %51 : vector<1x8x8xbf16> to vector<8x8xbf16>
    %cst_25 = arith.constant dense<0.000000e+00> : vector<8x384xf32>
    %53 = tpu.matmul %52, %50, %cst_25 {dimension_numbers = #tpu.dot_dimension_numbers<[1], [0], [0], [1], [0, 0, 1, 1], [], []>} : vector<8x8xbf16>, vector<8x384xbf16>, vector<8x384xf32> -> vector<8x384xf32>
    %54 = arith.addf %48, %53 : vector<8x384xf32>
    %c383_i32 = arith.constant 383 : i32
    %55 = tpu.dynamic_rotate %26 by %c383_i32 dim 1 : vector<8x384xf32>, i32 -> vector<8x384xf32>
    %56 = arith.truncf %55 : vector<8x384xf32> to vector<8x384xbf16>
    %c5 = arith.constant 5 : index
    %c0_26 = arith.constant 0 : index
    %c0_27 = arith.constant 0 : index
    %57 = vector.load %arg5[%c5, %c0_26, %c0_27] : memref<9x8x8xbf16, #tpu.memory_space<vmem>>, vector<1x8x8xbf16>
    %58 = vector.shape_cast %57 : vector<1x8x8xbf16> to vector<8x8xbf16>
    %cst_28 = arith.constant dense<0.000000e+00> : vector<8x384xf32>
    %59 = tpu.matmul %58, %56, %cst_28 {dimension_numbers = #tpu.dot_dimension_numbers<[1], [0], [0], [1], [0, 0, 1, 1], [], []>} : vector<8x8xbf16>, vector<8x384xbf16>, vector<8x384xf32> -> vector<8x384xf32>
    %60 = arith.addf %54, %59 : vector<8x384xf32>
    %c367_i32 = arith.constant 367 : i32
    %61 = tpu.dynamic_rotate %26 by %c367_i32 dim 1 : vector<8x384xf32>, i32 -> vector<8x384xf32>
    %62 = arith.truncf %61 : vector<8x384xf32> to vector<8x384xbf16>
    %c6 = arith.constant 6 : index
    %c0_29 = arith.constant 0 : index
    %c0_30 = arith.constant 0 : index
    %63 = vector.load %arg5[%c6, %c0_29, %c0_30] : memref<9x8x8xbf16, #tpu.memory_space<vmem>>, vector<1x8x8xbf16>
    %64 = vector.shape_cast %63 : vector<1x8x8xbf16> to vector<8x8xbf16>
    %cst_31 = arith.constant dense<0.000000e+00> : vector<8x384xf32>
    %65 = tpu.matmul %64, %62, %cst_31 {dimension_numbers = #tpu.dot_dimension_numbers<[1], [0], [0], [1], [0, 0, 1, 1], [], []>} : vector<8x8xbf16>, vector<8x384xbf16>, vector<8x384xf32> -> vector<8x384xf32>
    %66 = arith.addf %60, %65 : vector<8x384xf32>
    %c366_i32 = arith.constant 366 : i32
    %67 = tpu.dynamic_rotate %26 by %c366_i32 dim 1 : vector<8x384xf32>, i32 -> vector<8x384xf32>
    %68 = arith.truncf %67 : vector<8x384xf32> to vector<8x384xbf16>
    %c7 = arith.constant 7 : index
    %c0_32 = arith.constant 0 : index
    %c0_33 = arith.constant 0 : index
    %69 = vector.load %arg5[%c7, %c0_32, %c0_33] : memref<9x8x8xbf16, #tpu.memory_space<vmem>>, vector<1x8x8xbf16>
    %70 = vector.shape_cast %69 : vector<1x8x8xbf16> to vector<8x8xbf16>
    %cst_34 = arith.constant dense<0.000000e+00> : vector<8x384xf32>
    %71 = tpu.matmul %70, %68, %cst_34 {dimension_numbers = #tpu.dot_dimension_numbers<[1], [0], [0], [1], [0, 0, 1, 1], [], []>} : vector<8x8xbf16>, vector<8x384xbf16>, vector<8x384xf32> -> vector<8x384xf32>
    %72 = arith.addf %66, %71 : vector<8x384xf32>
    %c365_i32 = arith.constant 365 : i32
    %73 = tpu.dynamic_rotate %26 by %c365_i32 dim 1 : vector<8x384xf32>, i32 -> vector<8x384xf32>
    %74 = arith.truncf %73 : vector<8x384xf32> to vector<8x384xbf16>
    %c8 = arith.constant 8 : index
    %c0_35 = arith.constant 0 : index
    %c0_36 = arith.constant 0 : index
    %75 = vector.load %arg5[%c8, %c0_35, %c0_36] : memref<9x8x8xbf16, #tpu.memory_space<vmem>>, vector<1x8x8xbf16>
    %76 = vector.shape_cast %75 : vector<1x8x8xbf16> to vector<8x8xbf16>
    %cst_37 = arith.constant dense<0.000000e+00> : vector<8x384xf32>
    %77 = tpu.matmul %76, %74, %cst_37 {dimension_numbers = #tpu.dot_dimension_numbers<[1], [0], [0], [1], [0, 0, 1, 1], [], []>} : vector<8x8xbf16>, vector<8x384xbf16>, vector<8x384xf32> -> vector<8x384xf32>
    %78 = arith.addf %72, %77 : vector<8x384xf32>
    %79 = vector.broadcast %6 : vector<8x1xf32> to vector<8x384xf32>
    %80 = arith.mulf %78, %79 : vector<8x384xf32>
    %81 = vector.broadcast %7 : vector<8x1xf32> to vector<8x384xf32>
    %82 = arith.addf %80, %81 : vector<8x384xf32>
    %cst_38 = arith.constant 0.000000e+00 : f32
    %83 = vector.broadcast %cst_38 : f32 to vector<8x384xf32>
    %84 = arith.maximumf %82, %83 : vector<8x384xf32>
    %85 = arith.truncf %84 : vector<8x384xf32> to vector<8x384xbf16>
    %c0_39 = arith.constant 0 : index
    %c0_40 = arith.constant 0 : index
    %86 = vector.load %arg6[%c0_39, %c0_40] : memref<8x8xbf16, #tpu.memory_space<vmem>>, vector<8x8xbf16>
    %cst_41 = arith.constant dense<0.000000e+00> : vector<8x384xf32>
    %87 = tpu.matmul %86, %85, %cst_41 {dimension_numbers = #tpu.dot_dimension_numbers<[1], [0], [0], [1], [0, 0, 1, 1], [], []>} : vector<8x8xbf16>, vector<8x384xbf16>, vector<8x384xf32> -> vector<8x384xf32>
    %c0_42 = arith.constant 0 : index
    %c0_43 = arith.constant 0 : index
    %88 = vector.load %arg7[%c0_42, %c0_43] : memref<8x1xf32, #tpu.memory_space<vmem>>, vector<8x1xf32>
    %89 = vector.broadcast %88 : vector<8x1xf32> to vector<8x384xf32>
    %90 = arith.addf %87, %89 : vector<8x384xf32>
    %91 = arith.addf %90, %9 : vector<8x384xf32>
    %92 = vector.broadcast %0 : vector<1x384xf32> to vector<8x384xf32>
    %93 = arith.mulf %91, %92 : vector<8x384xf32>
    %c0_44 = arith.constant 0 : index
    %c0_45 = arith.constant 0 : index
    %c0_46 = arith.constant 0 : index
    %94 = vector.load %arg8[%c0_44, %c0_45, %c0_46] : memref<1x8x384xf32, #tpu.memory_space<vmem>>, vector<1x8x384xf32>
    %95 = vector.shape_cast %94 : vector<1x8x384xf32> to vector<8x384xf32>
    %96 = vector.shape_cast %93 : vector<8x384xf32> to vector<1x8x384xf32>
    tpu.vector_store %arg8[%c0_44, %c0_45, %c0_46], %96 {strides = array<i32>} : memref<1x8x384xf32, #tpu.memory_space<vmem>>, vector<1x8x384xf32>,
    return
  }
  func.func @transform_0(%arg0: i32) -> (i32, i32, i32) {
    %c0_i32 = arith.constant 0 : i32
    %c0_i32_0 = arith.constant 0 : i32
    %c0_i32_1 = arith.constant 0 : i32
    return %arg0, %c0_i32, %c0_i32_0 : i32, i32, i32
  }
  func.func @transform_1(%arg0: i32) -> (i32, i32) {
    %c0_i32 = arith.constant 0 : i32
    %c0_i32_0 = arith.constant 0 : i32
    %c0_i32_1 = arith.constant 0 : i32
    return %c0_i32, %c0_i32_0 : i32, i32
  }
  func.func @transform_2(%arg0: i32) -> (i32, i32) {
    %c0_i32 = arith.constant 0 : i32
    %c0_i32_0 = arith.constant 0 : i32
    %c0_i32_1 = arith.constant 0 : i32
    return %c0_i32, %c0_i32_0 : i32, i32
  }
  func.func @transform_3(%arg0: i32) -> (i32, i32) {
    %c0_i32 = arith.constant 0 : i32
    %c0_i32_0 = arith.constant 0 : i32
    %c0_i32_1 = arith.constant 0 : i32
    return %c0_i32, %c0_i32_0 : i32, i32
  }
  func.func @transform_4(%arg0: i32) -> (i32, i32, i32) {
    %c0_i32 = arith.constant 0 : i32
    %c0_i32_0 = arith.constant 0 : i32
    %c0_i32_1 = arith.constant 0 : i32
    %c0_i32_2 = arith.constant 0 : i32
    return %c0_i32, %c0_i32_0, %c0_i32_1 : i32, i32, i32
  }
  func.func @transform_5(%arg0: i32) -> (i32, i32) {
    %c0_i32 = arith.constant 0 : i32
    %c0_i32_0 = arith.constant 0 : i32
    %c0_i32_1 = arith.constant 0 : i32
    return %c0_i32, %c0_i32_0 : i32, i32
  }
  func.func @transform_6(%arg0: i32) -> (i32, i32) {
    %c0_i32 = arith.constant 0 : i32
    %c0_i32_0 = arith.constant 0 : i32
    %c0_i32_1 = arith.constant 0 : i32
    return %c0_i32, %c0_i32_0 : i32, i32
  }
  func.func @transform_7(%arg0: i32) -> (i32, i32, i32) {
    %c0_i32 = arith.constant 0 : i32
    %c0_i32_0 = arith.constant 0 : i32
    %c0_i32_1 = arith.constant 0 : i32
    return %arg0, %c0_i32, %c0_i32_0 : i32, i32, i32
  }
}

module attributes {stable_mosaic.version = 11 : i64} {
  func.func @kernel(%arg0: i32, %arg1: memref<1x4x384xf32, #tpu.memory_space<vmem>>, %arg2: memref<1x8x384xf32, #tpu.memory_space<vmem>>, %arg3: memref<1x384xf32, #tpu.memory_space<vmem>>, %arg4: memref<4x4xbf16, #tpu.memory_space<vmem>>, %arg5: memref<4x8xbf16, #tpu.memory_space<vmem>>, %arg6: memref<4x1xf32, #tpu.memory_space<vmem>>, %arg7: memref<4x1xf32, #tpu.memory_space<vmem>>, %arg8: memref<1x1xf32, #tpu.memory_space<vmem>>, %arg9: memref<12x6xf32, #tpu.memory_space<vmem>>, %arg10: memref<12x4xbf16, #tpu.memory_space<vmem>>, %arg11: memref<12x8xbf16, #tpu.memory_space<vmem>>, %arg12: memref<9x12x12xbf16, #tpu.memory_space<vmem>>, %arg13: memref<8x12xbf16, #tpu.memory_space<vmem>>, %arg14: memref<8x4xbf16, #tpu.memory_space<vmem>>, %arg15: memref<8x8xbf16, #tpu.memory_space<vmem>>, %arg16: memref<8x1xf32, #tpu.memory_space<vmem>>, %arg17: memref<1x8x384xf32, #tpu.memory_space<vmem>>) attributes {dimension_semantics = [#tpu.dimension_semantics<parallel>], iteration_bounds = array<i64: 2>, scalar_prefetch = 0 : i64, scratch_operands = 0 : i64, tpu.core_type = #tpu.core_type<tc>, window_params = [{transform_indices = @transform_0, window_bounds = array<i64: 1, 4, 384>}, {transform_indices = @transform_1, window_bounds = array<i64: 1, 8, 384>}, {pipeline_mode = #tpu.pipeline_mode<synchronous>, transform_indices = @transform_2, window_bounds = array<i64: 1, 384>}, {pipeline_mode = #tpu.pipeline_mode<synchronous>, transform_indices = @transform_3, window_bounds = array<i64: 4, 4>}, {pipeline_mode = #tpu.pipeline_mode<synchronous>, transform_indices = @transform_4, window_bounds = array<i64: 4, 8>}, {pipeline_mode = #tpu.pipeline_mode<synchronous>, transform_indices = @transform_5, window_bounds = array<i64: 4, 1>}, {pipeline_mode = #tpu.pipeline_mode<synchronous>, transform_indices = @transform_6, window_bounds = array<i64: 4, 1>}, {pipeline_mode = #tpu.pipeline_mode<synchronous>, transform_indices = @transform_7, window_bounds = array<i64: 1, 1>}, {pipeline_mode = #tpu.pipeline_mode<synchronous>, transform_indices = @transform_8, window_bounds = array<i64: 12, 6>}, {pipeline_mode = #tpu.pipeline_mode<synchronous>, transform_indices = @transform_9, window_bounds = array<i64: 12, 4>}, {pipeline_mode = #tpu.pipeline_mode<synchronous>, transform_indices = @transform_10, window_bounds = array<i64: 12, 8>}, {pipeline_mode = #tpu.pipeline_mode<synchronous>, transform_indices = @transform_11, window_bounds = array<i64: 9, 12, 12>}, {pipeline_mode = #tpu.pipeline_mode<synchronous>, transform_indices = @transform_12, window_bounds = array<i64: 8, 12>}, {pipeline_mode = #tpu.pipeline_mode<synchronous>, transform_indices = @transform_13, window_bounds = array<i64: 8, 4>}, {pipeline_mode = #tpu.pipeline_mode<synchronous>, transform_indices = @transform_14, window_bounds = array<i64: 8, 8>}, {pipeline_mode = #tpu.pipeline_mode<synchronous>, transform_indices = @transform_15, window_bounds = array<i64: 8, 1>}, {transform_indices = @transform_16, window_bounds = array<i64: 1, 8, 384>}]} {
    %c0 = arith.constant 0 : index
    %c0_0 = arith.constant 0 : index
    %0 = vector.load %arg3[%c0, %c0_0] : memref<1x384xf32, #tpu.memory_space<vmem>>, vector<1x384xf32>
    %c0_1 = arith.constant 0 : index
    %c0_2 = arith.constant 0 : index
    %1 = vector.load %arg9[%c0_1, %c0_2] : memref<12x6xf32, #tpu.memory_space<vmem>>, vector<12x6xf32>
    %2 = vector.extract_strided_slice %1 {offsets = [0, 0], sizes = [12, 1], strides = [1, 1]} : vector<12x6xf32> to vector<12x1xf32>
    %3 = vector.extract_strided_slice %1 {offsets = [0, 1], sizes = [12, 1], strides = [1, 1]} : vector<12x6xf32> to vector<12x1xf32>
    %4 = vector.extract_strided_slice %1 {offsets = [0, 2], sizes = [12, 1], strides = [1, 1]} : vector<12x6xf32> to vector<12x1xf32>
    %5 = vector.extract_strided_slice %1 {offsets = [0, 3], sizes = [12, 1], strides = [1, 1]} : vector<12x6xf32> to vector<12x1xf32>
    %6 = vector.extract_strided_slice %1 {offsets = [0, 4], sizes = [12, 1], strides = [1, 1]} : vector<12x6xf32> to vector<12x1xf32>
    %7 = vector.extract_strided_slice %1 {offsets = [0, 5], sizes = [12, 1], strides = [1, 1]} : vector<12x6xf32> to vector<12x1xf32>
    %c0_3 = arith.constant 0 : index
    %c0_4 = arith.constant 0 : index
    %c0_5 = arith.constant 0 : index
    %8 = vector.load %arg1[%c0_3, %c0_4, %c0_5] : memref<1x4x384xf32, #tpu.memory_space<vmem>>, vector<1x4x384xf32>
    %9 = vector.shape_cast %8 : vector<1x4x384xf32> to vector<4x384xf32>
    %c0_6 = arith.constant 0 : index
    %c0_7 = arith.constant 0 : index
    %c0_8 = arith.constant 0 : index
    %10 = vector.load %arg2[%c0_6, %c0_7, %c0_8] : memref<1x8x384xf32, #tpu.memory_space<vmem>>, vector<1x8x384xf32>
    %11 = vector.shape_cast %10 : vector<1x8x384xf32> to vector<8x384xf32>
    %12 = arith.truncf %9 : vector<4x384xf32> to vector<4x384xbf16>
    %13 = arith.truncf %11 : vector<8x384xf32> to vector<8x384xbf16>
    %c0_9 = arith.constant 0 : index
    %c0_10 = arith.constant 0 : index
    %14 = vector.load %arg4[%c0_9, %c0_10] : memref<4x4xbf16, #tpu.memory_space<vmem>>, vector<4x4xbf16>
    %cst = arith.constant dense<0.000000e+00> : vector<4x384xf32>
    %15 = tpu.matmul %14, %12, %cst {dimension_numbers = #tpu.dot_dimension_numbers<[1], [0], [0], [1], [0, 0, 1, 1], [], []>} : vector<4x4xbf16>, vector<4x384xbf16>, vector<4x384xf32> -> vector<4x384xf32>
    %c0_11 = arith.constant 0 : index
    %c0_12 = arith.constant 0 : index
    %16 = vector.load %arg5[%c0_11, %c0_12] : memref<4x8xbf16, #tpu.memory_space<vmem>>, vector<4x8xbf16>
    %cst_13 = arith.constant dense<0.000000e+00> : vector<4x384xf32>
    %17 = tpu.matmul %16, %13, %cst_13 {dimension_numbers = #tpu.dot_dimension_numbers<[1], [0], [0], [1], [0, 0, 1, 1], [], []>} : vector<4x8xbf16>, vector<8x384xbf16>, vector<4x384xf32> -> vector<4x384xf32>
    %18 = arith.addf %15, %17 : vector<4x384xf32>
    %c0_14 = arith.constant 0 : index
    %c0_15 = arith.constant 0 : index
    %19 = vector.load %arg6[%c0_14, %c0_15] : memref<4x1xf32, #tpu.memory_space<vmem>>, vector<4x1xf32>
    %20 = vector.broadcast %19 : vector<4x1xf32> to vector<4x384xf32>
    %21 = arith.addf %18, %20 : vector<4x384xf32>
    %cst_16 = arith.constant 0.000000e+00 : f32
    %22 = vector.broadcast %cst_16 : f32 to vector<4x384xf32>
    %23 = arith.maximumf %21, %22 : vector<4x384xf32>
    %c0_17 = arith.constant 0 : index
    %c0_18 = arith.constant 0 : index
    %24 = vector.load %arg7[%c0_17, %c0_18] : memref<4x1xf32, #tpu.memory_space<vmem>>, vector<4x1xf32>
    %25 = vector.broadcast %24 : vector<4x1xf32> to vector<4x384xf32>
    %26 = arith.mulf %23, %25 : vector<4x384xf32>
    %cst_19 = arith.constant dense<0.000000e+00> : vector<384xf32>
    %27 = vector.multi_reduction <add>, %26, %cst_19 [0] : vector<4x384xf32> to vector<384xf32>
    %28 = vector.shape_cast %27 : vector<384xf32> to vector<1x384xf32>
    %c0_20 = arith.constant 0 : index
    %c0_21 = arith.constant 0 : index
    %29 = vector.load %arg8[%c0_20, %c0_21] : memref<1x1xf32, #tpu.memory_space<vmem>>, vector<1x1xf32>
    %30 = vector.broadcast %29 : vector<1x1xf32> to vector<1x384xf32>
    %31 = arith.addf %28, %30 : vector<1x384xf32>
    %32 = arith.negf %31 : vector<1x384xf32>
    %33 = math.exp %32 : vector<1x384xf32>
    %cst_22 = arith.constant 1.000000e+00 : f32
    %34 = vector.broadcast %cst_22 : f32 to vector<1x384xf32>
    %35 = arith.addf %34, %33 : vector<1x384xf32>
    %36 = arith.divf %34, %35 : vector<1x384xf32>
    %37 = vector.broadcast %36 : vector<1x384xf32> to vector<4x384xf32>
    %38 = arith.mulf %9, %37 : vector<4x384xf32>
    %39 = vector.extract_strided_slice %2 {offsets = [0, 0], sizes = [4, 1], strides = [1, 1]} : vector<12x1xf32> to vector<4x1xf32>
    %40 = vector.broadcast %39 : vector<4x1xf32> to vector<4x384xf32>
    %41 = arith.mulf %38, %40 : vector<4x384xf32>
    %42 = vector.extract_strided_slice %3 {offsets = [0, 0], sizes = [4, 1], strides = [1, 1]} : vector<12x1xf32> to vector<4x1xf32>
    %43 = vector.broadcast %42 : vector<4x1xf32> to vector<4x384xf32>
    %44 = arith.addf %41, %43 : vector<4x384xf32>
    %cst_23 = arith.constant 0.000000e+00 : f32
    %45 = vector.broadcast %cst_23 : f32 to vector<4x384xf32>
    %46 = arith.maximumf %44, %45 : vector<4x384xf32>
    %47 = arith.truncf %46 : vector<4x384xf32> to vector<4x384xbf16>
    %48 = vector.extract_strided_slice %2 {offsets = [4, 0], sizes = [8, 1], strides = [1, 1]} : vector<12x1xf32> to vector<8x1xf32>
    %49 = vector.broadcast %48 : vector<8x1xf32> to vector<8x384xf32>
    %50 = arith.mulf %11, %49 : vector<8x384xf32>
    %51 = vector.extract_strided_slice %3 {offsets = [4, 0], sizes = [8, 1], strides = [1, 1]} : vector<12x1xf32> to vector<8x1xf32>
    %52 = vector.broadcast %51 : vector<8x1xf32> to vector<8x384xf32>
    %53 = arith.addf %50, %52 : vector<8x384xf32>
    %cst_24 = arith.constant 0.000000e+00 : f32
    %54 = vector.broadcast %cst_24 : f32 to vector<8x384xf32>
    %55 = arith.maximumf %53, %54 : vector<8x384xf32>
    %56 = arith.truncf %55 : vector<8x384xf32> to vector<8x384xbf16>
    %c0_25 = arith.constant 0 : index
    %c0_26 = arith.constant 0 : index
    %57 = vector.load %arg10[%c0_25, %c0_26] : memref<12x4xbf16, #tpu.memory_space<vmem>>, vector<12x4xbf16>
    %cst_27 = arith.constant dense<0.000000e+00> : vector<12x384xf32>
    %58 = tpu.matmul %57, %47, %cst_27 {dimension_numbers = #tpu.dot_dimension_numbers<[1], [0], [0], [1], [0, 0, 1, 1], [], []>} : vector<12x4xbf16>, vector<4x384xbf16>, vector<12x384xf32> -> vector<12x384xf32>
    %c0_28 = arith.constant 0 : index
    %c0_29 = arith.constant 0 : index
    %59 = vector.load %arg11[%c0_28, %c0_29] : memref<12x8xbf16, #tpu.memory_space<vmem>>, vector<12x8xbf16>
    %cst_30 = arith.constant dense<0.000000e+00> : vector<12x384xf32>
    %60 = tpu.matmul %59, %56, %cst_30 {dimension_numbers = #tpu.dot_dimension_numbers<[1], [0], [0], [1], [0, 0, 1, 1], [], []>} : vector<12x8xbf16>, vector<8x384xbf16>, vector<12x384xf32> -> vector<12x384xf32>
    %61 = arith.addf %58, %60 : vector<12x384xf32>
    %62 = vector.broadcast %4 : vector<12x1xf32> to vector<12x384xf32>
    %63 = arith.mulf %61, %62 : vector<12x384xf32>
    %64 = vector.broadcast %5 : vector<12x1xf32> to vector<12x384xf32>
    %65 = arith.addf %63, %64 : vector<12x384xf32>
    %cst_31 = arith.constant 0.000000e+00 : f32
    %66 = vector.broadcast %cst_31 : f32 to vector<12x384xf32>
    %67 = arith.maximumf %65, %66 : vector<12x384xf32>
    %68 = vector.broadcast %0 : vector<1x384xf32> to vector<12x384xf32>
    %69 = arith.mulf %67, %68 : vector<12x384xf32>
    %c4 = arith.constant 4 : index
    %c0_32 = arith.constant 0 : index
    %c0_33 = arith.constant 0 : index
    %70 = vector.load %arg12[%c4, %c0_32, %c0_33] : memref<9x12x12xbf16, #tpu.memory_space<vmem>>, vector<1x12x12xbf16>
    %71 = vector.shape_cast %70 : vector<1x12x12xbf16> to vector<12x12xbf16>
    %72 = arith.truncf %69 : vector<12x384xf32> to vector<12x384xbf16>
    %cst_34 = arith.constant dense<0.000000e+00> : vector<12x384xf32>
    %73 = tpu.matmul %71, %72, %cst_34 {dimension_numbers = #tpu.dot_dimension_numbers<[1], [0], [0], [1], [0, 0, 1, 1], [], []>} : vector<12x12xbf16>, vector<12x384xbf16>, vector<12x384xf32> -> vector<12x384xf32>
    %c19_i32 = arith.constant 19 : i32
    %74 = tpu.dynamic_rotate %69 by %c19_i32 dim 1 : vector<12x384xf32>, i32 -> vector<12x384xf32>
    %75 = arith.truncf %74 : vector<12x384xf32> to vector<12x384xbf16>
    %c0_35 = arith.constant 0 : index
    %c0_36 = arith.constant 0 : index
    %c0_37 = arith.constant 0 : index
    %76 = vector.load %arg12[%c0_35, %c0_36, %c0_37] : memref<9x12x12xbf16, #tpu.memory_space<vmem>>, vector<1x12x12xbf16>
    %77 = vector.shape_cast %76 : vector<1x12x12xbf16> to vector<12x12xbf16>
    %cst_38 = arith.constant dense<0.000000e+00> : vector<12x384xf32>
    %78 = tpu.matmul %77, %75, %cst_38 {dimension_numbers = #tpu.dot_dimension_numbers<[1], [0], [0], [1], [0, 0, 1, 1], [], []>} : vector<12x12xbf16>, vector<12x384xbf16>, vector<12x384xf32> -> vector<12x384xf32>
    %79 = arith.addf %73, %78 : vector<12x384xf32>
    %c18_i32 = arith.constant 18 : i32
    %80 = tpu.dynamic_rotate %69 by %c18_i32 dim 1 : vector<12x384xf32>, i32 -> vector<12x384xf32>
    %81 = arith.truncf %80 : vector<12x384xf32> to vector<12x384xbf16>
    %c1 = arith.constant 1 : index
    %c0_39 = arith.constant 0 : index
    %c0_40 = arith.constant 0 : index
    %82 = vector.load %arg12[%c1, %c0_39, %c0_40] : memref<9x12x12xbf16, #tpu.memory_space<vmem>>, vector<1x12x12xbf16>
    %83 = vector.shape_cast %82 : vector<1x12x12xbf16> to vector<12x12xbf16>
    %cst_41 = arith.constant dense<0.000000e+00> : vector<12x384xf32>
    %84 = tpu.matmul %83, %81, %cst_41 {dimension_numbers = #tpu.dot_dimension_numbers<[1], [0], [0], [1], [0, 0, 1, 1], [], []>} : vector<12x12xbf16>, vector<12x384xbf16>, vector<12x384xf32> -> vector<12x384xf32>
    %85 = arith.addf %79, %84 : vector<12x384xf32>
    %c17_i32 = arith.constant 17 : i32
    %86 = tpu.dynamic_rotate %69 by %c17_i32 dim 1 : vector<12x384xf32>, i32 -> vector<12x384xf32>
    %87 = arith.truncf %86 : vector<12x384xf32> to vector<12x384xbf16>
    %c2 = arith.constant 2 : index
    %c0_42 = arith.constant 0 : index
    %c0_43 = arith.constant 0 : index
    %88 = vector.load %arg12[%c2, %c0_42, %c0_43] : memref<9x12x12xbf16, #tpu.memory_space<vmem>>, vector<1x12x12xbf16>
    %89 = vector.shape_cast %88 : vector<1x12x12xbf16> to vector<12x12xbf16>
    %cst_44 = arith.constant dense<0.000000e+00> : vector<12x384xf32>
    %90 = tpu.matmul %89, %87, %cst_44 {dimension_numbers = #tpu.dot_dimension_numbers<[1], [0], [0], [1], [0, 0, 1, 1], [], []>} : vector<12x12xbf16>, vector<12x384xbf16>, vector<12x384xf32> -> vector<12x384xf32>
    %91 = arith.addf %85, %90 : vector<12x384xf32>
    %c1_i32 = arith.constant 1 : i32
    %92 = tpu.dynamic_rotate %69 by %c1_i32 dim 1 : vector<12x384xf32>, i32 -> vector<12x384xf32>
    %93 = arith.truncf %92 : vector<12x384xf32> to vector<12x384xbf16>
    %c3 = arith.constant 3 : index
    %c0_45 = arith.constant 0 : index
    %c0_46 = arith.constant 0 : index
    %94 = vector.load %arg12[%c3, %c0_45, %c0_46] : memref<9x12x12xbf16, #tpu.memory_space<vmem>>, vector<1x12x12xbf16>
    %95 = vector.shape_cast %94 : vector<1x12x12xbf16> to vector<12x12xbf16>
    %cst_47 = arith.constant dense<0.000000e+00> : vector<12x384xf32>
    %96 = tpu.matmul %95, %93, %cst_47 {dimension_numbers = #tpu.dot_dimension_numbers<[1], [0], [0], [1], [0, 0, 1, 1], [], []>} : vector<12x12xbf16>, vector<12x384xbf16>, vector<12x384xf32> -> vector<12x384xf32>
    %97 = arith.addf %91, %96 : vector<12x384xf32>
    %c383_i32 = arith.constant 383 : i32
    %98 = tpu.dynamic_rotate %69 by %c383_i32 dim 1 : vector<12x384xf32>, i32 -> vector<12x384xf32>
    %99 = arith.truncf %98 : vector<12x384xf32> to vector<12x384xbf16>
    %c5 = arith.constant 5 : index
    %c0_48 = arith.constant 0 : index
    %c0_49 = arith.constant 0 : index
    %100 = vector.load %arg12[%c5, %c0_48, %c0_49] : memref<9x12x12xbf16, #tpu.memory_space<vmem>>, vector<1x12x12xbf16>
    %101 = vector.shape_cast %100 : vector<1x12x12xbf16> to vector<12x12xbf16>
    %cst_50 = arith.constant dense<0.000000e+00> : vector<12x384xf32>
    %102 = tpu.matmul %101, %99, %cst_50 {dimension_numbers = #tpu.dot_dimension_numbers<[1], [0], [0], [1], [0, 0, 1, 1], [], []>} : vector<12x12xbf16>, vector<12x384xbf16>, vector<12x384xf32> -> vector<12x384xf32>
    %103 = arith.addf %97, %102 : vector<12x384xf32>
    %c367_i32 = arith.constant 367 : i32
    %104 = tpu.dynamic_rotate %69 by %c367_i32 dim 1 : vector<12x384xf32>, i32 -> vector<12x384xf32>
    %105 = arith.truncf %104 : vector<12x384xf32> to vector<12x384xbf16>
    %c6 = arith.constant 6 : index
    %c0_51 = arith.constant 0 : index
    %c0_52 = arith.constant 0 : index
    %106 = vector.load %arg12[%c6, %c0_51, %c0_52] : memref<9x12x12xbf16, #tpu.memory_space<vmem>>, vector<1x12x12xbf16>
    %107 = vector.shape_cast %106 : vector<1x12x12xbf16> to vector<12x12xbf16>
    %cst_53 = arith.constant dense<0.000000e+00> : vector<12x384xf32>
    %108 = tpu.matmul %107, %105, %cst_53 {dimension_numbers = #tpu.dot_dimension_numbers<[1], [0], [0], [1], [0, 0, 1, 1], [], []>} : vector<12x12xbf16>, vector<12x384xbf16>, vector<12x384xf32> -> vector<12x384xf32>
    %109 = arith.addf %103, %108 : vector<12x384xf32>
    %c366_i32 = arith.constant 366 : i32
    %110 = tpu.dynamic_rotate %69 by %c366_i32 dim 1 : vector<12x384xf32>, i32 -> vector<12x384xf32>
    %111 = arith.truncf %110 : vector<12x384xf32> to vector<12x384xbf16>
    %c7 = arith.constant 7 : index
    %c0_54 = arith.constant 0 : index
    %c0_55 = arith.constant 0 : index
    %112 = vector.load %arg12[%c7, %c0_54, %c0_55] : memref<9x12x12xbf16, #tpu.memory_space<vmem>>, vector<1x12x12xbf16>
    %113 = vector.shape_cast %112 : vector<1x12x12xbf16> to vector<12x12xbf16>
    %cst_56 = arith.constant dense<0.000000e+00> : vector<12x384xf32>
    %114 = tpu.matmul %113, %111, %cst_56 {dimension_numbers = #tpu.dot_dimension_numbers<[1], [0], [0], [1], [0, 0, 1, 1], [], []>} : vector<12x12xbf16>, vector<12x384xbf16>, vector<12x384xf32> -> vector<12x384xf32>
    %115 = arith.addf %109, %114 : vector<12x384xf32>
    %c365_i32 = arith.constant 365 : i32
    %116 = tpu.dynamic_rotate %69 by %c365_i32 dim 1 : vector<12x384xf32>, i32 -> vector<12x384xf32>
    %117 = arith.truncf %116 : vector<12x384xf32> to vector<12x384xbf16>
    %c8 = arith.constant 8 : index
    %c0_57 = arith.constant 0 : index
    %c0_58 = arith.constant 0 : index
    %118 = vector.load %arg12[%c8, %c0_57, %c0_58] : memref<9x12x12xbf16, #tpu.memory_space<vmem>>, vector<1x12x12xbf16>
    %119 = vector.shape_cast %118 : vector<1x12x12xbf16> to vector<12x12xbf16>
    %cst_59 = arith.constant dense<0.000000e+00> : vector<12x384xf32>
    %120 = tpu.matmul %119, %117, %cst_59 {dimension_numbers = #tpu.dot_dimension_numbers<[1], [0], [0], [1], [0, 0, 1, 1], [], []>} : vector<12x12xbf16>, vector<12x384xbf16>, vector<12x384xf32> -> vector<12x384xf32>
    %121 = arith.addf %115, %120 : vector<12x384xf32>
    %122 = vector.broadcast %6 : vector<12x1xf32> to vector<12x384xf32>
    %123 = arith.mulf %121, %122 : vector<12x384xf32>
    %124 = vector.broadcast %7 : vector<12x1xf32> to vector<12x384xf32>
    %125 = arith.addf %123, %124 : vector<12x384xf32>
    %cst_60 = arith.constant 0.000000e+00 : f32
    %126 = vector.broadcast %cst_60 : f32 to vector<12x384xf32>
    %127 = arith.maximumf %125, %126 : vector<12x384xf32>
    %128 = arith.truncf %127 : vector<12x384xf32> to vector<12x384xbf16>
    %c0_61 = arith.constant 0 : index
    %c0_62 = arith.constant 0 : index
    %129 = vector.load %arg14[%c0_61, %c0_62] : memref<8x4xbf16, #tpu.memory_space<vmem>>, vector<8x4xbf16>
    %130 = arith.truncf %38 : vector<4x384xf32> to vector<4x384xbf16>
    %cst_63 = arith.constant dense<0.000000e+00> : vector<8x384xf32>
    %131 = tpu.matmul %129, %130, %cst_63 {dimension_numbers = #tpu.dot_dimension_numbers<[1], [0], [0], [1], [0, 0, 1, 1], [], []>} : vector<8x4xbf16>, vector<4x384xbf16>, vector<8x384xf32> -> vector<8x384xf32>
    %c0_64 = arith.constant 0 : index
    %c0_65 = arith.constant 0 : index
    %132 = vector.load %arg15[%c0_64, %c0_65] : memref<8x8xbf16, #tpu.memory_space<vmem>>, vector<8x8xbf16>
    %cst_66 = arith.constant dense<0.000000e+00> : vector<8x384xf32>
    %133 = tpu.matmul %132, %13, %cst_66 {dimension_numbers = #tpu.dot_dimension_numbers<[1], [0], [0], [1], [0, 0, 1, 1], [], []>} : vector<8x8xbf16>, vector<8x384xbf16>, vector<8x384xf32> -> vector<8x384xf32>
    %134 = arith.addf %131, %133 : vector<8x384xf32>
    %c0_67 = arith.constant 0 : index
    %c0_68 = arith.constant 0 : index
    %135 = vector.load %arg13[%c0_67, %c0_68] : memref<8x12xbf16, #tpu.memory_space<vmem>>, vector<8x12xbf16>
    %cst_69 = arith.constant dense<0.000000e+00> : vector<8x384xf32>
    %136 = tpu.matmul %135, %128, %cst_69 {dimension_numbers = #tpu.dot_dimension_numbers<[1], [0], [0], [1], [0, 0, 1, 1], [], []>} : vector<8x12xbf16>, vector<12x384xbf16>, vector<8x384xf32> -> vector<8x384xf32>
    %c0_70 = arith.constant 0 : index
    %c0_71 = arith.constant 0 : index
    %137 = vector.load %arg16[%c0_70, %c0_71] : memref<8x1xf32, #tpu.memory_space<vmem>>, vector<8x1xf32>
    %138 = vector.broadcast %137 : vector<8x1xf32> to vector<8x384xf32>
    %139 = arith.addf %136, %138 : vector<8x384xf32>
    %140 = arith.addf %139, %134 : vector<8x384xf32>
    %141 = vector.broadcast %0 : vector<1x384xf32> to vector<8x384xf32>
    %142 = arith.mulf %140, %141 : vector<8x384xf32>
    %c0_72 = arith.constant 0 : index
    %c0_73 = arith.constant 0 : index
    %c0_74 = arith.constant 0 : index
    %143 = vector.load %arg17[%c0_72, %c0_73, %c0_74] : memref<1x8x384xf32, #tpu.memory_space<vmem>>, vector<1x8x384xf32>
    %144 = vector.shape_cast %143 : vector<1x8x384xf32> to vector<8x384xf32>
    %145 = vector.shape_cast %142 : vector<8x384xf32> to vector<1x8x384xf32>
    tpu.vector_store %arg17[%c0_72, %c0_73, %c0_74], %145 {strides = array<i32>} : memref<1x8x384xf32, #tpu.memory_space<vmem>>, vector<1x8x384xf32>,
    return
  }
  func.func @transform_0(%arg0: i32) -> (i32, i32, i32) {
    %c0_i32 = arith.constant 0 : i32
    %c0_i32_0 = arith.constant 0 : i32
    %c0_i32_1 = arith.constant 0 : i32
    return %arg0, %c0_i32, %c0_i32_0 : i32, i32, i32
  }
  func.func @transform_1(%arg0: i32) -> (i32, i32, i32) {
    %c0_i32 = arith.constant 0 : i32
    %c0_i32_0 = arith.constant 0 : i32
    %c0_i32_1 = arith.constant 0 : i32
    return %arg0, %c0_i32, %c0_i32_0 : i32, i32, i32
  }
  func.func @transform_2(%arg0: i32) -> (i32, i32) {
    %c0_i32 = arith.constant 0 : i32
    %c0_i32_0 = arith.constant 0 : i32
    %c0_i32_1 = arith.constant 0 : i32
    return %c0_i32, %c0_i32_0 : i32, i32
  }
  func.func @transform_3(%arg0: i32) -> (i32, i32) {
    %c0_i32 = arith.constant 0 : i32
    %c0_i32_0 = arith.constant 0 : i32
    %c0_i32_1 = arith.constant 0 : i32
    return %c0_i32, %c0_i32_0 : i32, i32
  }
  func.func @transform_4(%arg0: i32) -> (i32, i32) {
    %c0_i32 = arith.constant 0 : i32
    %c0_i32_0 = arith.constant 0 : i32
    %c0_i32_1 = arith.constant 0 : i32
    return %c0_i32, %c0_i32_0 : i32, i32
  }
  func.func @transform_5(%arg0: i32) -> (i32, i32) {
    %c0_i32 = arith.constant 0 : i32
    %c0_i32_0 = arith.constant 0 : i32
    %c0_i32_1 = arith.constant 0 : i32
    return %c0_i32, %c0_i32_0 : i32, i32
  }
  func.func @transform_6(%arg0: i32) -> (i32, i32) {
    %c0_i32 = arith.constant 0 : i32
    %c0_i32_0 = arith.constant 0 : i32
    %c0_i32_1 = arith.constant 0 : i32
    return %c0_i32, %c0_i32_0 : i32, i32
  }
  func.func @transform_7(%arg0: i32) -> (i32, i32) {
    %c0_i32 = arith.constant 0 : i32
    %c0_i32_0 = arith.constant 0 : i32
    %c0_i32_1 = arith.constant 0 : i32
    return %c0_i32, %c0_i32_0 : i32, i32
  }
  func.func @transform_8(%arg0: i32) -> (i32, i32) {
    %c0_i32 = arith.constant 0 : i32
    %c0_i32_0 = arith.constant 0 : i32
    %c0_i32_1 = arith.constant 0 : i32
    return %c0_i32, %c0_i32_0 : i32, i32
  }
  func.func @transform_9(%arg0: i32) -> (i32, i32) {
    %c0_i32 = arith.constant 0 : i32
    %c0_i32_0 = arith.constant 0 : i32
    %c0_i32_1 = arith.constant 0 : i32
    return %c0_i32, %c0_i32_0 : i32, i32
  }
  func.func @transform_10(%arg0: i32) -> (i32, i32) {
    %c0_i32 = arith.constant 0 : i32
    %c0_i32_0 = arith.constant 0 : i32
    %c0_i32_1 = arith.constant 0 : i32
    return %c0_i32, %c0_i32_0 : i32, i32
  }
  func.func @transform_11(%arg0: i32) -> (i32, i32, i32) {
    %c0_i32 = arith.constant 0 : i32
    %c0_i32_0 = arith.constant 0 : i32
    %c0_i32_1 = arith.constant 0 : i32
    %c0_i32_2 = arith.constant 0 : i32
    return %c0_i32, %c0_i32_0, %c0_i32_1 : i32, i32, i32
  }
  func.func @transform_12(%arg0: i32) -> (i32, i32) {
    %c0_i32 = arith.constant 0 : i32
    %c0_i32_0 = arith.constant 0 : i32
    %c0_i32_1 = arith.constant 0 : i32
    return %c0_i32, %c0_i32_0 : i32, i32
  }
  func.func @transform_13(%arg0: i32) -> (i32, i32) {
    %c0_i32 = arith.constant 0 : i32
    %c0_i32_0 = arith.constant 0 : i32
    %c0_i32_1 = arith.constant 0 : i32
    return %c0_i32, %c0_i32_0 : i32, i32
  }
  func.func @transform_14(%arg0: i32) -> (i32, i32) {
    %c0_i32 = arith.constant 0 : i32
    %c0_i32_0 = arith.constant 0 : i32
    %c0_i32_1 = arith.constant 0 : i32
    return %c0_i32, %c0_i32_0 : i32, i32
  }
  func.func @transform_15(%arg0: i32) -> (i32, i32) {
    %c0_i32 = arith.constant 0 : i32
    %c0_i32_0 = arith.constant 0 : i32
    %c0_i32_1 = arith.constant 0 : i32
    return %c0_i32, %c0_i32_0 : i32, i32
  }
  func.func @transform_16(%arg0: i32) -> (i32, i32, i32) {
    %c0_i32 = arith.constant 0 : i32
    %c0_i32_0 = arith.constant 0 : i32
    %c0_i32_1 = arith.constant 0 : i32
    return %arg0, %c0_i32, %c0_i32_0 : i32, i32, i32
  }
}

</mosaic_0001>

<llo_original>
// kernel: upstack_forward.3
$region0: #{upstack_forward.3}
  #allocation0 [shape = 'u32[]', space=smem, size = 0x4, offset = 0x4, fixed_abs, tag = 'smem constant byte address 0x4 - core index']
  #allocation1 [shape = 'u32[144,128]{1,0:T(1,128)}', space=vmem, size = 0x12000, scoped, tag = 'internal scratch']
  %s0 = inlined_call_operand.vmem [shape: f32[2,8,128], index: 0, kind: input, shape index: {}]
  %s1 = inlined_call_operand.vmem [shape: f32[1,128], index: 1, kind: input, shape index: {}]
  %s2 = inlined_call_operand.vmem [shape: f32[8,6], index: 2, kind: input, shape index: {}]
  %s3 = inlined_call_operand.vmem [shape: bf16[8,8], index: 3, kind: input, shape index: {}]
  %s4 = inlined_call_operand.vmem [shape: bf16[9,8,8], index: 4, kind: input, shape index: {}]
  %s5 = inlined_call_operand.vmem [shape: bf16[8,8], index: 5, kind: input, shape index: {}]
  %s6 = inlined_call_operand.vmem [shape: bf16[8,8], index: 6, kind: input, shape index: {}]
  %s7 = inlined_call_operand.vmem [shape: f32[8,1], index: 7, kind: input, shape index: {}]
  %s8 = inlined_call_operand.vmem [shape: f32[2,4,8,128], index: 8, kind: output, shape index: {}]
  %s9 = sld [smem:[#allocation0]]
  $region65: #{upstack_forward.3} parent=0
    _
  %s11 = ssub.s32 1, %s9
  %s12 = scalar_select 0, %s11, %s9
  loop: start=0, step=1, limit=4
  $region2: #{upstack_forward.3} parent=0 // loop_pre_header
    _
  $region3: #{upstack_forward.3} parent=0 // loop_header
    %s14 = sphi 0, %s18
    %p15 = scmp.ge.s32.totalorder %s14, 4
    %s24 = sphi 0, %s26
    %s27 = sphi 0, %s24
    %s28 = sphi 0, %s27
    %s44 = sphi 0, %s28
    %s48 = sphi 0, %s48
    %s50 = sphi 0, %s48
    %s51 = sphi 0, %s50
    %s65 = sphi 0, %s51
    %s69 = sphi 0, %s69
    %s71 = sphi 0, %s69
    %s72 = sphi 0, %s71
    %s86 = sphi 0, %s72
    %s90 = sphi 0, %s90
    %s92 = sphi 0, %s90
    %s93 = sphi 0, %s92
    %s107 = sphi 0, %s93
    %s111 = sphi 0, %s111
    %s113 = sphi 0, %s111
    %s114 = sphi 0, %s113
    %s128 = sphi 0, %s114
    %s132 = sphi 0, %s132
    %s134 = sphi 0, %s132
    %s135 = sphi 0, %s134
    %s149 = sphi 0, %s135
    %s153 = sphi 0, %s153
    %s155 = sphi 0, %s153
    %s156 = sphi 0, %s155
    %s170 = sphi 0, %s156
    %s174 = sphi 0, %s174
    %s176 = sphi 0, %s174
    %s177 = sphi 0, %s176
    %s191 = sphi 0, %s177
    %s197 = sphi 0, %s199
    %s200 = sphi 0, %s197
    %s201 = sphi 0, %s200
    %s217 = sphi 0, %s201
  $region4: #{upstack_forward.3} parent=0 // loop_header_branch
    %17 = sbr.rel (%p15) target = $region8
  $region5: #{upstack_forward.3} parent=0 // loop_body
    %s19 = ssub.s32 %s14, 1
    %s20 = ssub.s32 %s14, 2
    %s21 = sadd.s32 %s14, 1
    %s22 = ssub.s32 %s14, %s21
    %p23 = scmp.eq.s32.totalorder %s22, 0
    %s25 = sadd.s32 %s24, 1
    %s26 = scalar_select %p23, %s24, %s25
    %p29 = pneg %p23
    %p30 = scmp.eq.s32.totalorder %s14, 1
    %p31 = por %p29, %p30
    %p32 = scmp.ne.s32.totalorder %s24, %s27
    %p33 = scmp.eq.s32.totalorder %s14, 0
    %p34 = por %p32, %p33
    %p35 = scmp.ne.s32.totalorder %s24, %s27
    %p36 = scmp.eq.s32.totalorder %s19, 1
    %p37 = por %p35, %p36
    %p38 = scmp.ne.s32.totalorder %s27, %s28
    %p39 = scmp.eq.s32.totalorder %s19, 0
    %p40 = por %p38, %p39
    %p41 = scmp.ne.s32.totalorder %s27, %s28
    %p42 = scmp.eq.s32.totalorder %s20, 1
    %p43 = por %p41, %p42
    %p45 = scmp.ne.s32.totalorder %s28, %s44
    %p46 = scmp.eq.s32.totalorder %s20, 0
    %p47 = por %p45, %p46
    %s49 = sadd.s32 %s48, 1
    %p52 = scmp.eq.s32.totalorder %s14, 1
    %p53 = scmp.ne.s32.totalorder %s48, %s50
    %p54 = scmp.eq.s32.totalorder %s14, 0
    %p55 = por %p53, %p54
    %p56 = scmp.ne.s32.totalorder %s48, %s50
    %p57 = scmp.eq.s32.totalorder %s19, 1
    %p58 = por %p56, %p57
    %p59 = scmp.ne.s32.totalorder %s50, %s51
    %p60 = scmp.eq.s32.totalorder %s19, 0
    %p61 = por %p59, %p60
    %p62 = scmp.ne.s32.totalorder %s50, %s51
    %p63 = scmp.eq.s32.totalorder %s20, 1
    %p64 = por %p62, %p63
    %p66 = scmp.ne.s32.totalorder %s51, %s65
    %p67 = scmp.eq.s32.totalorder %s20, 0
    %p68 = por %p66, %p67
    %s70 = sadd.s32 %s69, 1
    %p73 = scmp.eq.s32.totalorder %s14, 1
    %p74 = scmp.ne.s32.totalorder %s69, %s71
    %p75 = scmp.eq.s32.totalorder %s14, 0
    %p76 = por %p74, %p75
    %p77 = scmp.ne.s32.totalorder %s69, %s71
    %p78 = scmp.eq.s32.totalorder %s19, 1
    %p79 = por %p77, %p78
    %p80 = scmp.ne.s32.totalorder %s71, %s72
    %p81 = scmp.eq.s32.totalorder %s19, 0
    %p82 = por %p80, %p81
    %p83 = scmp.ne.s32.totalorder %s71, %s72
    %p84 = scmp.eq.s32.totalorder %s20, 1
    %p85 = por %p83, %p84
    %p87 = scmp.ne.s32.totalorder %s72, %s86
    %p88 = scmp.eq.s32.totalorder %s20, 0
    %p89 = por %p87, %p88
    %s91 = sadd.s32 %s90, 1
    %p94 = scmp.eq.s32.totalorder %s14, 1
    %p95 = scmp.ne.s32.totalorder %s90, %s92
    %p96 = scmp.eq.s32.totalorder %s14, 0
    %p97 = por %p95, %p96
    %p98 = scmp.ne.s32.totalorder %s90, %s92
    %p99 = scmp.eq.s32.totalorder %s19, 1
    %p100 = por %p98, %p99
    %p101 = scmp.ne.s32.totalorder %s92, %s93
    %p102 = scmp.eq.s32.totalorder %s19, 0
    %p103 = por %p101, %p102
    %p104 = scmp.ne.s32.totalorder %s92, %s93
    %p105 = scmp.eq.s32.totalorder %s20, 1
    %p106 = por %p104, %p105
    %p108 = scmp.ne.s32.totalorder %s93, %s107
    %p109 = scmp.eq.s32.totalorder %s20, 0
    %p110 = por %p108, %p109
    %s112 = sadd.s32 %s111, 1
    %p115 = scmp.eq.s32.totalorder %s14, 1
    %p116 = scmp.ne.s32.totalorder %s111, %s113
    %p117 = scmp.eq.s32.totalorder %s14, 0
    %p118 = por %p116, %p117
    %p119 = scmp.ne.s32.totalorder %s111, %s113
    %p120 = scmp.eq.s32.totalorder %s19, 1
    %p121 = por %p119, %p120
    %p122 = scmp.ne.s32.totalorder %s113, %s114
    %p123 = scmp.eq.s32.totalorder %s19, 0
    %p124 = por %p122, %p123
    %p125 = scmp.ne.s32.totalorder %s113, %s114
    %p126 = scmp.eq.s32.totalorder %s20, 1
    %p127 = por %p125, %p126
    %p129 = scmp.ne.s32.totalorder %s114, %s128
    %p130 = scmp.eq.s32.totalorder %s20, 0
    %p131 = por %p129, %p130
    %s133 = sadd.s32 %s132, 1
    %p136 = scmp.eq.s32.totalorder %s14, 1
    %p137 = scmp.ne.s32.totalorder %s132, %s134
    %p138 = scmp.eq.s32.totalorder %s14, 0
    %p139 = por %p137, %p138
    %p140 = scmp.ne.s32.totalorder %s132, %s134
    %p141 = scmp.eq.s32.totalorder %s19, 1
    %p142 = por %p140, %p141
    %p143 = scmp.ne.s32.totalorder %s134, %s135
    %p144 = scmp.eq.s32.totalorder %s19, 0
    %p145 = por %p143, %p144
    %p146 = scmp.ne.s32.totalorder %s134, %s135
    %p147 = scmp.eq.s32.totalorder %s20, 1
    %p148 = por %p146, %p147
    %p150 = scmp.ne.s32.totalorder %s135, %s149
    %p151 = scmp.eq.s32.totalorder %s20, 0
    %p152 = por %p150, %p151
    %s154 = sadd.s32 %s153, 1
    %p157 = scmp.eq.s32.totalorder %s14, 1
    %p158 = scmp.ne.s32.totalorder %s153, %s155
    %p159 = scmp.eq.s32.totalorder %s14, 0
    %p160 = por %p158, %p159
    %p161 = scmp.ne.s32.totalorder %s153, %s155
    %p162 = scmp.eq.s32.totalorder %s19, 1
    %p163 = por %p161, %p162
    %p164 = scmp.ne.s32.totalorder %s155, %s156
    %p165 = scmp.eq.s32.totalorder %s19, 0
    %p166 = por %p164, %p165
    %p167 = scmp.ne.s32.totalorder %s155, %s156
    %p168 = scmp.eq.s32.totalorder %s20, 1
    %p169 = por %p167, %p168
    %p171 = scmp.ne.s32.totalorder %s156, %s170
    %p172 = scmp.eq.s32.totalorder %s20, 0
    %p173 = por %p171, %p172
    %s175 = sadd.s32 %s174, 1
    %p178 = scmp.eq.s32.totalorder %s14, 1
    %p179 = scmp.ne.s32.totalorder %s174, %s176
    %p180 = scmp.eq.s32.totalorder %s14, 0
    %p181 = por %p179, %p180
    %p182 = scmp.ne.s32.totalorder %s174, %s176
    %p183 = scmp.eq.s32.totalorder %s19, 1
    %p184 = por %p182, %p183
    %p185 = scmp.ne.s32.totalorder %s176, %s177
    %p186 = scmp.eq.s32.totalorder %s19, 0
    %p187 = por %p185, %p186
    %p188 = scmp.ne.s32.totalorder %s176, %s177
    %p189 = scmp.eq.s32.totalorder %s20, 1
    %p190 = por %p188, %p189
    %p192 = scmp.ne.s32.totalorder %s177, %s191
    %p193 = scmp.eq.s32.totalorder %s20, 0
    %p194 = por %p192, %p193
    %s195 = ssub.s32 %s14, %s21
    %p196 = scmp.eq.s32.totalorder %s195, 0
    %s198 = sadd.s32 %s197, 1
    %s199 = scalar_select %p196, %s197, %s198
    %p202 = pneg %p196
    %p203 = scmp.eq.s32.totalorder %s14, 1
    %p204 = por %p202, %p203
    %p205 = scmp.ne.s32.totalorder %s197, %s200
    %p206 = scmp.eq.s32.totalorder %s14, 0
    %p207 = por %p205, %p206
    %p208 = scmp.ne.s32.totalorder %s197, %s200
    %p209 = scmp.eq.s32.totalorder %s19, 1
    %p210 = por %p208, %p209
    %p211 = scmp.ne.s32.totalorder %s200, %s201
    %p212 = scmp.eq.s32.totalorder %s19, 0
    %p213 = por %p211, %p212
    %p214 = scmp.ne.s32.totalorder %s200, %s201
    %p215 = scmp.eq.s32.totalorder %s20, 1
    %p216 = por %p214, %p215
    %p218 = scmp.ne.s32.totalorder %s201, %s217
    %p219 = scmp.eq.s32.totalorder %s20, 0
    %p220 = por %p218, %p219
    %p221 = scmp.le.s32.totalorder 1, %s14
    %p222 = scmp.lt.s32.totalorder %s14, 3
    %p223 = pnand %p221, %p222
    %p224 = pneg %p223
    // Predicated region
    $region9: #{upstack_forward.3} parent=5 // pred_check
      _
    $region10: #{upstack_forward.3} parent=5 // pred_check_branch
      %226 = sbr.rel (%p223) target = $region12
    $region11: #{upstack_forward.3} parent=5 // pred_region
      %s227 = ssub.s32 %s14, 1
      // Predicated region
      $region13: #{upstack_forward.3} parent=11 // pred_check
        %p228 = pneg %p61
      $region14: #{upstack_forward.3} parent=11 // pred_check_branch
        %230 = sbr.rel (%p228) target = $region16
      $region15: #{upstack_forward.3} parent=11 // pred_region
        _
      $region16: #{upstack_forward.3} parent=11 // pred_fallthru
        _
      // Predicated region
      $region17: #{upstack_forward.3} parent=11 // pred_check
        %p231 = pneg %p82
      $region18: #{upstack_forward.3} parent=11 // pred_check_branch
        %233 = sbr.rel (%p231) target = $region20
      $region19: #{upstack_forward.3} parent=11 // pred_region
        _
      $region20: #{upstack_forward.3} parent=11 // pred_fallthru
        _
      // Predicated region
      $region21: #{upstack_forward.3} parent=11 // pred_check
        %p234 = pneg %p103
      $region22: #{upstack_forward.3} parent=11 // pred_check_branch
        %236 = sbr.rel (%p234) target = $region24
      $region23: #{upstack_forward.3} parent=11 // pred_region
        _
      $region24: #{upstack_forward.3} parent=11 // pred_fallthru
        _
      // Predicated region
      $region25: #{upstack_forward.3} parent=11 // pred_check
        %p237 = pneg %p124
      $region26: #{upstack_forward.3} parent=11 // pred_check_branch
        %239 = sbr.rel (%p237) target = $region28
      $region27: #{upstack_forward.3} parent=11 // pred_region
        _
      $region28: #{upstack_forward.3} parent=11 // pred_fallthru
        _
      // Predicated region
      $region29: #{upstack_forward.3} parent=11 // pred_check
        %p240 = pneg %p145
      $region30: #{upstack_forward.3} parent=11 // pred_check_branch
        %242 = sbr.rel (%p240) target = $region32
      $region31: #{upstack_forward.3} parent=11 // pred_region
        _
      $region32: #{upstack_forward.3} parent=11 // pred_fallthru
        _
      // Predicated region
      $region33: #{upstack_forward.3} parent=11 // pred_check
        %p243 = pneg %p166
      $region34: #{upstack_forward.3} parent=11 // pred_check_branch
        %245 = sbr.rel (%p243) target = $region36
      $region35: #{upstack_forward.3} parent=11 // pred_region
        _
      $region36: #{upstack_forward.3} parent=11 // pred_fallthru
        _
      // Predicated region
      $region37: #{upstack_forward.3} parent=11 // pred_check
        %p246 = pneg %p187
      $region38: #{upstack_forward.3} parent=11 // pred_check_branch
        %248 = sbr.rel (%p246) target = $region40
      $region39: #{upstack_forward.3} parent=11 // pred_region
        _
      $region40: #{upstack_forward.3} parent=11 // pred_fallthru
        _
    $region12: #{upstack_forward.3} parent=5 // pred_fallthru
      _
    %p249 = scmp.lt.s32.totalorder %s14, 2
    // Predicated region
    $region41: #{upstack_forward.3} parent=5 // pred_check
      %p250 = pneg %p249
    $region42: #{upstack_forward.3} parent=5 // pred_check_branch
      %252 = sbr.rel (%p250) target = $region44
    $region43: #{upstack_forward.3} parent=5 // pred_region
      // Predicated region
      $region45: #{upstack_forward.3} parent=43 // pred_check
        %p253 = pneg %p34
      $region46: #{upstack_forward.3} parent=43 // pred_check_branch
        %255 = sbr.rel (%p253) target = $region48
      $region47: #{upstack_forward.3} parent=43 // pred_region
        %p256 = scmp.lt.s32.totalorder %s14, 1
        %s257 = scalar_select %p256, %s14, 1
        %s258 = smul.addr %s257, 8
        %s259 = scalar_lea.vmem %s0, %s258
      $region48: #{upstack_forward.3} parent=43 // pred_fallthru
        _
    $region44: #{upstack_forward.3} parent=5 // pred_fallthru
      _
    %p260 = scmp.le.s32.totalorder 1, %s14
    %p261 = scmp.lt.s32.totalorder %s14, 3
    %p262 = pnand %p260, %p261
    %p263 = pneg %p262
    // Predicated region
    $region49: #{upstack_forward.3} parent=5 // pred_check
      _
    $region50: #{upstack_forward.3} parent=5 // pred_check_branch
      %265 = sbr.rel (%p262) target = $region52
    $region51: #{upstack_forward.3} parent=5 // pred_region
      %s266 = ssub.s32 %s14, 1
      %p267 = scmp.lt.s32.totalorder %s19, 1
      %s268 = scalar_select %p267, %s19, 1
      %s269 = smul.addr %s268, 8
      %s270 = scalar_lea.vmem %s0, %s269
      %p271 = pneg %p40
      %p272 = pneg %p37
      %p273 = pneg %p61
      %p274 = pneg %p58
      %p275 = pneg %p82
      %p276 = pneg %p79
      %p277 = pneg %p103
      %p278 = pneg %p100
      %p279 = pneg %p124
      %p280 = pneg %p121
      %p281 = pneg %p145
      %p282 = pneg %p142
      %p283 = pneg %p166
      %p284 = pneg %p163
      %p285 = pneg %p187
      %p286 = pneg %p184
      %p287 = pneg %p213
      %p288 = pneg %p210
      %p289 = scmp.lt.s32.totalorder %s19, 1
      %s290 = scalar_select %p289, %s19, 1
      %s291 = smul.addr %s290, 4
      %s292 = smul.addr %s291, 8
      %s293 = scalar_lea.vmem %s8, %s292
      %p294 = scmp.lt.s32.totalorder %s19, 1
      %s295 = scalar_select %p294, %s19, 1
      %s296 = smul.addr %s295, 8
      %s297 = scalar_lea.vmem %s0, %s296
      %p298 = scmp.lt.s32.totalorder %s19, 1
      %s299 = scalar_select %p298, %s19, 1
      %s300 = smul.addr %s299, 4
      %s301 = smul.addr %s300, 8
      %s302 = scalar_lea.vmem %s8, %s301
      %v304 = vld [vmem:[%s297] sm:$0xff]
      %v305 = vld [vmem:[%s1] sm:$0x1]
      %v306 = vld [vmem:[%s2] sm:$0xff]
      %308 = vset.pattern.permute.xlu0 0
      %309 = vperm.xlu0 %308, %v306
      %v310 = vpop.permute.xlu0 %309
      %v312 = vmul.f32 %v304, %v310
      %313 = vset.pattern.permute.xlu0 1
      %314 = vperm.xlu0 %313, %v306
      %v315 = vpop.permute.xlu0 %314
      %v317 = vadd.f32 %v312, %v315
      %v318 = vmax.f32 %v317, 0.0
      %v319 = vpack.c.bf16 %v318, %v318
      %v320 = vld [vmem:[%s3] sm:$0xf]
      %vm321 = vcmask 64512
      %v323 = vsel %vm321, %v320, 0
      %vm325 = vcmask 1043456
      %v327 = vsel %vm325, %v319, 0
      %329 = vmatprep.subr.bf16.mxu0 0
      %330 = vmatpush1.bf16.msra.mxu0 %v327
      %331 = vmatprep.subr.bf16.mxu0 0
      %332 = vmatpush1.bf16.msra.mxu0 0
      %333 = vmatprep.subr.bf16.mxu0 0
      %334 = vmatpush1.bf16.msra.mxu0 0
      %335 = vmatprep.subr.bf16.mxu0 0
      %336 = vmatpush1.bf16.msra.mxu0 0
      %337 = vmatprep.subr.bf16.mxu0 0
      %338 = vmatpush1.bf16.msra.mxu0 0
      %339 = vmatprep.subr.bf16.mxu0 0
      %340 = vmatpush1.bf16.msra.mxu0 0
      %341 = vmatprep.subr.bf16.mxu0 0
      %342 = vmatpush1.bf16.msra.mxu0 0
      %343 = vmatprep.subr.bf16.mxu0 0
      %344 = vmatpush1.bf16.msra.mxu0 0
      %345 = vmatprep.subr.bf16.mxu0 0
      %346 = vmatpush1.bf16.msra.mxu0 0
      %347 = vmatprep.subr.bf16.mxu0 0
      %348 = vmatpush1.bf16.msra.mxu0 0
      %349 = vmatprep.subr.bf16.mxu0 0
      %350 = vmatpush1.bf16.msra.mxu0 0
      %351 = vmatprep.subr.bf16.mxu0 0
      %352 = vmatpush1.bf16.msra.mxu0 0
      %353 = vmatprep.subr.bf16.mxu0 0
      %354 = vmatpush1.bf16.msra.mxu0 0
      %355 = vmatprep.subr.bf16.mxu0 0
      %356 = vmatpush1.bf16.msra.mxu0 0
      %357 = vmatprep.subr.bf16.mxu0 0
      %358 = vmatpush1.bf16.msra.mxu0 0
      %359 = vmatprep.subr.bf16.mxu0 0
      %360 = vmatpush1.bf16.msra.mxu0 0
      %361 = vmatprep.mubr.bf16.mxu0 0
      %362 = vmatmul.mubr.bf16.gmra.mrb[0].mxu0 %v323
      %v363 = vpop.f32.mrb[0].mxu0
      %v364 = vadd.f32 0.0, %v363
      %v365 = vpop.f32.mrb[0].mxu0
      %v366 = vpop.f32.mrb[0].mxu0
      %v367 = vpop.f32.mrb[0].mxu0
      %368 = vdwg.mxu0
      %369 = vset.pattern.permute.xlu0 2
      %370 = vperm.xlu0 %369, %v306
      %v371 = vpop.permute.xlu0 %370
      %v373 = vmul.f32 %v364, %v371
      %374 = vset.pattern.permute.xlu0 3
      %375 = vperm.xlu0 %374, %v306
      %v376 = vpop.permute.xlu0 %375
      %v378 = vadd.f32 %v373, %v376
      %v379 = vmax.f32 %v378, 0.0
      %v381 = vlaneseq
      %v382 = vshrl.u32 %v381, 7
      %v383 = vsub.s32 0, %v382
      %v384 = vrot.slane %v305, %v383
      %v386 = vmul.f32 %v379, %v384
      %v387 = vld [vmem:[%s6] sm:$0xf]
      %v388 = vpack.c.bf16 %v304, %v304
      %v389 = vld [vmem:[%s7] sm:$0xff]
      %391 = vset.pattern.permute.xlu0 0
      %392 = vperm.xlu0 %391, %v389
      %v393 = vpop.permute.xlu0 %392
      %v396 = vsel %vm321, %v387, 0
      %v399 = vsel %vm325, %v388, 0
      %401 = vmatprep.subr.bf16.mxu0 0
      %402 = vmatpush1.bf16.msra.mxu0 %v399
      %403 = vmatprep.subr.bf16.mxu0 0
      %404 = vmatpush1.bf16.msra.mxu0 0
      %405 = vmatprep.subr.bf16.mxu0 0
      %406 = vmatpush1.bf16.msra.mxu0 0
      %407 = vmatprep.subr.bf16.mxu0 0
      %408 = vmatpush1.bf16.msra.mxu0 0
      %409 = vmatprep.subr.bf16.mxu0 0
      %410 = vmatpush1.bf16.msra.mxu0 0
      %411 = vmatprep.subr.bf16.mxu0 0
      %412 = vmatpush1.bf16.msra.mxu0 0
      %413 = vmatprep.subr.bf16.mxu0 0
      %414 = vmatpush1.bf16.msra.mxu0 0
      %415 = vmatprep.subr.bf16.mxu0 0
      %416 = vmatpush1.bf16.msra.mxu0 0
      %417 = vmatprep.subr.bf16.mxu0 0
      %418 = vmatpush1.bf16.msra.mxu0 0
      %419 = vmatprep.subr.bf16.mxu0 0
      %420 = vmatpush1.bf16.msra.mxu0 0
      %421 = vmatprep.subr.bf16.mxu0 0
      %422 = vmatpush1.bf16.msra.mxu0 0
      %423 = vmatprep.subr.bf16.mxu0 0
      %424 = vmatpush1.bf16.msra.mxu0 0
      %425 = vmatprep.subr.bf16.mxu0 0
      %426 = vmatpush1.bf16.msra.mxu0 0
      %427 = vmatprep.subr.bf16.mxu0 0
      %428 = vmatpush1.bf16.msra.mxu0 0
      %429 = vmatprep.subr.bf16.mxu0 0
      %430 = vmatpush1.bf16.msra.mxu0 0
      %431 = vmatprep.subr.bf16.mxu0 0
      %432 = vmatpush1.bf16.msra.mxu0 0
      %433 = vmatprep.mubr.bf16.mxu0 0
      %434 = vmatmul.mubr.bf16.gmra.mrb[0].mxu0 %v396
      %v435 = vpop.f32.mrb[0].mxu0
      %v436 = vadd.f32 %v393, %v435
      %v437 = vpop.f32.mrb[0].mxu0
      %v438 = vpop.f32.mrb[0].mxu0
      %v439 = vpop.f32.mrb[0].mxu0
      %440 = vdwg.mxu0
      %v441 = vpack.c.bf16 %v386, %v386
      %442 = vrot.lane.b32.xlu0 %v386, 127
      %v443 = vpop.permute.xlu0 %442
      %v444 = vpack.c.bf16 %v443, %v443
      %445 = vrot.lane.b32.xlu0 %v386, 119
      %v446 = vpop.permute.xlu0 %445
      %v447 = vpack.c.bf16 %v446, %v446
      %448 = vrot.lane.b32.xlu0 %v386, 118
      %v449 = vpop.permute.xlu0 %448
      %v450 = vpack.c.bf16 %v449, %v449
      %s451 = scalar_lea.vmem %s4, 16
      %v452 = vld [vmem:[%s451] sm:$0xf]
      %v454 = vsel %vm321, %v452, 0
      %v457 = vsel %vm325, %v441, 0
      %459 = vmatprep.subr.bf16.mxu0 0
      %460 = vmatpush1.bf16.msra.mxu0 %v457
      %461 = vmatprep.subr.bf16.mxu0 0
      %462 = vmatpush1.bf16.msra.mxu0 0
      %463 = vmatprep.subr.bf16.mxu0 0
      %464 = vmatpush1.bf16.msra.mxu0 0
      %465 = vmatprep.subr.bf16.mxu0 0
      %466 = vmatpush1.bf16.msra.mxu0 0
      %467 = vmatprep.subr.bf16.mxu0 0
      %468 = vmatpush1.bf16.msra.mxu0 0
      %469 = vmatprep.subr.bf16.mxu0 0
      %470 = vmatpush1.bf16.msra.mxu0 0
      %471 = vmatprep.subr.bf16.mxu0 0
      %472 = vmatpush1.bf16.msra.mxu0 0
      %473 = vmatprep.subr.bf16.mxu0 0
      %474 = vmatpush1.bf16.msra.mxu0 0
      %475 = vmatprep.subr.bf16.mxu0 0
      %476 = vmatpush1.bf16.msra.mxu0 0
      %477 = vmatprep.subr.bf16.mxu0 0
      %478 = vmatpush1.bf16.msra.mxu0 0
      %479 = vmatprep.subr.bf16.mxu0 0
      %480 = vmatpush1.bf16.msra.mxu0 0
      %481 = vmatprep.subr.bf16.mxu0 0
      %482 = vmatpush1.bf16.msra.mxu0 0
      %483 = vmatprep.subr.bf16.mxu0 0
      %484 = vmatpush1.bf16.msra.mxu0 0
      %485 = vmatprep.subr.bf16.mxu0 0
      %486 = vmatpush1.bf16.msra.mxu0 0
      %487 = vmatprep.subr.bf16.mxu0 0
      %488 = vmatpush1.bf16.msra.mxu0 0
      %489 = vmatprep.subr.bf16.mxu0 0
      %490 = vmatpush1.bf16.msra.mxu0 0
      %491 = vmatprep.mubr.bf16.mxu0 0
      %492 = vmatmul.mubr.bf16.gmra.mrb[0].mxu0 %v454
      %v493 = vpop.f32.mrb[0].mxu0
      %v494 = vadd.f32 0.0, %v493
      %v495 = vpop.f32.mrb[0].mxu0
      %v496 = vpop.f32.mrb[0].mxu0
      %v497 = vpop.f32.mrb[0].mxu0
      %498 = vdwg.mxu0
      %499 = vset.pattern.permute.xlu0 4
      %500 = vperm.xlu0 %499, %v306
      %v501 = vpop.permute.xlu0 %500
      %v503 = vmul.f32 %v494, %v501
      %504 = vset.pattern.permute.xlu0 5
      %505 = vperm.xlu0 %504, %v306
      %v506 = vpop.permute.xlu0 %505
      %v508 = vadd.f32 %v503, %v506
      %v509 = vmax.f32 %v508, 0.0
      %v510 = vpack.c.bf16 %v509, %v509
      %v511 = vld [vmem:[%s5] sm:$0xf]
      %v513 = vsel %vm321, %v511, 0
      %v516 = vsel %vm325, %v510, 0
      %518 = vmatprep.subr.bf16.mxu0 0
      %519 = vmatpush1.bf16.msra.mxu0 %v516
      %520 = vmatprep.subr.bf16.mxu0 0
      %521 = vmatpush1.bf16.msra.mxu0 0
      %522 = vmatprep.subr.bf16.mxu0 0
      %523 = vmatpush1.bf16.msra.mxu0 0
      %524 = vmatprep.subr.bf16.mxu0 0
      %525 = vmatpush1.bf16.msra.mxu0 0
      %526 = vmatprep.subr.bf16.mxu0 0
      %527 = vmatpush1.bf16.msra.mxu0 0
      %528 = vmatprep.subr.bf16.mxu0 0
      %529 = vmatpush1.bf16.msra.mxu0 0
      %530 = vmatprep.subr.bf16.mxu0 0
      %531 = vmatpush1.bf16.msra.mxu0 0
      %532 = vmatprep.subr.bf16.mxu0 0
      %533 = vmatpush1.bf16.msra.mxu0 0
      %534 = vmatprep.subr.bf16.mxu0 0
      %535 = vmatpush1.bf16.msra.mxu0 0
      %536 = vmatprep.subr.bf16.mxu0 0
      %537 = vmatpush1.bf16.msra.mxu0 0
      %538 = vmatprep.subr.bf16.mxu0 0
      %539 = vmatpush1.bf16.msra.mxu0 0
      %540 = vmatprep.subr.bf16.mxu0 0
      %541 = vmatpush1.bf16.msra.mxu0 0
      %542 = vmatprep.subr.bf16.mxu0 0
      %543 = vmatpush1.bf16.msra.mxu0 0
      %544 = vmatprep.subr.bf16.mxu0 0
      %545 = vmatpush1.bf16.msra.mxu0 0
      %546 = vmatprep.subr.bf16.mxu0 0
      %547 = vmatpush1.bf16.msra.mxu0 0
      %548 = vmatprep.subr.bf16.mxu0 0
      %549 = vmatpush1.bf16.msra.mxu0 0
      %550 = vmatprep.mubr.bf16.mxu0 0
      %551 = vmatmul.mubr.bf16.gmra.mrb[0].mxu0 %v513
      %v552 = vpop.f32.mrb[0].mxu0
      %v553 = vadd.f32 %v436, %v552
      %v554 = vpop.f32.mrb[0].mxu0
      %v555 = vpop.f32.mrb[0].mxu0
      %v556 = vpop.f32.mrb[0].mxu0
      %557 = vdwg.mxu0
      %v558 = vmul.f32 %v553, %v384
      %559 = vst [vmem:[%s302] sm:$0xff] %v558
      %s560 = scalar_lea.vmem %s4, 20
      %v561 = vld [vmem:[%s560] sm:$0xf]
      %s562 = scalar_lea.vmem %s4, 12
      %v563 = vld [vmem:[%s562] sm:$0xf]
      %v565 = vsel %vm321, %v563, 0
      %v568 = vsel %vm325, %v444, 0
      %570 = vmatprep.subr.bf16.mxu0 0
      %571 = vmatpush1.bf16.msra.mxu0 %v568
      %572 = vmatprep.subr.bf16.mxu0 0
      %573 = vmatpush1.bf16.msra.mxu0 0
      %574 = vmatprep.subr.bf16.mxu0 0
      %575 = vmatpush1.bf16.msra.mxu0 0
      %576 = vmatprep.subr.bf16.mxu0 0
      %577 = vmatpush1.bf16.msra.mxu0 0
      %578 = vmatprep.subr.bf16.mxu0 0
      %579 = vmatpush1.bf16.msra.mxu0 0
      %580 = vmatprep.subr.bf16.mxu0 0
      %581 = vmatpush1.bf16.msra.mxu0 0
      %582 = vmatprep.subr.bf16.mxu0 0
      %583 = vmatpush1.bf16.msra.mxu0 0
      %584 = vmatprep.subr.bf16.mxu0 0
      %585 = vmatpush1.bf16.msra.mxu0 0
      %586 = vmatprep.subr.bf16.mxu0 0
      %587 = vmatpush1.bf16.msra.mxu0 0
      %588 = vmatprep.subr.bf16.mxu0 0
      %589 = vmatpush1.bf16.msra.mxu0 0
      %590 = vmatprep.subr.bf16.mxu0 0
      %591 = vmatpush1.bf16.msra.mxu0 0
      %592 = vmatprep.subr.bf16.mxu0 0
      %593 = vmatpush1.bf16.msra.mxu0 0
      %594 = vmatprep.subr.bf16.mxu0 0
      %595 = vmatpush1.bf16.msra.mxu0 0
      %596 = vmatprep.subr.bf16.mxu0 0
      %597 = vmatpush1.bf16.msra.mxu0 0
      %598 = vmatprep.subr.bf16.mxu0 0
      %599 = vmatpush1.bf16.msra.mxu0 0
      %600 = vmatprep.subr.bf16.mxu0 0
      %601 = vmatpush1.bf16.msra.mxu0 0
      %602 = vmatprep.mubr.bf16.mxu0 0
      %603 = vmatmul.mubr.bf16.gmra.mrb[0].mxu0 %v565
      %v604 = vpop.f32.mrb[0].mxu0
      %v605 = vadd.f32 0.0, %v604
      %v606 = vpop.f32.mrb[0].mxu0
      %v607 = vpop.f32.mrb[0].mxu0
      %v608 = vpop.f32.mrb[0].mxu0
      %609 = vdwg.mxu0
      %v611 = vsel %vm321, %v561, 0
      %613 = vmatprep.subr.bf16.mxu0 0
      %614 = vmatpush1.bf16.msra.mxu0 %v457
      %615 = vmatprep.subr.bf16.mxu0 0
      %616 = vmatpush1.bf16.msra.mxu0 0
      %617 = vmatprep.subr.bf16.mxu0 0
      %618 = vmatpush1.bf16.msra.mxu0 0
      %619 = vmatprep.subr.bf16.mxu0 0
      %620 = vmatpush1.bf16.msra.mxu0 0
      %621 = vmatprep.subr.bf16.mxu0 0
      %622 = vmatpush1.bf16.msra.mxu0 0
      %623 = vmatprep.subr.bf16.mxu0 0
      %624 = vmatpush1.bf16.msra.mxu0 0
      %625 = vmatprep.subr.bf16.mxu0 0
      %626 = vmatpush1.bf16.msra.mxu0 0
      %627 = vmatprep.subr.bf16.mxu0 0
      %628 = vmatpush1.bf16.msra.mxu0 0
      %629 = vmatprep.subr.bf16.mxu0 0
      %630 = vmatpush1.bf16.msra.mxu0 0
      %631 = vmatprep.subr.bf16.mxu0 0
      %632 = vmatpush1.bf16.msra.mxu0 0
      %633 = vmatprep.subr.bf16.mxu0 0
      %634 = vmatpush1.bf16.msra.mxu0 0
      %635 = vmatprep.subr.bf16.mxu0 0
      %636 = vmatpush1.bf16.msra.mxu0 0
      %637 = vmatprep.subr.bf16.mxu0 0
      %638 = vmatpush1.bf16.msra.mxu0 0
      %639 = vmatprep.subr.bf16.mxu0 0
      %640 = vmatpush1.bf16.msra.mxu0 0
      %641 = vmatprep.subr.bf16.mxu0 0
      %642 = vmatpush1.bf16.msra.mxu0 0
      %643 = vmatprep.subr.bf16.mxu0 0
      %644 = vmatpush1.bf16.msra.mxu0 0
      %645 = vmatprep.mubr.bf16.mxu0 0
      %646 = vmatmul.mubr.bf16.gmra.mrb[0].mxu0 %v611
      %v647 = vpop.f32.mrb[0].mxu0
      %v648 = vadd.f32 %v605, %v647
      %v649 = vpop.f32.mrb[0].mxu0
      %v650 = vpop.f32.mrb[0].mxu0
      %v651 = vpop.f32.mrb[0].mxu0
      %652 = vdwg.mxu0
      %v653 = vmul.f32 %v648, %v501
      %v654 = vadd.f32 %v653, %v506
      %v655 = vmax.f32 %v654, 0.0
      %v656 = vpack.c.bf16 %v655, %v655
      %v657 = vld [vmem:[%s5] sm:$0xf]
      %v659 = vsel %vm321, %v657, 0
      %v662 = vsel %vm325, %v656, 0
      %664 = vmatprep.subr.bf16.mxu0 0
      %665 = vmatpush1.bf16.msra.mxu0 %v662
      %666 = vmatprep.subr.bf16.mxu0 0
      %667 = vmatpush1.bf16.msra.mxu0 0
      %668 = vmatprep.subr.bf16.mxu0 0
      %669 = vmatpush1.bf16.msra.mxu0 0
      %670 = vmatprep.subr.bf16.mxu0 0
      %671 = vmatpush1.bf16.msra.mxu0 0
      %672 = vmatprep.subr.bf16.mxu0 0
      %673 = vmatpush1.bf16.msra.mxu0 0
      %674 = vmatprep.subr.bf16.mxu0 0
      %675 = vmatpush1.bf16.msra.mxu0 0
      %676 = vmatprep.subr.bf16.mxu0 0
      %677 = vmatpush1.bf16.msra.mxu0 0
      %678 = vmatprep.subr.bf16.mxu0 0
      %679 = vmatpush1.bf16.msra.mxu0 0
      %680 = vmatprep.subr.bf16.mxu0 0
      %681 = vmatpush1.bf16.msra.mxu0 0
      %682 = vmatprep.subr.bf16.mxu0 0
      %683 = vmatpush1.bf16.msra.mxu0 0
      %684 = vmatprep.subr.bf16.mxu0 0
      %685 = vmatpush1.bf16.msra.mxu0 0
      %686 = vmatprep.subr.bf16.mxu0 0
      %687 = vmatpush1.bf16.msra.mxu0 0
      %688 = vmatprep.subr.bf16.mxu0 0
      %689 = vmatpush1.bf16.msra.mxu0 0
      %690 = vmatprep.subr.bf16.mxu0 0
      %691 = vmatpush1.bf16.msra.mxu0 0
      %692 = vmatprep.subr.bf16.mxu0 0
      %693 = vmatpush1.bf16.msra.mxu0 0
      %694 = vmatprep.subr.bf16.mxu0 0
      %695 = vmatpush1.bf16.msra.mxu0 0
      %696 = vmatprep.mubr.bf16.mxu0 0
      %697 = vmatmul.mubr.bf16.gmra.mrb[0].mxu0 %v659
      %v698 = vpop.f32.mrb[0].mxu0
      %v699 = vadd.f32 %v436, %v698
      %v700 = vpop.f32.mrb[0].mxu0
      %v701 = vpop.f32.mrb[0].mxu0
      %v702 = vpop.f32.mrb[0].mxu0
      %703 = vdwg.mxu0
      %v704 = vmul.f32 %v699, %v384
      %s705 = scalar_lea.vmem %s302, 8
      %706 = vst [vmem:[%s705] sm:$0xff] %v704
      %s707 = scalar_lea.vmem %s4, 28
      %v708 = vld [vmem:[%s707] sm:$0xf]
      %s709 = scalar_lea.vmem %s4, 4
      %v710 = vld [vmem:[%s709] sm:$0xf]
      %v712 = vsel %vm321, %v710, 0
      %v715 = vsel %vm325, %v447, 0
      %717 = vmatprep.subr.bf16.mxu0 0
      %718 = vmatpush1.bf16.msra.mxu0 %v715
      %719 = vmatprep.subr.bf16.mxu0 0
      %720 = vmatpush1.bf16.msra.mxu0 0
      %721 = vmatprep.subr.bf16.mxu0 0
      %722 = vmatpush1.bf16.msra.mxu0 0
      %723 = vmatprep.subr.bf16.mxu0 0
      %724 = vmatpush1.bf16.msra.mxu0 0
      %725 = vmatprep.subr.bf16.mxu0 0
      %726 = vmatpush1.bf16.msra.mxu0 0
      %727 = vmatprep.subr.bf16.mxu0 0
      %728 = vmatpush1.bf16.msra.mxu0 0
      %729 = vmatprep.subr.bf16.mxu0 0
      %730 = vmatpush1.bf16.msra.mxu0 0
      %731 = vmatprep.subr.bf16.mxu0 0
      %732 = vmatpush1.bf16.msra.mxu0 0
      %733 = vmatprep.subr.bf16.mxu0 0
      %734 = vmatpush1.bf16.msra.mxu0 0
      %735 = vmatprep.subr.bf16.mxu0 0
      %736 = vmatpush1.bf16.msra.mxu0 0
      %737 = vmatprep.subr.bf16.mxu0 0
      %738 = vmatpush1.bf16.msra.mxu0 0
      %739 = vmatprep.subr.bf16.mxu0 0
      %740 = vmatpush1.bf16.msra.mxu0 0
      %741 = vmatprep.subr.bf16.mxu0 0
      %742 = vmatpush1.bf16.msra.mxu0 0
      %743 = vmatprep.subr.bf16.mxu0 0
      %744 = vmatpush1.bf16.msra.mxu0 0
      %745 = vmatprep.subr.bf16.mxu0 0
      %746 = vmatpush1.bf16.msra.mxu0 0
      %747 = vmatprep.subr.bf16.mxu0 0
      %748 = vmatpush1.bf16.msra.mxu0 0
      %749 = vmatprep.mubr.bf16.mxu0 0
      %750 = vmatmul.mubr.bf16.gmra.mrb[0].mxu0 %v712
      %v751 = vpop.f32.mrb[0].mxu0
      %v752 = vadd.f32 0.0, %v751
      %v753 = vpop.f32.mrb[0].mxu0
      %v754 = vpop.f32.mrb[0].mxu0
      %v755 = vpop.f32.mrb[0].mxu0
      %756 = vdwg.mxu0
      %v758 = vsel %vm321, %v708, 0
      %760 = vmatprep.subr.bf16.mxu0 0
      %761 = vmatpush1.bf16.msra.mxu0 %v457
      %762 = vmatprep.subr.bf16.mxu0 0
      %763 = vmatpush1.bf16.msra.mxu0 0
      %764 = vmatprep.subr.bf16.mxu0 0
      %765 = vmatpush1.bf16.msra.mxu0 0
      %766 = vmatprep.subr.bf16.mxu0 0
      %767 = vmatpush1.bf16.msra.mxu0 0
      %768 = vmatprep.subr.bf16.mxu0 0
      %769 = vmatpush1.bf16.msra.mxu0 0
      %770 = vmatprep.subr.bf16.mxu0 0
      %771 = vmatpush1.bf16.msra.mxu0 0
      %772 = vmatprep.subr.bf16.mxu0 0
      %773 = vmatpush1.bf16.msra.mxu0 0
      %774 = vmatprep.subr.bf16.mxu0 0
      %775 = vmatpush1.bf16.msra.mxu0 0
      %776 = vmatprep.subr.bf16.mxu0 0
      %777 = vmatpush1.bf16.msra.mxu0 0
      %778 = vmatprep.subr.bf16.mxu0 0
      %779 = vmatpush1.bf16.msra.mxu0 0
      %780 = vmatprep.subr.bf16.mxu0 0
      %781 = vmatpush1.bf16.msra.mxu0 0
      %782 = vmatprep.subr.bf16.mxu0 0
      %783 = vmatpush1.bf16.msra.mxu0 0
      %784 = vmatprep.subr.bf16.mxu0 0
      %785 = vmatpush1.bf16.msra.mxu0 0
      %786 = vmatprep.subr.bf16.mxu0 0
      %787 = vmatpush1.bf16.msra.mxu0 0
      %788 = vmatprep.subr.bf16.mxu0 0
      %789 = vmatpush1.bf16.msra.mxu0 0
      %790 = vmatprep.subr.bf16.mxu0 0
      %791 = vmatpush1.bf16.msra.mxu0 0
      %792 = vmatprep.mubr.bf16.mxu0 0
      %793 = vmatmul.mubr.bf16.gmra.mrb[0].mxu0 %v758
      %v794 = vpop.f32.mrb[0].mxu0
      %v795 = vadd.f32 %v752, %v794
      %v796 = vpop.f32.mrb[0].mxu0
      %v797 = vpop.f32.mrb[0].mxu0
      %v798 = vpop.f32.mrb[0].mxu0
      %799 = vdwg.mxu0
      %v800 = vmul.f32 %v795, %v501
      %v801 = vadd.f32 %v800, %v506
      %v802 = vmax.f32 %v801, 0.0
      %v803 = vpack.c.bf16 %v802, %v802
      %v804 = vld [vmem:[%s5] sm:$0xf]
      %v806 = vsel %vm321, %v804, 0
      %v809 = vsel %vm325, %v803, 0
      %811 = vmatprep.subr.bf16.mxu0 0
      %812 = vmatpush1.bf16.msra.mxu0 %v809
      %813 = vmatprep.subr.bf16.mxu0 0
      %814 = vmatpush1.bf16.msra.mxu0 0
      %815 = vmatprep.subr.bf16.mxu0 0
      %816 = vmatpush1.bf16.msra.mxu0 0
      %817 = vmatprep.subr.bf16.mxu0 0
      %818 = vmatpush1.bf16.msra.mxu0 0
      %819 = vmatprep.subr.bf16.mxu0 0
      %820 = vmatpush1.bf16.msra.mxu0 0
      %821 = vmatprep.subr.bf16.mxu0 0
      %822 = vmatpush1.bf16.msra.mxu0 0
      %823 = vmatprep.subr.bf16.mxu0 0
      %824 = vmatpush1.bf16.msra.mxu0 0
      %825 = vmatprep.subr.bf16.mxu0 0
      %826 = vmatpush1.bf16.msra.mxu0 0
      %827 = vmatprep.subr.bf16.mxu0 0
      %828 = vmatpush1.bf16.msra.mxu0 0
      %829 = vmatprep.subr.bf16.mxu0 0
      %830 = vmatpush1.bf16.msra.mxu0 0
      %831 = vmatprep.subr.bf16.mxu0 0
      %832 = vmatpush1.bf16.msra.mxu0 0
      %833 = vmatprep.subr.bf16.mxu0 0
      %834 = vmatpush1.bf16.msra.mxu0 0
      %835 = vmatprep.subr.bf16.mxu0 0
      %836 = vmatpush1.bf16.msra.mxu0 0
      %837 = vmatprep.subr.bf16.mxu0 0
      %838 = vmatpush1.bf16.msra.mxu0 0
      %839 = vmatprep.subr.bf16.mxu0 0
      %840 = vmatpush1.bf16.msra.mxu0 0
      %841 = vmatprep.subr.bf16.mxu0 0
      %842 = vmatpush1.bf16.msra.mxu0 0
      %843 = vmatprep.mubr.bf16.mxu0 0
      %844 = vmatmul.mubr.bf16.gmra.mrb[0].mxu0 %v806
      %v845 = vpop.f32.mrb[0].mxu0
      %v846 = vadd.f32 %v436, %v845
      %v847 = vpop.f32.mrb[0].mxu0
      %v848 = vpop.f32.mrb[0].mxu0
      %v849 = vpop.f32.mrb[0].mxu0
      %850 = vdwg.mxu0
      %v851 = vmul.f32 %v846, %v384
      %s852 = scalar_lea.vmem %s302, 16
      %853 = vst [vmem:[%s852] sm:$0xff] %v851
      %s854 = scalar_lea.vmem %s4, 32
      %v855 = vld [vmem:[%s854] sm:$0xf]
      %s856 = scalar_lea.vmem %s4, 24
      %v857 = vld [vmem:[%s856] sm:$0xf]
      %v859 = vsel %vm321, %v857, 0
      %861 = vmatprep.subr.bf16.mxu0 0
      %862 = vmatpush1.bf16.msra.mxu0 %v568
      %863 = vmatprep.subr.bf16.mxu0 0
      %864 = vmatpush1.bf16.msra.mxu0 0
      %865 = vmatprep.subr.bf16.mxu0 0
      %866 = vmatpush1.bf16.msra.mxu0 0
      %867 = vmatprep.subr.bf16.mxu0 0
      %868 = vmatpush1.bf16.msra.mxu0 0
      %869 = vmatprep.subr.bf16.mxu0 0
      %870 = vmatpush1.bf16.msra.mxu0 0
      %871 = vmatprep.subr.bf16.mxu0 0
      %872 = vmatpush1.bf16.msra.mxu0 0
      %873 = vmatprep.subr.bf16.mxu0 0
      %874 = vmatpush1.bf16.msra.mxu0 0
      %875 = vmatprep.subr.bf16.mxu0 0
      %876 = vmatpush1.bf16.msra.mxu0 0
      %877 = vmatprep.subr.bf16.mxu0 0
      %878 = vmatpush1.bf16.msra.mxu0 0
      %879 = vmatprep.subr.bf16.mxu0 0
      %880 = vmatpush1.bf16.msra.mxu0 0
      %881 = vmatprep.subr.bf16.mxu0 0
      %882 = vmatpush1.bf16.msra.mxu0 0
      %883 = vmatprep.subr.bf16.mxu0 0
      %884 = vmatpush1.bf16.msra.mxu0 0
      %885 = vmatprep.subr.bf16.mxu0 0
      %886 = vmatpush1.bf16.msra.mxu0 0
      %887 = vmatprep.subr.bf16.mxu0 0
      %888 = vmatpush1.bf16.msra.mxu0 0
      %889 = vmatprep.subr.bf16.mxu0 0
      %890 = vmatpush1.bf16.msra.mxu0 0
      %891 = vmatprep.subr.bf16.mxu0 0
      %892 = vmatpush1.bf16.msra.mxu0 0
      %893 = vmatprep.mubr.bf16.mxu0 0
      %894 = vmatmul.mubr.bf16.gmra.mrb[0].mxu0 %v859
      %v895 = vpop.f32.mrb[0].mxu0
      %v896 = vadd.f32 0.0, %v895
      %v897 = vpop.f32.mrb[0].mxu0
      %v898 = vpop.f32.mrb[0].mxu0
      %v899 = vpop.f32.mrb[0].mxu0
      %900 = vdwg.mxu0
      %v902 = vsel %vm321, %v855, 0
      %904 = vmatprep.subr.bf16.mxu0 0
      %905 = vmatpush1.bf16.msra.mxu0 %v457
      %906 = vmatprep.subr.bf16.mxu0 0
      %907 = vmatpush1.bf16.msra.mxu0 0
      %908 = vmatprep.subr.bf16.mxu0 0
      %909 = vmatpush1.bf16.msra.mxu0 0
      %910 = vmatprep.subr.bf16.mxu0 0
      %911 = vmatpush1.bf16.msra.mxu0 0
      %912 = vmatprep.subr.bf16.mxu0 0
      %913 = vmatpush1.bf16.msra.mxu0 0
      %914 = vmatprep.subr.bf16.mxu0 0
      %915 = vmatpush1.bf16.msra.mxu0 0
      %916 = vmatprep.subr.bf16.mxu0 0
      %917 = vmatpush1.bf16.msra.mxu0 0
      %918 = vmatprep.subr.bf16.mxu0 0
      %919 = vmatpush1.bf16.msra.mxu0 0
      %920 = vmatprep.subr.bf16.mxu0 0
      %921 = vmatpush1.bf16.msra.mxu0 0
      %922 = vmatprep.subr.bf16.mxu0 0
      %923 = vmatpush1.bf16.msra.mxu0 0
      %924 = vmatprep.subr.bf16.mxu0 0
      %925 = vmatpush1.bf16.msra.mxu0 0
      %926 = vmatprep.subr.bf16.mxu0 0
      %927 = vmatpush1.bf16.msra.mxu0 0
      %928 = vmatprep.subr.bf16.mxu0 0
      %929 = vmatpush1.bf16.msra.mxu0 0
      %930 = vmatprep.subr.bf16.mxu0 0
      %931 = vmatpush1.bf16.msra.mxu0 0
      %932 = vmatprep.subr.bf16.mxu0 0
      %933 = vmatpush1.bf16.msra.mxu0 0
      %934 = vmatprep.subr.bf16.mxu0 0
      %935 = vmatpush1.bf16.msra.mxu0 0
      %936 = vmatprep.mubr.bf16.mxu0 0
      %937 = vmatmul.mubr.bf16.gmra.mrb[0].mxu0 %v902
      %v938 = vpop.f32.mrb[0].mxu0
      %v939 = vadd.f32 %v896, %v938
      %v940 = vpop.f32.mrb[0].mxu0
      %v941 = vpop.f32.mrb[0].mxu0
      %v942 = vpop.f32.mrb[0].mxu0
      %943 = vdwg.mxu0
      %s944 = scalar_lea.vmem %s4, 8
      %v945 = vld [vmem:[%s944] sm:$0xf]
      %v947 = vsel %vm321, %v945, 0
      %949 = vmatprep.subr.bf16.mxu0 0
      %950 = vmatpush1.bf16.msra.mxu0 %v715
      %951 = vmatprep.subr.bf16.mxu0 0
      %952 = vmatpush1.bf16.msra.mxu0 0
      %953 = vmatprep.subr.bf16.mxu0 0
      %954 = vmatpush1.bf16.msra.mxu0 0
      %955 = vmatprep.subr.bf16.mxu0 0
      %956 = vmatpush1.bf16.msra.mxu0 0
      %957 = vmatprep.subr.bf16.mxu0 0
      %958 = vmatpush1.bf16.msra.mxu0 0
      %959 = vmatprep.subr.bf16.mxu0 0
      %960 = vmatpush1.bf16.msra.mxu0 0
      %961 = vmatprep.subr.bf16.mxu0 0
      %962 = vmatpush1.bf16.msra.mxu0 0
      %963 = vmatprep.subr.bf16.mxu0 0
      %964 = vmatpush1.bf16.msra.mxu0 0
      %965 = vmatprep.subr.bf16.mxu0 0
      %966 = vmatpush1.bf16.msra.mxu0 0
      %967 = vmatprep.subr.bf16.mxu0 0
      %968 = vmatpush1.bf16.msra.mxu0 0
      %969 = vmatprep.subr.bf16.mxu0 0
      %970 = vmatpush1.bf16.msra.mxu0 0
      %971 = vmatprep.subr.bf16.mxu0 0
      %972 = vmatpush1.bf16.msra.mxu0 0
      %973 = vmatprep.subr.bf16.mxu0 0
      %974 = vmatpush1.bf16.msra.mxu0 0
      %975 = vmatprep.subr.bf16.mxu0 0
      %976 = vmatpush1.bf16.msra.mxu0 0
      %977 = vmatprep.subr.bf16.mxu0 0
      %978 = vmatpush1.bf16.msra.mxu0 0
      %979 = vmatprep.subr.bf16.mxu0 0
      %980 = vmatpush1.bf16.msra.mxu0 0
      %981 = vmatprep.mubr.bf16.mxu0 0
      %982 = vmatmul.mubr.bf16.gmra.mrb[0].mxu0 %v947
      %v983 = vpop.f32.mrb[0].mxu0
      %v984 = vadd.f32 0.0, %v983
      %v985 = vpop.f32.mrb[0].mxu0
      %v986 = vpop.f32.mrb[0].mxu0
      %v987 = vpop.f32.mrb[0].mxu0
      %988 = vdwg.mxu0
      %v989 = vadd.f32 %v939, %v984
      %v990 = vld [vmem:[%s4] sm:$0xf]
      %v992 = vsel %vm321, %v990, 0
      %v995 = vsel %vm325, %v450, 0
      %997 = vmatprep.subr.bf16.mxu0 0
      %998 = vmatpush1.bf16.msra.mxu0 %v995
      %999 = vmatprep.subr.bf16.mxu0 0
      %1000 = vmatpush1.bf16.msra.mxu0 0
      %1001 = vmatprep.subr.bf16.mxu0 0
      %1002 = vmatpush1.bf16.msra.mxu0 0
      %1003 = vmatprep.subr.bf16.mxu0 0
      %1004 = vmatpush1.bf16.msra.mxu0 0
      %1005 = vmatprep.subr.bf16.mxu0 0
      %1006 = vmatpush1.bf16.msra.mxu0 0
      %1007 = vmatprep.subr.bf16.mxu0 0
      %1008 = vmatpush1.bf16.msra.mxu0 0
      %1009 = vmatprep.subr.bf16.mxu0 0
      %1010 = vmatpush1.bf16.msra.mxu0 0
      %1011 = vmatprep.subr.bf16.mxu0 0
      %1012 = vmatpush1.bf16.msra.mxu0 0
      %1013 = vmatprep.subr.bf16.mxu0 0
      %1014 = vmatpush1.bf16.msra.mxu0 0
      %1015 = vmatprep.subr.bf16.mxu0 0
      %1016 = vmatpush1.bf16.msra.mxu0 0
      %1017 = vmatprep.subr.bf16.mxu0 0
      %1018 = vmatpush1.bf16.msra.mxu0 0
      %1019 = vmatprep.subr.bf16.mxu0 0
      %1020 = vmatpush1.bf16.msra.mxu0 0
      %1021 = vmatprep.subr.bf16.mxu0 0
      %1022 = vmatpush1.bf16.msra.mxu0 0
      %1023 = vmatprep.subr.bf16.mxu0 0
      %1024 = vmatpush1.bf16.msra.mxu0 0
      %1025 = vmatprep.subr.bf16.mxu0 0
      %1026 = vmatpush1.bf16.msra.mxu0 0
      %1027 = vmatprep.subr.bf16.mxu0 0
      %1028 = vmatpush1.bf16.msra.mxu0 0
      %1029 = vmatprep.mubr.bf16.mxu0 0
      %1030 = vmatmul.mubr.bf16.gmra.mrb[0].mxu0 %v992
      %v1031 = vpop.f32.mrb[0].mxu0
      %v1032 = vadd.f32 0.0, %v1031
      %v1033 = vpop.f32.mrb[0].mxu0
      %v1034 = vpop.f32.mrb[0].mxu0
      %v1035 = vpop.f32.mrb[0].mxu0
      %1036 = vdwg.mxu0
      %v1037 = vadd.f32 %v989, %v1032
      %v1038 = vmul.f32 %v1037, %v501
      %v1039 = vadd.f32 %v1038, %v506
      %v1040 = vmax.f32 %v1039, 0.0
      %v1041 = vpack.c.bf16 %v1040, %v1040
      %v1042 = vld [vmem:[%s5] sm:$0xf]
      %v1044 = vsel %vm321, %v1042, 0
      %v1047 = vsel %vm325, %v1041, 0
      %1049 = vmatprep.subr.bf16.mxu0 0
      %1050 = vmatpush1.bf16.msra.mxu0 %v1047
      %1051 = vmatprep.subr.bf16.mxu0 0
      %1052 = vmatpush1.bf16.msra.mxu0 0
      %1053 = vmatprep.subr.bf16.mxu0 0
      %1054 = vmatpush1.bf16.msra.mxu0 0
      %1055 = vmatprep.subr.bf16.mxu0 0
      %1056 = vmatpush1.bf16.msra.mxu0 0
      %1057 = vmatprep.subr.bf16.mxu0 0
      %1058 = vmatpush1.bf16.msra.mxu0 0
      %1059 = vmatprep.subr.bf16.mxu0 0
      %1060 = vmatpush1.bf16.msra.mxu0 0
      %1061 = vmatprep.subr.bf16.mxu0 0
      %1062 = vmatpush1.bf16.msra.mxu0 0
      %1063 = vmatprep.subr.bf16.mxu0 0
      %1064 = vmatpush1.bf16.msra.mxu0 0
      %1065 = vmatprep.subr.bf16.mxu0 0
      %1066 = vmatpush1.bf16.msra.mxu0 0
      %1067 = vmatprep.subr.bf16.mxu0 0
      %1068 = vmatpush1.bf16.msra.mxu0 0
      %1069 = vmatprep.subr.bf16.mxu0 0
      %1070 = vmatpush1.bf16.msra.mxu0 0
      %1071 = vmatprep.subr.bf16.mxu0 0
      %1072 = vmatpush1.bf16.msra.mxu0 0
      %1073 = vmatprep.subr.bf16.mxu0 0
      %1074 = vmatpush1.bf16.msra.mxu0 0
      %1075 = vmatprep.subr.bf16.mxu0 0
      %1076 = vmatpush1.bf16.msra.mxu0 0
      %1077 = vmatprep.subr.bf16.mxu0 0
      %1078 = vmatpush1.bf16.msra.mxu0 0
      %1079 = vmatprep.subr.bf16.mxu0 0
      %1080 = vmatpush1.bf16.msra.mxu0 0
      %1081 = vmatprep.mubr.bf16.mxu0 0
      %1082 = vmatmul.mubr.bf16.gmra.mrb[0].mxu0 %v1044
      %v1083 = vpop.f32.mrb[0].mxu0
      %v1084 = vadd.f32 %v436, %v1083
      %v1085 = vpop.f32.mrb[0].mxu0
      %v1086 = vpop.f32.mrb[0].mxu0
      %v1087 = vpop.f32.mrb[0].mxu0
      %1088 = vdwg.mxu0
      %v1089 = vmul.f32 %v1084, %v384
      %s1090 = scalar_lea.vmem %s302, 24
      %1091 = vst [vmem:[%s1090] sm:$0xff] %v1089
      %p1092 = scmp.lt.s32.totalorder %s19, 1
      %s1093 = scalar_select %p1092, %s19, 1
      %s1094 = smul.addr %s1093, 4
      %s1095 = smul.addr %s1094, 8
      %s1096 = scalar_lea.vmem %s8, %s1095
      // Predicated region
      $region53: #{upstack_forward.3} parent=51 // pred_check
        %p1097 = pneg %p210
      $region54: #{upstack_forward.3} parent=51 // pred_check_branch
        %1099 = sbr.rel (%p1097) target = $region56
      $region55: #{upstack_forward.3} parent=51 // pred_region
        _
      $region56: #{upstack_forward.3} parent=51 // pred_fallthru
        _
    $region52: #{upstack_forward.3} parent=5 // pred_fallthru
      _
    %p1100 = scmp.le.s32.totalorder 2, %s14
    // Predicated region
    $region57: #{upstack_forward.3} parent=5 // pred_check
      %p1101 = pneg %p1100
    $region58: #{upstack_forward.3} parent=5 // pred_check_branch
      %1103 = sbr.rel (%p1101) target = $region60
    $region59: #{upstack_forward.3} parent=5 // pred_region
      %s1104 = ssub.s32 %s14, 2
      // Predicated region
      $region61: #{upstack_forward.3} parent=59 // pred_check
        %p1105 = pneg %p216
      $region62: #{upstack_forward.3} parent=59 // pred_check_branch
        %1107 = sbr.rel (%p1105) target = $region64
      $region63: #{upstack_forward.3} parent=59 // pred_region
        %p1108 = scmp.lt.s32.totalorder %s20, 1
        %s1109 = scalar_select %p1108, %s20, 1
        %s1110 = smul.addr %s1109, 4
        %s1111 = smul.addr %s1110, 8
        %s1112 = scalar_lea.vmem %s8, %s1111
      $region64: #{upstack_forward.3} parent=59 // pred_fallthru
        _
    $region60: #{upstack_forward.3} parent=5 // pred_fallthru
      _
  $region6: #{upstack_forward.3} parent=0 // loop_footer
    %s18 = sadd.s32 1, %s14
  $region7: #{upstack_forward.3} parent=0 // loop_footer_branch
    %13 = sbr.rel target = $region3
  $region8: #{upstack_forward.3} parent=0 // loop_exit
    _

// kernel: upstack_forward.5
$region0: #{upstack_forward.5}
  #allocation0 [shape = 'u32[]', space=smem, size = 0x4, offset = 0x4, fixed_abs, tag = 'smem constant byte address 0x4 - core index']
  #allocation1 [shape = 'u32[144,128]{1,0:T(1,128)}', space=vmem, size = 0x12000, scoped, tag = 'internal scratch']
  %s0 = inlined_call_operand.vmem [shape: f32[2,8,384], index: 0, kind: input, shape index: {}]
  %s1 = inlined_call_operand.vmem [shape: f32[1,384], index: 1, kind: input, shape index: {}]
  %s2 = inlined_call_operand.vmem [shape: f32[8,6], index: 2, kind: input, shape index: {}]
  %s3 = inlined_call_operand.vmem [shape: bf16[8,8], index: 3, kind: input, shape index: {}]
  %s4 = inlined_call_operand.vmem [shape: bf16[9,8,8], index: 4, kind: input, shape index: {}]
  %s5 = inlined_call_operand.vmem [shape: bf16[8,8], index: 5, kind: input, shape index: {}]
  %s6 = inlined_call_operand.vmem [shape: f32[8,1], index: 6, kind: input, shape index: {}]
  %s7 = inlined_call_operand.vmem [shape: f32[2,8,384], index: 7, kind: output, shape index: {}]
  %s8 = sld [smem:[#allocation0]]
  $region61: #{upstack_forward.5} parent=0
    _
  %s10 = ssub.s32 1, %s8
  %s11 = scalar_select 0, %s10, %s8
  loop: start=0, step=1, limit=4
  $region2: #{upstack_forward.5} parent=0 // loop_pre_header
    _
  $region3: #{upstack_forward.5} parent=0 // loop_header
    %s13 = sphi 0, %s17
    %p14 = scmp.ge.s32.totalorder %s13, 4
    %s23 = sphi 0, %s25
    %s26 = sphi 0, %s23
    %s27 = sphi 0, %s26
    %s43 = sphi 0, %s27
    %s47 = sphi 0, %s47
    %s49 = sphi 0, %s47
    %s50 = sphi 0, %s49
    %s64 = sphi 0, %s50
    %s68 = sphi 0, %s68
    %s70 = sphi 0, %s68
    %s71 = sphi 0, %s70
    %s85 = sphi 0, %s71
    %s89 = sphi 0, %s89
    %s91 = sphi 0, %s89
    %s92 = sphi 0, %s91
    %s106 = sphi 0, %s92
    %s110 = sphi 0, %s110
    %s112 = sphi 0, %s110
    %s113 = sphi 0, %s112
    %s127 = sphi 0, %s113
    %s131 = sphi 0, %s131
    %s133 = sphi 0, %s131
    %s134 = sphi 0, %s133
    %s148 = sphi 0, %s134
    %s152 = sphi 0, %s152
    %s154 = sphi 0, %s152
    %s155 = sphi 0, %s154
    %s169 = sphi 0, %s155
    %s175 = sphi 0, %s177
    %s178 = sphi 0, %s175
    %s179 = sphi 0, %s178
    %s195 = sphi 0, %s179
  $region4: #{upstack_forward.5} parent=0 // loop_header_branch
    %16 = sbr.rel (%p14) target = $region8
  $region5: #{upstack_forward.5} parent=0 // loop_body
    %s18 = ssub.s32 %s13, 1
    %s19 = ssub.s32 %s13, 2
    %s20 = sadd.s32 %s13, 1
    %s21 = ssub.s32 %s13, %s20
    %p22 = scmp.eq.s32.totalorder %s21, 0
    %s24 = sadd.s32 %s23, 1
    %s25 = scalar_select %p22, %s23, %s24
    %p28 = pneg %p22
    %p29 = scmp.eq.s32.totalorder %s13, 1
    %p30 = por %p28, %p29
    %p31 = scmp.ne.s32.totalorder %s23, %s26
    %p32 = scmp.eq.s32.totalorder %s13, 0
    %p33 = por %p31, %p32
    %p34 = scmp.ne.s32.totalorder %s23, %s26
    %p35 = scmp.eq.s32.totalorder %s18, 1
    %p36 = por %p34, %p35
    %p37 = scmp.ne.s32.totalorder %s26, %s27
    %p38 = scmp.eq.s32.totalorder %s18, 0
    %p39 = por %p37, %p38
    %p40 = scmp.ne.s32.totalorder %s26, %s27
    %p41 = scmp.eq.s32.totalorder %s19, 1
    %p42 = por %p40, %p41
    %p44 = scmp.ne.s32.totalorder %s27, %s43
    %p45 = scmp.eq.s32.totalorder %s19, 0
    %p46 = por %p44, %p45
    %s48 = sadd.s32 %s47, 1
    %p51 = scmp.eq.s32.totalorder %s13, 1
    %p52 = scmp.ne.s32.totalorder %s47, %s49
    %p53 = scmp.eq.s32.totalorder %s13, 0
    %p54 = por %p52, %p53
    %p55 = scmp.ne.s32.totalorder %s47, %s49
    %p56 = scmp.eq.s32.totalorder %s18, 1
    %p57 = por %p55, %p56
    %p58 = scmp.ne.s32.totalorder %s49, %s50
    %p59 = scmp.eq.s32.totalorder %s18, 0
    %p60 = por %p58, %p59
    %p61 = scmp.ne.s32.totalorder %s49, %s50
    %p62 = scmp.eq.s32.totalorder %s19, 1
    %p63 = por %p61, %p62
    %p65 = scmp.ne.s32.totalorder %s50, %s64
    %p66 = scmp.eq.s32.totalorder %s19, 0
    %p67 = por %p65, %p66
    %s69 = sadd.s32 %s68, 1
    %p72 = scmp.eq.s32.totalorder %s13, 1
    %p73 = scmp.ne.s32.totalorder %s68, %s70
    %p74 = scmp.eq.s32.totalorder %s13, 0
    %p75 = por %p73, %p74
    %p76 = scmp.ne.s32.totalorder %s68, %s70
    %p77 = scmp.eq.s32.totalorder %s18, 1
    %p78 = por %p76, %p77
    %p79 = scmp.ne.s32.totalorder %s70, %s71
    %p80 = scmp.eq.s32.totalorder %s18, 0
    %p81 = por %p79, %p80
    %p82 = scmp.ne.s32.totalorder %s70, %s71
    %p83 = scmp.eq.s32.totalorder %s19, 1
    %p84 = por %p82, %p83
    %p86 = scmp.ne.s32.totalorder %s71, %s85
    %p87 = scmp.eq.s32.totalorder %s19, 0
    %p88 = por %p86, %p87
    %s90 = sadd.s32 %s89, 1
    %p93 = scmp.eq.s32.totalorder %s13, 1
    %p94 = scmp.ne.s32.totalorder %s89, %s91
    %p95 = scmp.eq.s32.totalorder %s13, 0
    %p96 = por %p94, %p95
    %p97 = scmp.ne.s32.totalorder %s89, %s91
    %p98 = scmp.eq.s32.totalorder %s18, 1
    %p99 = por %p97, %p98
    %p100 = scmp.ne.s32.totalorder %s91, %s92
    %p101 = scmp.eq.s32.totalorder %s18, 0
    %p102 = por %p100, %p101
    %p103 = scmp.ne.s32.totalorder %s91, %s92
    %p104 = scmp.eq.s32.totalorder %s19, 1
    %p105 = por %p103, %p104
    %p107 = scmp.ne.s32.totalorder %s92, %s106
    %p108 = scmp.eq.s32.totalorder %s19, 0
    %p109 = por %p107, %p108
    %s111 = sadd.s32 %s110, 1
    %p114 = scmp.eq.s32.totalorder %s13, 1
    %p115 = scmp.ne.s32.totalorder %s110, %s112
    %p116 = scmp.eq.s32.totalorder %s13, 0
    %p117 = por %p115, %p116
    %p118 = scmp.ne.s32.totalorder %s110, %s112
    %p119 = scmp.eq.s32.totalorder %s18, 1
    %p120 = por %p118, %p119
    %p121 = scmp.ne.s32.totalorder %s112, %s113
    %p122 = scmp.eq.s32.totalorder %s18, 0
    %p123 = por %p121, %p122
    %p124 = scmp.ne.s32.totalorder %s112, %s113
    %p125 = scmp.eq.s32.totalorder %s19, 1
    %p126 = por %p124, %p125
    %p128 = scmp.ne.s32.totalorder %s113, %s127
    %p129 = scmp.eq.s32.totalorder %s19, 0
    %p130 = por %p128, %p129
    %s132 = sadd.s32 %s131, 1
    %p135 = scmp.eq.s32.totalorder %s13, 1
    %p136 = scmp.ne.s32.totalorder %s131, %s133
    %p137 = scmp.eq.s32.totalorder %s13, 0
    %p138 = por %p136, %p137
    %p139 = scmp.ne.s32.totalorder %s131, %s133
    %p140 = scmp.eq.s32.totalorder %s18, 1
    %p141 = por %p139, %p140
    %p142 = scmp.ne.s32.totalorder %s133, %s134
    %p143 = scmp.eq.s32.totalorder %s18, 0
    %p144 = por %p142, %p143
    %p145 = scmp.ne.s32.totalorder %s133, %s134
    %p146 = scmp.eq.s32.totalorder %s19, 1
    %p147 = por %p145, %p146
    %p149 = scmp.ne.s32.totalorder %s134, %s148
    %p150 = scmp.eq.s32.totalorder %s19, 0
    %p151 = por %p149, %p150
    %s153 = sadd.s32 %s152, 1
    %p156 = scmp.eq.s32.totalorder %s13, 1
    %p157 = scmp.ne.s32.totalorder %s152, %s154
    %p158 = scmp.eq.s32.totalorder %s13, 0
    %p159 = por %p157, %p158
    %p160 = scmp.ne.s32.totalorder %s152, %s154
    %p161 = scmp.eq.s32.totalorder %s18, 1
    %p162 = por %p160, %p161
    %p163 = scmp.ne.s32.totalorder %s154, %s155
    %p164 = scmp.eq.s32.totalorder %s18, 0
    %p165 = por %p163, %p164
    %p166 = scmp.ne.s32.totalorder %s154, %s155
    %p167 = scmp.eq.s32.totalorder %s19, 1
    %p168 = por %p166, %p167
    %p170 = scmp.ne.s32.totalorder %s155, %s169
    %p171 = scmp.eq.s32.totalorder %s19, 0
    %p172 = por %p170, %p171
    %s173 = ssub.s32 %s13, %s20
    %p174 = scmp.eq.s32.totalorder %s173, 0
    %s176 = sadd.s32 %s175, 1
    %s177 = scalar_select %p174, %s175, %s176
    %p180 = pneg %p174
    %p181 = scmp.eq.s32.totalorder %s13, 1
    %p182 = por %p180, %p181
    %p183 = scmp.ne.s32.totalorder %s175, %s178
    %p184 = scmp.eq.s32.totalorder %s13, 0
    %p185 = por %p183, %p184
    %p186 = scmp.ne.s32.totalorder %s175, %s178
    %p187 = scmp.eq.s32.totalorder %s18, 1
    %p188 = por %p186, %p187
    %p189 = scmp.ne.s32.totalorder %s178, %s179
    %p190 = scmp.eq.s32.totalorder %s18, 0
    %p191 = por %p189, %p190
    %p192 = scmp.ne.s32.totalorder %s178, %s179
    %p193 = scmp.eq.s32.totalorder %s19, 1
    %p194 = por %p192, %p193
    %p196 = scmp.ne.s32.totalorder %s179, %s195
    %p197 = scmp.eq.s32.totalorder %s19, 0
    %p198 = por %p196, %p197
    %p199 = scmp.le.s32.totalorder 1, %s13
    %p200 = scmp.lt.s32.totalorder %s13, 3
    %p201 = pnand %p199, %p200
    %p202 = pneg %p201
    // Predicated region
    $region9: #{upstack_forward.5} parent=5 // pred_check
      _
    $region10: #{upstack_forward.5} parent=5 // pred_check_branch
      %204 = sbr.rel (%p201) target = $region12
    $region11: #{upstack_forward.5} parent=5 // pred_region
      %s205 = ssub.s32 %s13, 1
      // Predicated region
      $region13: #{upstack_forward.5} parent=11 // pred_check
        %p206 = pneg %p60
      $region14: #{upstack_forward.5} parent=11 // pred_check_branch
        %208 = sbr.rel (%p206) target = $region16
      $region15: #{upstack_forward.5} parent=11 // pred_region
        _
      $region16: #{upstack_forward.5} parent=11 // pred_fallthru
        _
      // Predicated region
      $region17: #{upstack_forward.5} parent=11 // pred_check
        %p209 = pneg %p81
      $region18: #{upstack_forward.5} parent=11 // pred_check_branch
        %211 = sbr.rel (%p209) target = $region20
      $region19: #{upstack_forward.5} parent=11 // pred_region
        _
      $region20: #{upstack_forward.5} parent=11 // pred_fallthru
        _
      // Predicated region
      $region21: #{upstack_forward.5} parent=11 // pred_check
        %p212 = pneg %p102
      $region22: #{upstack_forward.5} parent=11 // pred_check_branch
        %214 = sbr.rel (%p212) target = $region24
      $region23: #{upstack_forward.5} parent=11 // pred_region
        _
      $region24: #{upstack_forward.5} parent=11 // pred_fallthru
        _
      // Predicated region
      $region25: #{upstack_forward.5} parent=11 // pred_check
        %p215 = pneg %p123
      $region26: #{upstack_forward.5} parent=11 // pred_check_branch
        %217 = sbr.rel (%p215) target = $region28
      $region27: #{upstack_forward.5} parent=11 // pred_region
        _
      $region28: #{upstack_forward.5} parent=11 // pred_fallthru
        _
      // Predicated region
      $region29: #{upstack_forward.5} parent=11 // pred_check
        %p218 = pneg %p144
      $region30: #{upstack_forward.5} parent=11 // pred_check_branch
        %220 = sbr.rel (%p218) target = $region32
      $region31: #{upstack_forward.5} parent=11 // pred_region
        _
      $region32: #{upstack_forward.5} parent=11 // pred_fallthru
        _
      // Predicated region
      $region33: #{upstack_forward.5} parent=11 // pred_check
        %p221 = pneg %p165
      $region34: #{upstack_forward.5} parent=11 // pred_check_branch
        %223 = sbr.rel (%p221) target = $region36
      $region35: #{upstack_forward.5} parent=11 // pred_region
        _
      $region36: #{upstack_forward.5} parent=11 // pred_fallthru
        _
    $region12: #{upstack_forward.5} parent=5 // pred_fallthru
      _
    %p224 = scmp.lt.s32.totalorder %s13, 2
    // Predicated region
    $region37: #{upstack_forward.5} parent=5 // pred_check
      %p225 = pneg %p224
    $region38: #{upstack_forward.5} parent=5 // pred_check_branch
      %227 = sbr.rel (%p225) target = $region40
    $region39: #{upstack_forward.5} parent=5 // pred_region
      // Predicated region
      $region41: #{upstack_forward.5} parent=39 // pred_check
        %p228 = pneg %p33
      $region42: #{upstack_forward.5} parent=39 // pred_check_branch
        %230 = sbr.rel (%p228) target = $region44
      $region43: #{upstack_forward.5} parent=39 // pred_region
        %p231 = scmp.lt.s32.totalorder %s13, 1
        %s232 = scalar_select %p231, %s13, 1
        %s233 = smul.addr %s232, 3
        %s234 = smul.addr %s233, 8
        %s235 = scalar_lea.vmem %s0, %s234
      $region44: #{upstack_forward.5} parent=39 // pred_fallthru
        _
    $region40: #{upstack_forward.5} parent=5 // pred_fallthru
      _
    %p236 = scmp.le.s32.totalorder 1, %s13
    %p237 = scmp.lt.s32.totalorder %s13, 3
    %p238 = pnand %p236, %p237
    %p239 = pneg %p238
    // Predicated region
    $region45: #{upstack_forward.5} parent=5 // pred_check
      _
    $region46: #{upstack_forward.5} parent=5 // pred_check_branch
      %241 = sbr.rel (%p238) target = $region48
    $region47: #{upstack_forward.5} parent=5 // pred_region
      %s242 = ssub.s32 %s13, 1
      %p243 = scmp.lt.s32.totalorder %s18, 1
      %s244 = scalar_select %p243, %s18, 1
      %s245 = smul.addr %s244, 3
      %s246 = smul.addr %s245, 8
      %s247 = scalar_lea.vmem %s0, %s246
      %p248 = pneg %p39
      %p249 = pneg %p36
      %p250 = pneg %p60
      %p251 = pneg %p57
      %p252 = pneg %p81
      %p253 = pneg %p78
      %p254 = pneg %p102
      %p255 = pneg %p99
      %p256 = pneg %p123
      %p257 = pneg %p120
      %p258 = pneg %p144
      %p259 = pneg %p141
      %p260 = pneg %p165
      %p261 = pneg %p162
      %p262 = pneg %p191
      %p263 = pneg %p188
      %p264 = scmp.lt.s32.totalorder %s18, 1
      %s265 = scalar_select %p264, %s18, 1
      %s266 = smul.addr %s265, 3
      %s267 = smul.addr %s266, 8
      %s268 = scalar_lea.vmem %s7, %s267
      %p269 = scmp.lt.s32.totalorder %s18, 1
      %s270 = scalar_select %p269, %s18, 1
      %s271 = smul.addr %s270, 3
      %s272 = smul.addr %s271, 8
      %s273 = scalar_lea.vmem %s0, %s272
      %p274 = scmp.lt.s32.totalorder %s18, 1
      %s275 = scalar_select %p274, %s18, 1
      %s276 = smul.addr %s275, 3
      %s277 = smul.addr %s276, 8
      %s278 = scalar_lea.vmem %s7, %s277
      %v280 = vld [vmem:[%s1] sm:$0x7]
      %v281 = vld [vmem:[%s2] sm:$0xff]
      %v282 = vld [vmem:[%s273] sm:$0xff]
      %v283 = vld [vmem:[%s273 + $0x8] sm:$0xff]
      %v284 = vld [vmem:[%s273 + $0x10] sm:$0xff]
      %286 = vset.pattern.permute.xlu0 0
      %287 = vperm.xlu0 %286, %v281
      %v288 = vpop.permute.xlu0 %287
      %v290 = vmul.f32 %v282, %v288
      %v291 = vmul.f32 %v283, %v288
      %v292 = vmul.f32 %v284, %v288
      %293 = vset.pattern.permute.xlu0 1
      %294 = vperm.xlu0 %293, %v281
      %v295 = vpop.permute.xlu0 %294
      %v297 = vadd.f32 %v290, %v295
      %v298 = vadd.f32 %v291, %v295
      %v299 = vadd.f32 %v292, %v295
      %v300 = vmax.f32 %v297, 0.0
      %v301 = vmax.f32 %v298, 0.0
      %v302 = vmax.f32 %v299, 0.0
      %v303 = vpack.c.bf16 %v300, %v300
      %v304 = vpack.c.bf16 %v301, %v301
      %v305 = vpack.c.bf16 %v302, %v302
      %v306 = vld [vmem:[%s3] sm:$0xf]
      %vm307 = vcmask 64512
      %v309 = vsel %vm307, %v306, 0
      %vm311 = vcmask 1043456
      %v313 = vsel %vm311, %v303, 0
      %v316 = vsel %vm311, %v304, 0
      %v319 = vsel %vm311, %v305, 0
      %321 = vmatprep.subr.bf16.mxu0 %v316
      %322 = vmatpush1.bf16.msra.mxu0 %v313
      %323 = vmatprep.subr.bf16.mxu0 0
      %324 = vmatpush1.bf16.msra.mxu0 0
      %325 = vmatprep.subr.bf16.mxu0 0
      %326 = vmatpush1.bf16.msra.mxu0 0
      %327 = vmatprep.subr.bf16.mxu0 0
      %328 = vmatpush1.bf16.msra.mxu0 0
      %329 = vmatprep.subr.bf16.mxu0 0
      %330 = vmatpush1.bf16.msra.mxu0 0
      %331 = vmatprep.subr.bf16.mxu0 0
      %332 = vmatpush1.bf16.msra.mxu0 0
      %333 = vmatprep.subr.bf16.mxu0 0
      %334 = vmatpush1.bf16.msra.mxu0 0
      %335 = vmatprep.subr.bf16.mxu0 0
      %336 = vmatpush1.bf16.msra.mxu0 0
      %337 = vmatprep.subr.bf16.mxu0 0
      %338 = vmatpush1.bf16.msra.mxu0 0
      %339 = vmatprep.subr.bf16.mxu0 0
      %340 = vmatpush1.bf16.msra.mxu0 0
      %341 = vmatprep.subr.bf16.mxu0 0
      %342 = vmatpush1.bf16.msra.mxu0 0
      %343 = vmatprep.subr.bf16.mxu0 0
      %344 = vmatpush1.bf16.msra.mxu0 0
      %345 = vmatprep.subr.bf16.mxu0 0
      %346 = vmatpush1.bf16.msra.mxu0 0
      %347 = vmatprep.subr.bf16.mxu0 0
      %348 = vmatpush1.bf16.msra.mxu0 0
      %349 = vmatprep.subr.bf16.mxu0 0
      %350 = vmatpush1.bf16.msra.mxu0 0
      %351 = vmatprep.subr.bf16.mxu0 0
      %352 = vmatpush1.bf16.msra.mxu0 0
      %353 = vmatprep.mubr.bf16.mxu0 0
      %354 = vmatmul.mubr.bf16.gmra.mrb[0].mxu0 %v309
      %v355 = vpop.f32.mrb[0].mxu0
      %v356 = vadd.f32 0.0, %v355
      %v357 = vpop.f32.mrb[0].mxu0
      %v358 = vadd.f32 0.0, %v357
      %v359 = vpop.f32.mrb[0].mxu0
      %v360 = vpop.f32.mrb[0].mxu0
      %361 = vdwg.mxu0
      %362 = vmatprep.subr.bf16.mxu0 0
      %363 = vmatpush1.bf16.msra.mxu0 %v319
      %364 = vmatprep.subr.bf16.mxu0 0
      %365 = vmatpush1.bf16.msra.mxu0 0
      %366 = vmatprep.subr.bf16.mxu0 0
      %367 = vmatpush1.bf16.msra.mxu0 0
      %368 = vmatprep.subr.bf16.mxu0 0
      %369 = vmatpush1.bf16.msra.mxu0 0
      %370 = vmatprep.subr.bf16.mxu0 0
      %371 = vmatpush1.bf16.msra.mxu0 0
      %372 = vmatprep.subr.bf16.mxu0 0
      %373 = vmatpush1.bf16.msra.mxu0 0
      %374 = vmatprep.subr.bf16.mxu0 0
      %375 = vmatpush1.bf16.msra.mxu0 0
      %376 = vmatprep.subr.bf16.mxu0 0
      %377 = vmatpush1.bf16.msra.mxu0 0
      %378 = vmatprep.subr.bf16.mxu0 0
      %379 = vmatpush1.bf16.msra.mxu0 0
      %380 = vmatprep.subr.bf16.mxu0 0
      %381 = vmatpush1.bf16.msra.mxu0 0
      %382 = vmatprep.subr.bf16.mxu0 0
      %383 = vmatpush1.bf16.msra.mxu0 0
      %384 = vmatprep.subr.bf16.mxu0 0
      %385 = vmatpush1.bf16.msra.mxu0 0
      %386 = vmatprep.subr.bf16.mxu0 0
      %387 = vmatpush1.bf16.msra.mxu0 0
      %388 = vmatprep.subr.bf16.mxu0 0
      %389 = vmatpush1.bf16.msra.mxu0 0
      %390 = vmatprep.subr.bf16.mxu0 0
      %391 = vmatpush1.bf16.msra.mxu0 0
      %392 = vmatprep.subr.bf16.mxu0 0
      %393 = vmatpush1.bf16.msra.mxu0 0
      %394 = vmatprep.mubr.bf16.mxu0 0
      %395 = vmatmul.mubr.bf16.gmra.mrb[0].mxu0 %v309
      %v396 = vpop.f32.mrb[0].mxu0
      %v397 = vadd.f32 0.0, %v396
      %v398 = vpop.f32.mrb[0].mxu0
      %v399 = vpop.f32.mrb[0].mxu0
      %v400 = vpop.f32.mrb[0].mxu0
      %401 = vdwg.mxu0
      %402 = vset.pattern.permute.xlu0 2
      %403 = vperm.xlu0 %402, %v281
      %v404 = vpop.permute.xlu0 %403
      %v406 = vmul.f32 %v356, %v404
      %v407 = vmul.f32 %v358, %v404
      %v408 = vmul.f32 %v397, %v404
      %409 = vset.pattern.permute.xlu0 3
      %410 = vperm.xlu0 %409, %v281
      %v411 = vpop.permute.xlu0 %410
      %v413 = vadd.f32 %v406, %v411
      %v414 = vadd.f32 %v407, %v411
      %v415 = vadd.f32 %v408, %v411
      %v416 = vmax.f32 %v413, 0.0
      %v417 = vmax.f32 %v414, 0.0
      %v418 = vmax.f32 %v415, 0.0
      %v420 = vlaneseq
      %v421 = vshrl.u32 %v420, 7
      %v422 = vsub.s32 0, %v421
      %v423 = vrot.slane %v280, %v422
      %v424 = vlaneseq
      %v425 = vshrl.u32 %v424, 7
      %v426 = vsub.s32 1, %v425
      %v427 = vrot.slane %v280, %v426
      %v428 = vlaneseq
      %v429 = vshrl.u32 %v428, 7
      %v430 = vsub.s32 2, %v429
      %v431 = vrot.slane %v280, %v430
      %v435 = vmul.f32 %v416, %v423
      %v436 = vmul.f32 %v417, %v427
      %v437 = vmul.f32 %v418, %v431
      %s438 = scalar_lea.vmem %s4, 16
      %v439 = vld [vmem:[%s438] sm:$0xf]
      %v440 = vpack.c.bf16 %v435, %v435
      %v441 = vpack.c.bf16 %v436, %v436
      %v442 = vpack.c.bf16 %v437, %v437
      %443 = vrot.lane.b32.xlu0 %v435, 19
      %v444 = vpop.permute.xlu0 %443
      %445 = vrot.lane.b32.xlu0 %v436, 19
      %v446 = vpop.permute.xlu0 %445
      %447 = vrot.lane.b32.xlu0 %v437, 19
      %v448 = vpop.permute.xlu0 %447
      %v449 = vlaneseq
      %v450 = vand.u32 %v449, 127
      %vm451 = vcmp.lt.s32.totalorder %v450, 19
      %v452 = vsel %vm451, %v446, %v448
      %v453 = vsel %vm451, %v444, %v446
      %v454 = vsel %vm451, %v448, %v444
      %v455 = vpack.c.bf16 %v454, %v454
      %v456 = vpack.c.bf16 %v453, %v453
      %v457 = vpack.c.bf16 %v452, %v452
      %v458 = vld [vmem:[%s4] sm:$0xf]
      %v460 = vsel %vm307, %v458, 0
      %v463 = vsel %vm311, %v455, 0
      %v466 = vsel %vm311, %v456, 0
      %v469 = vsel %vm311, %v457, 0
      %471 = vmatprep.subr.bf16.mxu0 %v466
      %472 = vmatpush1.bf16.msra.mxu0 %v463
      %473 = vmatprep.subr.bf16.mxu0 0
      %474 = vmatpush1.bf16.msra.mxu0 0
      %475 = vmatprep.subr.bf16.mxu0 0
      %476 = vmatpush1.bf16.msra.mxu0 0
      %477 = vmatprep.subr.bf16.mxu0 0
      %478 = vmatpush1.bf16.msra.mxu0 0
      %479 = vmatprep.subr.bf16.mxu0 0
      %480 = vmatpush1.bf16.msra.mxu0 0
      %481 = vmatprep.subr.bf16.mxu0 0
      %482 = vmatpush1.bf16.msra.mxu0 0
      %483 = vmatprep.subr.bf16.mxu0 0
      %484 = vmatpush1.bf16.msra.mxu0 0
      %485 = vmatprep.subr.bf16.mxu0 0
      %486 = vmatpush1.bf16.msra.mxu0 0
      %487 = vmatprep.subr.bf16.mxu0 0
      %488 = vmatpush1.bf16.msra.mxu0 0
      %489 = vmatprep.subr.bf16.mxu0 0
      %490 = vmatpush1.bf16.msra.mxu0 0
      %491 = vmatprep.subr.bf16.mxu0 0
      %492 = vmatpush1.bf16.msra.mxu0 0
      %493 = vmatprep.subr.bf16.mxu0 0
      %494 = vmatpush1.bf16.msra.mxu0 0
      %495 = vmatprep.subr.bf16.mxu0 0
      %496 = vmatpush1.bf16.msra.mxu0 0
      %497 = vmatprep.subr.bf16.mxu0 0
      %498 = vmatpush1.bf16.msra.mxu0 0
      %499 = vmatprep.subr.bf16.mxu0 0
      %500 = vmatpush1.bf16.msra.mxu0 0
      %501 = vmatprep.subr.bf16.mxu0 0
      %502 = vmatpush1.bf16.msra.mxu0 0
      %503 = vmatprep.mubr.bf16.mxu0 0
      %504 = vmatmul.mubr.bf16.gmra.mrb[0].mxu0 %v460
      %v505 = vpop.f32.mrb[0].mxu0
      %v506 = vadd.f32 0.0, %v505
      %v507 = vpop.f32.mrb[0].mxu0
      %v508 = vadd.f32 0.0, %v507
      %v509 = vpop.f32.mrb[0].mxu0
      %v510 = vpop.f32.mrb[0].mxu0
      %511 = vdwg.mxu0
      %512 = vmatprep.subr.bf16.mxu0 0
      %513 = vmatpush1.bf16.msra.mxu0 %v469
      %514 = vmatprep.subr.bf16.mxu0 0
      %515 = vmatpush1.bf16.msra.mxu0 0
      %516 = vmatprep.subr.bf16.mxu0 0
      %517 = vmatpush1.bf16.msra.mxu0 0
      %518 = vmatprep.subr.bf16.mxu0 0
      %519 = vmatpush1.bf16.msra.mxu0 0
      %520 = vmatprep.subr.bf16.mxu0 0
      %521 = vmatpush1.bf16.msra.mxu0 0
      %522 = vmatprep.subr.bf16.mxu0 0
      %523 = vmatpush1.bf16.msra.mxu0 0
      %524 = vmatprep.subr.bf16.mxu0 0
      %525 = vmatpush1.bf16.msra.mxu0 0
      %526 = vmatprep.subr.bf16.mxu0 0
      %527 = vmatpush1.bf16.msra.mxu0 0
      %528 = vmatprep.subr.bf16.mxu0 0
      %529 = vmatpush1.bf16.msra.mxu0 0
      %530 = vmatprep.subr.bf16.mxu0 0
      %531 = vmatpush1.bf16.msra.mxu0 0
      %532 = vmatprep.subr.bf16.mxu0 0
      %533 = vmatpush1.bf16.msra.mxu0 0
      %534 = vmatprep.subr.bf16.mxu0 0
      %535 = vmatpush1.bf16.msra.mxu0 0
      %536 = vmatprep.subr.bf16.mxu0 0
      %537 = vmatpush1.bf16.msra.mxu0 0
      %538 = vmatprep.subr.bf16.mxu0 0
      %539 = vmatpush1.bf16.msra.mxu0 0
      %540 = vmatprep.subr.bf16.mxu0 0
      %541 = vmatpush1.bf16.msra.mxu0 0
      %542 = vmatprep.subr.bf16.mxu0 0
      %543 = vmatpush1.bf16.msra.mxu0 0
      %544 = vmatprep.mubr.bf16.mxu0 0
      %545 = vmatmul.mubr.bf16.gmra.mrb[0].mxu0 %v460
      %v546 = vpop.f32.mrb[0].mxu0
      %v547 = vadd.f32 0.0, %v546
      %v548 = vpop.f32.mrb[0].mxu0
      %v549 = vpop.f32.mrb[0].mxu0
      %v550 = vpop.f32.mrb[0].mxu0
      %551 = vdwg.mxu0
      %v553 = vsel %vm307, %v439, 0
      %v556 = vsel %vm311, %v440, 0
      %v559 = vsel %vm311, %v441, 0
      %v562 = vsel %vm311, %v442, 0
      %564 = vmatprep.subr.bf16.mxu0 %v559
      %565 = vmatpush1.bf16.msra.mxu0 %v556
      %566 = vmatprep.subr.bf16.mxu0 0
      %567 = vmatpush1.bf16.msra.mxu0 0
      %568 = vmatprep.subr.bf16.mxu0 0
      %569 = vmatpush1.bf16.msra.mxu0 0
      %570 = vmatprep.subr.bf16.mxu0 0
      %571 = vmatpush1.bf16.msra.mxu0 0
      %572 = vmatprep.subr.bf16.mxu0 0
      %573 = vmatpush1.bf16.msra.mxu0 0
      %574 = vmatprep.subr.bf16.mxu0 0
      %575 = vmatpush1.bf16.msra.mxu0 0
      %576 = vmatprep.subr.bf16.mxu0 0
      %577 = vmatpush1.bf16.msra.mxu0 0
      %578 = vmatprep.subr.bf16.mxu0 0
      %579 = vmatpush1.bf16.msra.mxu0 0
      %580 = vmatprep.subr.bf16.mxu0 0
      %581 = vmatpush1.bf16.msra.mxu0 0
      %582 = vmatprep.subr.bf16.mxu0 0
      %583 = vmatpush1.bf16.msra.mxu0 0
      %584 = vmatprep.subr.bf16.mxu0 0
      %585 = vmatpush1.bf16.msra.mxu0 0
      %586 = vmatprep.subr.bf16.mxu0 0
      %587 = vmatpush1.bf16.msra.mxu0 0
      %588 = vmatprep.subr.bf16.mxu0 0
      %589 = vmatpush1.bf16.msra.mxu0 0
      %590 = vmatprep.subr.bf16.mxu0 0
      %591 = vmatpush1.bf16.msra.mxu0 0
      %592 = vmatprep.subr.bf16.mxu0 0
      %593 = vmatpush1.bf16.msra.mxu0 0
      %594 = vmatprep.subr.bf16.mxu0 0
      %595 = vmatpush1.bf16.msra.mxu0 0
      %596 = vmatprep.mubr.bf16.mxu0 0
      %597 = vmatmul.mubr.bf16.gmra.mrb[0].mxu0 %v553
      %v598 = vpop.f32.mrb[0].mxu0
      %v599 = vadd.f32 %v506, %v598
      %v600 = vpop.f32.mrb[0].mxu0
      %v601 = vadd.f32 %v508, %v600
      %v602 = vpop.f32.mrb[0].mxu0
      %v603 = vpop.f32.mrb[0].mxu0
      %604 = vdwg.mxu0
      %605 = vmatprep.subr.bf16.mxu0 0
      %606 = vmatpush1.bf16.msra.mxu0 %v562
      %607 = vmatprep.subr.bf16.mxu0 0
      %608 = vmatpush1.bf16.msra.mxu0 0
      %609 = vmatprep.subr.bf16.mxu0 0
      %610 = vmatpush1.bf16.msra.mxu0 0
      %611 = vmatprep.subr.bf16.mxu0 0
      %612 = vmatpush1.bf16.msra.mxu0 0
      %613 = vmatprep.subr.bf16.mxu0 0
      %614 = vmatpush1.bf16.msra.mxu0 0
      %615 = vmatprep.subr.bf16.mxu0 0
      %616 = vmatpush1.bf16.msra.mxu0 0
      %617 = vmatprep.subr.bf16.mxu0 0
      %618 = vmatpush1.bf16.msra.mxu0 0
      %619 = vmatprep.subr.bf16.mxu0 0
      %620 = vmatpush1.bf16.msra.mxu0 0
      %621 = vmatprep.subr.bf16.mxu0 0
      %622 = vmatpush1.bf16.msra.mxu0 0
      %623 = vmatprep.subr.bf16.mxu0 0
      %624 = vmatpush1.bf16.msra.mxu0 0
      %625 = vmatprep.subr.bf16.mxu0 0
      %626 = vmatpush1.bf16.msra.mxu0 0
      %627 = vmatprep.subr.bf16.mxu0 0
      %628 = vmatpush1.bf16.msra.mxu0 0
      %629 = vmatprep.subr.bf16.mxu0 0
      %630 = vmatpush1.bf16.msra.mxu0 0
      %631 = vmatprep.subr.bf16.mxu0 0
      %632 = vmatpush1.bf16.msra.mxu0 0
      %633 = vmatprep.subr.bf16.mxu0 0
      %634 = vmatpush1.bf16.msra.mxu0 0
      %635 = vmatprep.subr.bf16.mxu0 0
      %636 = vmatpush1.bf16.msra.mxu0 0
      %637 = vmatprep.mubr.bf16.mxu0 0
      %638 = vmatmul.mubr.bf16.gmra.mrb[0].mxu0 %v553
      %v639 = vpop.f32.mrb[0].mxu0
      %v640 = vadd.f32 %v547, %v639
      %v641 = vpop.f32.mrb[0].mxu0
      %v642 = vpop.f32.mrb[0].mxu0
      %v643 = vpop.f32.mrb[0].mxu0
      %644 = vdwg.mxu0
      %645 = vrot.lane.b32.xlu0 %v435, 18
      %v646 = vpop.permute.xlu0 %645
      %647 = vrot.lane.b32.xlu0 %v436, 18
      %v648 = vpop.permute.xlu0 %647
      %649 = vrot.lane.b32.xlu0 %v437, 18
      %v650 = vpop.permute.xlu0 %649
      %vm651 = vcmp.lt.s32.totalorder %v450, 18
      %v652 = vsel %vm651, %v648, %v650
      %v653 = vsel %vm651, %v646, %v648
      %v654 = vsel %vm651, %v650, %v646
      %v655 = vpack.c.bf16 %v654, %v654
      %v656 = vpack.c.bf16 %v653, %v653
      %v657 = vpack.c.bf16 %v652, %v652
      %s658 = scalar_lea.vmem %s4, 4
      %v659 = vld [vmem:[%s658] sm:$0xf]
      %v661 = vsel %vm307, %v659, 0
      %v664 = vsel %vm311, %v655, 0
      %v667 = vsel %vm311, %v656, 0
      %v670 = vsel %vm311, %v657, 0
      %672 = vmatprep.subr.bf16.mxu0 %v667
      %673 = vmatpush1.bf16.msra.mxu0 %v664
      %674 = vmatprep.subr.bf16.mxu0 0
      %675 = vmatpush1.bf16.msra.mxu0 0
      %676 = vmatprep.subr.bf16.mxu0 0
      %677 = vmatpush1.bf16.msra.mxu0 0
      %678 = vmatprep.subr.bf16.mxu0 0
      %679 = vmatpush1.bf16.msra.mxu0 0
      %680 = vmatprep.subr.bf16.mxu0 0
      %681 = vmatpush1.bf16.msra.mxu0 0
      %682 = vmatprep.subr.bf16.mxu0 0
      %683 = vmatpush1.bf16.msra.mxu0 0
      %684 = vmatprep.subr.bf16.mxu0 0
      %685 = vmatpush1.bf16.msra.mxu0 0
      %686 = vmatprep.subr.bf16.mxu0 0
      %687 = vmatpush1.bf16.msra.mxu0 0
      %688 = vmatprep.subr.bf16.mxu0 0
      %689 = vmatpush1.bf16.msra.mxu0 0
      %690 = vmatprep.subr.bf16.mxu0 0
      %691 = vmatpush1.bf16.msra.mxu0 0
      %692 = vmatprep.subr.bf16.mxu0 0
      %693 = vmatpush1.bf16.msra.mxu0 0
      %694 = vmatprep.subr.bf16.mxu0 0
      %695 = vmatpush1.bf16.msra.mxu0 0
      %696 = vmatprep.subr.bf16.mxu0 0
      %697 = vmatpush1.bf16.msra.mxu0 0
      %698 = vmatprep.subr.bf16.mxu0 0
      %699 = vmatpush1.bf16.msra.mxu0 0
      %700 = vmatprep.subr.bf16.mxu0 0
      %701 = vmatpush1.bf16.msra.mxu0 0
      %702 = vmatprep.subr.bf16.mxu0 0
      %703 = vmatpush1.bf16.msra.mxu0 0
      %704 = vmatprep.mubr.bf16.mxu0 0
      %705 = vmatmul.mubr.bf16.gmra.mrb[0].mxu0 %v661
      %v706 = vpop.f32.mrb[0].mxu0
      %v707 = vadd.f32 0.0, %v706
      %v708 = vpop.f32.mrb[0].mxu0
      %v709 = vadd.f32 0.0, %v708
      %v710 = vpop.f32.mrb[0].mxu0
      %v711 = vpop.f32.mrb[0].mxu0
      %712 = vdwg.mxu0
      %713 = vmatprep.subr.bf16.mxu0 0
      %714 = vmatpush1.bf16.msra.mxu0 %v670
      %715 = vmatprep.subr.bf16.mxu0 0
      %716 = vmatpush1.bf16.msra.mxu0 0
      %717 = vmatprep.subr.bf16.mxu0 0
      %718 = vmatpush1.bf16.msra.mxu0 0
      %719 = vmatprep.subr.bf16.mxu0 0
      %720 = vmatpush1.bf16.msra.mxu0 0
      %721 = vmatprep.subr.bf16.mxu0 0
      %722 = vmatpush1.bf16.msra.mxu0 0
      %723 = vmatprep.subr.bf16.mxu0 0
      %724 = vmatpush1.bf16.msra.mxu0 0
      %725 = vmatprep.subr.bf16.mxu0 0
      %726 = vmatpush1.bf16.msra.mxu0 0
      %727 = vmatprep.subr.bf16.mxu0 0
      %728 = vmatpush1.bf16.msra.mxu0 0
      %729 = vmatprep.subr.bf16.mxu0 0
      %730 = vmatpush1.bf16.msra.mxu0 0
      %731 = vmatprep.subr.bf16.mxu0 0
      %732 = vmatpush1.bf16.msra.mxu0 0
      %733 = vmatprep.subr.bf16.mxu0 0
      %734 = vmatpush1.bf16.msra.mxu0 0
      %735 = vmatprep.subr.bf16.mxu0 0
      %736 = vmatpush1.bf16.msra.mxu0 0
      %737 = vmatprep.subr.bf16.mxu0 0
      %738 = vmatpush1.bf16.msra.mxu0 0
      %739 = vmatprep.subr.bf16.mxu0 0
      %740 = vmatpush1.bf16.msra.mxu0 0
      %741 = vmatprep.subr.bf16.mxu0 0
      %742 = vmatpush1.bf16.msra.mxu0 0
      %743 = vmatprep.subr.bf16.mxu0 0
      %744 = vmatpush1.bf16.msra.mxu0 0
      %745 = vmatprep.mubr.bf16.mxu0 0
      %746 = vmatmul.mubr.bf16.gmra.mrb[0].mxu0 %v661
      %v747 = vpop.f32.mrb[0].mxu0
      %v748 = vadd.f32 0.0, %v747
      %v749 = vpop.f32.mrb[0].mxu0
      %v750 = vpop.f32.mrb[0].mxu0
      %v751 = vpop.f32.mrb[0].mxu0
      %752 = vdwg.mxu0
      %v753 = vadd.f32 %v599, %v707
      %v754 = vadd.f32 %v601, %v709
      %v755 = vadd.f32 %v640, %v748
      %756 = vrot.lane.b32.xlu0 %v435, 17
      %v757 = vpop.permute.xlu0 %756
      %758 = vrot.lane.b32.xlu0 %v436, 17
      %v759 = vpop.permute.xlu0 %758
      %760 = vrot.lane.b32.xlu0 %v437, 17
      %v761 = vpop.permute.xlu0 %760
      %vm762 = vcmp.lt.s32.totalorder %v450, 17
      %v763 = vsel %vm762, %v759, %v761
      %v764 = vsel %vm762, %v757, %v759
      %v765 = vsel %vm762, %v761, %v757
      %v766 = vpack.c.bf16 %v765, %v765
      %v767 = vpack.c.bf16 %v764, %v764
      %v768 = vpack.c.bf16 %v763, %v763
      %s769 = scalar_lea.vmem %s4, 8
      %v770 = vld [vmem:[%s769] sm:$0xf]
      %v772 = vsel %vm307, %v770, 0
      %v775 = vsel %vm311, %v766, 0
      %v778 = vsel %vm311, %v767, 0
      %v781 = vsel %vm311, %v768, 0
      %783 = vmatprep.subr.bf16.mxu0 %v778
      %784 = vmatpush1.bf16.msra.mxu0 %v775
      %785 = vmatprep.subr.bf16.mxu0 0
      %786 = vmatpush1.bf16.msra.mxu0 0
      %787 = vmatprep.subr.bf16.mxu0 0
      %788 = vmatpush1.bf16.msra.mxu0 0
      %789 = vmatprep.subr.bf16.mxu0 0
      %790 = vmatpush1.bf16.msra.mxu0 0
      %791 = vmatprep.subr.bf16.mxu0 0
      %792 = vmatpush1.bf16.msra.mxu0 0
      %793 = vmatprep.subr.bf16.mxu0 0
      %794 = vmatpush1.bf16.msra.mxu0 0
      %795 = vmatprep.subr.bf16.mxu0 0
      %796 = vmatpush1.bf16.msra.mxu0 0
      %797 = vmatprep.subr.bf16.mxu0 0
      %798 = vmatpush1.bf16.msra.mxu0 0
      %799 = vmatprep.subr.bf16.mxu0 0
      %800 = vmatpush1.bf16.msra.mxu0 0
      %801 = vmatprep.subr.bf16.mxu0 0
      %802 = vmatpush1.bf16.msra.mxu0 0
      %803 = vmatprep.subr.bf16.mxu0 0
      %804 = vmatpush1.bf16.msra.mxu0 0
      %805 = vmatprep.subr.bf16.mxu0 0
      %806 = vmatpush1.bf16.msra.mxu0 0
      %807 = vmatprep.subr.bf16.mxu0 0
      %808 = vmatpush1.bf16.msra.mxu0 0
      %809 = vmatprep.subr.bf16.mxu0 0
      %810 = vmatpush1.bf16.msra.mxu0 0
      %811 = vmatprep.subr.bf16.mxu0 0
      %812 = vmatpush1.bf16.msra.mxu0 0
      %813 = vmatprep.subr.bf16.mxu0 0
      %814 = vmatpush1.bf16.msra.mxu0 0
      %815 = vmatprep.mubr.bf16.mxu0 0
      %816 = vmatmul.mubr.bf16.gmra.mrb[0].mxu0 %v772
      %v817 = vpop.f32.mrb[0].mxu0
      %v818 = vadd.f32 0.0, %v817
      %v819 = vpop.f32.mrb[0].mxu0
      %v820 = vadd.f32 0.0, %v819
      %v821 = vpop.f32.mrb[0].mxu0
      %v822 = vpop.f32.mrb[0].mxu0
      %823 = vdwg.mxu0
      %824 = vmatprep.subr.bf16.mxu0 0
      %825 = vmatpush1.bf16.msra.mxu0 %v781
      %826 = vmatprep.subr.bf16.mxu0 0
      %827 = vmatpush1.bf16.msra.mxu0 0
      %828 = vmatprep.subr.bf16.mxu0 0
      %829 = vmatpush1.bf16.msra.mxu0 0
      %830 = vmatprep.subr.bf16.mxu0 0
      %831 = vmatpush1.bf16.msra.mxu0 0
      %832 = vmatprep.subr.bf16.mxu0 0
      %833 = vmatpush1.bf16.msra.mxu0 0
      %834 = vmatprep.subr.bf16.mxu0 0
      %835 = vmatpush1.bf16.msra.mxu0 0
      %836 = vmatprep.subr.bf16.mxu0 0
      %837 = vmatpush1.bf16.msra.mxu0 0
      %838 = vmatprep.subr.bf16.mxu0 0
      %839 = vmatpush1.bf16.msra.mxu0 0
      %840 = vmatprep.subr.bf16.mxu0 0
      %841 = vmatpush1.bf16.msra.mxu0 0
      %842 = vmatprep.subr.bf16.mxu0 0
      %843 = vmatpush1.bf16.msra.mxu0 0
      %844 = vmatprep.subr.bf16.mxu0 0
      %845 = vmatpush1.bf16.msra.mxu0 0
      %846 = vmatprep.subr.bf16.mxu0 0
      %847 = vmatpush1.bf16.msra.mxu0 0
      %848 = vmatprep.subr.bf16.mxu0 0
      %849 = vmatpush1.bf16.msra.mxu0 0
      %850 = vmatprep.subr.bf16.mxu0 0
      %851 = vmatpush1.bf16.msra.mxu0 0
      %852 = vmatprep.subr.bf16.mxu0 0
      %853 = vmatpush1.bf16.msra.mxu0 0
      %854 = vmatprep.subr.bf16.mxu0 0
      %855 = vmatpush1.bf16.msra.mxu0 0
      %856 = vmatprep.mubr.bf16.mxu0 0
      %857 = vmatmul.mubr.bf16.gmra.mrb[0].mxu0 %v772
      %v858 = vpop.f32.mrb[0].mxu0
      %v859 = vadd.f32 0.0, %v858
      %v860 = vpop.f32.mrb[0].mxu0
      %v861 = vpop.f32.mrb[0].mxu0
      %v862 = vpop.f32.mrb[0].mxu0
      %863 = vdwg.mxu0
      %v864 = vadd.f32 %v753, %v818
      %v865 = vadd.f32 %v754, %v820
      %v866 = vadd.f32 %v755, %v859
      %867 = vrot.lane.b32.xlu0 %v435, 1
      %v868 = vpop.permute.xlu0 %867
      %869 = vrot.lane.b32.xlu0 %v436, 1
      %v870 = vpop.permute.xlu0 %869
      %871 = vrot.lane.b32.xlu0 %v437, 1
      %v872 = vpop.permute.xlu0 %871
      %vm873 = vcmp.lt.s32.totalorder %v450, 1
      %v874 = vsel %vm873, %v870, %v872
      %v875 = vsel %vm873, %v868, %v870
      %v876 = vsel %vm873, %v872, %v868
      %v877 = vpack.c.bf16 %v876, %v876
      %v878 = vpack.c.bf16 %v875, %v875
      %v879 = vpack.c.bf16 %v874, %v874
      %s880 = scalar_lea.vmem %s4, 12
      %v881 = vld [vmem:[%s880] sm:$0xf]
      %v883 = vsel %vm307, %v881, 0
      %v886 = vsel %vm311, %v877, 0
      %v889 = vsel %vm311, %v878, 0
      %v892 = vsel %vm311, %v879, 0
      %894 = vmatprep.subr.bf16.mxu0 %v889
      %895 = vmatpush1.bf16.msra.mxu0 %v886
      %896 = vmatprep.subr.bf16.mxu0 0
      %897 = vmatpush1.bf16.msra.mxu0 0
      %898 = vmatprep.subr.bf16.mxu0 0
      %899 = vmatpush1.bf16.msra.mxu0 0
      %900 = vmatprep.subr.bf16.mxu0 0
      %901 = vmatpush1.bf16.msra.mxu0 0
      %902 = vmatprep.subr.bf16.mxu0 0
      %903 = vmatpush1.bf16.msra.mxu0 0
      %904 = vmatprep.subr.bf16.mxu0 0
      %905 = vmatpush1.bf16.msra.mxu0 0
      %906 = vmatprep.subr.bf16.mxu0 0
      %907 = vmatpush1.bf16.msra.mxu0 0
      %908 = vmatprep.subr.bf16.mxu0 0
      %909 = vmatpush1.bf16.msra.mxu0 0
      %910 = vmatprep.subr.bf16.mxu0 0
      %911 = vmatpush1.bf16.msra.mxu0 0
      %912 = vmatprep.subr.bf16.mxu0 0
      %913 = vmatpush1.bf16.msra.mxu0 0
      %914 = vmatprep.subr.bf16.mxu0 0
      %915 = vmatpush1.bf16.msra.mxu0 0
      %916 = vmatprep.subr.bf16.mxu0 0
      %917 = vmatpush1.bf16.msra.mxu0 0
      %918 = vmatprep.subr.bf16.mxu0 0
      %919 = vmatpush1.bf16.msra.mxu0 0
      %920 = vmatprep.subr.bf16.mxu0 0
      %921 = vmatpush1.bf16.msra.mxu0 0
      %922 = vmatprep.subr.bf16.mxu0 0
      %923 = vmatpush1.bf16.msra.mxu0 0
      %924 = vmatprep.subr.bf16.mxu0 0
      %925 = vmatpush1.bf16.msra.mxu0 0
      %926 = vmatprep.mubr.bf16.mxu0 0
      %927 = vmatmul.mubr.bf16.gmra.mrb[0].mxu0 %v883
      %v928 = vpop.f32.mrb[0].mxu0
      %v929 = vadd.f32 0.0, %v928
      %v930 = vpop.f32.mrb[0].mxu0
      %v931 = vadd.f32 0.0, %v930
      %v932 = vpop.f32.mrb[0].mxu0
      %v933 = vpop.f32.mrb[0].mxu0
      %934 = vdwg.mxu0
      %935 = vmatprep.subr.bf16.mxu0 0
      %936 = vmatpush1.bf16.msra.mxu0 %v892
      %937 = vmatprep.subr.bf16.mxu0 0
      %938 = vmatpush1.bf16.msra.mxu0 0
      %939 = vmatprep.subr.bf16.mxu0 0
      %940 = vmatpush1.bf16.msra.mxu0 0
      %941 = vmatprep.subr.bf16.mxu0 0
      %942 = vmatpush1.bf16.msra.mxu0 0
      %943 = vmatprep.subr.bf16.mxu0 0
      %944 = vmatpush1.bf16.msra.mxu0 0
      %945 = vmatprep.subr.bf16.mxu0 0
      %946 = vmatpush1.bf16.msra.mxu0 0
      %947 = vmatprep.subr.bf16.mxu0 0
      %948 = vmatpush1.bf16.msra.mxu0 0
      %949 = vmatprep.subr.bf16.mxu0 0
      %950 = vmatpush1.bf16.msra.mxu0 0
      %951 = vmatprep.subr.bf16.mxu0 0
      %952 = vmatpush1.bf16.msra.mxu0 0
      %953 = vmatprep.subr.bf16.mxu0 0
      %954 = vmatpush1.bf16.msra.mxu0 0
      %955 = vmatprep.subr.bf16.mxu0 0
      %956 = vmatpush1.bf16.msra.mxu0 0
      %957 = vmatprep.subr.bf16.mxu0 0
      %958 = vmatpush1.bf16.msra.mxu0 0
      %959 = vmatprep.subr.bf16.mxu0 0
      %960 = vmatpush1.bf16.msra.mxu0 0
      %961 = vmatprep.subr.bf16.mxu0 0
      %962 = vmatpush1.bf16.msra.mxu0 0
      %963 = vmatprep.subr.bf16.mxu0 0
      %964 = vmatpush1.bf16.msra.mxu0 0
      %965 = vmatprep.subr.bf16.mxu0 0
      %966 = vmatpush1.bf16.msra.mxu0 0
      %967 = vmatprep.mubr.bf16.mxu0 0
      %968 = vmatmul.mubr.bf16.gmra.mrb[0].mxu0 %v883
      %v969 = vpop.f32.mrb[0].mxu0
      %v970 = vadd.f32 0.0, %v969
      %v971 = vpop.f32.mrb[0].mxu0
      %v972 = vpop.f32.mrb[0].mxu0
      %v973 = vpop.f32.mrb[0].mxu0
      %974 = vdwg.mxu0
      %v975 = vadd.f32 %v864, %v929
      %v976 = vadd.f32 %v865, %v931
      %v977 = vadd.f32 %v866, %v970
      %978 = vrot.lane.b32.xlu0 %v435, 127
      %v979 = vpop.permute.xlu0 %978
      %980 = vrot.lane.b32.xlu0 %v436, 127
      %v981 = vpop.permute.xlu0 %980
      %982 = vrot.lane.b32.xlu0 %v437, 127
      %v983 = vpop.permute.xlu0 %982
      %vm984 = vcmp.lt.s32.totalorder %v450, 127
      %v985 = vsel %vm984, %v981, %v983
      %v986 = vsel %vm984, %v979, %v981
      %v987 = vsel %vm984, %v983, %v979
      %v988 = vpack.c.bf16 %v986, %v986
      %v989 = vpack.c.bf16 %v985, %v985
      %v990 = vpack.c.bf16 %v987, %v987
      %s991 = scalar_lea.vmem %s4, 20
      %v992 = vld [vmem:[%s991] sm:$0xf]
      %v994 = vsel %vm307, %v992, 0
      %v997 = vsel %vm311, %v988, 0
      %v1000 = vsel %vm311, %v989, 0
      %v1003 = vsel %vm311, %v990, 0
      %1005 = vmatprep.subr.bf16.mxu0 %v1000
      %1006 = vmatpush1.bf16.msra.mxu0 %v997
      %1007 = vmatprep.subr.bf16.mxu0 0
      %1008 = vmatpush1.bf16.msra.mxu0 0
      %1009 = vmatprep.subr.bf16.mxu0 0
      %1010 = vmatpush1.bf16.msra.mxu0 0
      %1011 = vmatprep.subr.bf16.mxu0 0
      %1012 = vmatpush1.bf16.msra.mxu0 0
      %1013 = vmatprep.subr.bf16.mxu0 0
      %1014 = vmatpush1.bf16.msra.mxu0 0
      %1015 = vmatprep.subr.bf16.mxu0 0
      %1016 = vmatpush1.bf16.msra.mxu0 0
      %1017 = vmatprep.subr.bf16.mxu0 0
      %1018 = vmatpush1.bf16.msra.mxu0 0
      %1019 = vmatprep.subr.bf16.mxu0 0
      %1020 = vmatpush1.bf16.msra.mxu0 0
      %1021 = vmatprep.subr.bf16.mxu0 0
      %1022 = vmatpush1.bf16.msra.mxu0 0
      %1023 = vmatprep.subr.bf16.mxu0 0
      %1024 = vmatpush1.bf16.msra.mxu0 0
      %1025 = vmatprep.subr.bf16.mxu0 0
      %1026 = vmatpush1.bf16.msra.mxu0 0
      %1027 = vmatprep.subr.bf16.mxu0 0
      %1028 = vmatpush1.bf16.msra.mxu0 0
      %1029 = vmatprep.subr.bf16.mxu0 0
      %1030 = vmatpush1.bf16.msra.mxu0 0
      %1031 = vmatprep.subr.bf16.mxu0 0
      %1032 = vmatpush1.bf16.msra.mxu0 0
      %1033 = vmatprep.subr.bf16.mxu0 0
      %1034 = vmatpush1.bf16.msra.mxu0 0
      %1035 = vmatprep.subr.bf16.mxu0 0
      %1036 = vmatpush1.bf16.msra.mxu0 0
      %1037 = vmatprep.mubr.bf16.mxu0 0
      %1038 = vmatmul.mubr.bf16.gmra.mrb[0].mxu0 %v994
      %v1039 = vpop.f32.mrb[0].mxu0
      %v1040 = vadd.f32 0.0, %v1039
      %v1041 = vpop.f32.mrb[0].mxu0
      %v1042 = vadd.f32 0.0, %v1041
      %v1043 = vpop.f32.mrb[0].mxu0
      %v1044 = vpop.f32.mrb[0].mxu0
      %1045 = vdwg.mxu0
      %1046 = vmatprep.subr.bf16.mxu0 0
      %1047 = vmatpush1.bf16.msra.mxu0 %v1003
      %1048 = vmatprep.subr.bf16.mxu0 0
      %1049 = vmatpush1.bf16.msra.mxu0 0
      %1050 = vmatprep.subr.bf16.mxu0 0
      %1051 = vmatpush1.bf16.msra.mxu0 0
      %1052 = vmatprep.subr.bf16.mxu0 0
      %1053 = vmatpush1.bf16.msra.mxu0 0
      %1054 = vmatprep.subr.bf16.mxu0 0
      %1055 = vmatpush1.bf16.msra.mxu0 0
      %1056 = vmatprep.subr.bf16.mxu0 0
      %1057 = vmatpush1.bf16.msra.mxu0 0
      %1058 = vmatprep.subr.bf16.mxu0 0
      %1059 = vmatpush1.bf16.msra.mxu0 0
      %1060 = vmatprep.subr.bf16.mxu0 0
      %1061 = vmatpush1.bf16.msra.mxu0 0
      %1062 = vmatprep.subr.bf16.mxu0 0
      %1063 = vmatpush1.bf16.msra.mxu0 0
      %1064 = vmatprep.subr.bf16.mxu0 0
      %1065 = vmatpush1.bf16.msra.mxu0 0
      %1066 = vmatprep.subr.bf16.mxu0 0
      %1067 = vmatpush1.bf16.msra.mxu0 0
      %1068 = vmatprep.subr.bf16.mxu0 0
      %1069 = vmatpush1.bf16.msra.mxu0 0
      %1070 = vmatprep.subr.bf16.mxu0 0
      %1071 = vmatpush1.bf16.msra.mxu0 0
      %1072 = vmatprep.subr.bf16.mxu0 0
      %1073 = vmatpush1.bf16.msra.mxu0 0
      %1074 = vmatprep.subr.bf16.mxu0 0
      %1075 = vmatpush1.bf16.msra.mxu0 0
      %1076 = vmatprep.subr.bf16.mxu0 0
      %1077 = vmatpush1.bf16.msra.mxu0 0
      %1078 = vmatprep.mubr.bf16.mxu0 0
      %1079 = vmatmul.mubr.bf16.gmra.mrb[0].mxu0 %v994
      %v1080 = vpop.f32.mrb[0].mxu0
      %v1081 = vadd.f32 0.0, %v1080
      %v1082 = vpop.f32.mrb[0].mxu0
      %v1083 = vpop.f32.mrb[0].mxu0
      %v1084 = vpop.f32.mrb[0].mxu0
      %1085 = vdwg.mxu0
      %v1086 = vadd.f32 %v975, %v1040
      %v1087 = vadd.f32 %v976, %v1042
      %v1088 = vadd.f32 %v977, %v1081
      %1089 = vrot.lane.b32.xlu0 %v435, 111
      %v1090 = vpop.permute.xlu0 %1089
      %1091 = vrot.lane.b32.xlu0 %v436, 111
      %v1092 = vpop.permute.xlu0 %1091
      %1093 = vrot.lane.b32.xlu0 %v437, 111
      %v1094 = vpop.permute.xlu0 %1093
      %vm1095 = vcmp.lt.s32.totalorder %v450, 111
      %v1096 = vsel %vm1095, %v1092, %v1094
      %v1097 = vsel %vm1095, %v1090, %v1092
      %v1098 = vsel %vm1095, %v1094, %v1090
      %v1099 = vpack.c.bf16 %v1097, %v1097
      %v1100 = vpack.c.bf16 %v1096, %v1096
      %v1101 = vpack.c.bf16 %v1098, %v1098
      %s1102 = scalar_lea.vmem %s4, 24
      %v1103 = vld [vmem:[%s1102] sm:$0xf]
      %v1105 = vsel %vm307, %v1103, 0
      %v1108 = vsel %vm311, %v1099, 0
      %v1111 = vsel %vm311, %v1100, 0
      %v1114 = vsel %vm311, %v1101, 0
      %1116 = vmatprep.subr.bf16.mxu0 %v1111
      %1117 = vmatpush1.bf16.msra.mxu0 %v1108
      %1118 = vmatprep.subr.bf16.mxu0 0
      %1119 = vmatpush1.bf16.msra.mxu0 0
      %1120 = vmatprep.subr.bf16.mxu0 0
      %1121 = vmatpush1.bf16.msra.mxu0 0
      %1122 = vmatprep.subr.bf16.mxu0 0
      %1123 = vmatpush1.bf16.msra.mxu0 0
      %1124 = vmatprep.subr.bf16.mxu0 0
      %1125 = vmatpush1.bf16.msra.mxu0 0
      %1126 = vmatprep.subr.bf16.mxu0 0
      %1127 = vmatpush1.bf16.msra.mxu0 0
      %1128 = vmatprep.subr.bf16.mxu0 0
      %1129 = vmatpush1.bf16.msra.mxu0 0
      %1130 = vmatprep.subr.bf16.mxu0 0
      %1131 = vmatpush1.bf16.msra.mxu0 0
      %1132 = vmatprep.subr.bf16.mxu0 0
      %1133 = vmatpush1.bf16.msra.mxu0 0
      %1134 = vmatprep.subr.bf16.mxu0 0
      %1135 = vmatpush1.bf16.msra.mxu0 0
      %1136 = vmatprep.subr.bf16.mxu0 0
      %1137 = vmatpush1.bf16.msra.mxu0 0
      %1138 = vmatprep.subr.bf16.mxu0 0
      %1139 = vmatpush1.bf16.msra.mxu0 0
      %1140 = vmatprep.subr.bf16.mxu0 0
      %1141 = vmatpush1.bf16.msra.mxu0 0
      %1142 = vmatprep.subr.bf16.mxu0 0
      %1143 = vmatpush1.bf16.msra.mxu0 0
      %1144 = vmatprep.subr.bf16.mxu0 0
      %1145 = vmatpush1.bf16.msra.mxu0 0
      %1146 = vmatprep.subr.bf16.mxu0 0
      %1147 = vmatpush1.bf16.msra.mxu0 0
      %1148 = vmatprep.mubr.bf16.mxu0 0
      %1149 = vmatmul.mubr.bf16.gmra.mrb[0].mxu0 %v1105
      %v1150 = vpop.f32.mrb[0].mxu0
      %v1151 = vadd.f32 0.0, %v1150
      %v1152 = vpop.f32.mrb[0].mxu0
      %v1153 = vadd.f32 0.0, %v1152
      %v1154 = vpop.f32.mrb[0].mxu0
      %v1155 = vpop.f32.mrb[0].mxu0
      %1156 = vdwg.mxu0
      %1157 = vmatprep.subr.bf16.mxu0 0
      %1158 = vmatpush1.bf16.msra.mxu0 %v1114
      %1159 = vmatprep.subr.bf16.mxu0 0
      %1160 = vmatpush1.bf16.msra.mxu0 0
      %1161 = vmatprep.subr.bf16.mxu0 0
      %1162 = vmatpush1.bf16.msra.mxu0 0
      %1163 = vmatprep.subr.bf16.mxu0 0
      %1164 = vmatpush1.bf16.msra.mxu0 0
      %1165 = vmatprep.subr.bf16.mxu0 0
      %1166 = vmatpush1.bf16.msra.mxu0 0
      %1167 = vmatprep.subr.bf16.mxu0 0
      %1168 = vmatpush1.bf16.msra.mxu0 0
      %1169 = vmatprep.subr.bf16.mxu0 0
      %1170 = vmatpush1.bf16.msra.mxu0 0
      %1171 = vmatprep.subr.bf16.mxu0 0
      %1172 = vmatpush1.bf16.msra.mxu0 0
      %1173 = vmatprep.subr.bf16.mxu0 0
      %1174 = vmatpush1.bf16.msra.mxu0 0
      %1175 = vmatprep.subr.bf16.mxu0 0
      %1176 = vmatpush1.bf16.msra.mxu0 0
      %1177 = vmatprep.subr.bf16.mxu0 0
      %1178 = vmatpush1.bf16.msra.mxu0 0
      %1179 = vmatprep.subr.bf16.mxu0 0
      %1180 = vmatpush1.bf16.msra.mxu0 0
      %1181 = vmatprep.subr.bf16.mxu0 0
      %1182 = vmatpush1.bf16.msra.mxu0 0
      %1183 = vmatprep.subr.bf16.mxu0 0
      %1184 = vmatpush1.bf16.msra.mxu0 0
      %1185 = vmatprep.subr.bf16.mxu0 0
      %1186 = vmatpush1.bf16.msra.mxu0 0
      %1187 = vmatprep.subr.bf16.mxu0 0
      %1188 = vmatpush1.bf16.msra.mxu0 0
      %1189 = vmatprep.mubr.bf16.mxu0 0
      %1190 = vmatmul.mubr.bf16.gmra.mrb[0].mxu0 %v1105
      %v1191 = vpop.f32.mrb[0].mxu0
      %v1192 = vadd.f32 0.0, %v1191
      %v1193 = vpop.f32.mrb[0].mxu0
      %v1194 = vpop.f32.mrb[0].mxu0
      %v1195 = vpop.f32.mrb[0].mxu0
      %1196 = vdwg.mxu0
      %v1197 = vadd.f32 %v1086, %v1151
      %v1198 = vadd.f32 %v1087, %v1153
      %v1199 = vadd.f32 %v1088, %v1192
      %1200 = vrot.lane.b32.xlu0 %v435, 110
      %v1201 = vpop.permute.xlu0 %1200
      %1202 = vrot.lane.b32.xlu0 %v436, 110
      %v1203 = vpop.permute.xlu0 %1202
      %1204 = vrot.lane.b32.xlu0 %v437, 110
      %v1205 = vpop.permute.xlu0 %1204
      %vm1206 = vcmp.lt.s32.totalorder %v450, 110
      %v1207 = vsel %vm1206, %v1203, %v1205
      %v1208 = vsel %vm1206, %v1201, %v1203
      %v1209 = vsel %vm1206, %v1205, %v1201
      %v1210 = vpack.c.bf16 %v1208, %v1208
      %v1211 = vpack.c.bf16 %v1207, %v1207
      %v1212 = vpack.c.bf16 %v1209, %v1209
      %s1213 = scalar_lea.vmem %s4, 28
      %v1214 = vld [vmem:[%s1213] sm:$0xf]
      %v1216 = vsel %vm307, %v1214, 0
      %v1219 = vsel %vm311, %v1210, 0
      %v1222 = vsel %vm311, %v1211, 0
      %v1225 = vsel %vm311, %v1212, 0
      %1227 = vmatprep.subr.bf16.mxu0 %v1222
      %1228 = vmatpush1.bf16.msra.mxu0 %v1219
      %1229 = vmatprep.subr.bf16.mxu0 0
      %1230 = vmatpush1.bf16.msra.mxu0 0
      %1231 = vmatprep.subr.bf16.mxu0 0
      %1232 = vmatpush1.bf16.msra.mxu0 0
      %1233 = vmatprep.subr.bf16.mxu0 0
      %1234 = vmatpush1.bf16.msra.mxu0 0
      %1235 = vmatprep.subr.bf16.mxu0 0
      %1236 = vmatpush1.bf16.msra.mxu0 0
      %1237 = vmatprep.subr.bf16.mxu0 0
      %1238 = vmatpush1.bf16.msra.mxu0 0
      %1239 = vmatprep.subr.bf16.mxu0 0
      %1240 = vmatpush1.bf16.msra.mxu0 0
      %1241 = vmatprep.subr.bf16.mxu0 0
      %1242 = vmatpush1.bf16.msra.mxu0 0
      %1243 = vmatprep.subr.bf16.mxu0 0
      %1244 = vmatpush1.bf16.msra.mxu0 0
      %1245 = vmatprep.subr.bf16.mxu0 0
      %1246 = vmatpush1.bf16.msra.mxu0 0
      %1247 = vmatprep.subr.bf16.mxu0 0
      %1248 = vmatpush1.bf16.msra.mxu0 0
      %1249 = vmatprep.subr.bf16.mxu0 0
      %1250 = vmatpush1.bf16.msra.mxu0 0
      %1251 = vmatprep.subr.bf16.mxu0 0
      %1252 = vmatpush1.bf16.msra.mxu0 0
      %1253 = vmatprep.subr.bf16.mxu0 0
      %1254 = vmatpush1.bf16.msra.mxu0 0
      %1255 = vmatprep.subr.bf16.mxu0 0
      %1256 = vmatpush1.bf16.msra.mxu0 0
      %1257 = vmatprep.subr.bf16.mxu0 0
      %1258 = vmatpush1.bf16.msra.mxu0 0
      %1259 = vmatprep.mubr.bf16.mxu0 0
      %1260 = vmatmul.mubr.bf16.gmra.mrb[0].mxu0 %v1216
      %v1261 = vpop.f32.mrb[0].mxu0
      %v1262 = vadd.f32 0.0, %v1261
      %v1263 = vpop.f32.mrb[0].mxu0
      %v1264 = vadd.f32 0.0, %v1263
      %v1265 = vpop.f32.mrb[0].mxu0
      %v1266 = vpop.f32.mrb[0].mxu0
      %1267 = vdwg.mxu0
      %1268 = vmatprep.subr.bf16.mxu0 0
      %1269 = vmatpush1.bf16.msra.mxu0 %v1225
      %1270 = vmatprep.subr.bf16.mxu0 0
      %1271 = vmatpush1.bf16.msra.mxu0 0
      %1272 = vmatprep.subr.bf16.mxu0 0
      %1273 = vmatpush1.bf16.msra.mxu0 0
      %1274 = vmatprep.subr.bf16.mxu0 0
      %1275 = vmatpush1.bf16.msra.mxu0 0
      %1276 = vmatprep.subr.bf16.mxu0 0
      %1277 = vmatpush1.bf16.msra.mxu0 0
      %1278 = vmatprep.subr.bf16.mxu0 0
      %1279 = vmatpush1.bf16.msra.mxu0 0
      %1280 = vmatprep.subr.bf16.mxu0 0
      %1281 = vmatpush1.bf16.msra.mxu0 0
      %1282 = vmatprep.subr.bf16.mxu0 0
      %1283 = vmatpush1.bf16.msra.mxu0 0
      %1284 = vmatprep.subr.bf16.mxu0 0
      %1285 = vmatpush1.bf16.msra.mxu0 0
      %1286 = vmatprep.subr.bf16.mxu0 0
      %1287 = vmatpush1.bf16.msra.mxu0 0
      %1288 = vmatprep.subr.bf16.mxu0 0
      %1289 = vmatpush1.bf16.msra.mxu0 0
      %1290 = vmatprep.subr.bf16.mxu0 0
      %1291 = vmatpush1.bf16.msra.mxu0 0
      %1292 = vmatprep.subr.bf16.mxu0 0
      %1293 = vmatpush1.bf16.msra.mxu0 0
      %1294 = vmatprep.subr.bf16.mxu0 0
      %1295 = vmatpush1.bf16.msra.mxu0 0
      %1296 = vmatprep.subr.bf16.mxu0 0
      %1297 = vmatpush1.bf16.msra.mxu0 0
      %1298 = vmatprep.subr.bf16.mxu0 0
      %1299 = vmatpush1.bf16.msra.mxu0 0
      %1300 = vmatprep.mubr.bf16.mxu0 0
      %1301 = vmatmul.mubr.bf16.gmra.mrb[0].mxu0 %v1216
      %v1302 = vpop.f32.mrb[0].mxu0
      %v1303 = vadd.f32 0.0, %v1302
      %v1304 = vpop.f32.mrb[0].mxu0
      %v1305 = vpop.f32.mrb[0].mxu0
      %v1306 = vpop.f32.mrb[0].mxu0
      %1307 = vdwg.mxu0
      %v1308 = vadd.f32 %v1197, %v1262
      %v1309 = vadd.f32 %v1198, %v1264
      %v1310 = vadd.f32 %v1199, %v1303
      %1311 = vrot.lane.b32.xlu0 %v435, 109
      %v1312 = vpop.permute.xlu0 %1311
      %1313 = vrot.lane.b32.xlu0 %v436, 109
      %v1314 = vpop.permute.xlu0 %1313
      %1315 = vrot.lane.b32.xlu0 %v437, 109
      %v1316 = vpop.permute.xlu0 %1315
      %vm1317 = vcmp.lt.s32.totalorder %v450, 109
      %v1318 = vsel %vm1317, %v1314, %v1316
      %v1319 = vsel %vm1317, %v1312, %v1314
      %v1320 = vsel %vm1317, %v1316, %v1312
      %v1321 = vpack.c.bf16 %v1319, %v1319
      %v1322 = vpack.c.bf16 %v1318, %v1318
      %v1323 = vpack.c.bf16 %v1320, %v1320
      %s1324 = scalar_lea.vmem %s4, 32
      %v1325 = vld [vmem:[%s1324] sm:$0xf]
      %v1327 = vsel %vm307, %v1325, 0
      %v1330 = vsel %vm311, %v1321, 0
      %v1333 = vsel %vm311, %v1322, 0
      %v1336 = vsel %vm311, %v1323, 0
      %1338 = vmatprep.subr.bf16.mxu0 %v1333
      %1339 = vmatpush1.bf16.msra.mxu0 %v1330
      %1340 = vmatprep.subr.bf16.mxu0 0
      %1341 = vmatpush1.bf16.msra.mxu0 0
      %1342 = vmatprep.subr.bf16.mxu0 0
      %1343 = vmatpush1.bf16.msra.mxu0 0
      %1344 = vmatprep.subr.bf16.mxu0 0
      %1345 = vmatpush1.bf16.msra.mxu0 0
      %1346 = vmatprep.subr.bf16.mxu0 0
      %1347 = vmatpush1.bf16.msra.mxu0 0
      %1348 = vmatprep.subr.bf16.mxu0 0
      %1349 = vmatpush1.bf16.msra.mxu0 0
      %1350 = vmatprep.subr.bf16.mxu0 0
      %1351 = vmatpush1.bf16.msra.mxu0 0
      %1352 = vmatprep.subr.bf16.mxu0 0
      %1353 = vmatpush1.bf16.msra.mxu0 0
      %1354 = vmatprep.subr.bf16.mxu0 0
      %1355 = vmatpush1.bf16.msra.mxu0 0
      %1356 = vmatprep.subr.bf16.mxu0 0
      %1357 = vmatpush1.bf16.msra.mxu0 0
      %1358 = vmatprep.subr.bf16.mxu0 0
      %1359 = vmatpush1.bf16.msra.mxu0 0
      %1360 = vmatprep.subr.bf16.mxu0 0
      %1361 = vmatpush1.bf16.msra.mxu0 0
      %1362 = vmatprep.subr.bf16.mxu0 0
      %1363 = vmatpush1.bf16.msra.mxu0 0
      %1364 = vmatprep.subr.bf16.mxu0 0
      %1365 = vmatpush1.bf16.msra.mxu0 0
      %1366 = vmatprep.subr.bf16.mxu0 0
      %1367 = vmatpush1.bf16.msra.mxu0 0
      %1368 = vmatprep.subr.bf16.mxu0 0
      %1369 = vmatpush1.bf16.msra.mxu0 0
      %1370 = vmatprep.mubr.bf16.mxu0 0
      %1371 = vmatmul.mubr.bf16.gmra.mrb[0].mxu0 %v1327
      %v1372 = vpop.f32.mrb[0].mxu0
      %v1373 = vadd.f32 0.0, %v1372
      %v1374 = vpop.f32.mrb[0].mxu0
      %v1375 = vadd.f32 0.0, %v1374
      %v1376 = vpop.f32.mrb[0].mxu0
      %v1377 = vpop.f32.mrb[0].mxu0
      %1378 = vdwg.mxu0
      %1379 = vmatprep.subr.bf16.mxu0 0
      %1380 = vmatpush1.bf16.msra.mxu0 %v1336
      %1381 = vmatprep.subr.bf16.mxu0 0
      %1382 = vmatpush1.bf16.msra.mxu0 0
      %1383 = vmatprep.subr.bf16.mxu0 0
      %1384 = vmatpush1.bf16.msra.mxu0 0
      %1385 = vmatprep.subr.bf16.mxu0 0
      %1386 = vmatpush1.bf16.msra.mxu0 0
      %1387 = vmatprep.subr.bf16.mxu0 0
      %1388 = vmatpush1.bf16.msra.mxu0 0
      %1389 = vmatprep.subr.bf16.mxu0 0
      %1390 = vmatpush1.bf16.msra.mxu0 0
      %1391 = vmatprep.subr.bf16.mxu0 0
      %1392 = vmatpush1.bf16.msra.mxu0 0
      %1393 = vmatprep.subr.bf16.mxu0 0
      %1394 = vmatpush1.bf16.msra.mxu0 0
      %1395 = vmatprep.subr.bf16.mxu0 0
      %1396 = vmatpush1.bf16.msra.mxu0 0
      %1397 = vmatprep.subr.bf16.mxu0 0
      %1398 = vmatpush1.bf16.msra.mxu0 0
      %1399 = vmatprep.subr.bf16.mxu0 0
      %1400 = vmatpush1.bf16.msra.mxu0 0
      %1401 = vmatprep.subr.bf16.mxu0 0
      %1402 = vmatpush1.bf16.msra.mxu0 0
      %1403 = vmatprep.subr.bf16.mxu0 0
      %1404 = vmatpush1.bf16.msra.mxu0 0
      %1405 = vmatprep.subr.bf16.mxu0 0
      %1406 = vmatpush1.bf16.msra.mxu0 0
      %1407 = vmatprep.subr.bf16.mxu0 0
      %1408 = vmatpush1.bf16.msra.mxu0 0
      %1409 = vmatprep.subr.bf16.mxu0 0
      %1410 = vmatpush1.bf16.msra.mxu0 0
      %1411 = vmatprep.mubr.bf16.mxu0 0
      %1412 = vmatmul.mubr.bf16.gmra.mrb[0].mxu0 %v1327
      %v1413 = vpop.f32.mrb[0].mxu0
      %v1414 = vadd.f32 0.0, %v1413
      %v1415 = vpop.f32.mrb[0].mxu0
      %v1416 = vpop.f32.mrb[0].mxu0
      %v1417 = vpop.f32.mrb[0].mxu0
      %1418 = vdwg.mxu0
      %v1419 = vadd.f32 %v1308, %v1373
      %v1420 = vadd.f32 %v1309, %v1375
      %v1421 = vadd.f32 %v1310, %v1414
      %1422 = vset.pattern.permute.xlu0 4
      %1423 = vperm.xlu0 %1422, %v281
      %v1424 = vpop.permute.xlu0 %1423
      %v1426 = vmul.f32 %v1419, %v1424
      %v1427 = vmul.f32 %v1420, %v1424
      %v1428 = vmul.f32 %v1421, %v1424
      %1429 = vset.pattern.permute.xlu0 5
      %1430 = vperm.xlu0 %1429, %v281
      %v1431 = vpop.permute.xlu0 %1430
      %v1433 = vadd.f32 %v1426, %v1431
      %v1434 = vadd.f32 %v1427, %v1431
      %v1435 = vadd.f32 %v1428, %v1431
      %v1436 = vmax.f32 %v1433, 0.0
      %v1437 = vmax.f32 %v1434, 0.0
      %v1438 = vmax.f32 %v1435, 0.0
      %v1439 = vpack.c.bf16 %v1436, %v1436
      %v1440 = vpack.c.bf16 %v1437, %v1437
      %v1441 = vpack.c.bf16 %v1438, %v1438
      %v1442 = vld [vmem:[%s5] sm:$0xf]
      %v1443 = vld [vmem:[%s6] sm:$0xff]
      %1445 = vset.pattern.permute.xlu0 0
      %1446 = vperm.xlu0 %1445, %v1443
      %v1447 = vpop.permute.xlu0 %1446
      %v1450 = vsel %vm307, %v1442, 0
      %v1453 = vsel %vm311, %v1439, 0
      %v1456 = vsel %vm311, %v1440, 0
      %v1459 = vsel %vm311, %v1441, 0
      %1461 = vmatprep.subr.bf16.mxu0 %v1456
      %1462 = vmatpush1.bf16.msra.mxu0 %v1453
      %1463 = vmatprep.subr.bf16.mxu0 0
      %1464 = vmatpush1.bf16.msra.mxu0 0
      %1465 = vmatprep.subr.bf16.mxu0 0
      %1466 = vmatpush1.bf16.msra.mxu0 0
      %1467 = vmatprep.subr.bf16.mxu0 0
      %1468 = vmatpush1.bf16.msra.mxu0 0
      %1469 = vmatprep.subr.bf16.mxu0 0
      %1470 = vmatpush1.bf16.msra.mxu0 0
      %1471 = vmatprep.subr.bf16.mxu0 0
      %1472 = vmatpush1.bf16.msra.mxu0 0
      %1473 = vmatprep.subr.bf16.mxu0 0
      %1474 = vmatpush1.bf16.msra.mxu0 0
      %1475 = vmatprep.subr.bf16.mxu0 0
      %1476 = vmatpush1.bf16.msra.mxu0 0
      %1477 = vmatprep.subr.bf16.mxu0 0
      %1478 = vmatpush1.bf16.msra.mxu0 0
      %1479 = vmatprep.subr.bf16.mxu0 0
      %1480 = vmatpush1.bf16.msra.mxu0 0
      %1481 = vmatprep.subr.bf16.mxu0 0
      %1482 = vmatpush1.bf16.msra.mxu0 0
      %1483 = vmatprep.subr.bf16.mxu0 0
      %1484 = vmatpush1.bf16.msra.mxu0 0
      %1485 = vmatprep.subr.bf16.mxu0 0
      %1486 = vmatpush1.bf16.msra.mxu0 0
      %1487 = vmatprep.subr.bf16.mxu0 0
      %1488 = vmatpush1.bf16.msra.mxu0 0
      %1489 = vmatprep.subr.bf16.mxu0 0
      %1490 = vmatpush1.bf16.msra.mxu0 0
      %1491 = vmatprep.subr.bf16.mxu0 0
      %1492 = vmatpush1.bf16.msra.mxu0 0
      %1493 = vmatprep.mubr.bf16.mxu0 0
      %1494 = vmatmul.mubr.bf16.gmra.mrb[0].mxu0 %v1450
      %v1495 = vpop.f32.mrb[0].mxu0
      %v1496 = vadd.f32 %v1447, %v1495
      %v1497 = vpop.f32.mrb[0].mxu0
      %v1498 = vadd.f32 %v1447, %v1497
      %v1499 = vpop.f32.mrb[0].mxu0
      %v1500 = vpop.f32.mrb[0].mxu0
      %1501 = vdwg.mxu0
      %1502 = vmatprep.subr.bf16.mxu0 0
      %1503 = vmatpush1.bf16.msra.mxu0 %v1459
      %1504 = vmatprep.subr.bf16.mxu0 0
      %1505 = vmatpush1.bf16.msra.mxu0 0
      %1506 = vmatprep.subr.bf16.mxu0 0
      %1507 = vmatpush1.bf16.msra.mxu0 0
      %1508 = vmatprep.subr.bf16.mxu0 0
      %1509 = vmatpush1.bf16.msra.mxu0 0
      %1510 = vmatprep.subr.bf16.mxu0 0
      %1511 = vmatpush1.bf16.msra.mxu0 0
      %1512 = vmatprep.subr.bf16.mxu0 0
      %1513 = vmatpush1.bf16.msra.mxu0 0
      %1514 = vmatprep.subr.bf16.mxu0 0
      %1515 = vmatpush1.bf16.msra.mxu0 0
      %1516 = vmatprep.subr.bf16.mxu0 0
      %1517 = vmatpush1.bf16.msra.mxu0 0
      %1518 = vmatprep.subr.bf16.mxu0 0
      %1519 = vmatpush1.bf16.msra.mxu0 0
      %1520 = vmatprep.subr.bf16.mxu0 0
      %1521 = vmatpush1.bf16.msra.mxu0 0
      %1522 = vmatprep.subr.bf16.mxu0 0
      %1523 = vmatpush1.bf16.msra.mxu0 0
      %1524 = vmatprep.subr.bf16.mxu0 0
      %1525 = vmatpush1.bf16.msra.mxu0 0
      %1526 = vmatprep.subr.bf16.mxu0 0
      %1527 = vmatpush1.bf16.msra.mxu0 0
      %1528 = vmatprep.subr.bf16.mxu0 0
      %1529 = vmatpush1.bf16.msra.mxu0 0
      %1530 = vmatprep.subr.bf16.mxu0 0
      %1531 = vmatpush1.bf16.msra.mxu0 0
      %1532 = vmatprep.subr.bf16.mxu0 0
      %1533 = vmatpush1.bf16.msra.mxu0 0
      %1534 = vmatprep.mubr.bf16.mxu0 0
      %1535 = vmatmul.mubr.bf16.gmra.mrb[0].mxu0 %v1450
      %v1536 = vpop.f32.mrb[0].mxu0
      %v1537 = vadd.f32 %v1447, %v1536
      %v1538 = vpop.f32.mrb[0].mxu0
      %v1539 = vpop.f32.mrb[0].mxu0
      %v1540 = vpop.f32.mrb[0].mxu0
      %1541 = vdwg.mxu0
      %v1542 = vadd.f32 %v1496, %v282
      %v1543 = vadd.f32 %v1498, %v283
      %v1544 = vadd.f32 %v1537, %v284
      %v1545 = vmul.f32 %v1542, %v423
      %v1546 = vmul.f32 %v1543, %v427
      %v1547 = vmul.f32 %v1544, %v431
      %1548 = vst [vmem:[%s278] sm:$0xff] %v1545
      %1549 = vst [vmem:[%s278 + $0x8] sm:$0xff] %v1546
      %1550 = vst [vmem:[%s278 + $0x10] sm:$0xff] %v1547
      %p1551 = scmp.lt.s32.totalorder %s18, 1
      %s1552 = scalar_select %p1551, %s18, 1
      %s1553 = smul.addr %s1552, 3
      %s1554 = smul.addr %s1553, 8
      %s1555 = scalar_lea.vmem %s7, %s1554
      // Predicated region
      $region49: #{upstack_forward.5} parent=47 // pred_check
        %p1556 = pneg %p188
      $region50: #{upstack_forward.5} parent=47 // pred_check_branch
        %1558 = sbr.rel (%p1556) target = $region52
      $region51: #{upstack_forward.5} parent=47 // pred_region
        _
      $region52: #{upstack_forward.5} parent=47 // pred_fallthru
        _
    $region48: #{upstack_forward.5} parent=5 // pred_fallthru
      _
    %p1559 = scmp.le.s32.totalorder 2, %s13
    // Predicated region
    $region53: #{upstack_forward.5} parent=5 // pred_check
      %p1560 = pneg %p1559
    $region54: #{upstack_forward.5} parent=5 // pred_check_branch
      %1562 = sbr.rel (%p1560) target = $region56
    $region55: #{upstack_forward.5} parent=5 // pred_region
      %s1563 = ssub.s32 %s13, 2
      // Predicated region
      $region57: #{upstack_forward.5} parent=55 // pred_check
        %p1564 = pneg %p194
      $region58: #{upstack_forward.5} parent=55 // pred_check_branch
        %1566 = sbr.rel (%p1564) target = $region60
      $region59: #{upstack_forward.5} parent=55 // pred_region
        %p1567 = scmp.lt.s32.totalorder %s19, 1
        %s1568 = scalar_select %p1567, %s19, 1
        %s1569 = smul.addr %s1568, 3
        %s1570 = smul.addr %s1569, 8
        %s1571 = scalar_lea.vmem %s7, %s1570
      $region60: #{upstack_forward.5} parent=55 // pred_fallthru
        _
    $region56: #{upstack_forward.5} parent=5 // pred_fallthru
      _
  $region6: #{upstack_forward.5} parent=0 // loop_footer
    %s17 = sadd.s32 1, %s13
  $region7: #{upstack_forward.5} parent=0 // loop_footer_branch
    %12 = sbr.rel target = $region3
  $region8: #{upstack_forward.5} parent=0 // loop_exit
    _

// kernel: upstack_forward.4
$region0: #{upstack_forward.4}
  #allocation0 [shape = 'u32[]', space=smem, size = 0x4, offset = 0x4, fixed_abs, tag = 'smem constant byte address 0x4 - core index']
  #allocation1 [shape = 'u32[144,128]{1,0:T(1,128)}', space=vmem, size = 0x12000, scoped, tag = 'internal scratch']
  #allocation2 [shape = 'f32[1,1]{1,0:T(1,128)S(1)}', space=vmem, size = 0x200, scoped, tag = 'scoped memory for upstack_forward.4']
  %s0 = inlined_call_operand.vmem [shape: f32[2,4,384], index: 0, kind: input, shape index: {}]
  %s1 = inlined_call_operand.vmem [shape: f32[2,8,384], index: 1, kind: input, shape index: {}]
  %s2 = inlined_call_operand.vmem [shape: f32[1,384], index: 2, kind: input, shape index: {}]
  %s3 = inlined_call_operand.vmem [shape: bf16[4,4], index: 3, kind: input, shape index: {}]
  %s4 = inlined_call_operand.vmem [shape: bf16[4,8], index: 4, kind: input, shape index: {}]
  %s5 = inlined_call_operand.vmem [shape: f32[4,1], index: 5, kind: input, shape index: {}]
  %s6 = inlined_call_operand.vmem [shape: f32[4,1], index: 6, kind: input, shape index: {}]
  %s7 = inlined_call_operand.<no memory space> [shape: f32[1,1], index: 7, kind: input, shape index: {}]
  %s8 = inlined_call_operand.vmem [shape: f32[12,6], index: 8, kind: input, shape index: {}]
  %s9 = inlined_call_operand.vmem [shape: bf16[12,4], index: 9, kind: input, shape index: {}]
  %s10 = inlined_call_operand.vmem [shape: bf16[12,8], index: 10, kind: input, shape index: {}]
  %s11 = inlined_call_operand.vmem [shape: bf16[9,12,12], index: 11, kind: input, shape index: {}]
  %s12 = inlined_call_operand.vmem [shape: bf16[8,12], index: 12, kind: input, shape index: {}]
  %s13 = inlined_call_operand.vmem [shape: bf16[8,4], index: 13, kind: input, shape index: {}]
  %s14 = inlined_call_operand.vmem [shape: bf16[8,8], index: 14, kind: input, shape index: {}]
  %s15 = inlined_call_operand.vmem [shape: f32[8,1], index: 15, kind: input, shape index: {}]
  %s16 = inlined_call_operand.vmem [shape: f32[2,8,384], index: 16, kind: output, shape index: {}]
  %s17 = sld [smem:[#allocation0]]
  $region97: #{upstack_forward.4} parent=0
    _
  %s19 = ssub.s32 1, %s17
  %s20 = scalar_select 0, %s19, %s17
  %v21 = vstv %s7
  %22 = vst [vmem:[#allocation2] sm:$0x1] %v21
  loop: start=0, step=1, limit=4
  $region2: #{upstack_forward.4} parent=0 // loop_pre_header
    _
  $region3: #{upstack_forward.4} parent=0 // loop_header
    %s24 = sphi 0, %s28
    %p25 = scmp.ge.s32.totalorder %s24, 4
    %s34 = sphi 0, %s36
    %s37 = sphi 0, %s34
    %s38 = sphi 0, %s37
    %s54 = sphi 0, %s38
    %s60 = sphi 0, %s62
    %s63 = sphi 0, %s60
    %s64 = sphi 0, %s63
    %s80 = sphi 0, %s64
    %s84 = sphi 0, %s84
    %s86 = sphi 0, %s84
    %s87 = sphi 0, %s86
    %s101 = sphi 0, %s87
    %s105 = sphi 0, %s105
    %s107 = sphi 0, %s105
    %s108 = sphi 0, %s107
    %s122 = sphi 0, %s108
    %s126 = sphi 0, %s126
    %s128 = sphi 0, %s126
    %s129 = sphi 0, %s128
    %s143 = sphi 0, %s129
    %s147 = sphi 0, %s147
    %s149 = sphi 0, %s147
    %s150 = sphi 0, %s149
    %s164 = sphi 0, %s150
    %s168 = sphi 0, %s168
    %s170 = sphi 0, %s168
    %s171 = sphi 0, %s170
    %s185 = sphi 0, %s171
    %s189 = sphi 0, %s189
    %s191 = sphi 0, %s189
    %s192 = sphi 0, %s191
    %s206 = sphi 0, %s192
    %s210 = sphi 0, %s210
    %s212 = sphi 0, %s210
    %s213 = sphi 0, %s212
    %s227 = sphi 0, %s213
    %s231 = sphi 0, %s231
    %s233 = sphi 0, %s231
    %s234 = sphi 0, %s233
    %s248 = sphi 0, %s234
    %s252 = sphi 0, %s252
    %s254 = sphi 0, %s252
    %s255 = sphi 0, %s254
    %s269 = sphi 0, %s255
    %s273 = sphi 0, %s273
    %s275 = sphi 0, %s273
    %s276 = sphi 0, %s275
    %s290 = sphi 0, %s276
    %s294 = sphi 0, %s294
    %s296 = sphi 0, %s294
    %s297 = sphi 0, %s296
    %s311 = sphi 0, %s297
    %s315 = sphi 0, %s315
    %s317 = sphi 0, %s315
    %s318 = sphi 0, %s317
    %s332 = sphi 0, %s318
    %s336 = sphi 0, %s336
    %s338 = sphi 0, %s336
    %s339 = sphi 0, %s338
    %s353 = sphi 0, %s339
    %s357 = sphi 0, %s357
    %s359 = sphi 0, %s357
    %s360 = sphi 0, %s359
    %s374 = sphi 0, %s360
    %s380 = sphi 0, %s382
    %s383 = sphi 0, %s380
    %s384 = sphi 0, %s383
    %s400 = sphi 0, %s384
  $region4: #{upstack_forward.4} parent=0 // loop_header_branch
    %27 = sbr.rel (%p25) target = $region8
  $region5: #{upstack_forward.4} parent=0 // loop_body
    %s29 = ssub.s32 %s24, 1
    %s30 = ssub.s32 %s24, 2
    %s31 = sadd.s32 %s24, 1
    %s32 = ssub.s32 %s24, %s31
    %p33 = scmp.eq.s32.totalorder %s32, 0
    %s35 = sadd.s32 %s34, 1
    %s36 = scalar_select %p33, %s34, %s35
    %p39 = pneg %p33
    %p40 = scmp.eq.s32.totalorder %s24, 1
    %p41 = por %p39, %p40
    %p42 = scmp.ne.s32.totalorder %s34, %s37
    %p43 = scmp.eq.s32.totalorder %s24, 0
    %p44 = por %p42, %p43
    %p45 = scmp.ne.s32.totalorder %s34, %s37
    %p46 = scmp.eq.s32.totalorder %s29, 1
    %p47 = por %p45, %p46
    %p48 = scmp.ne.s32.totalorder %s37, %s38
    %p49 = scmp.eq.s32.totalorder %s29, 0
    %p50 = por %p48, %p49
    %p51 = scmp.ne.s32.totalorder %s37, %s38
    %p52 = scmp.eq.s32.totalorder %s30, 1
    %p53 = por %p51, %p52
    %p55 = scmp.ne.s32.totalorder %s38, %s54
    %p56 = scmp.eq.s32.totalorder %s30, 0
    %p57 = por %p55, %p56
    %s58 = ssub.s32 %s24, %s31
    %p59 = scmp.eq.s32.totalorder %s58, 0
    %s61 = sadd.s32 %s60, 1
    %s62 = scalar_select %p59, %s60, %s61
    %p65 = pneg %p59
    %p66 = scmp.eq.s32.totalorder %s24, 1
    %p67 = por %p65, %p66
    %p68 = scmp.ne.s32.totalorder %s60, %s63
    %p69 = scmp.eq.s32.totalorder %s24, 0
    %p70 = por %p68, %p69
    %p71 = scmp.ne.s32.totalorder %s60, %s63
    %p72 = scmp.eq.s32.totalorder %s29, 1
    %p73 = por %p71, %p72
    %p74 = scmp.ne.s32.totalorder %s63, %s64
    %p75 = scmp.eq.s32.totalorder %s29, 0
    %p76 = por %p74, %p75
    %p77 = scmp.ne.s32.totalorder %s63, %s64
    %p78 = scmp.eq.s32.totalorder %s30, 1
    %p79 = por %p77, %p78
    %p81 = scmp.ne.s32.totalorder %s64, %s80
    %p82 = scmp.eq.s32.totalorder %s30, 0
    %p83 = por %p81, %p82
    %s85 = sadd.s32 %s84, 1
    %p88 = scmp.eq.s32.totalorder %s24, 1
    %p89 = scmp.ne.s32.totalorder %s84, %s86
    %p90 = scmp.eq.s32.totalorder %s24, 0
    %p91 = por %p89, %p90
    %p92 = scmp.ne.s32.totalorder %s84, %s86
    %p93 = scmp.eq.s32.totalorder %s29, 1
    %p94 = por %p92, %p93
    %p95 = scmp.ne.s32.totalorder %s86, %s87
    %p96 = scmp.eq.s32.totalorder %s29, 0
    %p97 = por %p95, %p96
    %p98 = scmp.ne.s32.totalorder %s86, %s87
    %p99 = scmp.eq.s32.totalorder %s30, 1
    %p100 = por %p98, %p99
    %p102 = scmp.ne.s32.totalorder %s87, %s101
    %p103 = scmp.eq.s32.totalorder %s30, 0
    %p104 = por %p102, %p103
    %s106 = sadd.s32 %s105, 1
    %p109 = scmp.eq.s32.totalorder %s24, 1
    %p110 = scmp.ne.s32.totalorder %s105, %s107
    %p111 = scmp.eq.s32.totalorder %s24, 0
    %p112 = por %p110, %p111
    %p113 = scmp.ne.s32.totalorder %s105, %s107
    %p114 = scmp.eq.s32.totalorder %s29, 1
    %p115 = por %p113, %p114
    %p116 = scmp.ne.s32.totalorder %s107, %s108
    %p117 = scmp.eq.s32.totalorder %s29, 0
    %p118 = por %p116, %p117
    %p119 = scmp.ne.s32.totalorder %s107, %s108
    %p120 = scmp.eq.s32.totalorder %s30, 1
    %p121 = por %p119, %p120
    %p123 = scmp.ne.s32.totalorder %s108, %s122
    %p124 = scmp.eq.s32.totalorder %s30, 0
    %p125 = por %p123, %p124
    %s127 = sadd.s32 %s126, 1
    %p130 = scmp.eq.s32.totalorder %s24, 1
    %p131 = scmp.ne.s32.totalorder %s126, %s128
    %p132 = scmp.eq.s32.totalorder %s24, 0
    %p133 = por %p131, %p132
    %p134 = scmp.ne.s32.totalorder %s126, %s128
    %p135 = scmp.eq.s32.totalorder %s29, 1
    %p136 = por %p134, %p135
    %p137 = scmp.ne.s32.totalorder %s128, %s129
    %p138 = scmp.eq.s32.totalorder %s29, 0
    %p139 = por %p137, %p138
    %p140 = scmp.ne.s32.totalorder %s128, %s129
    %p141 = scmp.eq.s32.totalorder %s30, 1
    %p142 = por %p140, %p141
    %p144 = scmp.ne.s32.totalorder %s129, %s143
    %p145 = scmp.eq.s32.totalorder %s30, 0
    %p146 = por %p144, %p145
    %s148 = sadd.s32 %s147, 1
    %p151 = scmp.eq.s32.totalorder %s24, 1
    %p152 = scmp.ne.s32.totalorder %s147, %s149
    %p153 = scmp.eq.s32.totalorder %s24, 0
    %p154 = por %p152, %p153
    %p155 = scmp.ne.s32.totalorder %s147, %s149
    %p156 = scmp.eq.s32.totalorder %s29, 1
    %p157 = por %p155, %p156
    %p158 = scmp.ne.s32.totalorder %s149, %s150
    %p159 = scmp.eq.s32.totalorder %s29, 0
    %p160 = por %p158, %p159
    %p161 = scmp.ne.s32.totalorder %s149, %s150
    %p162 = scmp.eq.s32.totalorder %s30, 1
    %p163 = por %p161, %p162
    %p165 = scmp.ne.s32.totalorder %s150, %s164
    %p166 = scmp.eq.s32.totalorder %s30, 0
    %p167 = por %p165, %p166
    %s169 = sadd.s32 %s168, 1
    %p172 = scmp.eq.s32.totalorder %s24, 1
    %p173 = scmp.ne.s32.totalorder %s168, %s170
    %p174 = scmp.eq.s32.totalorder %s24, 0
    %p175 = por %p173, %p174
    %p176 = scmp.ne.s32.totalorder %s168, %s170
    %p177 = scmp.eq.s32.totalorder %s29, 1
    %p178 = por %p176, %p177
    %p179 = scmp.ne.s32.totalorder %s170, %s171
    %p180 = scmp.eq.s32.totalorder %s29, 0
    %p181 = por %p179, %p180
    %p182 = scmp.ne.s32.totalorder %s170, %s171
    %p183 = scmp.eq.s32.totalorder %s30, 1
    %p184 = por %p182, %p183
    %p186 = scmp.ne.s32.totalorder %s171, %s185
    %p187 = scmp.eq.s32.totalorder %s30, 0
    %p188 = por %p186, %p187
    %s190 = sadd.s32 %s189, 1
    %p193 = scmp.eq.s32.totalorder %s24, 1
    %p194 = scmp.ne.s32.totalorder %s189, %s191
    %p195 = scmp.eq.s32.totalorder %s24, 0
    %p196 = por %p194, %p195
    %p197 = scmp.ne.s32.totalorder %s189, %s191
    %p198 = scmp.eq.s32.totalorder %s29, 1
    %p199 = por %p197, %p198
    %p200 = scmp.ne.s32.totalorder %s191, %s192
    %p201 = scmp.eq.s32.totalorder %s29, 0
    %p202 = por %p200, %p201
    %p203 = scmp.ne.s32.totalorder %s191, %s192
    %p204 = scmp.eq.s32.totalorder %s30, 1
    %p205 = por %p203, %p204
    %p207 = scmp.ne.s32.totalorder %s192, %s206
    %p208 = scmp.eq.s32.totalorder %s30, 0
    %p209 = por %p207, %p208
    %s211 = sadd.s32 %s210, 1
    %p214 = scmp.eq.s32.totalorder %s24, 1
    %p215 = scmp.ne.s32.totalorder %s210, %s212
    %p216 = scmp.eq.s32.totalorder %s24, 0
    %p217 = por %p215, %p216
    %p218 = scmp.ne.s32.totalorder %s210, %s212
    %p219 = scmp.eq.s32.totalorder %s29, 1
    %p220 = por %p218, %p219
    %p221 = scmp.ne.s32.totalorder %s212, %s213
    %p222 = scmp.eq.s32.totalorder %s29, 0
    %p223 = por %p221, %p222
    %p224 = scmp.ne.s32.totalorder %s212, %s213
    %p225 = scmp.eq.s32.totalorder %s30, 1
    %p226 = por %p224, %p225
    %p228 = scmp.ne.s32.totalorder %s213, %s227
    %p229 = scmp.eq.s32.totalorder %s30, 0
    %p230 = por %p228, %p229
    %s232 = sadd.s32 %s231, 1
    %p235 = scmp.eq.s32.totalorder %s24, 1
    %p236 = scmp.ne.s32.totalorder %s231, %s233
    %p237 = scmp.eq.s32.totalorder %s24, 0
    %p238 = por %p236, %p237
    %p239 = scmp.ne.s32.totalorder %s231, %s233
    %p240 = scmp.eq.s32.totalorder %s29, 1
    %p241 = por %p239, %p240
    %p242 = scmp.ne.s32.totalorder %s233, %s234
    %p243 = scmp.eq.s32.totalorder %s29, 0
    %p244 = por %p242, %p243
    %p245 = scmp.ne.s32.totalorder %s233, %s234
    %p246 = scmp.eq.s32.totalorder %s30, 1
    %p247 = por %p245, %p246
    %p249 = scmp.ne.s32.totalorder %s234, %s248
    %p250 = scmp.eq.s32.totalorder %s30, 0
    %p251 = por %p249, %p250
    %s253 = sadd.s32 %s252, 1
    %p256 = scmp.eq.s32.totalorder %s24, 1
    %p257 = scmp.ne.s32.totalorder %s252, %s254
    %p258 = scmp.eq.s32.totalorder %s24, 0
    %p259 = por %p257, %p258
    %p260 = scmp.ne.s32.totalorder %s252, %s254
    %p261 = scmp.eq.s32.totalorder %s29, 1
    %p262 = por %p260, %p261
    %p263 = scmp.ne.s32.totalorder %s254, %s255
    %p264 = scmp.eq.s32.totalorder %s29, 0
    %p265 = por %p263, %p264
    %p266 = scmp.ne.s32.totalorder %s254, %s255
    %p267 = scmp.eq.s32.totalorder %s30, 1
    %p268 = por %p266, %p267
    %p270 = scmp.ne.s32.totalorder %s255, %s269
    %p271 = scmp.eq.s32.totalorder %s30, 0
    %p272 = por %p270, %p271
    %s274 = sadd.s32 %s273, 1
    %p277 = scmp.eq.s32.totalorder %s24, 1
    %p278 = scmp.ne.s32.totalorder %s273, %s275
    %p279 = scmp.eq.s32.totalorder %s24, 0
    %p280 = por %p278, %p279
    %p281 = scmp.ne.s32.totalorder %s273, %s275
    %p282 = scmp.eq.s32.totalorder %s29, 1
    %p283 = por %p281, %p282
    %p284 = scmp.ne.s32.totalorder %s275, %s276
    %p285 = scmp.eq.s32.totalorder %s29, 0
    %p286 = por %p284, %p285
    %p287 = scmp.ne.s32.totalorder %s275, %s276
    %p288 = scmp.eq.s32.totalorder %s30, 1
    %p289 = por %p287, %p288
    %p291 = scmp.ne.s32.totalorder %s276, %s290
    %p292 = scmp.eq.s32.totalorder %s30, 0
    %p293 = por %p291, %p292
    %s295 = sadd.s32 %s294, 1
    %p298 = scmp.eq.s32.totalorder %s24, 1
    %p299 = scmp.ne.s32.totalorder %s294, %s296
    %p300 = scmp.eq.s32.totalorder %s24, 0
    %p301 = por %p299, %p300
    %p302 = scmp.ne.s32.totalorder %s294, %s296
    %p303 = scmp.eq.s32.totalorder %s29, 1
    %p304 = por %p302, %p303
    %p305 = scmp.ne.s32.totalorder %s296, %s297
    %p306 = scmp.eq.s32.totalorder %s29, 0
    %p307 = por %p305, %p306
    %p308 = scmp.ne.s32.totalorder %s296, %s297
    %p309 = scmp.eq.s32.totalorder %s30, 1
    %p310 = por %p308, %p309
    %p312 = scmp.ne.s32.totalorder %s297, %s311
    %p313 = scmp.eq.s32.totalorder %s30, 0
    %p314 = por %p312, %p313
    %s316 = sadd.s32 %s315, 1
    %p319 = scmp.eq.s32.totalorder %s24, 1
    %p320 = scmp.ne.s32.totalorder %s315, %s317
    %p321 = scmp.eq.s32.totalorder %s24, 0
    %p322 = por %p320, %p321
    %p323 = scmp.ne.s32.totalorder %s315, %s317
    %p324 = scmp.eq.s32.totalorder %s29, 1
    %p325 = por %p323, %p324
    %p326 = scmp.ne.s32.totalorder %s317, %s318
    %p327 = scmp.eq.s32.totalorder %s29, 0
    %p328 = por %p326, %p327
    %p329 = scmp.ne.s32.totalorder %s317, %s318
    %p330 = scmp.eq.s32.totalorder %s30, 1
    %p331 = por %p329, %p330
    %p333 = scmp.ne.s32.totalorder %s318, %s332
    %p334 = scmp.eq.s32.totalorder %s30, 0
    %p335 = por %p333, %p334
    %s337 = sadd.s32 %s336, 1
    %p340 = scmp.eq.s32.totalorder %s24, 1
    %p341 = scmp.ne.s32.totalorder %s336, %s338
    %p342 = scmp.eq.s32.totalorder %s24, 0
    %p343 = por %p341, %p342
    %p344 = scmp.ne.s32.totalorder %s336, %s338
    %p345 = scmp.eq.s32.totalorder %s29, 1
    %p346 = por %p344, %p345
    %p347 = scmp.ne.s32.totalorder %s338, %s339
    %p348 = scmp.eq.s32.totalorder %s29, 0
    %p349 = por %p347, %p348
    %p350 = scmp.ne.s32.totalorder %s338, %s339
    %p351 = scmp.eq.s32.totalorder %s30, 1
    %p352 = por %p350, %p351
    %p354 = scmp.ne.s32.totalorder %s339, %s353
    %p355 = scmp.eq.s32.totalorder %s30, 0
    %p356 = por %p354, %p355
    %s358 = sadd.s32 %s357, 1
    %p361 = scmp.eq.s32.totalorder %s24, 1
    %p362 = scmp.ne.s32.totalorder %s357, %s359
    %p363 = scmp.eq.s32.totalorder %s24, 0
    %p364 = por %p362, %p363
    %p365 = scmp.ne.s32.totalorder %s357, %s359
    %p366 = scmp.eq.s32.totalorder %s29, 1
    %p367 = por %p365, %p366
    %p368 = scmp.ne.s32.totalorder %s359, %s360
    %p369 = scmp.eq.s32.totalorder %s29, 0
    %p370 = por %p368, %p369
    %p371 = scmp.ne.s32.totalorder %s359, %s360
    %p372 = scmp.eq.s32.totalorder %s30, 1
    %p373 = por %p371, %p372
    %p375 = scmp.ne.s32.totalorder %s360, %s374
    %p376 = scmp.eq.s32.totalorder %s30, 0
    %p377 = por %p375, %p376
    %s378 = ssub.s32 %s24, %s31
    %p379 = scmp.eq.s32.totalorder %s378, 0
    %s381 = sadd.s32 %s380, 1
    %s382 = scalar_select %p379, %s380, %s381
    %p385 = pneg %p379
    %p386 = scmp.eq.s32.totalorder %s24, 1
    %p387 = por %p385, %p386
    %p388 = scmp.ne.s32.totalorder %s380, %s383
    %p389 = scmp.eq.s32.totalorder %s24, 0
    %p390 = por %p388, %p389
    %p391 = scmp.ne.s32.totalorder %s380, %s383
    %p392 = scmp.eq.s32.totalorder %s29, 1
    %p393 = por %p391, %p392
    %p394 = scmp.ne.s32.totalorder %s383, %s384
    %p395 = scmp.eq.s32.totalorder %s29, 0
    %p396 = por %p394, %p395
    %p397 = scmp.ne.s32.totalorder %s383, %s384
    %p398 = scmp.eq.s32.totalorder %s30, 1
    %p399 = por %p397, %p398
    %p401 = scmp.ne.s32.totalorder %s384, %s400
    %p402 = scmp.eq.s32.totalorder %s30, 0
    %p403 = por %p401, %p402
    %p404 = scmp.le.s32.totalorder 1, %s24
    %p405 = scmp.lt.s32.totalorder %s24, 3
    %p406 = pnand %p404, %p405
    %p407 = pneg %p406
    // Predicated region
    $region9: #{upstack_forward.4} parent=5 // pred_check
      _
    $region10: #{upstack_forward.4} parent=5 // pred_check_branch
      %409 = sbr.rel (%p406) target = $region12
    $region11: #{upstack_forward.4} parent=5 // pred_region
      %s410 = ssub.s32 %s24, 1
      // Predicated region
      $region13: #{upstack_forward.4} parent=11 // pred_check
        %p411 = pneg %p97
      $region14: #{upstack_forward.4} parent=11 // pred_check_branch
        %413 = sbr.rel (%p411) target = $region16
      $region15: #{upstack_forward.4} parent=11 // pred_region
        _
      $region16: #{upstack_forward.4} parent=11 // pred_fallthru
        _
      // Predicated region
      $region17: #{upstack_forward.4} parent=11 // pred_check
        %p414 = pneg %p118
      $region18: #{upstack_forward.4} parent=11 // pred_check_branch
        %416 = sbr.rel (%p414) target = $region20
      $region19: #{upstack_forward.4} parent=11 // pred_region
        _
      $region20: #{upstack_forward.4} parent=11 // pred_fallthru
        _
      // Predicated region
      $region21: #{upstack_forward.4} parent=11 // pred_check
        %p417 = pneg %p139
      $region22: #{upstack_forward.4} parent=11 // pred_check_branch
        %419 = sbr.rel (%p417) target = $region24
      $region23: #{upstack_forward.4} parent=11 // pred_region
        _
      $region24: #{upstack_forward.4} parent=11 // pred_fallthru
        _
      // Predicated region
      $region25: #{upstack_forward.4} parent=11 // pred_check
        %p420 = pneg %p160
      $region26: #{upstack_forward.4} parent=11 // pred_check_branch
        %422 = sbr.rel (%p420) target = $region28
      $region27: #{upstack_forward.4} parent=11 // pred_region
        _
      $region28: #{upstack_forward.4} parent=11 // pred_fallthru
        _
      // Predicated region
      $region29: #{upstack_forward.4} parent=11 // pred_check
        %p423 = pneg %p181
      $region30: #{upstack_forward.4} parent=11 // pred_check_branch
        %425 = sbr.rel (%p423) target = $region32
      $region31: #{upstack_forward.4} parent=11 // pred_region
        _
      $region32: #{upstack_forward.4} parent=11 // pred_fallthru
        _
      // Predicated region
      $region33: #{upstack_forward.4} parent=11 // pred_check
        %p426 = pneg %p202
      $region34: #{upstack_forward.4} parent=11 // pred_check_branch
        %428 = sbr.rel (%p426) target = $region36
      $region35: #{upstack_forward.4} parent=11 // pred_region
        _
      $region36: #{upstack_forward.4} parent=11 // pred_fallthru
        _
      // Predicated region
      $region37: #{upstack_forward.4} parent=11 // pred_check
        %p429 = pneg %p223
      $region38: #{upstack_forward.4} parent=11 // pred_check_branch
        %431 = sbr.rel (%p429) target = $region40
      $region39: #{upstack_forward.4} parent=11 // pred_region
        _
      $region40: #{upstack_forward.4} parent=11 // pred_fallthru
        _
      // Predicated region
      $region41: #{upstack_forward.4} parent=11 // pred_check
        %p432 = pneg %p244
      $region42: #{upstack_forward.4} parent=11 // pred_check_branch
        %434 = sbr.rel (%p432) target = $region44
      $region43: #{upstack_forward.4} parent=11 // pred_region
        _
      $region44: #{upstack_forward.4} parent=11 // pred_fallthru
        _
      // Predicated region
      $region45: #{upstack_forward.4} parent=11 // pred_check
        %p435 = pneg %p265
      $region46: #{upstack_forward.4} parent=11 // pred_check_branch
        %437 = sbr.rel (%p435) target = $region48
      $region47: #{upstack_forward.4} parent=11 // pred_region
        _
      $region48: #{upstack_forward.4} parent=11 // pred_fallthru
        _
      // Predicated region
      $region49: #{upstack_forward.4} parent=11 // pred_check
        %p438 = pneg %p286
      $region50: #{upstack_forward.4} parent=11 // pred_check_branch
        %440 = sbr.rel (%p438) target = $region52
      $region51: #{upstack_forward.4} parent=11 // pred_region
        _
      $region52: #{upstack_forward.4} parent=11 // pred_fallthru
        _
      // Predicated region
      $region53: #{upstack_forward.4} parent=11 // pred_check
        %p441 = pneg %p307
      $region54: #{upstack_forward.4} parent=11 // pred_check_branch
        %443 = sbr.rel (%p441) target = $region56
      $region55: #{upstack_forward.4} parent=11 // pred_region
        _
      $region56: #{upstack_forward.4} parent=11 // pred_fallthru
        _
      // Predicated region
      $region57: #{upstack_forward.4} parent=11 // pred_check
        %p444 = pneg %p328
      $region58: #{upstack_forward.4} parent=11 // pred_check_branch
        %446 = sbr.rel (%p444) target = $region60
      $region59: #{upstack_forward.4} parent=11 // pred_region
        _
      $region60: #{upstack_forward.4} parent=11 // pred_fallthru
        _
      // Predicated region
      $region61: #{upstack_forward.4} parent=11 // pred_check
        %p447 = pneg %p349
      $region62: #{upstack_forward.4} parent=11 // pred_check_branch
        %449 = sbr.rel (%p447) target = $region64
      $region63: #{upstack_forward.4} parent=11 // pred_region
        _
      $region64: #{upstack_forward.4} parent=11 // pred_fallthru
        _
      // Predicated region
      $region65: #{upstack_forward.4} parent=11 // pred_check
        %p450 = pneg %p370
      $region66: #{upstack_forward.4} parent=11 // pred_check_branch
        %452 = sbr.rel (%p450) target = $region68
      $region67: #{upstack_forward.4} parent=11 // pred_region
        _
      $region68: #{upstack_forward.4} parent=11 // pred_fallthru
        _
    $region12: #{upstack_forward.4} parent=5 // pred_fallthru
      _
    %p453 = scmp.lt.s32.totalorder %s24, 2
    // Predicated region
    $region69: #{upstack_forward.4} parent=5 // pred_check
      %p454 = pneg %p453
    $region70: #{upstack_forward.4} parent=5 // pred_check_branch
      %456 = sbr.rel (%p454) target = $region72
    $region71: #{upstack_forward.4} parent=5 // pred_region
      // Predicated region
      $region73: #{upstack_forward.4} parent=71 // pred_check
        %p457 = pneg %p44
      $region74: #{upstack_forward.4} parent=71 // pred_check_branch
        %459 = sbr.rel (%p457) target = $region76
      $region75: #{upstack_forward.4} parent=71 // pred_region
        %p460 = scmp.lt.s32.totalorder %s24, 1
        %s461 = scalar_select %p460, %s24, 1
        %s462 = smul.addr %s461, 3
        %s463 = smul.addr %s462, 4
        %s464 = scalar_lea.vmem %s0, %s463
      $region76: #{upstack_forward.4} parent=71 // pred_fallthru
        _
      // Predicated region
      $region77: #{upstack_forward.4} parent=71 // pred_check
        %p465 = pneg %p70
      $region78: #{upstack_forward.4} parent=71 // pred_check_branch
        %467 = sbr.rel (%p465) target = $region80
      $region79: #{upstack_forward.4} parent=71 // pred_region
        %p468 = scmp.lt.s32.totalorder %s24, 1
        %s469 = scalar_select %p468, %s24, 1
        %s470 = smul.addr %s469, 3
        %s471 = smul.addr %s470, 8
        %s472 = scalar_lea.vmem %s1, %s471
      $region80: #{upstack_forward.4} parent=71 // pred_fallthru
        _
    $region72: #{upstack_forward.4} parent=5 // pred_fallthru
      _
    %p473 = scmp.le.s32.totalorder 1, %s24
    %p474 = scmp.lt.s32.totalorder %s24, 3
    %p475 = pnand %p473, %p474
    %p476 = pneg %p475
    // Predicated region
    $region81: #{upstack_forward.4} parent=5 // pred_check
      _
    $region82: #{upstack_forward.4} parent=5 // pred_check_branch
      %478 = sbr.rel (%p475) target = $region84
    $region83: #{upstack_forward.4} parent=5 // pred_region
      %s479 = ssub.s32 %s24, 1
      %p480 = scmp.lt.s32.totalorder %s29, 1
      %s481 = scalar_select %p480, %s29, 1
      %s482 = smul.addr %s481, 3
      %s483 = smul.addr %s482, 4
      %s484 = scalar_lea.vmem %s0, %s483
      %p485 = pneg %p50
      %p486 = pneg %p47
      %p487 = scmp.lt.s32.totalorder %s29, 1
      %s488 = scalar_select %p487, %s29, 1
      %s489 = smul.addr %s488, 3
      %s490 = smul.addr %s489, 8
      %s491 = scalar_lea.vmem %s1, %s490
      %p492 = pneg %p76
      %p493 = pneg %p73
      %p494 = pneg %p97
      %p495 = pneg %p94
      %p496 = pneg %p118
      %p497 = pneg %p115
      %p498 = pneg %p139
      %p499 = pneg %p136
      %p500 = pneg %p160
      %p501 = pneg %p157
      %p502 = pneg %p181
      %p503 = pneg %p178
      %p504 = pneg %p202
      %p505 = pneg %p199
      %p506 = pneg %p223
      %p507 = pneg %p220
      %p508 = pneg %p244
      %p509 = pneg %p241
      %p510 = pneg %p265
      %p511 = pneg %p262
      %p512 = pneg %p286
      %p513 = pneg %p283
      %p514 = pneg %p307
      %p515 = pneg %p304
      %p516 = pneg %p328
      %p517 = pneg %p325
      %p518 = pneg %p349
      %p519 = pneg %p346
      %p520 = pneg %p370
      %p521 = pneg %p367
      %p522 = pneg %p396
      %p523 = pneg %p393
      %p524 = scmp.lt.s32.totalorder %s29, 1
      %s525 = scalar_select %p524, %s29, 1
      %s526 = smul.addr %s525, 3
      %s527 = smul.addr %s526, 8
      %s528 = scalar_lea.vmem %s16, %s527
      %p529 = scmp.lt.s32.totalorder %s29, 1
      %s530 = scalar_select %p529, %s29, 1
      %s531 = smul.addr %s530, 3
      %s532 = smul.addr %s531, 4
      %s533 = scalar_lea.vmem %s0, %s532
      %p534 = scmp.lt.s32.totalorder %s29, 1
      %s535 = scalar_select %p534, %s29, 1
      %s536 = smul.addr %s535, 3
      %s537 = smul.addr %s536, 8
      %s538 = scalar_lea.vmem %s1, %s537
      %p539 = scmp.lt.s32.totalorder %s29, 1
      %s540 = scalar_select %p539, %s29, 1
      %s541 = smul.addr %s540, 3
      %s542 = smul.addr %s541, 8
      %s543 = scalar_lea.vmem %s16, %s542
      %v545 = vld [vmem:[%s2] sm:$0x7]
      %v546 = vld [vmem:[%s8] sm:$0xff]
      %v547 = vld [vmem:[%s8 + $0x8] sm:$0xf]
      %v548 = vld [vmem:[%s533] sm:$0xff]
      %v549 = vld [vmem:[%s533 + $0x8] sm:$0xf]
      %v550 = vld [vmem:[%s538] sm:$0xff]
      %v551 = vld [vmem:[%s538 + $0x8] sm:$0xff]
      %v552 = vld [vmem:[%s538 + $0x10] sm:$0xff]
      %v554 = vcombine.high %v548, %v548
      %v556 = vpack.c.bf16 %v548, %v548
      %v557 = vpack.c.bf16 %v554, %v554
      %v558 = vpack.c.bf16 %v549, %v549
      %v559 = vpack.c.bf16 %v550, %v550
      %v560 = vpack.c.bf16 %v551, %v551
      %v561 = vpack.c.bf16 %v552, %v552
      %v562 = vld [vmem:[%s3] sm:$0x3]
      %v563 = vld [vmem:[%s4] sm:$0x3]
      %vm564 = vcmask 64512
      %v566 = vsel %vm564, %v563, 0
      %vm568 = vcmask 1043456
      %v570 = vsel %vm568, %v559, 0
      %v573 = vsel %vm568, %v560, 0
      %v576 = vsel %vm568, %v561, 0
      %578 = vmatprep.subr.bf16.mxu0 %v573
      %579 = vmatpush1.bf16.msra.mxu0 %v570
      %580 = vmatprep.subr.bf16.mxu0 0
      %581 = vmatpush1.bf16.msra.mxu0 0
      %582 = vmatprep.subr.bf16.mxu0 0
      %583 = vmatpush1.bf16.msra.mxu0 0
      %584 = vmatprep.subr.bf16.mxu0 0
      %585 = vmatpush1.bf16.msra.mxu0 0
      %586 = vmatprep.subr.bf16.mxu0 0
      %587 = vmatpush1.bf16.msra.mxu0 0
      %588 = vmatprep.subr.bf16.mxu0 0
      %589 = vmatpush1.bf16.msra.mxu0 0
      %590 = vmatprep.subr.bf16.mxu0 0
      %591 = vmatpush1.bf16.msra.mxu0 0
      %592 = vmatprep.subr.bf16.mxu0 0
      %593 = vmatpush1.bf16.msra.mxu0 0
      %594 = vmatprep.subr.bf16.mxu0 0
      %595 = vmatpush1.bf16.msra.mxu0 0
      %596 = vmatprep.subr.bf16.mxu0 0
      %597 = vmatpush1.bf16.msra.mxu0 0
      %598 = vmatprep.subr.bf16.mxu0 0
      %599 = vmatpush1.bf16.msra.mxu0 0
      %600 = vmatprep.subr.bf16.mxu0 0
      %601 = vmatpush1.bf16.msra.mxu0 0
      %602 = vmatprep.subr.bf16.mxu0 0
      %603 = vmatpush1.bf16.msra.mxu0 0
      %604 = vmatprep.subr.bf16.mxu0 0
      %605 = vmatpush1.bf16.msra.mxu0 0
      %606 = vmatprep.subr.bf16.mxu0 0
      %607 = vmatpush1.bf16.msra.mxu0 0
      %608 = vmatprep.subr.bf16.mxu0 0
      %609 = vmatpush1.bf16.msra.mxu0 0
      %610 = vmatprep.mubr.bf16.mxu0 0
      %611 = vmatmul.mubr.bf16.gmra.mrb[0].mxu0 %v566
      %v612 = vpop.f32.mrb[0].mxu0
      %v613 = vadd.f32 0.0, %v612
      %v614 = vpop.f32.mrb[0].mxu0
      %v615 = vadd.f32 0.0, %v614
      %v616 = vpop.f32.mrb[0].mxu0
      %v617 = vpop.f32.mrb[0].mxu0
      %618 = vdwg.mxu0
      %619 = vmatprep.subr.bf16.mxu0 0
      %620 = vmatpush1.bf16.msra.mxu0 %v576
      %621 = vmatprep.subr.bf16.mxu0 0
      %622 = vmatpush1.bf16.msra.mxu0 0
      %623 = vmatprep.subr.bf16.mxu0 0
      %624 = vmatpush1.bf16.msra.mxu0 0
      %625 = vmatprep.subr.bf16.mxu0 0
      %626 = vmatpush1.bf16.msra.mxu0 0
      %627 = vmatprep.subr.bf16.mxu0 0
      %628 = vmatpush1.bf16.msra.mxu0 0
      %629 = vmatprep.subr.bf16.mxu0 0
      %630 = vmatpush1.bf16.msra.mxu0 0
      %631 = vmatprep.subr.bf16.mxu0 0
      %632 = vmatpush1.bf16.msra.mxu0 0
      %633 = vmatprep.subr.bf16.mxu0 0
      %634 = vmatpush1.bf16.msra.mxu0 0
      %635 = vmatprep.subr.bf16.mxu0 0
      %636 = vmatpush1.bf16.msra.mxu0 0
      %637 = vmatprep.subr.bf16.mxu0 0
      %638 = vmatpush1.bf16.msra.mxu0 0
      %639 = vmatprep.subr.bf16.mxu0 0
      %640 = vmatpush1.bf16.msra.mxu0 0
      %641 = vmatprep.subr.bf16.mxu0 0
      %642 = vmatpush1.bf16.msra.mxu0 0
      %643 = vmatprep.subr.bf16.mxu0 0
      %644 = vmatpush1.bf16.msra.mxu0 0
      %645 = vmatprep.subr.bf16.mxu0 0
      %646 = vmatpush1.bf16.msra.mxu0 0
      %647 = vmatprep.subr.bf16.mxu0 0
      %648 = vmatpush1.bf16.msra.mxu0 0
      %649 = vmatprep.subr.bf16.mxu0 0
      %650 = vmatpush1.bf16.msra.mxu0 0
      %651 = vmatprep.mubr.bf16.mxu0 0
      %652 = vmatmul.mubr.bf16.gmra.mrb[0].mxu0 %v566
      %v653 = vpop.f32.mrb[0].mxu0
      %v654 = vadd.f32 0.0, %v653
      %v655 = vpop.f32.mrb[0].mxu0
      %v656 = vpop.f32.mrb[0].mxu0
      %v657 = vpop.f32.mrb[0].mxu0
      %658 = vdwg.mxu0
      %vm659 = vcmask 31744
      %v661 = vsel %vm659, %v562, 0
      %vm663 = vcmask 1041408
      %v665 = vsel %vm663, %v556, 0
      %v668 = vsel %vm663, %v557, 0
      %v671 = vsel %vm663, %v558, 0
      %673 = vmatprep.subr.bf16.mxu0 %v668
      %674 = vmatpush1.bf16.msra.mxu0 %v665
      %675 = vmatprep.subr.bf16.mxu0 0
      %676 = vmatpush1.bf16.msra.mxu0 0
      %677 = vmatprep.subr.bf16.mxu0 0
      %678 = vmatpush1.bf16.msra.mxu0 0
      %679 = vmatprep.subr.bf16.mxu0 0
      %680 = vmatpush1.bf16.msra.mxu0 0
      %681 = vmatprep.subr.bf16.mxu0 0
      %682 = vmatpush1.bf16.msra.mxu0 0
      %683 = vmatprep.subr.bf16.mxu0 0
      %684 = vmatpush1.bf16.msra.mxu0 0
      %685 = vmatprep.subr.bf16.mxu0 0
      %686 = vmatpush1.bf16.msra.mxu0 0
      %687 = vmatprep.subr.bf16.mxu0 0
      %688 = vmatpush1.bf16.msra.mxu0 0
      %689 = vmatprep.subr.bf16.mxu0 0
      %690 = vmatpush1.bf16.msra.mxu0 0
      %691 = vmatprep.subr.bf16.mxu0 0
      %692 = vmatpush1.bf16.msra.mxu0 0
      %693 = vmatprep.subr.bf16.mxu0 0
      %694 = vmatpush1.bf16.msra.mxu0 0
      %695 = vmatprep.subr.bf16.mxu0 0
      %696 = vmatpush1.bf16.msra.mxu0 0
      %697 = vmatprep.subr.bf16.mxu0 0
      %698 = vmatpush1.bf16.msra.mxu0 0
      %699 = vmatprep.subr.bf16.mxu0 0
      %700 = vmatpush1.bf16.msra.mxu0 0
      %701 = vmatprep.subr.bf16.mxu0 0
      %702 = vmatpush1.bf16.msra.mxu0 0
      %703 = vmatprep.subr.bf16.mxu0 0
      %704 = vmatpush1.bf16.msra.mxu0 0
      %705 = vmatprep.mubr.bf16.mxu0 0
      %706 = vmatmul.mubr.bf16.gmra.mrb[0].mxu0 %v661
      %v707 = vpop.f32.mrb[0].mxu0
      %v708 = vadd.f32 %v613, %v707
      %v709 = vpop.f32.mrb[0].mxu0
      %v710 = vadd.f32 %v615, %v709
      %v711 = vpop.f32.mrb[0].mxu0
      %v712 = vpop.f32.mrb[0].mxu0
      %713 = vdwg.mxu0
      %714 = vmatprep.subr.bf16.mxu0 0
      %715 = vmatpush1.bf16.msra.mxu0 %v671
      %716 = vmatprep.subr.bf16.mxu0 0
      %717 = vmatpush1.bf16.msra.mxu0 0
      %718 = vmatprep.subr.bf16.mxu0 0
      %719 = vmatpush1.bf16.msra.mxu0 0
      %720 = vmatprep.subr.bf16.mxu0 0
      %721 = vmatpush1.bf16.msra.mxu0 0
      %722 = vmatprep.subr.bf16.mxu0 0
      %723 = vmatpush1.bf16.msra.mxu0 0
      %724 = vmatprep.subr.bf16.mxu0 0
      %725 = vmatpush1.bf16.msra.mxu0 0
      %726 = vmatprep.subr.bf16.mxu0 0
      %727 = vmatpush1.bf16.msra.mxu0 0
      %728 = vmatprep.subr.bf16.mxu0 0
      %729 = vmatpush1.bf16.msra.mxu0 0
      %730 = vmatprep.subr.bf16.mxu0 0
      %731 = vmatpush1.bf16.msra.mxu0 0
      %732 = vmatprep.subr.bf16.mxu0 0
      %733 = vmatpush1.bf16.msra.mxu0 0
      %734 = vmatprep.subr.bf16.mxu0 0
      %735 = vmatpush1.bf16.msra.mxu0 0
      %736 = vmatprep.subr.bf16.mxu0 0
      %737 = vmatpush1.bf16.msra.mxu0 0
      %738 = vmatprep.subr.bf16.mxu0 0
      %739 = vmatpush1.bf16.msra.mxu0 0
      %740 = vmatprep.subr.bf16.mxu0 0
      %741 = vmatpush1.bf16.msra.mxu0 0
      %742 = vmatprep.subr.bf16.mxu0 0
      %743 = vmatpush1.bf16.msra.mxu0 0
      %744 = vmatprep.subr.bf16.mxu0 0
      %745 = vmatpush1.bf16.msra.mxu0 0
      %746 = vmatprep.mubr.bf16.mxu0 0
      %747 = vmatmul.mubr.bf16.gmra.mrb[0].mxu0 %v661
      %v748 = vpop.f32.mrb[0].mxu0
      %v749 = vadd.f32 %v654, %v748
      %v750 = vpop.f32.mrb[0].mxu0
      %v751 = vpop.f32.mrb[0].mxu0
      %v752 = vpop.f32.mrb[0].mxu0
      %753 = vdwg.mxu0
      %v754 = vld [vmem:[%s5] sm:$0xf]
      %756 = vset.pattern.permute.xlu0 0
      %757 = vperm.xlu0 %756, %v754
      %v758 = vpop.permute.xlu0 %757
      %v760 = vadd.f32 %v708, %v758
      %v761 = vadd.f32 %v710, %v758
      %v762 = vadd.f32 %v749, %v758
      %v763 = vmax.f32 %v760, 0.0
      %v764 = vmax.f32 %v761, 0.0
      %v765 = vmax.f32 %v762, 0.0
      %v766 = vld [vmem:[%s6] sm:$0xf]
      %768 = vset.pattern.permute.xlu0 0
      %769 = vperm.xlu0 %768, %v766
      %v770 = vpop.permute.xlu0 %769
      %v772 = vmul.f32 %v763, %v770
      %v773 = vmul.f32 %v764, %v770
      %v774 = vmul.f32 %v765, %v770
      %v775 = vsel %vm568, %v772, 0.0
      %v776 = vrot.slane %v775, 4
      %v777 = vadd.f32 %v775, %v776
      %v778 = vrot.slane %v777, 2
      %v779 = vadd.f32 %v777, %v778
      %v780 = vrot.slane %v779, 1
      %v781 = vadd.f32 %v779, %v780
      %v782 = vsel %vm568, %v773, 0.0
      %v783 = vrot.slane %v782, 4
      %v784 = vadd.f32 %v782, %v783
      %v785 = vrot.slane %v784, 2
      %v786 = vadd.f32 %v784, %v785
      %v787 = vrot.slane %v786, 1
      %v788 = vadd.f32 %v786, %v787
      %v789 = vsel %vm568, %v774, 0.0
      %v790 = vrot.slane %v789, 4
      %v791 = vadd.f32 %v789, %v790
      %v792 = vrot.slane %v791, 2
      %v793 = vadd.f32 %v791, %v792
      %v794 = vrot.slane %v793, 1
      %v795 = vadd.f32 %v793, %v794
      %v796 = vld [vmem:[#allocation2] sm:$0x1]
      %798 = vset.pattern.permute.xlu0 0
      %799 = vperm.xlu0 %798, %v796
      %v800 = vpop.permute.xlu0 %799
      %v802 = vlaneseq
      %v803 = vshrl.u32 %v802, 7
      %v804 = vsub.s32 0, %v803
      %v805 = vrot.slane %v800, %v804
      %v806 = vadd.f32 %v781, %v805
      %v807 = vadd.f32 %v788, %v805
      %v808 = vadd.f32 %v795, %v805
      %v809 = vxor.u32 %v806, 2147483648
      %v810 = vxor.u32 %v807, 2147483648
      %v811 = vxor.u32 %v808, 2147483648
      %v812 = vmul.f32 %v809, 1.442695
      %v813 = vpow.pop %v812
      %v814 = vmul.f32 %v810, 1.442695
      %v815 = vpow.pop %v814
      %v816 = vmul.f32 %v811, 1.442695
      %v817 = vpow.pop %v816
      %v818 = vadd.f32 %v813, 1.0
      %v819 = vadd.f32 %v815, 1.0
      %v820 = vadd.f32 %v817, 1.0
      %v821 = vrcp.pop %v818
      %v822 = vmul.f32 1.0, %v821
      %v823 = vrcp.pop %v819
      %v824 = vmul.f32 1.0, %v823
      %v825 = vrcp.pop %v820
      %v826 = vmul.f32 1.0, %v825
      %v829 = vcombine.low %v822, %v824
      %v831 = vmul.f32 %v548, %v829
      %v832 = vmul.f32 %v549, %v826
      %834 = vset.pattern.permute.xlu0 0
      %835 = vperm.xlu0 %834, %v546
      %v836 = vpop.permute.xlu0 %835
      %v838 = vunpack.c.l.s4 839922192
      %v839 = vunpack.c.0.s8 %v838
      %v840 = vlaneseq
      %v841 = vshrl.u32 %v840, 7
      %v842 = vsub.s32 %v839, %v841
      %v843 = vrot.slane %v836, %v842
      %v845 = vmul.f32 %v831, %v843
      %v846 = vmul.f32 %v832, %v843
      %847 = vset.pattern.permute.xlu0 1
      %848 = vperm.xlu0 %847, %v546
      %v849 = vpop.permute.xlu0 %848
      %v851 = vunpack.c.l.s4 839922192
      %v852 = vunpack.c.0.s8 %v851
      %v853 = vlaneseq
      %v854 = vshrl.u32 %v853, 7
      %v855 = vsub.s32 %v852, %v854
      %v856 = vrot.slane %v849, %v855
      %v858 = vadd.f32 %v845, %v856
      %v859 = vadd.f32 %v846, %v856
      %v860 = vmax.f32 %v858, 0.0
      %v861 = vmax.f32 %v859, 0.0
      %v863 = vcombine.high %v860, %v860
      %v865 = vpack.c.bf16 %v860, %v860
      %v866 = vpack.c.bf16 %v863, %v863
      %v867 = vpack.c.bf16 %v861, %v861
      %869 = vset.pattern.permute.xlu0 0
      %870 = vperm.xlu0 %869, %v547
      %v871 = vpop.permute.xlu0 %870
      %v872 = vrot.slane %v836, 4
      %v873 = vrot.slane %v871, 4
      %v874 = vsel %vm568, %v872, %v873
      %v876 = vmul.f32 %v550, %v874
      %v877 = vmul.f32 %v551, %v874
      %v878 = vmul.f32 %v552, %v874
      %879 = vset.pattern.permute.xlu0 1
      %880 = vperm.xlu0 %879, %v547
      %v881 = vpop.permute.xlu0 %880
      %v882 = vrot.slane %v849, 4
      %v883 = vrot.slane %v881, 4
      %v884 = vsel %vm568, %v882, %v883
      %v886 = vadd.f32 %v876, %v884
      %v887 = vadd.f32 %v877, %v884
      %v888 = vadd.f32 %v878, %v884
      %v889 = vmax.f32 %v886, 0.0
      %v890 = vmax.f32 %v887, 0.0
      %v891 = vmax.f32 %v888, 0.0
      %v892 = vpack.c.bf16 %v889, %v889
      %v893 = vpack.c.bf16 %v890, %v890
      %v894 = vpack.c.bf16 %v891, %v891
      %v895 = vld [vmem:[%s9] sm:$0xf]
      %v896 = vld [vmem:[%s9 + $0x4] sm:$0x3]
      %v897 = vld [vmem:[%s10] sm:$0xf]
      %v898 = vld [vmem:[%s10 + $0x4] sm:$0x3]
      %v901 = vunpack.c.l.b16 %v897
      %v902 = vunpack.c.l.b16 %v898
      %v903 = vpack.c.b16 %v902, %v901
      %v905 = vsel %vm564, %v903, 0
      %v908 = vsel %vm568, %v892, 0
      %v911 = vsel %vm568, %v893, 0
      %v914 = vsel %vm568, %v894, 0
      %916 = vmatprep.subr.bf16.mxu0 %v911
      %917 = vmatpush1.bf16.msra.mxu0 %v908
      %918 = vmatprep.subr.bf16.mxu0 0
      %919 = vmatpush1.bf16.msra.mxu0 0
      %920 = vmatprep.subr.bf16.mxu0 0
      %921 = vmatpush1.bf16.msra.mxu0 0
      %922 = vmatprep.subr.bf16.mxu0 0
      %923 = vmatpush1.bf16.msra.mxu0 0
      %924 = vmatprep.subr.bf16.mxu0 0
      %925 = vmatpush1.bf16.msra.mxu0 0
      %926 = vmatprep.subr.bf16.mxu0 0
      %927 = vmatpush1.bf16.msra.mxu0 0
      %928 = vmatprep.subr.bf16.mxu0 0
      %929 = vmatpush1.bf16.msra.mxu0 0
      %930 = vmatprep.subr.bf16.mxu0 0
      %931 = vmatpush1.bf16.msra.mxu0 0
      %932 = vmatprep.subr.bf16.mxu0 0
      %933 = vmatpush1.bf16.msra.mxu0 0
      %934 = vmatprep.subr.bf16.mxu0 0
      %935 = vmatpush1.bf16.msra.mxu0 0
      %936 = vmatprep.subr.bf16.mxu0 0
      %937 = vmatpush1.bf16.msra.mxu0 0
      %938 = vmatprep.subr.bf16.mxu0 0
      %939 = vmatpush1.bf16.msra.mxu0 0
      %940 = vmatprep.subr.bf16.mxu0 0
      %941 = vmatpush1.bf16.msra.mxu0 0
      %942 = vmatprep.subr.bf16.mxu0 0
      %943 = vmatpush1.bf16.msra.mxu0 0
      %944 = vmatprep.subr.bf16.mxu0 0
      %945 = vmatpush1.bf16.msra.mxu0 0
      %946 = vmatprep.subr.bf16.mxu0 0
      %947 = vmatpush1.bf16.msra.mxu0 0
      %948 = vmatprep.mubr.bf16.mxu0 0
      %949 = vmatmul.mubr.bf16.gmra.mrb[0].mxu0 %v905
      %v950 = vpop.f32.mrb[0].mxu0
      %v951 = vadd.f32 0.0, %v950
      %v952 = vpop.f32.mrb[0].mxu0
      %v953 = vadd.f32 0.0, %v952
      %v954 = vpop.f32.mrb[0].mxu0
      %v955 = vadd.f32 0.0, %v954
      %v956 = vpop.f32.mrb[0].mxu0
      %v957 = vadd.f32 0.0, %v956
      %958 = vdwg.mxu0
      %959 = vmatprep.subr.bf16.mxu0 0
      %960 = vmatpush1.bf16.msra.mxu0 %v914
      %961 = vmatprep.subr.bf16.mxu0 0
      %962 = vmatpush1.bf16.msra.mxu0 0
      %963 = vmatprep.subr.bf16.mxu0 0
      %964 = vmatpush1.bf16.msra.mxu0 0
      %965 = vmatprep.subr.bf16.mxu0 0
      %966 = vmatpush1.bf16.msra.mxu0 0
      %967 = vmatprep.subr.bf16.mxu0 0
      %968 = vmatpush1.bf16.msra.mxu0 0
      %969 = vmatprep.subr.bf16.mxu0 0
      %970 = vmatpush1.bf16.msra.mxu0 0
      %971 = vmatprep.subr.bf16.mxu0 0
      %972 = vmatpush1.bf16.msra.mxu0 0
      %973 = vmatprep.subr.bf16.mxu0 0
      %974 = vmatpush1.bf16.msra.mxu0 0
      %975 = vmatprep.subr.bf16.mxu0 0
      %976 = vmatpush1.bf16.msra.mxu0 0
      %977 = vmatprep.subr.bf16.mxu0 0
      %978 = vmatpush1.bf16.msra.mxu0 0
      %979 = vmatprep.subr.bf16.mxu0 0
      %980 = vmatpush1.bf16.msra.mxu0 0
      %981 = vmatprep.subr.bf16.mxu0 0
      %982 = vmatpush1.bf16.msra.mxu0 0
      %983 = vmatprep.subr.bf16.mxu0 0
      %984 = vmatpush1.bf16.msra.mxu0 0
      %985 = vmatprep.subr.bf16.mxu0 0
      %986 = vmatpush1.bf16.msra.mxu0 0
      %987 = vmatprep.subr.bf16.mxu0 0
      %988 = vmatpush1.bf16.msra.mxu0 0
      %989 = vmatprep.subr.bf16.mxu0 0
      %990 = vmatpush1.bf16.msra.mxu0 0
      %991 = vmatprep.mubr.bf16.mxu0 0
      %992 = vmatmul.mubr.bf16.gmra.mrb[0].mxu0 %v905
      %v993 = vpop.f32.mrb[0].mxu0
      %v994 = vadd.f32 0.0, %v993
      %v995 = vpop.f32.mrb[0].mxu0
      %v996 = vpop.f32.mrb[0].mxu0
      %v997 = vadd.f32 0.0, %v996
      %v998 = vpop.f32.mrb[0].mxu0
      %999 = vdwg.mxu0
      %v1002 = vunpack.c.l.b16 %v895
      %v1003 = vunpack.c.l.b16 %v896
      %v1004 = vpack.c.b16 %v1003, %v1002
      %v1006 = vsel %vm659, %v1004, 0
      %v1009 = vsel %vm663, %v865, 0
      %v1012 = vsel %vm663, %v866, 0
      %v1015 = vsel %vm663, %v867, 0
      %1017 = vmatprep.subr.bf16.mxu0 %v1012
      %1018 = vmatpush1.bf16.msra.mxu0 %v1009
      %1019 = vmatprep.subr.bf16.mxu0 0
      %1020 = vmatpush1.bf16.msra.mxu0 0
      %1021 = vmatprep.subr.bf16.mxu0 0
      %1022 = vmatpush1.bf16.msra.mxu0 0
      %1023 = vmatprep.subr.bf16.mxu0 0
      %1024 = vmatpush1.bf16.msra.mxu0 0
      %1025 = vmatprep.subr.bf16.mxu0 0
      %1026 = vmatpush1.bf16.msra.mxu0 0
      %1027 = vmatprep.subr.bf16.mxu0 0
      %1028 = vmatpush1.bf16.msra.mxu0 0
      %1029 = vmatprep.subr.bf16.mxu0 0
      %1030 = vmatpush1.bf16.msra.mxu0 0
      %1031 = vmatprep.subr.bf16.mxu0 0
      %1032 = vmatpush1.bf16.msra.mxu0 0
      %1033 = vmatprep.subr.bf16.mxu0 0
      %1034 = vmatpush1.bf16.msra.mxu0 0
      %1035 = vmatprep.subr.bf16.mxu0 0
      %1036 = vmatpush1.bf16.msra.mxu0 0
      %1037 = vmatprep.subr.bf16.mxu0 0
      %1038 = vmatpush1.bf16.msra.mxu0 0
      %1039 = vmatprep.subr.bf16.mxu0 0
      %1040 = vmatpush1.bf16.msra.mxu0 0
      %1041 = vmatprep.subr.bf16.mxu0 0
      %1042 = vmatpush1.bf16.msra.mxu0 0
      %1043 = vmatprep.subr.bf16.mxu0 0
      %1044 = vmatpush1.bf16.msra.mxu0 0
      %1045 = vmatprep.subr.bf16.mxu0 0
      %1046 = vmatpush1.bf16.msra.mxu0 0
      %1047 = vmatprep.subr.bf16.mxu0 0
      %1048 = vmatpush1.bf16.msra.mxu0 0
      %1049 = vmatprep.mubr.bf16.mxu0 0
      %1050 = vmatmul.mubr.bf16.gmra.mrb[0].mxu0 %v1006
      %v1051 = vpop.f32.mrb[0].mxu0
      %v1052 = vadd.f32 %v951, %v1051
      %v1053 = vpop.f32.mrb[0].mxu0
      %v1054 = vadd.f32 %v953, %v1053
      %v1055 = vpop.f32.mrb[0].mxu0
      %v1056 = vadd.f32 %v955, %v1055
      %v1057 = vpop.f32.mrb[0].mxu0
      %v1058 = vadd.f32 %v957, %v1057
      %1059 = vdwg.mxu0
      %1060 = vmatprep.subr.bf16.mxu0 0
      %1061 = vmatpush1.bf16.msra.mxu0 %v1015
      %1062 = vmatprep.subr.bf16.mxu0 0
      %1063 = vmatpush1.bf16.msra.mxu0 0
      %1064 = vmatprep.subr.bf16.mxu0 0
      %1065 = vmatpush1.bf16.msra.mxu0 0
      %1066 = vmatprep.subr.bf16.mxu0 0
      %1067 = vmatpush1.bf16.msra.mxu0 0
      %1068 = vmatprep.subr.bf16.mxu0 0
      %1069 = vmatpush1.bf16.msra.mxu0 0
      %1070 = vmatprep.subr.bf16.mxu0 0
      %1071 = vmatpush1.bf16.msra.mxu0 0
      %1072 = vmatprep.subr.bf16.mxu0 0
      %1073 = vmatpush1.bf16.msra.mxu0 0
      %1074 = vmatprep.subr.bf16.mxu0 0
      %1075 = vmatpush1.bf16.msra.mxu0 0
      %1076 = vmatprep.subr.bf16.mxu0 0
      %1077 = vmatpush1.bf16.msra.mxu0 0
      %1078 = vmatprep.subr.bf16.mxu0 0
      %1079 = vmatpush1.bf16.msra.mxu0 0
      %1080 = vmatprep.subr.bf16.mxu0 0
      %1081 = vmatpush1.bf16.msra.mxu0 0
      %1082 = vmatprep.subr.bf16.mxu0 0
      %1083 = vmatpush1.bf16.msra.mxu0 0
      %1084 = vmatprep.subr.bf16.mxu0 0
      %1085 = vmatpush1.bf16.msra.mxu0 0
      %1086 = vmatprep.subr.bf16.mxu0 0
      %1087 = vmatpush1.bf16.msra.mxu0 0
      %1088 = vmatprep.subr.bf16.mxu0 0
      %1089 = vmatpush1.bf16.msra.mxu0 0
      %1090 = vmatprep.subr.bf16.mxu0 0
      %1091 = vmatpush1.bf16.msra.mxu0 0
      %1092 = vmatprep.mubr.bf16.mxu0 0
      %1093 = vmatmul.mubr.bf16.gmra.mrb[0].mxu0 %v1006
      %v1094 = vpop.f32.mrb[0].mxu0
      %v1095 = vadd.f32 %v994, %v1094
      %v1096 = vpop.f32.mrb[0].mxu0
      %v1097 = vpop.f32.mrb[0].mxu0
      %v1098 = vadd.f32 %v997, %v1097
      %v1099 = vpop.f32.mrb[0].mxu0
      %1100 = vdwg.mxu0
      %1101 = vset.pattern.permute.xlu0 2
      %1102 = vperm.xlu0 %1101, %v546
      %v1103 = vpop.permute.xlu0 %1102
      %1105 = vset.pattern.permute.xlu0 2
      %1106 = vperm.xlu0 %1105, %v547
      %v1107 = vpop.permute.xlu0 %1106
      %v1109 = vmul.f32 %v1052, %v1103
      %v1110 = vmul.f32 %v1054, %v1103
      %v1111 = vmul.f32 %v1095, %v1103
      %v1112 = vmul.f32 %v1056, %v1107
      %v1113 = vmul.f32 %v1058, %v1107
      %v1114 = vmul.f32 %v1098, %v1107
      %1115 = vset.pattern.permute.xlu0 3
      %1116 = vperm.xlu0 %1115, %v546
      %v1117 = vpop.permute.xlu0 %1116
      %1119 = vset.pattern.permute.xlu0 3
      %1120 = vperm.xlu0 %1119, %v547
      %v1121 = vpop.permute.xlu0 %1120
      %v1123 = vadd.f32 %v1109, %v1117
      %v1124 = vadd.f32 %v1110, %v1117
      %v1125 = vadd.f32 %v1111, %v1117
      %v1126 = vadd.f32 %v1112, %v1121
      %v1127 = vadd.f32 %v1113, %v1121
      %v1128 = vadd.f32 %v1114, %v1121
      %v1129 = vmax.f32 %v1123, 0.0
      %v1130 = vmax.f32 %v1124, 0.0
      %v1131 = vmax.f32 %v1125, 0.0
      %v1132 = vmax.f32 %v1126, 0.0
      %v1133 = vmax.f32 %v1127, 0.0
      %v1134 = vmax.f32 %v1128, 0.0
      %v1136 = vlaneseq
      %v1137 = vshrl.u32 %v1136, 7
      %v1138 = vsub.s32 0, %v1137
      %v1139 = vrot.slane %v545, %v1138
      %v1140 = vlaneseq
      %v1141 = vshrl.u32 %v1140, 7
      %v1142 = vsub.s32 1, %v1141
      %v1143 = vrot.slane %v545, %v1142
      %v1144 = vlaneseq
      %v1145 = vshrl.u32 %v1144, 7
      %v1146 = vsub.s32 2, %v1145
      %v1147 = vrot.slane %v545, %v1146
      %v1151 = vmul.f32 %v1129, %v1139
      %v1152 = vmul.f32 %v1130, %v1143
      %v1153 = vmul.f32 %v1131, %v1147
      %v1154 = vmul.f32 %v1132, %v1139
      %v1155 = vmul.f32 %v1133, %v1143
      %v1156 = vmul.f32 %v1134, %v1147
      %s1157 = scalar_lea.vmem %s11, 32
      %v1158 = vld [vmem:[%s1157] sm:$0xf]
      %v1159 = vld [vmem:[%s1157 + $0x4] sm:$0x3]
      %v1160 = vpack.c.bf16 %v1154, %v1151
      %v1161 = vpack.c.bf16 %v1155, %v1152
      %v1162 = vpack.c.bf16 %v1156, %v1153
      %1163 = vrot.lane.b32.xlu0 %v1151, 19
      %v1164 = vpop.permute.xlu0 %1163
      %1165 = vrot.lane.b32.xlu0 %v1154, 19
      %v1166 = vpop.permute.xlu0 %1165
      %1167 = vrot.lane.b32.xlu0 %v1152, 19
      %v1168 = vpop.permute.xlu0 %1167
      %1169 = vrot.lane.b32.xlu0 %v1155, 19
      %v1170 = vpop.permute.xlu0 %1169
      %1171 = vrot.lane.b32.xlu0 %v1153, 19
      %v1172 = vpop.permute.xlu0 %1171
      %1173 = vrot.lane.b32.xlu0 %v1156, 19
      %v1174 = vpop.permute.xlu0 %1173
      %v1175 = vlaneseq
      %v1176 = vand.u32 %v1175, 127
      %vm1177 = vcmp.lt.s32.totalorder %v1176, 19
      %v1178 = vsel %vm1177, %v1168, %v1172
      %v1179 = vsel %vm1177, %v1170, %v1174
      %v1180 = vsel %vm1177, %v1164, %v1168
      %v1181 = vsel %vm1177, %v1166, %v1170
      %v1182 = vsel %vm1177, %v1172, %v1164
      %v1183 = vsel %vm1177, %v1174, %v1166
      %v1184 = vpack.c.bf16 %v1183, %v1182
      %v1185 = vpack.c.bf16 %v1181, %v1180
      %v1186 = vpack.c.bf16 %v1179, %v1178
      %v1187 = vld [vmem:[%s11] sm:$0xf]
      %v1188 = vld [vmem:[%s11 + $0x4] sm:$0x3]
      %v1191 = vunpack.c.l.b16 %v1187
      %v1192 = vunpack.c.l.b16 %v1188
      %v1193 = vpack.c.b16 %v1192, %v1191
      %vm1194 = vcmask 97280
      %v1196 = vsel %vm1194, %v1193, 0
      %vm1198 = vcmask 1045504
      %v1200 = vsel %vm1198, %v1184, 0
      %v1203 = vsel %vm1198, %v1185, 0
      %v1206 = vsel %vm1198, %v1186, 0
      %1208 = vmatprep.subr.bf16.mxu0 %v1203
      %1209 = vmatpush1.bf16.msra.mxu0 %v1200
      %1210 = vmatprep.subr.bf16.mxu0 0
      %1211 = vmatpush1.bf16.msra.mxu0 0
      %1212 = vmatprep.subr.bf16.mxu0 0
      %1213 = vmatpush1.bf16.msra.mxu0 0
      %1214 = vmatprep.subr.bf16.mxu0 0
      %1215 = vmatpush1.bf16.msra.mxu0 0
      %1216 = vmatprep.subr.bf16.mxu0 0
      %1217 = vmatpush1.bf16.msra.mxu0 0
      %1218 = vmatprep.subr.bf16.mxu0 0
      %1219 = vmatpush1.bf16.msra.mxu0 0
      %1220 = vmatprep.subr.bf16.mxu0 0
      %1221 = vmatpush1.bf16.msra.mxu0 0
      %1222 = vmatprep.subr.bf16.mxu0 0
      %1223 = vmatpush1.bf16.msra.mxu0 0
      %1224 = vmatprep.subr.bf16.mxu0 0
      %1225 = vmatpush1.bf16.msra.mxu0 0
      %1226 = vmatprep.subr.bf16.mxu0 0
      %1227 = vmatpush1.bf16.msra.mxu0 0
      %1228 = vmatprep.subr.bf16.mxu0 0
      %1229 = vmatpush1.bf16.msra.mxu0 0
      %1230 = vmatprep.subr.bf16.mxu0 0
      %1231 = vmatpush1.bf16.msra.mxu0 0
      %1232 = vmatprep.subr.bf16.mxu0 0
      %1233 = vmatpush1.bf16.msra.mxu0 0
      %1234 = vmatprep.subr.bf16.mxu0 0
      %1235 = vmatpush1.bf16.msra.mxu0 0
      %1236 = vmatprep.subr.bf16.mxu0 0
      %1237 = vmatpush1.bf16.msra.mxu0 0
      %1238 = vmatprep.subr.bf16.mxu0 0
      %1239 = vmatpush1.bf16.msra.mxu0 0
      %1240 = vmatprep.mubr.bf16.mxu0 0
      %1241 = vmatmul.mubr.bf16.gmra.mrb[0].mxu0 %v1196
      %v1242 = vpop.f32.mrb[0].mxu0
      %v1243 = vadd.f32 0.0, %v1242
      %v1244 = vpop.f32.mrb[0].mxu0
      %v1245 = vadd.f32 0.0, %v1244
      %v1246 = vpop.f32.mrb[0].mxu0
      %v1247 = vadd.f32 0.0, %v1246
      %v1248 = vpop.f32.mrb[0].mxu0
      %v1249 = vadd.f32 0.0, %v1248
      %1250 = vdwg.mxu0
      %1251 = vmatprep.subr.bf16.mxu0 0
      %1252 = vmatpush1.bf16.msra.mxu0 %v1206
      %1253 = vmatprep.subr.bf16.mxu0 0
      %1254 = vmatpush1.bf16.msra.mxu0 0
      %1255 = vmatprep.subr.bf16.mxu0 0
      %1256 = vmatpush1.bf16.msra.mxu0 0
      %1257 = vmatprep.subr.bf16.mxu0 0
      %1258 = vmatpush1.bf16.msra.mxu0 0
      %1259 = vmatprep.subr.bf16.mxu0 0
      %1260 = vmatpush1.bf16.msra.mxu0 0
      %1261 = vmatprep.subr.bf16.mxu0 0
      %1262 = vmatpush1.bf16.msra.mxu0 0
      %1263 = vmatprep.subr.bf16.mxu0 0
      %1264 = vmatpush1.bf16.msra.mxu0 0
      %1265 = vmatprep.subr.bf16.mxu0 0
      %1266 = vmatpush1.bf16.msra.mxu0 0
      %1267 = vmatprep.subr.bf16.mxu0 0
      %1268 = vmatpush1.bf16.msra.mxu0 0
      %1269 = vmatprep.subr.bf16.mxu0 0
      %1270 = vmatpush1.bf16.msra.mxu0 0
      %1271 = vmatprep.subr.bf16.mxu0 0
      %1272 = vmatpush1.bf16.msra.mxu0 0
      %1273 = vmatprep.subr.bf16.mxu0 0
      %1274 = vmatpush1.bf16.msra.mxu0 0
      %1275 = vmatprep.subr.bf16.mxu0 0
      %1276 = vmatpush1.bf16.msra.mxu0 0
      %1277 = vmatprep.subr.bf16.mxu0 0
      %1278 = vmatpush1.bf16.msra.mxu0 0
      %1279 = vmatprep.subr.bf16.mxu0 0
      %1280 = vmatpush1.bf16.msra.mxu0 0
      %1281 = vmatprep.subr.bf16.mxu0 0
      %1282 = vmatpush1.bf16.msra.mxu0 0
      %1283 = vmatprep.mubr.bf16.mxu0 0
      %1284 = vmatmul.mubr.bf16.gmra.mrb[0].mxu0 %v1196
      %v1285 = vpop.f32.mrb[0].mxu0
      %v1286 = vadd.f32 0.0, %v1285
      %v1287 = vpop.f32.mrb[0].mxu0
      %v1288 = vpop.f32.mrb[0].mxu0
      %v1289 = vadd.f32 0.0, %v1288
      %v1290 = vpop.f32.mrb[0].mxu0
      %1291 = vdwg.mxu0
      %v1294 = vunpack.c.l.b16 %v1158
      %v1295 = vunpack.c.l.b16 %v1159
      %v1296 = vpack.c.b16 %v1295, %v1294
      %v1298 = vsel %vm1194, %v1296, 0
      %v1301 = vsel %vm1198, %v1160, 0
      %v1304 = vsel %vm1198, %v1161, 0
      %v1307 = vsel %vm1198, %v1162, 0
      %1309 = vmatprep.subr.bf16.mxu0 %v1304
      %1310 = vmatpush1.bf16.msra.mxu0 %v1301
      %1311 = vmatprep.subr.bf16.mxu0 0
      %1312 = vmatpush1.bf16.msra.mxu0 0
      %1313 = vmatprep.subr.bf16.mxu0 0
      %1314 = vmatpush1.bf16.msra.mxu0 0
      %1315 = vmatprep.subr.bf16.mxu0 0
      %1316 = vmatpush1.bf16.msra.mxu0 0
      %1317 = vmatprep.subr.bf16.mxu0 0
      %1318 = vmatpush1.bf16.msra.mxu0 0
      %1319 = vmatprep.subr.bf16.mxu0 0
      %1320 = vmatpush1.bf16.msra.mxu0 0
      %1321 = vmatprep.subr.bf16.mxu0 0
      %1322 = vmatpush1.bf16.msra.mxu0 0
      %1323 = vmatprep.subr.bf16.mxu0 0
      %1324 = vmatpush1.bf16.msra.mxu0 0
      %1325 = vmatprep.subr.bf16.mxu0 0
      %1326 = vmatpush1.bf16.msra.mxu0 0
      %1327 = vmatprep.subr.bf16.mxu0 0
      %1328 = vmatpush1.bf16.msra.mxu0 0
      %1329 = vmatprep.subr.bf16.mxu0 0
      %1330 = vmatpush1.bf16.msra.mxu0 0
      %1331 = vmatprep.subr.bf16.mxu0 0
      %1332 = vmatpush1.bf16.msra.mxu0 0
      %1333 = vmatprep.subr.bf16.mxu0 0
      %1334 = vmatpush1.bf16.msra.mxu0 0
      %1335 = vmatprep.subr.bf16.mxu0 0
      %1336 = vmatpush1.bf16.msra.mxu0 0
      %1337 = vmatprep.subr.bf16.mxu0 0
      %1338 = vmatpush1.bf16.msra.mxu0 0
      %1339 = vmatprep.subr.bf16.mxu0 0
      %1340 = vmatpush1.bf16.msra.mxu0 0
      %1341 = vmatprep.mubr.bf16.mxu0 0
      %1342 = vmatmul.mubr.bf16.gmra.mrb[0].mxu0 %v1298
      %v1343 = vpop.f32.mrb[0].mxu0
      %v1344 = vadd.f32 %v1243, %v1343
      %v1345 = vpop.f32.mrb[0].mxu0
      %v1346 = vadd.f32 %v1245, %v1345
      %v1347 = vpop.f32.mrb[0].mxu0
      %v1348 = vadd.f32 %v1247, %v1347
      %v1349 = vpop.f32.mrb[0].mxu0
      %v1350 = vadd.f32 %v1249, %v1349
      %1351 = vdwg.mxu0
      %1352 = vmatprep.subr.bf16.mxu0 0
      %1353 = vmatpush1.bf16.msra.mxu0 %v1307
      %1354 = vmatprep.subr.bf16.mxu0 0
      %1355 = vmatpush1.bf16.msra.mxu0 0
      %1356 = vmatprep.subr.bf16.mxu0 0
      %1357 = vmatpush1.bf16.msra.mxu0 0
      %1358 = vmatprep.subr.bf16.mxu0 0
      %1359 = vmatpush1.bf16.msra.mxu0 0
      %1360 = vmatprep.subr.bf16.mxu0 0
      %1361 = vmatpush1.bf16.msra.mxu0 0
      %1362 = vmatprep.subr.bf16.mxu0 0
      %1363 = vmatpush1.bf16.msra.mxu0 0
      %1364 = vmatprep.subr.bf16.mxu0 0
      %1365 = vmatpush1.bf16.msra.mxu0 0
      %1366 = vmatprep.subr.bf16.mxu0 0
      %1367 = vmatpush1.bf16.msra.mxu0 0
      %1368 = vmatprep.subr.bf16.mxu0 0
      %1369 = vmatpush1.bf16.msra.mxu0 0
      %1370 = vmatprep.subr.bf16.mxu0 0
      %1371 = vmatpush1.bf16.msra.mxu0 0
      %1372 = vmatprep.subr.bf16.mxu0 0
      %1373 = vmatpush1.bf16.msra.mxu0 0
      %1374 = vmatprep.subr.bf16.mxu0 0
      %1375 = vmatpush1.bf16.msra.mxu0 0
      %1376 = vmatprep.subr.bf16.mxu0 0
      %1377 = vmatpush1.bf16.msra.mxu0 0
      %1378 = vmatprep.subr.bf16.mxu0 0
      %1379 = vmatpush1.bf16.msra.mxu0 0
      %1380 = vmatprep.subr.bf16.mxu0 0
      %1381 = vmatpush1.bf16.msra.mxu0 0
      %1382 = vmatprep.subr.bf16.mxu0 0
      %1383 = vmatpush1.bf16.msra.mxu0 0
      %1384 = vmatprep.mubr.bf16.mxu0 0
      %1385 = vmatmul.mubr.bf16.gmra.mrb[0].mxu0 %v1298
      %v1386 = vpop.f32.mrb[0].mxu0
      %v1387 = vadd.f32 %v1286, %v1386
      %v1388 = vpop.f32.mrb[0].mxu0
      %v1389 = vpop.f32.mrb[0].mxu0
      %v1390 = vadd.f32 %v1289, %v1389
      %v1391 = vpop.f32.mrb[0].mxu0
      %1392 = vdwg.mxu0
      %1393 = vrot.lane.b32.xlu0 %v1151, 18
      %v1394 = vpop.permute.xlu0 %1393
      %1395 = vrot.lane.b32.xlu0 %v1154, 18
      %v1396 = vpop.permute.xlu0 %1395
      %1397 = vrot.lane.b32.xlu0 %v1152, 18
      %v1398 = vpop.permute.xlu0 %1397
      %1399 = vrot.lane.b32.xlu0 %v1155, 18
      %v1400 = vpop.permute.xlu0 %1399
      %1401 = vrot.lane.b32.xlu0 %v1153, 18
      %v1402 = vpop.permute.xlu0 %1401
      %1403 = vrot.lane.b32.xlu0 %v1156, 18
      %v1404 = vpop.permute.xlu0 %1403
      %vm1405 = vcmp.lt.s32.totalorder %v1176, 18
      %v1406 = vsel %vm1405, %v1398, %v1402
      %v1407 = vsel %vm1405, %v1400, %v1404
      %v1408 = vsel %vm1405, %v1394, %v1398
      %v1409 = vsel %vm1405, %v1396, %v1400
      %v1410 = vsel %vm1405, %v1402, %v1394
      %v1411 = vsel %vm1405, %v1404, %v1396
      %v1412 = vpack.c.bf16 %v1411, %v1410
      %v1413 = vpack.c.bf16 %v1409, %v1408
      %v1414 = vpack.c.bf16 %v1407, %v1406
      %s1415 = scalar_lea.vmem %s11, 8
      %v1416 = vld [vmem:[%s1415] sm:$0xf]
      %v1417 = vld [vmem:[%s1415 + $0x4] sm:$0x3]
      %v1420 = vunpack.c.l.b16 %v1416
      %v1421 = vunpack.c.l.b16 %v1417
      %v1422 = vpack.c.b16 %v1421, %v1420
      %v1424 = vsel %vm1194, %v1422, 0
      %v1427 = vsel %vm1198, %v1412, 0
      %v1430 = vsel %vm1198, %v1413, 0
      %v1433 = vsel %vm1198, %v1414, 0
      %1435 = vmatprep.subr.bf16.mxu0 %v1430
      %1436 = vmatpush1.bf16.msra.mxu0 %v1427
      %1437 = vmatprep.subr.bf16.mxu0 0
      %1438 = vmatpush1.bf16.msra.mxu0 0
      %1439 = vmatprep.subr.bf16.mxu0 0
      %1440 = vmatpush1.bf16.msra.mxu0 0
      %1441 = vmatprep.subr.bf16.mxu0 0
      %1442 = vmatpush1.bf16.msra.mxu0 0
      %1443 = vmatprep.subr.bf16.mxu0 0
      %1444 = vmatpush1.bf16.msra.mxu0 0
      %1445 = vmatprep.subr.bf16.mxu0 0
      %1446 = vmatpush1.bf16.msra.mxu0 0
      %1447 = vmatprep.subr.bf16.mxu0 0
      %1448 = vmatpush1.bf16.msra.mxu0 0
      %1449 = vmatprep.subr.bf16.mxu0 0
      %1450 = vmatpush1.bf16.msra.mxu0 0
      %1451 = vmatprep.subr.bf16.mxu0 0
      %1452 = vmatpush1.bf16.msra.mxu0 0
      %1453 = vmatprep.subr.bf16.mxu0 0
      %1454 = vmatpush1.bf16.msra.mxu0 0
      %1455 = vmatprep.subr.bf16.mxu0 0
      %1456 = vmatpush1.bf16.msra.mxu0 0
      %1457 = vmatprep.subr.bf16.mxu0 0
      %1458 = vmatpush1.bf16.msra.mxu0 0
      %1459 = vmatprep.subr.bf16.mxu0 0
      %1460 = vmatpush1.bf16.msra.mxu0 0
      %1461 = vmatprep.subr.bf16.mxu0 0
      %1462 = vmatpush1.bf16.msra.mxu0 0
      %1463 = vmatprep.subr.bf16.mxu0 0
      %1464 = vmatpush1.bf16.msra.mxu0 0
      %1465 = vmatprep.subr.bf16.mxu0 0
      %1466 = vmatpush1.bf16.msra.mxu0 0
      %1467 = vmatprep.mubr.bf16.mxu0 0
      %1468 = vmatmul.mubr.bf16.gmra.mrb[0].mxu0 %v1424
      %v1469 = vpop.f32.mrb[0].mxu0
      %v1470 = vadd.f32 0.0, %v1469
      %v1471 = vpop.f32.mrb[0].mxu0
      %v1472 = vadd.f32 0.0, %v1471
      %v1473 = vpop.f32.mrb[0].mxu0
      %v1474 = vadd.f32 0.0, %v1473
      %v1475 = vpop.f32.mrb[0].mxu0
      %v1476 = vadd.f32 0.0, %v1475
      %1477 = vdwg.mxu0
      %1478 = vmatprep.subr.bf16.mxu0 0
      %1479 = vmatpush1.bf16.msra.mxu0 %v1433
      %1480 = vmatprep.subr.bf16.mxu0 0
      %1481 = vmatpush1.bf16.msra.mxu0 0
      %1482 = vmatprep.subr.bf16.mxu0 0
      %1483 = vmatpush1.bf16.msra.mxu0 0
      %1484 = vmatprep.subr.bf16.mxu0 0
      %1485 = vmatpush1.bf16.msra.mxu0 0
      %1486 = vmatprep.subr.bf16.mxu0 0
      %1487 = vmatpush1.bf16.msra.mxu0 0
      %1488 = vmatprep.subr.bf16.mxu0 0
      %1489 = vmatpush1.bf16.msra.mxu0 0
      %1490 = vmatprep.subr.bf16.mxu0 0
      %1491 = vmatpush1.bf16.msra.mxu0 0
      %1492 = vmatprep.subr.bf16.mxu0 0
      %1493 = vmatpush1.bf16.msra.mxu0 0
      %1494 = vmatprep.subr.bf16.mxu0 0
      %1495 = vmatpush1.bf16.msra.mxu0 0
      %1496 = vmatprep.subr.bf16.mxu0 0
      %1497 = vmatpush1.bf16.msra.mxu0 0
      %1498 = vmatprep.subr.bf16.mxu0 0
      %1499 = vmatpush1.bf16.msra.mxu0 0
      %1500 = vmatprep.subr.bf16.mxu0 0
      %1501 = vmatpush1.bf16.msra.mxu0 0
      %1502 = vmatprep.subr.bf16.mxu0 0
      %1503 = vmatpush1.bf16.msra.mxu0 0
      %1504 = vmatprep.subr.bf16.mxu0 0
      %1505 = vmatpush1.bf16.msra.mxu0 0
      %1506 = vmatprep.subr.bf16.mxu0 0
      %1507 = vmatpush1.bf16.msra.mxu0 0
      %1508 = vmatprep.subr.bf16.mxu0 0
      %1509 = vmatpush1.bf16.msra.mxu0 0
      %1510 = vmatprep.mubr.bf16.mxu0 0
      %1511 = vmatmul.mubr.bf16.gmra.mrb[0].mxu0 %v1424
      %v1512 = vpop.f32.mrb[0].mxu0
      %v1513 = vadd.f32 0.0, %v1512
      %v1514 = vpop.f32.mrb[0].mxu0
      %v1515 = vpop.f32.mrb[0].mxu0
      %v1516 = vadd.f32 0.0, %v1515
      %v1517 = vpop.f32.mrb[0].mxu0
      %1518 = vdwg.mxu0
      %v1519 = vadd.f32 %v1344, %v1470
      %v1520 = vadd.f32 %v1346, %v1472
      %v1521 = vadd.f32 %v1387, %v1513
      %v1522 = vadd.f32 %v1348, %v1474
      %v1523 = vadd.f32 %v1350, %v1476
      %v1524 = vadd.f32 %v1390, %v1516
      %1525 = vrot.lane.b32.xlu0 %v1151, 17
      %v1526 = vpop.permute.xlu0 %1525
      %1527 = vrot.lane.b32.xlu0 %v1154, 17
      %v1528 = vpop.permute.xlu0 %1527
      %1529 = vrot.lane.b32.xlu0 %v1152, 17
      %v1530 = vpop.permute.xlu0 %1529
      %1531 = vrot.lane.b32.xlu0 %v1155, 17
      %v1532 = vpop.permute.xlu0 %1531
      %1533 = vrot.lane.b32.xlu0 %v1153, 17
      %v1534 = vpop.permute.xlu0 %1533
      %1535 = vrot.lane.b32.xlu0 %v1156, 17
      %v1536 = vpop.permute.xlu0 %1535
      %vm1537 = vcmp.lt.s32.totalorder %v1176, 17
      %v1538 = vsel %vm1537, %v1530, %v1534
      %v1539 = vsel %vm1537, %v1532, %v1536
      %v1540 = vsel %vm1537, %v1526, %v1530
      %v1541 = vsel %vm1537, %v1528, %v1532
      %v1542 = vsel %vm1537, %v1534, %v1526
      %v1543 = vsel %vm1537, %v1536, %v1528
      %v1544 = vpack.c.bf16 %v1543, %v1542
      %v1545 = vpack.c.bf16 %v1541, %v1540
      %v1546 = vpack.c.bf16 %v1539, %v1538
      %s1547 = scalar_lea.vmem %s11, 16
      %v1548 = vld [vmem:[%s1547] sm:$0xf]
      %v1549 = vld [vmem:[%s1547 + $0x4] sm:$0x3]
      %v1552 = vunpack.c.l.b16 %v1548
      %v1553 = vunpack.c.l.b16 %v1549
      %v1554 = vpack.c.b16 %v1553, %v1552
      %v1556 = vsel %vm1194, %v1554, 0
      %v1559 = vsel %vm1198, %v1544, 0
      %v1562 = vsel %vm1198, %v1545, 0
      %v1565 = vsel %vm1198, %v1546, 0
      %1567 = vmatprep.subr.bf16.mxu0 %v1562
      %1568 = vmatpush1.bf16.msra.mxu0 %v1559
      %1569 = vmatprep.subr.bf16.mxu0 0
      %1570 = vmatpush1.bf16.msra.mxu0 0
      %1571 = vmatprep.subr.bf16.mxu0 0
      %1572 = vmatpush1.bf16.msra.mxu0 0
      %1573 = vmatprep.subr.bf16.mxu0 0
      %1574 = vmatpush1.bf16.msra.mxu0 0
      %1575 = vmatprep.subr.bf16.mxu0 0
      %1576 = vmatpush1.bf16.msra.mxu0 0
      %1577 = vmatprep.subr.bf16.mxu0 0
      %1578 = vmatpush1.bf16.msra.mxu0 0
      %1579 = vmatprep.subr.bf16.mxu0 0
      %1580 = vmatpush1.bf16.msra.mxu0 0
      %1581 = vmatprep.subr.bf16.mxu0 0
      %1582 = vmatpush1.bf16.msra.mxu0 0
      %1583 = vmatprep.subr.bf16.mxu0 0
      %1584 = vmatpush1.bf16.msra.mxu0 0
      %1585 = vmatprep.subr.bf16.mxu0 0
      %1586 = vmatpush1.bf16.msra.mxu0 0
      %1587 = vmatprep.subr.bf16.mxu0 0
      %1588 = vmatpush1.bf16.msra.mxu0 0
      %1589 = vmatprep.subr.bf16.mxu0 0
      %1590 = vmatpush1.bf16.msra.mxu0 0
      %1591 = vmatprep.subr.bf16.mxu0 0
      %1592 = vmatpush1.bf16.msra.mxu0 0
      %1593 = vmatprep.subr.bf16.mxu0 0
      %1594 = vmatpush1.bf16.msra.mxu0 0
      %1595 = vmatprep.subr.bf16.mxu0 0
      %1596 = vmatpush1.bf16.msra.mxu0 0
      %1597 = vmatprep.subr.bf16.mxu0 0
      %1598 = vmatpush1.bf16.msra.mxu0 0
      %1599 = vmatprep.mubr.bf16.mxu0 0
      %1600 = vmatmul.mubr.bf16.gmra.mrb[0].mxu0 %v1556
      %v1601 = vpop.f32.mrb[0].mxu0
      %v1602 = vadd.f32 0.0, %v1601
      %v1603 = vpop.f32.mrb[0].mxu0
      %v1604 = vadd.f32 0.0, %v1603
      %v1605 = vpop.f32.mrb[0].mxu0
      %v1606 = vadd.f32 0.0, %v1605
      %v1607 = vpop.f32.mrb[0].mxu0
      %v1608 = vadd.f32 0.0, %v1607
      %1609 = vdwg.mxu0
      %1610 = vmatprep.subr.bf16.mxu0 0
      %1611 = vmatpush1.bf16.msra.mxu0 %v1565
      %1612 = vmatprep.subr.bf16.mxu0 0
      %1613 = vmatpush1.bf16.msra.mxu0 0
      %1614 = vmatprep.subr.bf16.mxu0 0
      %1615 = vmatpush1.bf16.msra.mxu0 0
      %1616 = vmatprep.subr.bf16.mxu0 0
      %1617 = vmatpush1.bf16.msra.mxu0 0
      %1618 = vmatprep.subr.bf16.mxu0 0
      %1619 = vmatpush1.bf16.msra.mxu0 0
      %1620 = vmatprep.subr.bf16.mxu0 0
      %1621 = vmatpush1.bf16.msra.mxu0 0
      %1622 = vmatprep.subr.bf16.mxu0 0
      %1623 = vmatpush1.bf16.msra.mxu0 0
      %1624 = vmatprep.subr.bf16.mxu0 0
      %1625 = vmatpush1.bf16.msra.mxu0 0
      %1626 = vmatprep.subr.bf16.mxu0 0
      %1627 = vmatpush1.bf16.msra.mxu0 0
      %1628 = vmatprep.subr.bf16.mxu0 0
      %1629 = vmatpush1.bf16.msra.mxu0 0
      %1630 = vmatprep.subr.bf16.mxu0 0
      %1631 = vmatpush1.bf16.msra.mxu0 0
      %1632 = vmatprep.subr.bf16.mxu0 0
      %1633 = vmatpush1.bf16.msra.mxu0 0
      %1634 = vmatprep.subr.bf16.mxu0 0
      %1635 = vmatpush1.bf16.msra.mxu0 0
      %1636 = vmatprep.subr.bf16.mxu0 0
      %1637 = vmatpush1.bf16.msra.mxu0 0
      %1638 = vmatprep.subr.bf16.mxu0 0
      %1639 = vmatpush1.bf16.msra.mxu0 0
      %1640 = vmatprep.subr.bf16.mxu0 0
      %1641 = vmatpush1.bf16.msra.mxu0 0
      %1642 = vmatprep.mubr.bf16.mxu0 0
      %1643 = vmatmul.mubr.bf16.gmra.mrb[0].mxu0 %v1556
      %v1644 = vpop.f32.mrb[0].mxu0
      %v1645 = vadd.f32 0.0, %v1644
      %v1646 = vpop.f32.mrb[0].mxu0
      %v1647 = vpop.f32.mrb[0].mxu0
      %v1648 = vadd.f32 0.0, %v1647
      %v1649 = vpop.f32.mrb[0].mxu0
      %1650 = vdwg.mxu0
      %v1651 = vadd.f32 %v1519, %v1602
      %v1652 = vadd.f32 %v1520, %v1604
      %v1653 = vadd.f32 %v1521, %v1645
      %v1654 = vadd.f32 %v1522, %v1606
      %v1655 = vadd.f32 %v1523, %v1608
      %v1656 = vadd.f32 %v1524, %v1648
      %1657 = vrot.lane.b32.xlu0 %v1151, 1
      %v1658 = vpop.permute.xlu0 %1657
      %1659 = vrot.lane.b32.xlu0 %v1154, 1
      %v1660 = vpop.permute.xlu0 %1659
      %1661 = vrot.lane.b32.xlu0 %v1152, 1
      %v1662 = vpop.permute.xlu0 %1661
      %1663 = vrot.lane.b32.xlu0 %v1155, 1
      %v1664 = vpop.permute.xlu0 %1663
      %1665 = vrot.lane.b32.xlu0 %v1153, 1
      %v1666 = vpop.permute.xlu0 %1665
      %1667 = vrot.lane.b32.xlu0 %v1156, 1
      %v1668 = vpop.permute.xlu0 %1667
      %vm1669 = vcmp.lt.s32.totalorder %v1176, 1
      %v1670 = vsel %vm1669, %v1662, %v1666
      %v1671 = vsel %vm1669, %v1664, %v1668
      %v1672 = vsel %vm1669, %v1658, %v1662
      %v1673 = vsel %vm1669, %v1660, %v1664
      %v1674 = vsel %vm1669, %v1666, %v1658
      %v1675 = vsel %vm1669, %v1668, %v1660
      %v1676 = vpack.c.bf16 %v1675, %v1674
      %v1677 = vpack.c.bf16 %v1673, %v1672
      %v1678 = vpack.c.bf16 %v1671, %v1670
      %s1679 = scalar_lea.vmem %s11, 24
      %v1680 = vld [vmem:[%s1679] sm:$0xf]
      %v1681 = vld [vmem:[%s1679 + $0x4] sm:$0x3]
      %v1684 = vunpack.c.l.b16 %v1680
      %v1685 = vunpack.c.l.b16 %v1681
      %v1686 = vpack.c.b16 %v1685, %v1684
      %v1688 = vsel %vm1194, %v1686, 0
      %v1691 = vsel %vm1198, %v1676, 0
      %v1694 = vsel %vm1198, %v1677, 0
      %v1697 = vsel %vm1198, %v1678, 0
      %1699 = vmatprep.subr.bf16.mxu0 %v1694
      %1700 = vmatpush1.bf16.msra.mxu0 %v1691
      %1701 = vmatprep.subr.bf16.mxu0 0
      %1702 = vmatpush1.bf16.msra.mxu0 0
      %1703 = vmatprep.subr.bf16.mxu0 0
      %1704 = vmatpush1.bf16.msra.mxu0 0
      %1705 = vmatprep.subr.bf16.mxu0 0
      %1706 = vmatpush1.bf16.msra.mxu0 0
      %1707 = vmatprep.subr.bf16.mxu0 0
      %1708 = vmatpush1.bf16.msra.mxu0 0
      %1709 = vmatprep.subr.bf16.mxu0 0
      %1710 = vmatpush1.bf16.msra.mxu0 0
      %1711 = vmatprep.subr.bf16.mxu0 0
      %1712 = vmatpush1.bf16.msra.mxu0 0
      %1713 = vmatprep.subr.bf16.mxu0 0
      %1714 = vmatpush1.bf16.msra.mxu0 0
      %1715 = vmatprep.subr.bf16.mxu0 0
      %1716 = vmatpush1.bf16.msra.mxu0 0
      %1717 = vmatprep.subr.bf16.mxu0 0
      %1718 = vmatpush1.bf16.msra.mxu0 0
      %1719 = vmatprep.subr.bf16.mxu0 0
      %1720 = vmatpush1.bf16.msra.mxu0 0
      %1721 = vmatprep.subr.bf16.mxu0 0
      %1722 = vmatpush1.bf16.msra.mxu0 0
      %1723 = vmatprep.subr.bf16.mxu0 0
      %1724 = vmatpush1.bf16.msra.mxu0 0
      %1725 = vmatprep.subr.bf16.mxu0 0
      %1726 = vmatpush1.bf16.msra.mxu0 0
      %1727 = vmatprep.subr.bf16.mxu0 0
      %1728 = vmatpush1.bf16.msra.mxu0 0
      %1729 = vmatprep.subr.bf16.mxu0 0
      %1730 = vmatpush1.bf16.msra.mxu0 0
      %1731 = vmatprep.mubr.bf16.mxu0 0
      %1732 = vmatmul.mubr.bf16.gmra.mrb[0].mxu0 %v1688
      %v1733 = vpop.f32.mrb[0].mxu0
      %v1734 = vadd.f32 0.0, %v1733
      %v1735 = vpop.f32.mrb[0].mxu0
      %v1736 = vadd.f32 0.0, %v1735
      %v1737 = vpop.f32.mrb[0].mxu0
      %v1738 = vadd.f32 0.0, %v1737
      %v1739 = vpop.f32.mrb[0].mxu0
      %v1740 = vadd.f32 0.0, %v1739
      %1741 = vdwg.mxu0
      %1742 = vmatprep.subr.bf16.mxu0 0
      %1743 = vmatpush1.bf16.msra.mxu0 %v1697
      %1744 = vmatprep.subr.bf16.mxu0 0
      %1745 = vmatpush1.bf16.msra.mxu0 0
      %1746 = vmatprep.subr.bf16.mxu0 0
      %1747 = vmatpush1.bf16.msra.mxu0 0
      %1748 = vmatprep.subr.bf16.mxu0 0
      %1749 = vmatpush1.bf16.msra.mxu0 0
      %1750 = vmatprep.subr.bf16.mxu0 0
      %1751 = vmatpush1.bf16.msra.mxu0 0
      %1752 = vmatprep.subr.bf16.mxu0 0
      %1753 = vmatpush1.bf16.msra.mxu0 0
      %1754 = vmatprep.subr.bf16.mxu0 0
      %1755 = vmatpush1.bf16.msra.mxu0 0
      %1756 = vmatprep.subr.bf16.mxu0 0
      %1757 = vmatpush1.bf16.msra.mxu0 0
      %1758 = vmatprep.subr.bf16.mxu0 0
      %1759 = vmatpush1.bf16.msra.mxu0 0
      %1760 = vmatprep.subr.bf16.mxu0 0
      %1761 = vmatpush1.bf16.msra.mxu0 0
      %1762 = vmatprep.subr.bf16.mxu0 0
      %1763 = vmatpush1.bf16.msra.mxu0 0
      %1764 = vmatprep.subr.bf16.mxu0 0
      %1765 = vmatpush1.bf16.msra.mxu0 0
      %1766 = vmatprep.subr.bf16.mxu0 0
      %1767 = vmatpush1.bf16.msra.mxu0 0
      %1768 = vmatprep.subr.bf16.mxu0 0
      %1769 = vmatpush1.bf16.msra.mxu0 0
      %1770 = vmatprep.subr.bf16.mxu0 0
      %1771 = vmatpush1.bf16.msra.mxu0 0
      %1772 = vmatprep.subr.bf16.mxu0 0
      %1773 = vmatpush1.bf16.msra.mxu0 0
      %1774 = vmatprep.mubr.bf16.mxu0 0
      %1775 = vmatmul.mubr.bf16.gmra.mrb[0].mxu0 %v1688
      %v1776 = vpop.f32.mrb[0].mxu0
      %v1777 = vadd.f32 0.0, %v1776
      %v1778 = vpop.f32.mrb[0].mxu0
      %v1779 = vpop.f32.mrb[0].mxu0
      %v1780 = vadd.f32 0.0, %v1779
      %v1781 = vpop.f32.mrb[0].mxu0
      %1782 = vdwg.mxu0
      %v1783 = vadd.f32 %v1651, %v1734
      %v1784 = vadd.f32 %v1652, %v1736
      %v1785 = vadd.f32 %v1653, %v1777
      %v1786 = vadd.f32 %v1654, %v1738
      %v1787 = vadd.f32 %v1655, %v1740
      %v1788 = vadd.f32 %v1656, %v1780
      %1789 = vrot.lane.b32.xlu0 %v1151, 127
      %v1790 = vpop.permute.xlu0 %1789
      %1791 = vrot.lane.b32.xlu0 %v1154, 127
      %v1792 = vpop.permute.xlu0 %1791
      %1793 = vrot.lane.b32.xlu0 %v1152, 127
      %v1794 = vpop.permute.xlu0 %1793
      %1795 = vrot.lane.b32.xlu0 %v1155, 127
      %v1796 = vpop.permute.xlu0 %1795
      %1797 = vrot.lane.b32.xlu0 %v1153, 127
      %v1798 = vpop.permute.xlu0 %1797
      %1799 = vrot.lane.b32.xlu0 %v1156, 127
      %v1800 = vpop.permute.xlu0 %1799
      %vm1801 = vcmp.lt.s32.totalorder %v1176, 127
      %v1802 = vsel %vm1801, %v1794, %v1798
      %v1803 = vsel %vm1801, %v1796, %v1800
      %v1804 = vsel %vm1801, %v1790, %v1794
      %v1805 = vsel %vm1801, %v1792, %v1796
      %v1806 = vsel %vm1801, %v1798, %v1790
      %v1807 = vsel %vm1801, %v1800, %v1792
      %v1808 = vpack.c.bf16 %v1805, %v1804
      %v1809 = vpack.c.bf16 %v1803, %v1802
      %v1810 = vpack.c.bf16 %v1807, %v1806
      %s1811 = scalar_lea.vmem %s11, 40
      %v1812 = vld [vmem:[%s1811] sm:$0xf]
      %v1813 = vld [vmem:[%s1811 + $0x4] sm:$0x3]
      %v1816 = vunpack.c.l.b16 %v1812
      %v1817 = vunpack.c.l.b16 %v1813
      %v1818 = vpack.c.b16 %v1817, %v1816
      %v1820 = vsel %vm1194, %v1818, 0
      %v1823 = vsel %vm1198, %v1808, 0
      %v1826 = vsel %vm1198, %v1809, 0
      %v1829 = vsel %vm1198, %v1810, 0
      %1831 = vmatprep.subr.bf16.mxu0 %v1826
      %1832 = vmatpush1.bf16.msra.mxu0 %v1823
      %1833 = vmatprep.subr.bf16.mxu0 0
      %1834 = vmatpush1.bf16.msra.mxu0 0
      %1835 = vmatprep.subr.bf16.mxu0 0
      %1836 = vmatpush1.bf16.msra.mxu0 0
      %1837 = vmatprep.subr.bf16.mxu0 0
      %1838 = vmatpush1.bf16.msra.mxu0 0
      %1839 = vmatprep.subr.bf16.mxu0 0
      %1840 = vmatpush1.bf16.msra.mxu0 0
      %1841 = vmatprep.subr.bf16.mxu0 0
      %1842 = vmatpush1.bf16.msra.mxu0 0
      %1843 = vmatprep.subr.bf16.mxu0 0
      %1844 = vmatpush1.bf16.msra.mxu0 0
      %1845 = vmatprep.subr.bf16.mxu0 0
      %1846 = vmatpush1.bf16.msra.mxu0 0
      %1847 = vmatprep.subr.bf16.mxu0 0
      %1848 = vmatpush1.bf16.msra.mxu0 0
      %1849 = vmatprep.subr.bf16.mxu0 0
      %1850 = vmatpush1.bf16.msra.mxu0 0
      %1851 = vmatprep.subr.bf16.mxu0 0
      %1852 = vmatpush1.bf16.msra.mxu0 0
      %1853 = vmatprep.subr.bf16.mxu0 0
      %1854 = vmatpush1.bf16.msra.mxu0 0
      %1855 = vmatprep.subr.bf16.mxu0 0
      %1856 = vmatpush1.bf16.msra.mxu0 0
      %1857 = vmatprep.subr.bf16.mxu0 0
      %1858 = vmatpush1.bf16.msra.mxu0 0
      %1859 = vmatprep.subr.bf16.mxu0 0
      %1860 = vmatpush1.bf16.msra.mxu0 0
      %1861 = vmatprep.subr.bf16.mxu0 0
      %1862 = vmatpush1.bf16.msra.mxu0 0
      %1863 = vmatprep.mubr.bf16.mxu0 0
      %1864 = vmatmul.mubr.bf16.gmra.mrb[0].mxu0 %v1820
      %v1865 = vpop.f32.mrb[0].mxu0
      %v1866 = vadd.f32 0.0, %v1865
      %v1867 = vpop.f32.mrb[0].mxu0
      %v1868 = vadd.f32 0.0, %v1867
      %v1869 = vpop.f32.mrb[0].mxu0
      %v1870 = vadd.f32 0.0, %v1869
      %v1871 = vpop.f32.mrb[0].mxu0
      %v1872 = vadd.f32 0.0, %v1871
      %1873 = vdwg.mxu0
      %1874 = vmatprep.subr.bf16.mxu0 0
      %1875 = vmatpush1.bf16.msra.mxu0 %v1829
      %1876 = vmatprep.subr.bf16.mxu0 0
      %1877 = vmatpush1.bf16.msra.mxu0 0
      %1878 = vmatprep.subr.bf16.mxu0 0
      %1879 = vmatpush1.bf16.msra.mxu0 0
      %1880 = vmatprep.subr.bf16.mxu0 0
      %1881 = vmatpush1.bf16.msra.mxu0 0
      %1882 = vmatprep.subr.bf16.mxu0 0
      %1883 = vmatpush1.bf16.msra.mxu0 0
      %1884 = vmatprep.subr.bf16.mxu0 0
      %1885 = vmatpush1.bf16.msra.mxu0 0
      %1886 = vmatprep.subr.bf16.mxu0 0
      %1887 = vmatpush1.bf16.msra.mxu0 0
      %1888 = vmatprep.subr.bf16.mxu0 0
      %1889 = vmatpush1.bf16.msra.mxu0 0
      %1890 = vmatprep.subr.bf16.mxu0 0
      %1891 = vmatpush1.bf16.msra.mxu0 0
      %1892 = vmatprep.subr.bf16.mxu0 0
      %1893 = vmatpush1.bf16.msra.mxu0 0
      %1894 = vmatprep.subr.bf16.mxu0 0
      %1895 = vmatpush1.bf16.msra.mxu0 0
      %1896 = vmatprep.subr.bf16.mxu0 0
      %1897 = vmatpush1.bf16.msra.mxu0 0
      %1898 = vmatprep.subr.bf16.mxu0 0
      %1899 = vmatpush1.bf16.msra.mxu0 0
      %1900 = vmatprep.subr.bf16.mxu0 0
      %1901 = vmatpush1.bf16.msra.mxu0 0
      %1902 = vmatprep.subr.bf16.mxu0 0
      %1903 = vmatpush1.bf16.msra.mxu0 0
      %1904 = vmatprep.subr.bf16.mxu0 0
      %1905 = vmatpush1.bf16.msra.mxu0 0
      %1906 = vmatprep.mubr.bf16.mxu0 0
      %1907 = vmatmul.mubr.bf16.gmra.mrb[0].mxu0 %v1820
      %v1908 = vpop.f32.mrb[0].mxu0
      %v1909 = vadd.f32 0.0, %v1908
      %v1910 = vpop.f32.mrb[0].mxu0
      %v1911 = vpop.f32.mrb[0].mxu0
      %v1912 = vadd.f32 0.0, %v1911
      %v1913 = vpop.f32.mrb[0].mxu0
      %1914 = vdwg.mxu0
      %v1915 = vadd.f32 %v1783, %v1866
      %v1916 = vadd.f32 %v1784, %v1868
      %v1917 = vadd.f32 %v1785, %v1909
      %v1918 = vadd.f32 %v1786, %v1870
      %v1919 = vadd.f32 %v1787, %v1872
      %v1920 = vadd.f32 %v1788, %v1912
      %1921 = vrot.lane.b32.xlu0 %v1151, 111
      %v1922 = vpop.permute.xlu0 %1921
      %1923 = vrot.lane.b32.xlu0 %v1154, 111
      %v1924 = vpop.permute.xlu0 %1923
      %1925 = vrot.lane.b32.xlu0 %v1152, 111
      %v1926 = vpop.permute.xlu0 %1925
      %1927 = vrot.lane.b32.xlu0 %v1155, 111
      %v1928 = vpop.permute.xlu0 %1927
      %1929 = vrot.lane.b32.xlu0 %v1153, 111
      %v1930 = vpop.permute.xlu0 %1929
      %1931 = vrot.lane.b32.xlu0 %v1156, 111
      %v1932 = vpop.permute.xlu0 %1931
      %vm1933 = vcmp.lt.s32.totalorder %v1176, 111
      %v1934 = vsel %vm1933, %v1926, %v1930
      %v1935 = vsel %vm1933, %v1928, %v1932
      %v1936 = vsel %vm1933, %v1922, %v1926
      %v1937 = vsel %vm1933, %v1924, %v1928
      %v1938 = vsel %vm1933, %v1930, %v1922
      %v1939 = vsel %vm1933, %v1932, %v1924
      %v1940 = vpack.c.bf16 %v1937, %v1936
      %v1941 = vpack.c.bf16 %v1935, %v1934
      %v1942 = vpack.c.bf16 %v1939, %v1938
      %s1943 = scalar_lea.vmem %s11, 48
      %v1944 = vld [vmem:[%s1943] sm:$0xf]
      %v1945 = vld [vmem:[%s1943 + $0x4] sm:$0x3]
      %v1948 = vunpack.c.l.b16 %v1944
      %v1949 = vunpack.c.l.b16 %v1945
      %v1950 = vpack.c.b16 %v1949, %v1948
      %v1952 = vsel %vm1194, %v1950, 0
      %v1955 = vsel %vm1198, %v1940, 0
      %v1958 = vsel %vm1198, %v1941, 0
      %v1961 = vsel %vm1198, %v1942, 0
      %1963 = vmatprep.subr.bf16.mxu0 %v1958
      %1964 = vmatpush1.bf16.msra.mxu0 %v1955
      %1965 = vmatprep.subr.bf16.mxu0 0
      %1966 = vmatpush1.bf16.msra.mxu0 0
      %1967 = vmatprep.subr.bf16.mxu0 0
      %1968 = vmatpush1.bf16.msra.mxu0 0
      %1969 = vmatprep.subr.bf16.mxu0 0
      %1970 = vmatpush1.bf16.msra.mxu0 0
      %1971 = vmatprep.subr.bf16.mxu0 0
      %1972 = vmatpush1.bf16.msra.mxu0 0
      %1973 = vmatprep.subr.bf16.mxu0 0
      %1974 = vmatpush1.bf16.msra.mxu0 0
      %1975 = vmatprep.subr.bf16.mxu0 0
      %1976 = vmatpush1.bf16.msra.mxu0 0
      %1977 = vmatprep.subr.bf16.mxu0 0
      %1978 = vmatpush1.bf16.msra.mxu0 0
      %1979 = vmatprep.subr.bf16.mxu0 0
      %1980 = vmatpush1.bf16.msra.mxu0 0
      %1981 = vmatprep.subr.bf16.mxu0 0
      %1982 = vmatpush1.bf16.msra.mxu0 0
      %1983 = vmatprep.subr.bf16.mxu0 0
      %1984 = vmatpush1.bf16.msra.mxu0 0
      %1985 = vmatprep.subr.bf16.mxu0 0
      %1986 = vmatpush1.bf16.msra.mxu0 0
      %1987 = vmatprep.subr.bf16.mxu0 0
      %1988 = vmatpush1.bf16.msra.mxu0 0
      %1989 = vmatprep.subr.bf16.mxu0 0
      %1990 = vmatpush1.bf16.msra.mxu0 0
      %1991 = vmatprep.subr.bf16.mxu0 0
      %1992 = vmatpush1.bf16.msra.mxu0 0
      %1993 = vmatprep.subr.bf16.mxu0 0
      %1994 = vmatpush1.bf16.msra.mxu0 0
      %1995 = vmatprep.mubr.bf16.mxu0 0
      %1996 = vmatmul.mubr.bf16.gmra.mrb[0].mxu0 %v1952
      %v1997 = vpop.f32.mrb[0].mxu0
      %v1998 = vadd.f32 0.0, %v1997
      %v1999 = vpop.f32.mrb[0].mxu0
      %v2000 = vadd.f32 0.0, %v1999
      %v2001 = vpop.f32.mrb[0].mxu0
      %v2002 = vadd.f32 0.0, %v2001
      %v2003 = vpop.f32.mrb[0].mxu0
      %v2004 = vadd.f32 0.0, %v2003
      %2005 = vdwg.mxu0
      %2006 = vmatprep.subr.bf16.mxu0 0
      %2007 = vmatpush1.bf16.msra.mxu0 %v1961
      %2008 = vmatprep.subr.bf16.mxu0 0
      %2009 = vmatpush1.bf16.msra.mxu0 0
      %2010 = vmatprep.subr.bf16.mxu0 0
      %2011 = vmatpush1.bf16.msra.mxu0 0
      %2012 = vmatprep.subr.bf16.mxu0 0
      %2013 = vmatpush1.bf16.msra.mxu0 0
      %2014 = vmatprep.subr.bf16.mxu0 0
      %2015 = vmatpush1.bf16.msra.mxu0 0
      %2016 = vmatprep.subr.bf16.mxu0 0
      %2017 = vmatpush1.bf16.msra.mxu0 0
      %2018 = vmatprep.subr.bf16.mxu0 0
      %2019 = vmatpush1.bf16.msra.mxu0 0
      %2020 = vmatprep.subr.bf16.mxu0 0
      %2021 = vmatpush1.bf16.msra.mxu0 0
      %2022 = vmatprep.subr.bf16.mxu0 0
      %2023 = vmatpush1.bf16.msra.mxu0 0
      %2024 = vmatprep.subr.bf16.mxu0 0
      %2025 = vmatpush1.bf16.msra.mxu0 0
      %2026 = vmatprep.subr.bf16.mxu0 0
      %2027 = vmatpush1.bf16.msra.mxu0 0
      %2028 = vmatprep.subr.bf16.mxu0 0
      %2029 = vmatpush1.bf16.msra.mxu0 0
      %2030 = vmatprep.subr.bf16.mxu0 0
      %2031 = vmatpush1.bf16.msra.mxu0 0
      %2032 = vmatprep.subr.bf16.mxu0 0
      %2033 = vmatpush1.bf16.msra.mxu0 0
      %2034 = vmatprep.subr.bf16.mxu0 0
      %2035 = vmatpush1.bf16.msra.mxu0 0
      %2036 = vmatprep.subr.bf16.mxu0 0
      %2037 = vmatpush1.bf16.msra.mxu0 0
      %2038 = vmatprep.mubr.bf16.mxu0 0
      %2039 = vmatmul.mubr.bf16.gmra.mrb[0].mxu0 %v1952
      %v2040 = vpop.f32.mrb[0].mxu0
      %v2041 = vadd.f32 0.0, %v2040
      %v2042 = vpop.f32.mrb[0].mxu0
      %v2043 = vpop.f32.mrb[0].mxu0
      %v2044 = vadd.f32 0.0, %v2043
      %v2045 = vpop.f32.mrb[0].mxu0
      %2046 = vdwg.mxu0
      %v2047 = vadd.f32 %v1915, %v1998
      %v2048 = vadd.f32 %v1916, %v2000
      %v2049 = vadd.f32 %v1917, %v2041
      %v2050 = vadd.f32 %v1918, %v2002
      %v2051 = vadd.f32 %v1919, %v2004
      %v2052 = vadd.f32 %v1920, %v2044
      %2053 = vrot.lane.b32.xlu0 %v1151, 110
      %v2054 = vpop.permute.xlu0 %2053
      %2055 = vrot.lane.b32.xlu0 %v1154, 110
      %v2056 = vpop.permute.xlu0 %2055
      %2057 = vrot.lane.b32.xlu0 %v1152, 110
      %v2058 = vpop.permute.xlu0 %2057
      %2059 = vrot.lane.b32.xlu0 %v1155, 110
      %v2060 = vpop.permute.xlu0 %2059
      %2061 = vrot.lane.b32.xlu0 %v1153, 110
      %v2062 = vpop.permute.xlu0 %2061
      %2063 = vrot.lane.b32.xlu0 %v1156, 110
      %v2064 = vpop.permute.xlu0 %2063
      %vm2065 = vcmp.lt.s32.totalorder %v1176, 110
      %v2066 = vsel %vm2065, %v2058, %v2062
      %v2067 = vsel %vm2065, %v2060, %v2064
      %v2068 = vsel %vm2065, %v2054, %v2058
      %v2069 = vsel %vm2065, %v2056, %v2060
      %v2070 = vsel %vm2065, %v2062, %v2054
      %v2071 = vsel %vm2065, %v2064, %v2056
      %v2072 = vpack.c.bf16 %v2069, %v2068
      %v2073 = vpack.c.bf16 %v2067, %v2066
      %v2074 = vpack.c.bf16 %v2071, %v2070
      %s2075 = scalar_lea.vmem %s11, 56
      %v2076 = vld [vmem:[%s2075] sm:$0xf]
      %v2077 = vld [vmem:[%s2075 + $0x4] sm:$0x3]
      %v2080 = vunpack.c.l.b16 %v2076
      %v2081 = vunpack.c.l.b16 %v2077
      %v2082 = vpack.c.b16 %v2081, %v2080
      %v2084 = vsel %vm1194, %v2082, 0
      %v2087 = vsel %vm1198, %v2072, 0
      %v2090 = vsel %vm1198, %v2073, 0
      %v2093 = vsel %vm1198, %v2074, 0
      %2095 = vmatprep.subr.bf16.mxu0 %v2090
      %2096 = vmatpush1.bf16.msra.mxu0 %v2087
      %2097 = vmatprep.subr.bf16.mxu0 0
      %2098 = vmatpush1.bf16.msra.mxu0 0
      %2099 = vmatprep.subr.bf16.mxu0 0
      %2100 = vmatpush1.bf16.msra.mxu0 0
      %2101 = vmatprep.subr.bf16.mxu0 0
      %2102 = vmatpush1.bf16.msra.mxu0 0
      %2103 = vmatprep.subr.bf16.mxu0 0
      %2104 = vmatpush1.bf16.msra.mxu0 0
      %2105 = vmatprep.subr.bf16.mxu0 0
      %2106 = vmatpush1.bf16.msra.mxu0 0
      %2107 = vmatprep.subr.bf16.mxu0 0
      %2108 = vmatpush1.bf16.msra.mxu0 0
      %2109 = vmatprep.subr.bf16.mxu0 0
      %2110 = vmatpush1.bf16.msra.mxu0 0
      %2111 = vmatprep.subr.bf16.mxu0 0
      %2112 = vmatpush1.bf16.msra.mxu0 0
      %2113 = vmatprep.subr.bf16.mxu0 0
      %2114 = vmatpush1.bf16.msra.mxu0 0
      %2115 = vmatprep.subr.bf16.mxu0 0
      %2116 = vmatpush1.bf16.msra.mxu0 0
      %2117 = vmatprep.subr.bf16.mxu0 0
      %2118 = vmatpush1.bf16.msra.mxu0 0
      %2119 = vmatprep.subr.bf16.mxu0 0
      %2120 = vmatpush1.bf16.msra.mxu0 0
      %2121 = vmatprep.subr.bf16.mxu0 0
      %2122 = vmatpush1.bf16.msra.mxu0 0
      %2123 = vmatprep.subr.bf16.mxu0 0
      %2124 = vmatpush1.bf16.msra.mxu0 0
      %2125 = vmatprep.subr.bf16.mxu0 0
      %2126 = vmatpush1.bf16.msra.mxu0 0
      %2127 = vmatprep.mubr.bf16.mxu0 0
      %2128 = vmatmul.mubr.bf16.gmra.mrb[0].mxu0 %v2084
      %v2129 = vpop.f32.mrb[0].mxu0
      %v2130 = vadd.f32 0.0, %v2129
      %v2131 = vpop.f32.mrb[0].mxu0
      %v2132 = vadd.f32 0.0, %v2131
      %v2133 = vpop.f32.mrb[0].mxu0
      %v2134 = vadd.f32 0.0, %v2133
      %v2135 = vpop.f32.mrb[0].mxu0
      %v2136 = vadd.f32 0.0, %v2135
      %2137 = vdwg.mxu0
      %2138 = vmatprep.subr.bf16.mxu0 0
      %2139 = vmatpush1.bf16.msra.mxu0 %v2093
      %2140 = vmatprep.subr.bf16.mxu0 0
      %2141 = vmatpush1.bf16.msra.mxu0 0
      %2142 = vmatprep.subr.bf16.mxu0 0
      %2143 = vmatpush1.bf16.msra.mxu0 0
      %2144 = vmatprep.subr.bf16.mxu0 0
      %2145 = vmatpush1.bf16.msra.mxu0 0
      %2146 = vmatprep.subr.bf16.mxu0 0
      %2147 = vmatpush1.bf16.msra.mxu0 0
      %2148 = vmatprep.subr.bf16.mxu0 0
      %2149 = vmatpush1.bf16.msra.mxu0 0
      %2150 = vmatprep.subr.bf16.mxu0 0
      %2151 = vmatpush1.bf16.msra.mxu0 0
      %2152 = vmatprep.subr.bf16.mxu0 0
      %2153 = vmatpush1.bf16.msra.mxu0 0
      %2154 = vmatprep.subr.bf16.mxu0 0
      %2155 = vmatpush1.bf16.msra.mxu0 0
      %2156 = vmatprep.subr.bf16.mxu0 0
      %2157 = vmatpush1.bf16.msra.mxu0 0
      %2158 = vmatprep.subr.bf16.mxu0 0
      %2159 = vmatpush1.bf16.msra.mxu0 0
      %2160 = vmatprep.subr.bf16.mxu0 0
      %2161 = vmatpush1.bf16.msra.mxu0 0
      %2162 = vmatprep.subr.bf16.mxu0 0
      %2163 = vmatpush1.bf16.msra.mxu0 0
      %2164 = vmatprep.subr.bf16.mxu0 0
      %2165 = vmatpush1.bf16.msra.mxu0 0
      %2166 = vmatprep.subr.bf16.mxu0 0
      %2167 = vmatpush1.bf16.msra.mxu0 0
      %2168 = vmatprep.subr.bf16.mxu0 0
      %2169 = vmatpush1.bf16.msra.mxu0 0
      %2170 = vmatprep.mubr.bf16.mxu0 0
      %2171 = vmatmul.mubr.bf16.gmra.mrb[0].mxu0 %v2084
      %v2172 = vpop.f32.mrb[0].mxu0
      %v2173 = vadd.f32 0.0, %v2172
      %v2174 = vpop.f32.mrb[0].mxu0
      %v2175 = vpop.f32.mrb[0].mxu0
      %v2176 = vadd.f32 0.0, %v2175
      %v2177 = vpop.f32.mrb[0].mxu0
      %2178 = vdwg.mxu0
      %v2179 = vadd.f32 %v2047, %v2130
      %v2180 = vadd.f32 %v2048, %v2132
      %v2181 = vadd.f32 %v2049, %v2173
      %v2182 = vadd.f32 %v2050, %v2134
      %v2183 = vadd.f32 %v2051, %v2136
      %v2184 = vadd.f32 %v2052, %v2176
      %2185 = vrot.lane.b32.xlu0 %v1151, 109
      %v2186 = vpop.permute.xlu0 %2185
      %2187 = vrot.lane.b32.xlu0 %v1154, 109
      %v2188 = vpop.permute.xlu0 %2187
      %2189 = vrot.lane.b32.xlu0 %v1152, 109
      %v2190 = vpop.permute.xlu0 %2189
      %2191 = vrot.lane.b32.xlu0 %v1155, 109
      %v2192 = vpop.permute.xlu0 %2191
      %2193 = vrot.lane.b32.xlu0 %v1153, 109
      %v2194 = vpop.permute.xlu0 %2193
      %2195 = vrot.lane.b32.xlu0 %v1156, 109
      %v2196 = vpop.permute.xlu0 %2195
      %vm2197 = vcmp.lt.s32.totalorder %v1176, 109
      %v2198 = vsel %vm2197, %v2190, %v2194
      %v2199 = vsel %vm2197, %v2192, %v2196
      %v2200 = vsel %vm2197, %v2186, %v2190
      %v2201 = vsel %vm2197, %v2188, %v2192
      %v2202 = vsel %vm2197, %v2194, %v2186
      %v2203 = vsel %vm2197, %v2196, %v2188
      %v2204 = vpack.c.bf16 %v2201, %v2200
      %v2205 = vpack.c.bf16 %v2199, %v2198
      %v2206 = vpack.c.bf16 %v2203, %v2202
      %s2207 = scalar_lea.vmem %s11, 64
      %v2208 = vld [vmem:[%s2207] sm:$0xf]
      %v2209 = vld [vmem:[%s2207 + $0x4] sm:$0x3]
      %v2212 = vunpack.c.l.b16 %v2208
      %v2213 = vunpack.c.l.b16 %v2209
      %v2214 = vpack.c.b16 %v2213, %v2212
      %v2216 = vsel %vm1194, %v2214, 0
      %v2219 = vsel %vm1198, %v2204, 0
      %v2222 = vsel %vm1198, %v2205, 0
      %v2225 = vsel %vm1198, %v2206, 0
      %2227 = vmatprep.subr.bf16.mxu0 %v2222
      %2228 = vmatpush1.bf16.msra.mxu0 %v2219
      %2229 = vmatprep.subr.bf16.mxu0 0
      %2230 = vmatpush1.bf16.msra.mxu0 0
      %2231 = vmatprep.subr.bf16.mxu0 0
      %2232 = vmatpush1.bf16.msra.mxu0 0
      %2233 = vmatprep.subr.bf16.mxu0 0
      %2234 = vmatpush1.bf16.msra.mxu0 0
      %2235 = vmatprep.subr.bf16.mxu0 0
      %2236 = vmatpush1.bf16.msra.mxu0 0
      %2237 = vmatprep.subr.bf16.mxu0 0
      %2238 = vmatpush1.bf16.msra.mxu0 0
      %2239 = vmatprep.subr.bf16.mxu0 0
      %2240 = vmatpush1.bf16.msra.mxu0 0
      %2241 = vmatprep.subr.bf16.mxu0 0
      %2242 = vmatpush1.bf16.msra.mxu0 0
      %2243 = vmatprep.subr.bf16.mxu0 0
      %2244 = vmatpush1.bf16.msra.mxu0 0
      %2245 = vmatprep.subr.bf16.mxu0 0
      %2246 = vmatpush1.bf16.msra.mxu0 0
      %2247 = vmatprep.subr.bf16.mxu0 0
      %2248 = vmatpush1.bf16.msra.mxu0 0
      %2249 = vmatprep.subr.bf16.mxu0 0
      %2250 = vmatpush1.bf16.msra.mxu0 0
      %2251 = vmatprep.subr.bf16.mxu0 0
      %2252 = vmatpush1.bf16.msra.mxu0 0
      %2253 = vmatprep.subr.bf16.mxu0 0
      %2254 = vmatpush1.bf16.msra.mxu0 0
      %2255 = vmatprep.subr.bf16.mxu0 0
      %2256 = vmatpush1.bf16.msra.mxu0 0
      %2257 = vmatprep.subr.bf16.mxu0 0
      %2258 = vmatpush1.bf16.msra.mxu0 0
      %2259 = vmatprep.mubr.bf16.mxu0 0
      %2260 = vmatmul.mubr.bf16.gmra.mrb[0].mxu0 %v2216
      %v2261 = vpop.f32.mrb[0].mxu0
      %v2262 = vadd.f32 0.0, %v2261
      %v2263 = vpop.f32.mrb[0].mxu0
      %v2264 = vadd.f32 0.0, %v2263
      %v2265 = vpop.f32.mrb[0].mxu0
      %v2266 = vadd.f32 0.0, %v2265
      %v2267 = vpop.f32.mrb[0].mxu0
      %v2268 = vadd.f32 0.0, %v2267
      %2269 = vdwg.mxu0
      %2270 = vmatprep.subr.bf16.mxu0 0
      %2271 = vmatpush1.bf16.msra.mxu0 %v2225
      %2272 = vmatprep.subr.bf16.mxu0 0
      %2273 = vmatpush1.bf16.msra.mxu0 0
      %2274 = vmatprep.subr.bf16.mxu0 0
      %2275 = vmatpush1.bf16.msra.mxu0 0
      %2276 = vmatprep.subr.bf16.mxu0 0
      %2277 = vmatpush1.bf16.msra.mxu0 0
      %2278 = vmatprep.subr.bf16.mxu0 0
      %2279 = vmatpush1.bf16.msra.mxu0 0
      %2280 = vmatprep.subr.bf16.mxu0 0
      %2281 = vmatpush1.bf16.msra.mxu0 0
      %2282 = vmatprep.subr.bf16.mxu0 0
      %2283 = vmatpush1.bf16.msra.mxu0 0
      %2284 = vmatprep.subr.bf16.mxu0 0
      %2285 = vmatpush1.bf16.msra.mxu0 0
      %2286 = vmatprep.subr.bf16.mxu0 0
      %2287 = vmatpush1.bf16.msra.mxu0 0
      %2288 = vmatprep.subr.bf16.mxu0 0
      %2289 = vmatpush1.bf16.msra.mxu0 0
      %2290 = vmatprep.subr.bf16.mxu0 0
      %2291 = vmatpush1.bf16.msra.mxu0 0
      %2292 = vmatprep.subr.bf16.mxu0 0
      %2293 = vmatpush1.bf16.msra.mxu0 0
      %2294 = vmatprep.subr.bf16.mxu0 0
      %2295 = vmatpush1.bf16.msra.mxu0 0
      %2296 = vmatprep.subr.bf16.mxu0 0
      %2297 = vmatpush1.bf16.msra.mxu0 0
      %2298 = vmatprep.subr.bf16.mxu0 0
      %2299 = vmatpush1.bf16.msra.mxu0 0
      %2300 = vmatprep.subr.bf16.mxu0 0
      %2301 = vmatpush1.bf16.msra.mxu0 0
      %2302 = vmatprep.mubr.bf16.mxu0 0
      %2303 = vmatmul.mubr.bf16.gmra.mrb[0].mxu0 %v2216
      %v2304 = vpop.f32.mrb[0].mxu0
      %v2305 = vadd.f32 0.0, %v2304
      %v2306 = vpop.f32.mrb[0].mxu0
      %v2307 = vpop.f32.mrb[0].mxu0
      %v2308 = vadd.f32 0.0, %v2307
      %v2309 = vpop.f32.mrb[0].mxu0
      %2310 = vdwg.mxu0
      %v2311 = vadd.f32 %v2179, %v2262
      %v2312 = vadd.f32 %v2180, %v2264
      %v2313 = vadd.f32 %v2181, %v2305
      %v2314 = vadd.f32 %v2182, %v2266
      %v2315 = vadd.f32 %v2183, %v2268
      %v2316 = vadd.f32 %v2184, %v2308
      %2317 = vset.pattern.permute.xlu0 4
      %2318 = vperm.xlu0 %2317, %v546
      %v2319 = vpop.permute.xlu0 %2318
      %2321 = vset.pattern.permute.xlu0 4
      %2322 = vperm.xlu0 %2321, %v547
      %v2323 = vpop.permute.xlu0 %2322
      %v2325 = vmul.f32 %v2311, %v2319
      %v2326 = vmul.f32 %v2312, %v2319
      %v2327 = vmul.f32 %v2313, %v2319
      %v2328 = vmul.f32 %v2314, %v2323
      %v2329 = vmul.f32 %v2315, %v2323
      %v2330 = vmul.f32 %v2316, %v2323
      %2331 = vset.pattern.permute.xlu0 5
      %2332 = vperm.xlu0 %2331, %v546
      %v2333 = vpop.permute.xlu0 %2332
      %2335 = vset.pattern.permute.xlu0 5
      %2336 = vperm.xlu0 %2335, %v547
      %v2337 = vpop.permute.xlu0 %2336
      %v2339 = vadd.f32 %v2325, %v2333
      %v2340 = vadd.f32 %v2326, %v2333
      %v2341 = vadd.f32 %v2327, %v2333
      %v2342 = vadd.f32 %v2328, %v2337
      %v2343 = vadd.f32 %v2329, %v2337
      %v2344 = vadd.f32 %v2330, %v2337
      %v2345 = vmax.f32 %v2339, 0.0
      %v2346 = vmax.f32 %v2340, 0.0
      %v2347 = vmax.f32 %v2341, 0.0
      %v2348 = vmax.f32 %v2342, 0.0
      %v2349 = vmax.f32 %v2343, 0.0
      %v2350 = vmax.f32 %v2344, 0.0
      %v2351 = vpack.c.bf16 %v2348, %v2345
      %v2352 = vpack.c.bf16 %v2349, %v2346
      %v2353 = vpack.c.bf16 %v2350, %v2347
      %v2354 = vld [vmem:[%s13] sm:$0xf]
      %v2356 = vcombine.high %v831, %v831
      %v2358 = vpack.c.bf16 %v831, %v831
      %v2359 = vpack.c.bf16 %v2356, %v2356
      %v2360 = vpack.c.bf16 %v832, %v832
      %v2361 = vld [vmem:[%s14] sm:$0xf]
      %v2363 = vsel %vm564, %v2361, 0
      %2365 = vmatprep.subr.bf16.mxu0 %v573
      %2366 = vmatpush1.bf16.msra.mxu0 %v570
      %2367 = vmatprep.subr.bf16.mxu0 0
      %2368 = vmatpush1.bf16.msra.mxu0 0
      %2369 = vmatprep.subr.bf16.mxu0 0
      %2370 = vmatpush1.bf16.msra.mxu0 0
      %2371 = vmatprep.subr.bf16.mxu0 0
      %2372 = vmatpush1.bf16.msra.mxu0 0
      %2373 = vmatprep.subr.bf16.mxu0 0
      %2374 = vmatpush1.bf16.msra.mxu0 0
      %2375 = vmatprep.subr.bf16.mxu0 0
      %2376 = vmatpush1.bf16.msra.mxu0 0
      %2377 = vmatprep.subr.bf16.mxu0 0
      %2378 = vmatpush1.bf16.msra.mxu0 0
      %2379 = vmatprep.subr.bf16.mxu0 0
      %2380 = vmatpush1.bf16.msra.mxu0 0
      %2381 = vmatprep.subr.bf16.mxu0 0
      %2382 = vmatpush1.bf16.msra.mxu0 0
      %2383 = vmatprep.subr.bf16.mxu0 0
      %2384 = vmatpush1.bf16.msra.mxu0 0
      %2385 = vmatprep.subr.bf16.mxu0 0
      %2386 = vmatpush1.bf16.msra.mxu0 0
      %2387 = vmatprep.subr.bf16.mxu0 0
      %2388 = vmatpush1.bf16.msra.mxu0 0
      %2389 = vmatprep.subr.bf16.mxu0 0
      %2390 = vmatpush1.bf16.msra.mxu0 0
      %2391 = vmatprep.subr.bf16.mxu0 0
      %2392 = vmatpush1.bf16.msra.mxu0 0
      %2393 = vmatprep.subr.bf16.mxu0 0
      %2394 = vmatpush1.bf16.msra.mxu0 0
      %2395 = vmatprep.subr.bf16.mxu0 0
      %2396 = vmatpush1.bf16.msra.mxu0 0
      %2397 = vmatprep.mubr.bf16.mxu0 0
      %2398 = vmatmul.mubr.bf16.gmra.mrb[0].mxu0 %v2363
      %v2399 = vpop.f32.mrb[0].mxu0
      %v2400 = vadd.f32 0.0, %v2399
      %v2401 = vpop.f32.mrb[0].mxu0
      %v2402 = vadd.f32 0.0, %v2401
      %v2403 = vpop.f32.mrb[0].mxu0
      %v2404 = vpop.f32.mrb[0].mxu0
      %2405 = vdwg.mxu0
      %2406 = vmatprep.subr.bf16.mxu0 0
      %2407 = vmatpush1.bf16.msra.mxu0 %v576
      %2408 = vmatprep.subr.bf16.mxu0 0
      %2409 = vmatpush1.bf16.msra.mxu0 0
      %2410 = vmatprep.subr.bf16.mxu0 0
      %2411 = vmatpush1.bf16.msra.mxu0 0
      %2412 = vmatprep.subr.bf16.mxu0 0
      %2413 = vmatpush1.bf16.msra.mxu0 0
      %2414 = vmatprep.subr.bf16.mxu0 0
      %2415 = vmatpush1.bf16.msra.mxu0 0
      %2416 = vmatprep.subr.bf16.mxu0 0
      %2417 = vmatpush1.bf16.msra.mxu0 0
      %2418 = vmatprep.subr.bf16.mxu0 0
      %2419 = vmatpush1.bf16.msra.mxu0 0
      %2420 = vmatprep.subr.bf16.mxu0 0
      %2421 = vmatpush1.bf16.msra.mxu0 0
      %2422 = vmatprep.subr.bf16.mxu0 0
      %2423 = vmatpush1.bf16.msra.mxu0 0
      %2424 = vmatprep.subr.bf16.mxu0 0
      %2425 = vmatpush1.bf16.msra.mxu0 0
      %2426 = vmatprep.subr.bf16.mxu0 0
      %2427 = vmatpush1.bf16.msra.mxu0 0
      %2428 = vmatprep.subr.bf16.mxu0 0
      %2429 = vmatpush1.bf16.msra.mxu0 0
      %2430 = vmatprep.subr.bf16.mxu0 0
      %2431 = vmatpush1.bf16.msra.mxu0 0
      %2432 = vmatprep.subr.bf16.mxu0 0
      %2433 = vmatpush1.bf16.msra.mxu0 0
      %2434 = vmatprep.subr.bf16.mxu0 0
      %2435 = vmatpush1.bf16.msra.mxu0 0
      %2436 = vmatprep.subr.bf16.mxu0 0
      %2437 = vmatpush1.bf16.msra.mxu0 0
      %2438 = vmatprep.mubr.bf16.mxu0 0
      %2439 = vmatmul.mubr.bf16.gmra.mrb[0].mxu0 %v2363
      %v2440 = vpop.f32.mrb[0].mxu0
      %v2441 = vadd.f32 0.0, %v2440
      %v2442 = vpop.f32.mrb[0].mxu0
      %v2443 = vpop.f32.mrb[0].mxu0
      %v2444 = vpop.f32.mrb[0].mxu0
      %2445 = vdwg.mxu0
      %v2447 = vsel %vm659, %v2354, 0
      %v2450 = vsel %vm663, %v2358, 0
      %v2453 = vsel %vm663, %v2359, 0
      %v2456 = vsel %vm663, %v2360, 0
      %2458 = vmatprep.subr.bf16.mxu0 %v2453
      %2459 = vmatpush1.bf16.msra.mxu0 %v2450
      %2460 = vmatprep.subr.bf16.mxu0 0
      %2461 = vmatpush1.bf16.msra.mxu0 0
      %2462 = vmatprep.subr.bf16.mxu0 0
      %2463 = vmatpush1.bf16.msra.mxu0 0
      %2464 = vmatprep.subr.bf16.mxu0 0
      %2465 = vmatpush1.bf16.msra.mxu0 0
      %2466 = vmatprep.subr.bf16.mxu0 0
      %2467 = vmatpush1.bf16.msra.mxu0 0
      %2468 = vmatprep.subr.bf16.mxu0 0
      %2469 = vmatpush1.bf16.msra.mxu0 0
      %2470 = vmatprep.subr.bf16.mxu0 0
      %2471 = vmatpush1.bf16.msra.mxu0 0
      %2472 = vmatprep.subr.bf16.mxu0 0
      %2473 = vmatpush1.bf16.msra.mxu0 0
      %2474 = vmatprep.subr.bf16.mxu0 0
      %2475 = vmatpush1.bf16.msra.mxu0 0
      %2476 = vmatprep.subr.bf16.mxu0 0
      %2477 = vmatpush1.bf16.msra.mxu0 0
      %2478 = vmatprep.subr.bf16.mxu0 0
      %2479 = vmatpush1.bf16.msra.mxu0 0
      %2480 = vmatprep.subr.bf16.mxu0 0
      %2481 = vmatpush1.bf16.msra.mxu0 0
      %2482 = vmatprep.subr.bf16.mxu0 0
      %2483 = vmatpush1.bf16.msra.mxu0 0
      %2484 = vmatprep.subr.bf16.mxu0 0
      %2485 = vmatpush1.bf16.msra.mxu0 0
      %2486 = vmatprep.subr.bf16.mxu0 0
      %2487 = vmatpush1.bf16.msra.mxu0 0
      %2488 = vmatprep.subr.bf16.mxu0 0
      %2489 = vmatpush1.bf16.msra.mxu0 0
      %2490 = vmatprep.mubr.bf16.mxu0 0
      %2491 = vmatmul.mubr.bf16.gmra.mrb[0].mxu0 %v2447
      %v2492 = vpop.f32.mrb[0].mxu0
      %v2493 = vadd.f32 %v2400, %v2492
      %v2494 = vpop.f32.mrb[0].mxu0
      %v2495 = vadd.f32 %v2402, %v2494
      %v2496 = vpop.f32.mrb[0].mxu0
      %v2497 = vpop.f32.mrb[0].mxu0
      %2498 = vdwg.mxu0
      %2499 = vmatprep.subr.bf16.mxu0 0
      %2500 = vmatpush1.bf16.msra.mxu0 %v2456
      %2501 = vmatprep.subr.bf16.mxu0 0
      %2502 = vmatpush1.bf16.msra.mxu0 0
      %2503 = vmatprep.subr.bf16.mxu0 0
      %2504 = vmatpush1.bf16.msra.mxu0 0
      %2505 = vmatprep.subr.bf16.mxu0 0
      %2506 = vmatpush1.bf16.msra.mxu0 0
      %2507 = vmatprep.subr.bf16.mxu0 0
      %2508 = vmatpush1.bf16.msra.mxu0 0
      %2509 = vmatprep.subr.bf16.mxu0 0
      %2510 = vmatpush1.bf16.msra.mxu0 0
      %2511 = vmatprep.subr.bf16.mxu0 0
      %2512 = vmatpush1.bf16.msra.mxu0 0
      %2513 = vmatprep.subr.bf16.mxu0 0
      %2514 = vmatpush1.bf16.msra.mxu0 0
      %2515 = vmatprep.subr.bf16.mxu0 0
      %2516 = vmatpush1.bf16.msra.mxu0 0
      %2517 = vmatprep.subr.bf16.mxu0 0
      %2518 = vmatpush1.bf16.msra.mxu0 0
      %2519 = vmatprep.subr.bf16.mxu0 0
      %2520 = vmatpush1.bf16.msra.mxu0 0
      %2521 = vmatprep.subr.bf16.mxu0 0
      %2522 = vmatpush1.bf16.msra.mxu0 0
      %2523 = vmatprep.subr.bf16.mxu0 0
      %2524 = vmatpush1.bf16.msra.mxu0 0
      %2525 = vmatprep.subr.bf16.mxu0 0
      %2526 = vmatpush1.bf16.msra.mxu0 0
      %2527 = vmatprep.subr.bf16.mxu0 0
      %2528 = vmatpush1.bf16.msra.mxu0 0
      %2529 = vmatprep.subr.bf16.mxu0 0
      %2530 = vmatpush1.bf16.msra.mxu0 0
      %2531 = vmatprep.mubr.bf16.mxu0 0
      %2532 = vmatmul.mubr.bf16.gmra.mrb[0].mxu0 %v2447
      %v2533 = vpop.f32.mrb[0].mxu0
      %v2534 = vadd.f32 %v2441, %v2533
      %v2535 = vpop.f32.mrb[0].mxu0
      %v2536 = vpop.f32.mrb[0].mxu0
      %v2537 = vpop.f32.mrb[0].mxu0
      %2538 = vdwg.mxu0
      %v2539 = vld [vmem:[%s12] sm:$0xf]
      %v2540 = vld [vmem:[%s15] sm:$0xff]
      %2542 = vset.pattern.permute.xlu0 0
      %2543 = vperm.xlu0 %2542, %v2540
      %v2544 = vpop.permute.xlu0 %2543
      %v2547 = vsel %vm1194, %v2539, 0
      %v2550 = vsel %vm1198, %v2351, 0
      %v2553 = vsel %vm1198, %v2352, 0
      %v2556 = vsel %vm1198, %v2353, 0
      %2558 = vmatprep.subr.bf16.mxu0 %v2553
      %2559 = vmatpush1.bf16.msra.mxu0 %v2550
      %2560 = vmatprep.subr.bf16.mxu0 0
      %2561 = vmatpush1.bf16.msra.mxu0 0
      %2562 = vmatprep.subr.bf16.mxu0 0
      %2563 = vmatpush1.bf16.msra.mxu0 0
      %2564 = vmatprep.subr.bf16.mxu0 0
      %2565 = vmatpush1.bf16.msra.mxu0 0
      %2566 = vmatprep.subr.bf16.mxu0 0
      %2567 = vmatpush1.bf16.msra.mxu0 0
      %2568 = vmatprep.subr.bf16.mxu0 0
      %2569 = vmatpush1.bf16.msra.mxu0 0
      %2570 = vmatprep.subr.bf16.mxu0 0
      %2571 = vmatpush1.bf16.msra.mxu0 0
      %2572 = vmatprep.subr.bf16.mxu0 0
      %2573 = vmatpush1.bf16.msra.mxu0 0
      %2574 = vmatprep.subr.bf16.mxu0 0
      %2575 = vmatpush1.bf16.msra.mxu0 0
      %2576 = vmatprep.subr.bf16.mxu0 0
      %2577 = vmatpush1.bf16.msra.mxu0 0
      %2578 = vmatprep.subr.bf16.mxu0 0
      %2579 = vmatpush1.bf16.msra.mxu0 0
      %2580 = vmatprep.subr.bf16.mxu0 0
      %2581 = vmatpush1.bf16.msra.mxu0 0
      %2582 = vmatprep.subr.bf16.mxu0 0
      %2583 = vmatpush1.bf16.msra.mxu0 0
      %2584 = vmatprep.subr.bf16.mxu0 0
      %2585 = vmatpush1.bf16.msra.mxu0 0
      %2586 = vmatprep.subr.bf16.mxu0 0
      %2587 = vmatpush1.bf16.msra.mxu0 0
      %2588 = vmatprep.subr.bf16.mxu0 0
      %2589 = vmatpush1.bf16.msra.mxu0 0
      %2590 = vmatprep.mubr.bf16.mxu0 0
      %2591 = vmatmul.mubr.bf16.gmra.mrb[0].mxu0 %v2547
      %v2592 = vpop.f32.mrb[0].mxu0
      %v2593 = vadd.f32 %v2544, %v2592
      %v2594 = vpop.f32.mrb[0].mxu0
      %v2595 = vadd.f32 %v2544, %v2594
      %v2596 = vpop.f32.mrb[0].mxu0
      %v2597 = vpop.f32.mrb[0].mxu0
      %2598 = vdwg.mxu0
      %2599 = vmatprep.subr.bf16.mxu0 0
      %2600 = vmatpush1.bf16.msra.mxu0 %v2556
      %2601 = vmatprep.subr.bf16.mxu0 0
      %2602 = vmatpush1.bf16.msra.mxu0 0
      %2603 = vmatprep.subr.bf16.mxu0 0
      %2604 = vmatpush1.bf16.msra.mxu0 0
      %2605 = vmatprep.subr.bf16.mxu0 0
      %2606 = vmatpush1.bf16.msra.mxu0 0
      %2607 = vmatprep.subr.bf16.mxu0 0
      %2608 = vmatpush1.bf16.msra.mxu0 0
      %2609 = vmatprep.subr.bf16.mxu0 0
      %2610 = vmatpush1.bf16.msra.mxu0 0
      %2611 = vmatprep.subr.bf16.mxu0 0
      %2612 = vmatpush1.bf16.msra.mxu0 0
      %2613 = vmatprep.subr.bf16.mxu0 0
      %2614 = vmatpush1.bf16.msra.mxu0 0
      %2615 = vmatprep.subr.bf16.mxu0 0
      %2616 = vmatpush1.bf16.msra.mxu0 0
      %2617 = vmatprep.subr.bf16.mxu0 0
      %2618 = vmatpush1.bf16.msra.mxu0 0
      %2619 = vmatprep.subr.bf16.mxu0 0
      %2620 = vmatpush1.bf16.msra.mxu0 0
      %2621 = vmatprep.subr.bf16.mxu0 0
      %2622 = vmatpush1.bf16.msra.mxu0 0
      %2623 = vmatprep.subr.bf16.mxu0 0
      %2624 = vmatpush1.bf16.msra.mxu0 0
      %2625 = vmatprep.subr.bf16.mxu0 0
      %2626 = vmatpush1.bf16.msra.mxu0 0
      %2627 = vmatprep.subr.bf16.mxu0 0
      %2628 = vmatpush1.bf16.msra.mxu0 0
      %2629 = vmatprep.subr.bf16.mxu0 0
      %2630 = vmatpush1.bf16.msra.mxu0 0
      %2631 = vmatprep.mubr.bf16.mxu0 0
      %2632 = vmatmul.mubr.bf16.gmra.mrb[0].mxu0 %v2547
      %v2633 = vpop.f32.mrb[0].mxu0
      %v2634 = vadd.f32 %v2544, %v2633
      %v2635 = vpop.f32.mrb[0].mxu0
      %v2636 = vpop.f32.mrb[0].mxu0
      %v2637 = vpop.f32.mrb[0].mxu0
      %2638 = vdwg.mxu0
      %v2639 = vadd.f32 %v2593, %v2493
      %v2640 = vadd.f32 %v2595, %v2495
      %v2641 = vadd.f32 %v2634, %v2534
      %v2642 = vmul.f32 %v2639, %v1139
      %v2643 = vmul.f32 %v2640, %v1143
      %v2644 = vmul.f32 %v2641, %v1147
      %2645 = vst [vmem:[%s543] sm:$0xff] %v2642
      %2646 = vst [vmem:[%s543 + $0x8] sm:$0xff] %v2643
      %2647 = vst [vmem:[%s543 + $0x10] sm:$0xff] %v2644
      %p2648 = scmp.lt.s32.totalorder %s29, 1
      %s2649 = scalar_select %p2648, %s29, 1
      %s2650 = smul.addr %s2649, 3
      %s2651 = smul.addr %s2650, 8
      %s2652 = scalar_lea.vmem %s16, %s2651
      // Predicated region
      $region85: #{upstack_forward.4} parent=83 // pred_check
        %p2653 = pneg %p393
      $region86: #{upstack_forward.4} parent=83 // pred_check_branch
        %2655 = sbr.rel (%p2653) target = $region88
      $region87: #{upstack_forward.4} parent=83 // pred_region
        _
      $region88: #{upstack_forward.4} parent=83 // pred_fallthru
        _
    $region84: #{upstack_forward.4} parent=5 // pred_fallthru
      _
    %p2656 = scmp.le.s32.totalorder 2, %s24
    // Predicated region
    $region89: #{upstack_forward.4} parent=5 // pred_check
      %p2657 = pneg %p2656
    $region90: #{upstack_forward.4} parent=5 // pred_check_branch
      %2659 = sbr.rel (%p2657) target = $region92
    $region91: #{upstack_forward.4} parent=5 // pred_region
      %s2660 = ssub.s32 %s24, 2
      // Predicated region
      $region93: #{upstack_forward.4} parent=91 // pred_check
        %p2661 = pneg %p399
      $region94: #{upstack_forward.4} parent=91 // pred_check_branch
        %2663 = sbr.rel (%p2661) target = $region96
      $region95: #{upstack_forward.4} parent=91 // pred_region
        %p2664 = scmp.lt.s32.totalorder %s30, 1
        %s2665 = scalar_select %p2664, %s30, 1
        %s2666 = smul.addr %s2665, 3
        %s2667 = smul.addr %s2666, 8
        %s2668 = scalar_lea.vmem %s16, %s2667
      $region96: #{upstack_forward.4} parent=91 // pred_fallthru
        _
    $region92: #{upstack_forward.4} parent=5 // pred_fallthru
      _
  $region6: #{upstack_forward.4} parent=0 // loop_footer
    %s28 = sadd.s32 1, %s24
  $region7: #{upstack_forward.4} parent=0 // loop_footer_branch
    %23 = sbr.rel target = $region3
  $region8: #{upstack_forward.4} parent=0 // loop_exit
    _

</llo_original>
